<compile_context>
chip_gen: v7x
topology: tpu7x:2x2x1
jax: 0.10.0
libtpu: 0.0.40
codegen_flags: <defaults>
</compile_context>

<pallas_src>
import functools

import numpy as np
import jax
import jax.numpy as jnp
from jax.experimental import pallas as pl
from jax.experimental.pallas import tpu as pltpu

# ---------------------------------------------------------------------------
# Config (mirrors the PyTorch `configs` object)
# ---------------------------------------------------------------------------
SEQ_LEN = 12
PRED_LEN = 4
D_MODEL = 16
D_FF = 32
TOP_K = 2
NUM_KERNELS = 3                     # Inception kernel sizes 1, 3, 5
KMAX = 2 * NUM_KERNELS - 1          # folded conv kernel size (5)
LANES = 128


def _round_up(x, m):
    return (x + m - 1) // m * m


def _gelu_erf(x):
    # PyTorch nn.GELU() default = exact erf GELU.  Abramowitz & Stegun 7.1.26
    # rational approximation (max abs err ~1.5e-7); avoids relying on lax.erf
    # lowering inside Mosaic.
    a1, a2, a3, a4, a5 = 0.254829592, -0.284496736, 1.421413741, -1.453152027, 1.061405429
    p = 0.3275911
    z = x * 0.7071067811865476
    s = jnp.where(z >= 0.0, 1.0, -1.0)
    az = jnp.abs(z)
    t = 1.0 / (1.0 + p * az)
    poly = ((((a5 * t + a4) * t + a3) * t + a2) * t + a1) * t
    erf = s * (1.0 - poly * jnp.exp(-az * az))
    return 0.5 * x * (1.0 + erf)


# ---------------------------------------------------------------------------
# Fused Pallas kernel: k x (Inception conv -> GELU -> Inception conv)
#                      + softmax-weighted combine + residual, per batch element.
# ---------------------------------------------------------------------------
def _timesblock_kernel(pw_ref, x_ref, w1_ref, b1_ref, w2_ref, b2_ref, o_ref,
                       tbuf, hbuf, im1, im2, *,
                       periods, lengths, T, C, F, K, P, R, padL, Lbuf):
    f32 = jnp.float32
    b = pl.program_id(0)
    kk = K * K
    tpb1 = LANES // C           # conv1 taps packed per 128-lane block
    tpb2 = LANES // F           # conv2 taps packed per 128-lane block

    # ---- stage x (lane padded to 128) into the time buffer; zero the halos ----
    xv = x_ref[0].astype(f32)                                     # [T, C]
    if C < LANES:
        x128 = jnp.concatenate([xv, jnp.zeros((T, LANES - C), f32)], axis=1)
    else:
        x128 = xv
    tbuf[0:padL, :] = jnp.zeros((padL, LANES), f32)
    tbuf[padL:padL + T, :] = x128
    tbuf[padL + T:Lbuf, :] = jnp.zeros((Lbuf - padL - T, LANES), f32)

    # hbuf halos (its data region [padL, padL+R) is fully rewritten every period)
    hbuf[0:padL, :] = jnp.zeros((padL, LANES), f32)
    hbuf[padL + R:Lbuf, :] = jnp.zeros((Lbuf - padL - R, LANES), f32)

    t_iota = jax.lax.broadcasted_iota(jnp.int32, (R, 1), 0)
    acc = x128                                                     # residual [T,128]

    for i, (p, L) in enumerate(zip(periods, lengths)):
        wcol = t_iota % p                 # output column w = t mod period

        def col_mask(dx):
            # valid iff 0 <= (t mod p) + dx - P < p  (no wrap across period rows)
            d = dx - P
            if d == 0:
                return None
            v = wcol + d
            return ((v >= 0) & (v < p)).astype(f32)

        def assemble(src, cin, tpb, dst):
            # im2col: dst column ((j // tpb)*128 + (j % tpb)*cin + c) holds tap
            # j = dy*K+dx, channel c, i.e. masked src[t + (dy-P)*p + (dx-P), c].
            # All loads are full 128-lane, all stores are 128-lane aligned.
            nblk = dst.shape[1] // LANES
            for blk in range(nblk):
                block = jnp.zeros((R, LANES), f32)
                for s in range(tpb):
                    j = blk * tpb + s
                    if j >= kk:
                        break
                    dy, dx = j // K, j % K
                    off = padL + (dy - P) * p + (dx - P)
                    piece = src[off:off + R, :]                    # [R, 128]
                    m = col_mask(dx)
                    if m is not None:
                        piece = piece * m
                    if s > 0:
                        # lanes >= cin of src are exactly zero, so the rotated
                        # pieces never collide when summed.
                        piece = jnp.roll(piece, s * cin, axis=1)
                    block = block + piece
                dst[:, blk * LANES:(blk + 1) * LANES] = block

        # ---- conv1 (folded inception, d_model -> d_ff) + GELU ----
        assemble(tbuf, C, tpb1, im1)
        h = jnp.dot(im1[...], w1_ref[...], preferred_element_type=f32)   # [R,128]
        h = _gelu_erf(h + b1_ref[...])
        if L < R:                                   # rows outside this period image
            h = h * (t_iota < L).astype(f32)
        hbuf[padL:padL + R, :] = h                  # lanes >= F are exactly zero

        # ---- conv2 (folded inception, d_ff -> d_model) ----
        assemble(hbuf, F, tpb2, im2)
        y = jnp.dot(im2[...], w2_ref[...], preferred_element_type=f32)   # [R,128]
        y = y + b2_ref[...]

        acc = acc + pw_ref[b, i] * y[0:T, :]        # softmax-weighted combine

    o_ref[0] = acc


@functools.lru_cache(maxsize=None)
def _build_timesblock(B, T, C, F, periods):
    assert LANES % C == 0 and LANES % F == 0, "d_model / d_ff must divide 128"
    K, P = KMAX, (KMAX - 1) // 2
    lengths = tuple(-(-T // p) * p for p in periods)
    R = _round_up(max(lengths), 8)                  # rows computed per period
    p_max = max(periods)
    padL = _round_up(P * p_max + P, 8)              # zero halo (sublane aligned)
    Lbuf = 2 * padL + R                             # padded time-buffer length
    D1 = -(-K * K // (LANES // C)) * LANES          # im2col width for conv1 (512)
    D2 = -(-K * K // (LANES // F)) * LANES          # im2col width for conv2 (896)

    kernel = functools.partial(
        _timesblock_kernel, periods=periods, lengths=lengths, T=T, C=C, F=F,
        K=K, P=P, R=R, padL=padL, Lbuf=Lbuf)

    call = pl.pallas_call(
        kernel,
        grid=(B,),
        out_shape=jax.ShapeDtypeStruct((B, T, LANES), jnp.float32),
        in_specs=[
            pl.BlockSpec(memory_space=pltpu.MemorySpace.SMEM),      # pw [B, k]
            pl.BlockSpec((1, T, C), lambda g: (g, 0, 0)),           # x  [B, T, C]
            pl.BlockSpec((D1, LANES), lambda g: (0, 0)),            # packed conv1 W
            pl.BlockSpec((1, LANES), lambda g: (0, 0)),             # packed conv1 b
            pl.BlockSpec((D2, LANES), lambda g: (0, 0)),            # packed conv2 W
            pl.BlockSpec((1, LANES), lambda g: (0, 0)),             # packed conv2 b
        ],
        out_specs=pl.BlockSpec((1, T, LANES), lambda g: (g, 0, 0)),
        scratch_shapes=[
            pltpu.VMEM((Lbuf, LANES), jnp.float32),   # time-padded x image
            pltpu.VMEM((Lbuf, LANES), jnp.float32),   # time-padded GELU image
            pltpu.VMEM((R, D1), jnp.float32),         # im2col slab, conv1
            pltpu.VMEM((R, D2), jnp.float32),         # im2col slab, conv2
        ],
        compiler_params=pltpu.CompilerParams(dimension_semantics=("parallel",)),
    )

    @jax.jit
    def run(x, period_weight, w1f, b1f, w2f, b2f):
        pw = jax.nn.softmax(period_weight.astype(jnp.float32), axis=1)
        out = call(pw, x.astype(jnp.float32), w1f, b1f, w2f, b2f)
        return out[:, :, :C]

    return run


# ---------------------------------------------------------------------------
# FFT_for_Period (plain JAX + host: chosen periods define static shapes)
# ---------------------------------------------------------------------------
def fft_for_period(x, k=2):
    xf = jnp.fft.rfft(x, axis=1)
    amp = jnp.abs(xf)                                # [B, T//2+1, N]
    freq = amp.mean(axis=0).mean(axis=-1)
    freq = freq.at[0].set(0.0)
    _, top = jax.lax.top_k(freq, k)
    top_np = np.asarray(jax.device_get(top))
    period = x.shape[1] // np.maximum(top_np, 1)     # guard /0 on flat spectra
    period_weight = amp.mean(axis=-1)[:, top_np]     # [B, k]
    return tuple(int(p) for p in period), period_weight


def timesblock_forward(x, w1f, b1f, w2f, b2f, *, k, d_model, d_ff):
    B, T, N = x.shape
    assert N == d_model
    periods, period_weight = fft_for_period(x, k)
    run = _build_timesblock(B, T, d_model, d_ff, periods)
    return run(x, period_weight, w1f, b1f, w2f, b2f)


# ---------------------------------------------------------------------------
# Parameters: Inception_Block_V1 folded into one KxK conv, then packed into the
# kernel's im2col weight layout.
# ---------------------------------------------------------------------------
def make_inception_params(key, c_in, c_out, num_kernels):
    kmax = 2 * num_kernels - 1
    w_comb = np.zeros((kmax, kmax, c_in, c_out), np.float32)     # HWIO
    b_comb = np.zeros((c_out,), np.float32)
    for i in range(num_kernels):
        ksz = 2 * i + 1
        key, kw, kb = jax.random.split(key, 3)
        w = np.asarray(jax.random.normal(kw, (c_out, c_in, ksz, ksz), jnp.float32)) * 0.05
        bb = np.asarray(jax.random.normal(kb, (c_out,), jnp.float32)) * 0.05
        pad = (kmax - ksz) // 2
        w_comb[pad:pad + ksz, pad:pad + ksz] += np.transpose(w, (2, 3, 1, 0))
        b_comb += bb
    return w_comb / num_kernels, b_comb / num_kernels


def pack_conv_params(w_hwio, b_vec):
    """Row ((j // tpb)*128 + (j % tpb)*c_in + c) of the packed weight holds
    w[dy, dx, c, :] for tap j = dy*K + dx; output channels padded to 128 lanes."""
    K, _, c_in, c_out = w_hwio.shape
    tpb = LANES // c_in
    D = -(-K * K // tpb) * LANES
    wf = np.zeros((D, LANES), np.float32)
    for dy in range(K):
        for dx in range(K):
            j = dy * K + dx
            r0 = (j // tpb) * LANES + (j % tpb) * c_in
            wf[r0:r0 + c_in, :c_out] = w_hwio[dy, dx]
    bf = np.zeros((1, LANES), np.float32)
    bf[0, :c_out] = b_vec
    return jnp.asarray(wf), jnp.asarray(bf)


# ---------------------------------------------------------------------------
# Pure-JAX reference (XLA convs) for a correctness check
# ---------------------------------------------------------------------------
def reference_timesblock(x, w1, b1, w2, b2, periods, period_weight):
    B, T, N = x.shape
    w1j, b1j, w2j, b2j = map(jnp.asarray, (w1, b1, w2, b2))

    def conv(img, w, b):
        out = jax.lax.conv_general_dilated(
            img, w, window_strides=(1, 1), padding="SAME",
            dimension_numbers=("NHWC", "HWIO", "NHWC"),
            precision=jax.lax.Precision.HIGHEST)
        return out + b[None, None, None, :]

    res = []
    for p in periods:
        length = -(-T // p) * p
        xt = x
        if length > T:
            xt = jnp.concatenate([x, jnp.zeros((B, length - T, N), x.dtype)], axis=1)
        img = xt.reshape(B, length // p, p, N)
        h = jax.nn.gelu(conv(img, w1j, b1j), approximate=False)
        y = conv(h, w2j, b2j)
        res.append(y.reshape(B, length, N)[:, :T, :])
    res = jnp.stack(res, axis=0)
    pw = jax.nn.softmax(period_weight, axis=1)
    return x + jnp.einsum("kbtn,bk->btn", res, pw)


if __name__ == "__main__":
    key = jax.random.PRNGKey(0)
    kx, kp1, kp2 = jax.random.split(key, 3)

    B = 2
    T = SEQ_LEN + PRED_LEN
    x = jax.random.normal(kx, (B, T, D_MODEL), jnp.float32)

    w1, b1 = make_inception_params(kp1, D_MODEL, D_FF, NUM_KERNELS)   # d_model -> d_ff
    w2, b2 = make_inception_params(kp2, D_FF, D_MODEL, NUM_KERNELS)   # d_ff -> d_model
    w1f, b1f = pack_conv_params(w1, b1)
    w2f, b2f = pack_conv_params(w2, b2)

    out = timesblock_forward(x, w1f, b1f, w2f, b2f,
                             k=TOP_K, d_model=D_MODEL, d_ff=D_FF)
    out = jax.block_until_ready(out)
    assert out.shape == (B, T, D_MODEL)
    assert bool(jnp.all(jnp.isfinite(out)))

    # correctness check against a pure-JAX reference (loose tol: MXU precision modes)
    periods, period_weight = fft_for_period(x, TOP_K)
    ref = reference_timesblock(x, w1, b1, w2, b2, periods, period_weight)
    err = float(jnp.max(jnp.abs(out - ref)))
    assert err < 5e-2, f"mismatch vs reference: {err}"

    print("KERNEL_OK")
</pallas_src>

<mosaic_0001>
module attributes {stable_mosaic.version = 11 : i64} {
  func.func @_timesblock_kernel(%arg0: i32, %arg1: memref<2x2xf32, #tpu.memory_space<smem>>, %arg2: memref<1x16x16xf32, #tpu.memory_space<vmem>>, %arg3: memref<512x128xf32, #tpu.memory_space<vmem>>, %arg4: memref<1x128xf32, #tpu.memory_space<vmem>>, %arg5: memref<896x128xf32, #tpu.memory_space<vmem>>, %arg6: memref<1x128xf32, #tpu.memory_space<vmem>>, %arg7: memref<1x16x128xf32, #tpu.memory_space<vmem>>, %arg8: memref<56x128xf32, #tpu.memory_space<vmem>>, %arg9: memref<56x128xf32, #tpu.memory_space<vmem>>, %arg10: memref<24x512xf32, #tpu.memory_space<vmem>>, %arg11: memref<24x896xf32, #tpu.memory_space<vmem>>) attributes {dimension_semantics = [#tpu.dimension_semantics<parallel>], iteration_bounds = array<i64: 2>, scalar_prefetch = 0 : i64, scratch_operands = 4 : i64, tpu.core_type = #tpu.core_type<tc>, window_params = [{transform_indices = @transform_0, window_bounds = array<i64: 2, 2>}, {transform_indices = @transform_1, window_bounds = array<i64: 1, 16, 16>}, {pipeline_mode = #tpu.pipeline_mode<synchronous>, transform_indices = @transform_2, window_bounds = array<i64: 512, 128>}, {pipeline_mode = #tpu.pipeline_mode<synchronous>, transform_indices = @transform_3, window_bounds = array<i64: 1, 128>}, {pipeline_mode = #tpu.pipeline_mode<synchronous>, transform_indices = @transform_4, window_bounds = array<i64: 896, 128>}, {pipeline_mode = #tpu.pipeline_mode<synchronous>, transform_indices = @transform_5, window_bounds = array<i64: 1, 128>}, {transform_indices = @transform_6, window_bounds = array<i64: 1, 16, 128>}]} {
    %c0 = arith.constant 0 : index
    %c0_0 = arith.constant 0 : index
    %c0_1 = arith.constant 0 : index
    %0 = vector.load %arg2[%c0, %c0_0, %c0_1] : memref<1x16x16xf32, #tpu.memory_space<vmem>>, vector<1x16x16xf32>
    %1 = vector.shape_cast %0 : vector<1x16x16xf32> to vector<16x16xf32>
    %cst = arith.constant 0.000000e+00 : f32
    %2 = vector.broadcast %cst : f32 to vector<16x112xf32>
    %3 = tpu.concatenate %1, %2 in 1 : vector<16x16xf32>, vector<16x112xf32> -> vector<16x128xf32>
    %cst_2 = arith.constant 0.000000e+00 : f32
    %4 = vector.broadcast %cst_2 : f32 to vector<16x128xf32>
    %c0_3 = arith.constant 0 : index
    %c0_4 = arith.constant 0 : index
    %5 = vector.load %arg8[%c0_3, %c0_4] : memref<56x128xf32, #tpu.memory_space<vmem>>, vector<16x128xf32>
    tpu.vector_store %arg8[%c0_3, %c0_4], %4 {strides = array<i32>} : memref<56x128xf32, #tpu.memory_space<vmem>>, vector<16x128xf32>,
    %c16 = arith.constant 16 : index
    %c0_5 = arith.constant 0 : index
    %6 = vector.load %arg8[%c16, %c0_5] : memref<56x128xf32, #tpu.memory_space<vmem>>, vector<16x128xf32>
    tpu.vector_store %arg8[%c16, %c0_5], %3 {strides = array<i32>} : memref<56x128xf32, #tpu.memory_space<vmem>>, vector<16x128xf32>,
    %cst_6 = arith.constant 0.000000e+00 : f32
    %7 = vector.broadcast %cst_6 : f32 to vector<24x128xf32>
    %c32 = arith.constant 32 : index
    %c0_7 = arith.constant 0 : index
    %8 = vector.load %arg8[%c32, %c0_7] : memref<56x128xf32, #tpu.memory_space<vmem>>, vector<24x128xf32>
    tpu.vector_store %arg8[%c32, %c0_7], %7 {strides = array<i32>} : memref<56x128xf32, #tpu.memory_space<vmem>>, vector<24x128xf32>,
    %cst_8 = arith.constant 0.000000e+00 : f32
    %9 = vector.broadcast %cst_8 : f32 to vector<16x128xf32>
    %c0_9 = arith.constant 0 : index
    %c0_10 = arith.constant 0 : index
    %10 = vector.load %arg9[%c0_9, %c0_10] : memref<56x128xf32, #tpu.memory_space<vmem>>, vector<16x128xf32>
    tpu.vector_store %arg9[%c0_9, %c0_10], %9 {strides = array<i32>} : memref<56x128xf32, #tpu.memory_space<vmem>>, vector<16x128xf32>,
    %cst_11 = arith.constant 0.000000e+00 : f32
    %11 = vector.broadcast %cst_11 : f32 to vector<16x128xf32>
    %c40 = arith.constant 40 : index
    %c0_12 = arith.constant 0 : index
    %12 = vector.load %arg9[%c40, %c0_12] : memref<56x128xf32, #tpu.memory_space<vmem>>, vector<16x128xf32>
    tpu.vector_store %arg9[%c40, %c0_12], %11 {strides = array<i32>} : memref<56x128xf32, #tpu.memory_space<vmem>>, vector<16x128xf32>,
    %13 = tpu.iota {dimensions = array<i32: 0>} : vector<24x1xi32>
    %c2_i32 = arith.constant 2 : i32
    %c0_i32 = arith.constant 0 : i32
    %14 = arith.cmpi eq, %c2_i32, %c0_i32 : i32
    %c1_i32 = arith.constant 1 : i32
    %15 = arith.select %14, %c1_i32, %c2_i32 : i32
    %16 = vector.broadcast %15 : i32 to vector<24x1xi32>
    %17 = arith.remsi %13, %16 : vector<24x1xi32>
    %c0_i32_13 = arith.constant 0 : i32
    %18 = vector.broadcast %c0_i32_13 : i32 to vector<24x1xi32>
    %19 = arith.cmpi ne, %17, %18 : vector<24x1xi32>
    %c0_i32_14 = arith.constant 0 : i32
    %20 = vector.broadcast %c0_i32_14 : i32 to vector<24x1xi32>
    %21 = arith.cmpi slt, %17, %20 : vector<24x1xi32>
    %c0_i32_15 = arith.constant 0 : i32
    %22 = arith.cmpi slt, %15, %c0_i32_15 : i32
    %23 = vector.broadcast %22 : i1 to vector<24x1xi1>
    %24 = vector.broadcast %23 : vector<24x1xi1> to vector<24x1xi1>
    %25 = arith.xori %21, %24 : vector<24x1xi1>
    %26 = arith.andi %25, %19 : vector<24x1xi1>
    %27 = vector.broadcast %15 : i32 to vector<24x1xi32>
    %28 = arith.addi %17, %27 : vector<24x1xi32>
    %29 = arith.select %26, %28, %17 : vector<24x1xi1>, vector<24x1xi32>
    %cst_16 = arith.constant 0.000000e+00 : f32
    %30 = vector.broadcast %cst_16 : f32 to vector<24x128xf32>
    %c10 = arith.constant 10 : index
    %c0_17 = arith.constant 0 : index
    %31 = vector.load %arg8[%c10, %c0_17] : memref<56x128xf32, #tpu.memory_space<vmem>>, vector<24x128xf32>
    %c-2_i32 = arith.constant -2 : i32
    %32 = vector.broadcast %c-2_i32 : i32 to vector<24x1xi32>
    %33 = arith.addi %29, %32 : vector<24x1xi32>
    %c0_i32_18 = arith.constant 0 : i32
    %34 = vector.broadcast %c0_i32_18 : i32 to vector<24x1xi32>
    %35 = arith.cmpi sge, %33, %34 : vector<24x1xi32>
    %c2_i32_19 = arith.constant 2 : i32
    %36 = vector.broadcast %c2_i32_19 : i32 to vector<24x1xi32>
    %37 = arith.cmpi slt, %33, %36 : vector<24x1xi32>
    %38 = arith.andi %35, %37 : vector<24x1xi1>
    %39 = arith.extui %38 : vector<24x1xi1> to vector<24x1xi32>
    %40 = arith.sitofp %39 : vector<24x1xi32> to vector<24x1xf32>
    %41 = vector.broadcast %40 : vector<24x1xf32> to vector<24x128xf32>
    %42 = arith.mulf %31, %41 : vector<24x128xf32>
    %43 = arith.addf %30, %42 : vector<24x128xf32>
    %c11 = arith.constant 11 : index
    %c0_20 = arith.constant 0 : index
    %44 = vector.load %arg8[%c11, %c0_20] : memref<56x128xf32, #tpu.memory_space<vmem>>, vector<24x128xf32>
    %c-1_i32 = arith.constant -1 : i32
    %45 = vector.broadcast %c-1_i32 : i32 to vector<24x1xi32>
    %46 = arith.addi %29, %45 : vector<24x1xi32>
    %c0_i32_21 = arith.constant 0 : i32
    %47 = vector.broadcast %c0_i32_21 : i32 to vector<24x1xi32>
    %48 = arith.cmpi sge, %46, %47 : vector<24x1xi32>
    %c2_i32_22 = arith.constant 2 : i32
    %49 = vector.broadcast %c2_i32_22 : i32 to vector<24x1xi32>
    %50 = arith.cmpi slt, %46, %49 : vector<24x1xi32>
    %51 = arith.andi %48, %50 : vector<24x1xi1>
    %52 = arith.extui %51 : vector<24x1xi1> to vector<24x1xi32>
    %53 = arith.sitofp %52 : vector<24x1xi32> to vector<24x1xf32>
    %54 = vector.broadcast %53 : vector<24x1xf32> to vector<24x128xf32>
    %55 = arith.mulf %44, %54 : vector<24x128xf32>
    %56 = vector.extract_strided_slice %55 {offsets = [0, 112], sizes = [24, 16], strides = [1, 1]} : vector<24x128xf32> to vector<24x16xf32>
    %57 = vector.extract_strided_slice %55 {offsets = [0, 0], sizes = [24, 112], strides = [1, 1]} : vector<24x128xf32> to vector<24x112xf32>
    %58 = tpu.concatenate %56, %57 in 1 : vector<24x16xf32>, vector<24x112xf32> -> vector<24x128xf32>
    %59 = arith.addf %43, %58 : vector<24x128xf32>
    %c12 = arith.constant 12 : index
    %c0_23 = arith.constant 0 : index
    %60 = vector.load %arg8[%c12, %c0_23] : memref<56x128xf32, #tpu.memory_space<vmem>>, vector<24x128xf32>
    %61 = vector.extract_strided_slice %60 {offsets = [0, 96], sizes = [24, 32], strides = [1, 1]} : vector<24x128xf32> to vector<24x32xf32>
    %62 = vector.extract_strided_slice %60 {offsets = [0, 0], sizes = [24, 96], strides = [1, 1]} : vector<24x128xf32> to vector<24x96xf32>
    %63 = tpu.concatenate %61, %62 in 1 : vector<24x32xf32>, vector<24x96xf32> -> vector<24x128xf32>
    %64 = arith.addf %59, %63 : vector<24x128xf32>
    %c13 = arith.constant 13 : index
    %c0_24 = arith.constant 0 : index
    %65 = vector.load %arg8[%c13, %c0_24] : memref<56x128xf32, #tpu.memory_space<vmem>>, vector<24x128xf32>
    %c1_i32_25 = arith.constant 1 : i32
    %66 = vector.broadcast %c1_i32_25 : i32 to vector<24x1xi32>
    %67 = arith.addi %29, %66 : vector<24x1xi32>
    %c0_i32_26 = arith.constant 0 : i32
    %68 = vector.broadcast %c0_i32_26 : i32 to vector<24x1xi32>
    %69 = arith.cmpi sge, %67, %68 : vector<24x1xi32>
    %c2_i32_27 = arith.constant 2 : i32
    %70 = vector.broadcast %c2_i32_27 : i32 to vector<24x1xi32>
    %71 = arith.cmpi slt, %67, %70 : vector<24x1xi32>
    %72 = arith.andi %69, %71 : vector<24x1xi1>
    %73 = arith.extui %72 : vector<24x1xi1> to vector<24x1xi32>
    %74 = arith.sitofp %73 : vector<24x1xi32> to vector<24x1xf32>
    %75 = vector.broadcast %74 : vector<24x1xf32> to vector<24x128xf32>
    %76 = arith.mulf %65, %75 : vector<24x128xf32>
    %77 = vector.extract_strided_slice %76 {offsets = [0, 80], sizes = [24, 48], strides = [1, 1]} : vector<24x128xf32> to vector<24x48xf32>
    %78 = vector.extract_strided_slice %76 {offsets = [0, 0], sizes = [24, 80], strides = [1, 1]} : vector<24x128xf32> to vector<24x80xf32>
    %79 = tpu.concatenate %77, %78 in 1 : vector<24x48xf32>, vector<24x80xf32> -> vector<24x128xf32>
    %80 = arith.addf %64, %79 : vector<24x128xf32>
    %c14 = arith.constant 14 : index
    %c0_28 = arith.constant 0 : index
    %81 = vector.load %arg8[%c14, %c0_28] : memref<56x128xf32, #tpu.memory_space<vmem>>, vector<24x128xf32>
    %c2_i32_29 = arith.constant 2 : i32
    %82 = vector.broadcast %c2_i32_29 : i32 to vector<24x1xi32>
    %83 = arith.addi %29, %82 : vector<24x1xi32>
    %c0_i32_30 = arith.constant 0 : i32
    %84 = vector.broadcast %c0_i32_30 : i32 to vector<24x1xi32>
    %85 = arith.cmpi sge, %83, %84 : vector<24x1xi32>
    %c2_i32_31 = arith.constant 2 : i32
    %86 = vector.broadcast %c2_i32_31 : i32 to vector<24x1xi32>
    %87 = arith.cmpi slt, %83, %86 : vector<24x1xi32>
    %88 = arith.andi %85, %87 : vector<24x1xi1>
    %89 = arith.extui %88 : vector<24x1xi1> to vector<24x1xi32>
    %90 = arith.sitofp %89 : vector<24x1xi32> to vector<24x1xf32>
    %91 = vector.broadcast %90 : vector<24x1xf32> to vector<24x128xf32>
    %92 = arith.mulf %81, %91 : vector<24x128xf32>
    %93 = vector.extract_strided_slice %92 {offsets = [0, 64], sizes = [24, 64], strides = [1, 1]} : vector<24x128xf32> to vector<24x64xf32>
    %94 = vector.extract_strided_slice %92 {offsets = [0, 0], sizes = [24, 64], strides = [1, 1]} : vector<24x128xf32> to vector<24x64xf32>
    %95 = tpu.concatenate %93, %94 in 1 : vector<24x64xf32>, vector<24x64xf32> -> vector<24x128xf32>
    %96 = arith.addf %80, %95 : vector<24x128xf32>
    %c12_32 = arith.constant 12 : index
    %c0_33 = arith.constant 0 : index
    %97 = vector.load %arg8[%c12_32, %c0_33] : memref<56x128xf32, #tpu.memory_space<vmem>>, vector<24x128xf32>
    %c-2_i32_34 = arith.constant -2 : i32
    %98 = vector.broadcast %c-2_i32_34 : i32 to vector<24x1xi32>
    %99 = arith.addi %29, %98 : vector<24x1xi32>
    %c0_i32_35 = arith.constant 0 : i32
    %100 = vector.broadcast %c0_i32_35 : i32 to vector<24x1xi32>
    %101 = arith.cmpi sge, %99, %100 : vector<24x1xi32>
    %c2_i32_36 = arith.constant 2 : i32
    %102 = vector.broadcast %c2_i32_36 : i32 to vector<24x1xi32>
    %103 = arith.cmpi slt, %99, %102 : vector<24x1xi32>
    %104 = arith.andi %101, %103 : vector<24x1xi1>
    %105 = arith.extui %104 : vector<24x1xi1> to vector<24x1xi32>
    %106 = arith.sitofp %105 : vector<24x1xi32> to vector<24x1xf32>
    %107 = vector.broadcast %106 : vector<24x1xf32> to vector<24x128xf32>
    %108 = arith.mulf %97, %107 : vector<24x128xf32>
    %109 = vector.extract_strided_slice %108 {offsets = [0, 48], sizes = [24, 80], strides = [1, 1]} : vector<24x128xf32> to vector<24x80xf32>
    %110 = vector.extract_strided_slice %108 {offsets = [0, 0], sizes = [24, 48], strides = [1, 1]} : vector<24x128xf32> to vector<24x48xf32>
    %111 = tpu.concatenate %109, %110 in 1 : vector<24x80xf32>, vector<24x48xf32> -> vector<24x128xf32>
    %112 = arith.addf %96, %111 : vector<24x128xf32>
    %c13_37 = arith.constant 13 : index
    %c0_38 = arith.constant 0 : index
    %113 = vector.load %arg8[%c13_37, %c0_38] : memref<56x128xf32, #tpu.memory_space<vmem>>, vector<24x128xf32>
    %c-1_i32_39 = arith.constant -1 : i32
    %114 = vector.broadcast %c-1_i32_39 : i32 to vector<24x1xi32>
    %115 = arith.addi %29, %114 : vector<24x1xi32>
    %c0_i32_40 = arith.constant 0 : i32
    %116 = vector.broadcast %c0_i32_40 : i32 to vector<24x1xi32>
    %117 = arith.cmpi sge, %115, %116 : vector<24x1xi32>
    %c2_i32_41 = arith.constant 2 : i32
    %118 = vector.broadcast %c2_i32_41 : i32 to vector<24x1xi32>
    %119 = arith.cmpi slt, %115, %118 : vector<24x1xi32>
    %120 = arith.andi %117, %119 : vector<24x1xi1>
    %121 = arith.extui %120 : vector<24x1xi1> to vector<24x1xi32>
    %122 = arith.sitofp %121 : vector<24x1xi32> to vector<24x1xf32>
    %123 = vector.broadcast %122 : vector<24x1xf32> to vector<24x128xf32>
    %124 = arith.mulf %113, %123 : vector<24x128xf32>
    %125 = vector.extract_strided_slice %124 {offsets = [0, 32], sizes = [24, 96], strides = [1, 1]} : vector<24x128xf32> to vector<24x96xf32>
    %126 = vector.extract_strided_slice %124 {offsets = [0, 0], sizes = [24, 32], strides = [1, 1]} : vector<24x128xf32> to vector<24x32xf32>
    %127 = tpu.concatenate %125, %126 in 1 : vector<24x96xf32>, vector<24x32xf32> -> vector<24x128xf32>
    %128 = arith.addf %112, %127 : vector<24x128xf32>
    %c14_42 = arith.constant 14 : index
    %c0_43 = arith.constant 0 : index
    %129 = vector.load %arg8[%c14_42, %c0_43] : memref<56x128xf32, #tpu.memory_space<vmem>>, vector<24x128xf32>
    %130 = vector.extract_strided_slice %129 {offsets = [0, 16], sizes = [24, 112], strides = [1, 1]} : vector<24x128xf32> to vector<24x112xf32>
    %131 = vector.extract_strided_slice %129 {offsets = [0, 0], sizes = [24, 16], strides = [1, 1]} : vector<24x128xf32> to vector<24x16xf32>
    %132 = tpu.concatenate %130, %131 in 1 : vector<24x112xf32>, vector<24x16xf32> -> vector<24x128xf32>
    %133 = arith.addf %128, %132 : vector<24x128xf32>
    %c0_44 = arith.constant 0 : index
    %c0_45 = arith.constant 0 : index
    %134 = vector.load %arg10[%c0_44, %c0_45] : memref<24x512xf32, #tpu.memory_space<vmem>>, vector<24x128xf32>
    tpu.vector_store %arg10[%c0_44, %c0_45], %133 {strides = array<i32>} : memref<24x512xf32, #tpu.memory_space<vmem>>, vector<24x128xf32>,
    %cst_46 = arith.constant 0.000000e+00 : f32
    %135 = vector.broadcast %cst_46 : f32 to vector<24x128xf32>
    %c15 = arith.constant 15 : index
    %c0_47 = arith.constant 0 : index
    %136 = vector.load %arg8[%c15, %c0_47] : memref<56x128xf32, #tpu.memory_space<vmem>>, vector<24x128xf32>
    %c1_i32_48 = arith.constant 1 : i32
    %137 = vector.broadcast %c1_i32_48 : i32 to vector<24x1xi32>
    %138 = arith.addi %29, %137 : vector<24x1xi32>
    %c0_i32_49 = arith.constant 0 : i32
    %139 = vector.broadcast %c0_i32_49 : i32 to vector<24x1xi32>
    %140 = arith.cmpi sge, %138, %139 : vector<24x1xi32>
    %c2_i32_50 = arith.constant 2 : i32
    %141 = vector.broadcast %c2_i32_50 : i32 to vector<24x1xi32>
    %142 = arith.cmpi slt, %138, %141 : vector<24x1xi32>
    %143 = arith.andi %140, %142 : vector<24x1xi1>
    %144 = arith.extui %143 : vector<24x1xi1> to vector<24x1xi32>
    %145 = arith.sitofp %144 : vector<24x1xi32> to vector<24x1xf32>
    %146 = vector.broadcast %145 : vector<24x1xf32> to vector<24x128xf32>
    %147 = arith.mulf %136, %146 : vector<24x128xf32>
    %148 = arith.addf %135, %147 : vector<24x128xf32>
    %c16_51 = arith.constant 16 : index
    %c0_52 = arith.constant 0 : index
    %149 = vector.load %arg8[%c16_51, %c0_52] : memref<56x128xf32, #tpu.memory_space<vmem>>, vector<24x128xf32>
    %c2_i32_53 = arith.constant 2 : i32
    %150 = vector.broadcast %c2_i32_53 : i32 to vector<24x1xi32>
    %151 = arith.addi %29, %150 : vector<24x1xi32>
    %c0_i32_54 = arith.constant 0 : i32
    %152 = vector.broadcast %c0_i32_54 : i32 to vector<24x1xi32>
    %153 = arith.cmpi sge, %151, %152 : vector<24x1xi32>
    %c2_i32_55 = arith.constant 2 : i32
    %154 = vector.broadcast %c2_i32_55 : i32 to vector<24x1xi32>
    %155 = arith.cmpi slt, %151, %154 : vector<24x1xi32>
    %156 = arith.andi %153, %155 : vector<24x1xi1>
    %157 = arith.extui %156 : vector<24x1xi1> to vector<24x1xi32>
    %158 = arith.sitofp %157 : vector<24x1xi32> to vector<24x1xf32>
    %159 = vector.broadcast %158 : vector<24x1xf32> to vector<24x128xf32>
    %160 = arith.mulf %149, %159 : vector<24x128xf32>
    %161 = vector.extract_strided_slice %160 {offsets = [0, 112], sizes = [24, 16], strides = [1, 1]} : vector<24x128xf32> to vector<24x16xf32>
    %162 = vector.extract_strided_slice %160 {offsets = [0, 0], sizes = [24, 112], strides = [1, 1]} : vector<24x128xf32> to vector<24x112xf32>
    %163 = tpu.concatenate %161, %162 in 1 : vector<24x16xf32>, vector<24x112xf32> -> vector<24x128xf32>
    %164 = arith.addf %148, %163 : vector<24x128xf32>
    %c14_56 = arith.constant 14 : index
    %c0_57 = arith.constant 0 : index
    %165 = vector.load %arg8[%c14_56, %c0_57] : memref<56x128xf32, #tpu.memory_space<vmem>>, vector<24x128xf32>
    %c-2_i32_58 = arith.constant -2 : i32
    %166 = vector.broadcast %c-2_i32_58 : i32 to vector<24x1xi32>
    %167 = arith.addi %29, %166 : vector<24x1xi32>
    %c0_i32_59 = arith.constant 0 : i32
    %168 = vector.broadcast %c0_i32_59 : i32 to vector<24x1xi32>
    %169 = arith.cmpi sge, %167, %168 : vector<24x1xi32>
    %c2_i32_60 = arith.constant 2 : i32
    %170 = vector.broadcast %c2_i32_60 : i32 to vector<24x1xi32>
    %171 = arith.cmpi slt, %167, %170 : vector<24x1xi32>
    %172 = arith.andi %169, %171 : vector<24x1xi1>
    %173 = arith.extui %172 : vector<24x1xi1> to vector<24x1xi32>
    %174 = arith.sitofp %173 : vector<24x1xi32> to vector<24x1xf32>
    %175 = vector.broadcast %174 : vector<24x1xf32> to vector<24x128xf32>
    %176 = arith.mulf %165, %175 : vector<24x128xf32>
    %177 = vector.extract_strided_slice %176 {offsets = [0, 96], sizes = [24, 32], strides = [1, 1]} : vector<24x128xf32> to vector<24x32xf32>
    %178 = vector.extract_strided_slice %176 {offsets = [0, 0], sizes = [24, 96], strides = [1, 1]} : vector<24x128xf32> to vector<24x96xf32>
    %179 = tpu.concatenate %177, %178 in 1 : vector<24x32xf32>, vector<24x96xf32> -> vector<24x128xf32>
    %180 = arith.addf %164, %179 : vector<24x128xf32>
    %c15_61 = arith.constant 15 : index
    %c0_62 = arith.constant 0 : index
    %181 = vector.load %arg8[%c15_61, %c0_62] : memref<56x128xf32, #tpu.memory_space<vmem>>, vector<24x128xf32>
    %c-1_i32_63 = arith.constant -1 : i32
    %182 = vector.broadcast %c-1_i32_63 : i32 to vector<24x1xi32>
    %183 = arith.addi %29, %182 : vector<24x1xi32>
    %c0_i32_64 = arith.constant 0 : i32
    %184 = vector.broadcast %c0_i32_64 : i32 to vector<24x1xi32>
    %185 = arith.cmpi sge, %183, %184 : vector<24x1xi32>
    %c2_i32_65 = arith.constant 2 : i32
    %186 = vector.broadcast %c2_i32_65 : i32 to vector<24x1xi32>
    %187 = arith.cmpi slt, %183, %186 : vector<24x1xi32>
    %188 = arith.andi %185, %187 : vector<24x1xi1>
    %189 = arith.extui %188 : vector<24x1xi1> to vector<24x1xi32>
    %190 = arith.sitofp %189 : vector<24x1xi32> to vector<24x1xf32>
    %191 = vector.broadcast %190 : vector<24x1xf32> to vector<24x128xf32>
    %192 = arith.mulf %181, %191 : vector<24x128xf32>
    %193 = vector.extract_strided_slice %192 {offsets = [0, 80], sizes = [24, 48], strides = [1, 1]} : vector<24x128xf32> to vector<24x48xf32>
    %194 = vector.extract_strided_slice %192 {offsets = [0, 0], sizes = [24, 80], strides = [1, 1]} : vector<24x128xf32> to vector<24x80xf32>
    %195 = tpu.concatenate %193, %194 in 1 : vector<24x48xf32>, vector<24x80xf32> -> vector<24x128xf32>
    %196 = arith.addf %180, %195 : vector<24x128xf32>
    %c16_66 = arith.constant 16 : index
    %c0_67 = arith.constant 0 : index
    %197 = vector.load %arg8[%c16_66, %c0_67] : memref<56x128xf32, #tpu.memory_space<vmem>>, vector<24x128xf32>
    %198 = vector.extract_strided_slice %197 {offsets = [0, 64], sizes = [24, 64], strides = [1, 1]} : vector<24x128xf32> to vector<24x64xf32>
    %199 = vector.extract_strided_slice %197 {offsets = [0, 0], sizes = [24, 64], strides = [1, 1]} : vector<24x128xf32> to vector<24x64xf32>
    %200 = tpu.concatenate %198, %199 in 1 : vector<24x64xf32>, vector<24x64xf32> -> vector<24x128xf32>
    %201 = arith.addf %196, %200 : vector<24x128xf32>
    %c17 = arith.constant 17 : index
    %c0_68 = arith.constant 0 : index
    %202 = vector.load %arg8[%c17, %c0_68] : memref<56x128xf32, #tpu.memory_space<vmem>>, vector<24x128xf32>
    %c1_i32_69 = arith.constant 1 : i32
    %203 = vector.broadcast %c1_i32_69 : i32 to vector<24x1xi32>
    %204 = arith.addi %29, %203 : vector<24x1xi32>
    %c0_i32_70 = arith.constant 0 : i32
    %205 = vector.broadcast %c0_i32_70 : i32 to vector<24x1xi32>
    %206 = arith.cmpi sge, %204, %205 : vector<24x1xi32>
    %c2_i32_71 = arith.constant 2 : i32
    %207 = vector.broadcast %c2_i32_71 : i32 to vector<24x1xi32>
    %208 = arith.cmpi slt, %204, %207 : vector<24x1xi32>
    %209 = arith.andi %206, %208 : vector<24x1xi1>
    %210 = arith.extui %209 : vector<24x1xi1> to vector<24x1xi32>
    %211 = arith.sitofp %210 : vector<24x1xi32> to vector<24x1xf32>
    %212 = vector.broadcast %211 : vector<24x1xf32> to vector<24x128xf32>
    %213 = arith.mulf %202, %212 : vector<24x128xf32>
    %214 = vector.extract_strided_slice %213 {offsets = [0, 48], sizes = [24, 80], strides = [1, 1]} : vector<24x128xf32> to vector<24x80xf32>
    %215 = vector.extract_strided_slice %213 {offsets = [0, 0], sizes = [24, 48], strides = [1, 1]} : vector<24x128xf32> to vector<24x48xf32>
    %216 = tpu.concatenate %214, %215 in 1 : vector<24x80xf32>, vector<24x48xf32> -> vector<24x128xf32>
    %217 = arith.addf %201, %216 : vector<24x128xf32>
    %c18 = arith.constant 18 : index
    %c0_72 = arith.constant 0 : index
    %218 = vector.load %arg8[%c18, %c0_72] : memref<56x128xf32, #tpu.memory_space<vmem>>, vector<24x128xf32>
    %c2_i32_73 = arith.constant 2 : i32
    %219 = vector.broadcast %c2_i32_73 : i32 to vector<24x1xi32>
    %220 = arith.addi %29, %219 : vector<24x1xi32>
    %c0_i32_74 = arith.constant 0 : i32
    %221 = vector.broadcast %c0_i32_74 : i32 to vector<24x1xi32>
    %222 = arith.cmpi sge, %220, %221 : vector<24x1xi32>
    %c2_i32_75 = arith.constant 2 : i32
    %223 = vector.broadcast %c2_i32_75 : i32 to vector<24x1xi32>
    %224 = arith.cmpi slt, %220, %223 : vector<24x1xi32>
    %225 = arith.andi %222, %224 : vector<24x1xi1>
    %226 = arith.extui %225 : vector<24x1xi1> to vector<24x1xi32>
    %227 = arith.sitofp %226 : vector<24x1xi32> to vector<24x1xf32>
    %228 = vector.broadcast %227 : vector<24x1xf32> to vector<24x128xf32>
    %229 = arith.mulf %218, %228 : vector<24x128xf32>
    %230 = vector.extract_strided_slice %229 {offsets = [0, 32], sizes = [24, 96], strides = [1, 1]} : vector<24x128xf32> to vector<24x96xf32>
    %231 = vector.extract_strided_slice %229 {offsets = [0, 0], sizes = [24, 32], strides = [1, 1]} : vector<24x128xf32> to vector<24x32xf32>
    %232 = tpu.concatenate %230, %231 in 1 : vector<24x96xf32>, vector<24x32xf32> -> vector<24x128xf32>
    %233 = arith.addf %217, %232 : vector<24x128xf32>
    %c16_76 = arith.constant 16 : index
    %c0_77 = arith.constant 0 : index
    %234 = vector.load %arg8[%c16_76, %c0_77] : memref<56x128xf32, #tpu.memory_space<vmem>>, vector<24x128xf32>
    %c-2_i32_78 = arith.constant -2 : i32
    %235 = vector.broadcast %c-2_i32_78 : i32 to vector<24x1xi32>
    %236 = arith.addi %29, %235 : vector<24x1xi32>
    %c0_i32_79 = arith.constant 0 : i32
    %237 = vector.broadcast %c0_i32_79 : i32 to vector<24x1xi32>
    %238 = arith.cmpi sge, %236, %237 : vector<24x1xi32>
    %c2_i32_80 = arith.constant 2 : i32
    %239 = vector.broadcast %c2_i32_80 : i32 to vector<24x1xi32>
    %240 = arith.cmpi slt, %236, %239 : vector<24x1xi32>
    %241 = arith.andi %238, %240 : vector<24x1xi1>
    %242 = arith.extui %241 : vector<24x1xi1> to vector<24x1xi32>
    %243 = arith.sitofp %242 : vector<24x1xi32> to vector<24x1xf32>
    %244 = vector.broadcast %243 : vector<24x1xf32> to vector<24x128xf32>
    %245 = arith.mulf %234, %244 : vector<24x128xf32>
    %246 = vector.extract_strided_slice %245 {offsets = [0, 16], sizes = [24, 112], strides = [1, 1]} : vector<24x128xf32> to vector<24x112xf32>
    %247 = vector.extract_strided_slice %245 {offsets = [0, 0], sizes = [24, 16], strides = [1, 1]} : vector<24x128xf32> to vector<24x16xf32>
    %248 = tpu.concatenate %246, %247 in 1 : vector<24x112xf32>, vector<24x16xf32> -> vector<24x128xf32>
    %249 = arith.addf %233, %248 : vector<24x128xf32>
    %c0_81 = arith.constant 0 : index
    %c128 = arith.constant 128 : index
    %250 = vector.load %arg10[%c0_81, %c128] : memref<24x512xf32, #tpu.memory_space<vmem>>, vector<24x128xf32>
    tpu.vector_store %arg10[%c0_81, %c128], %249 {strides = array<i32>} : memref<24x512xf32, #tpu.memory_space<vmem>>, vector<24x128xf32>,
    %cst_82 = arith.constant 0.000000e+00 : f32
    %251 = vector.broadcast %cst_82 : f32 to vector<24x128xf32>
    %c17_83 = arith.constant 17 : index
    %c0_84 = arith.constant 0 : index
    %252 = vector.load %arg8[%c17_83, %c0_84] : memref<56x128xf32, #tpu.memory_space<vmem>>, vector<24x128xf32>
    %c-1_i32_85 = arith.constant -1 : i32
    %253 = vector.broadcast %c-1_i32_85 : i32 to vector<24x1xi32>
    %254 = arith.addi %29, %253 : vector<24x1xi32>
    %c0_i32_86 = arith.constant 0 : i32
    %255 = vector.broadcast %c0_i32_86 : i32 to vector<24x1xi32>
    %256 = arith.cmpi sge, %254, %255 : vector<24x1xi32>
    %c2_i32_87 = arith.constant 2 : i32
    %257 = vector.broadcast %c2_i32_87 : i32 to vector<24x1xi32>
    %258 = arith.cmpi slt, %254, %257 : vector<24x1xi32>
    %259 = arith.andi %256, %258 : vector<24x1xi1>
    %260 = arith.extui %259 : vector<24x1xi1> to vector<24x1xi32>
    %261 = arith.sitofp %260 : vector<24x1xi32> to vector<24x1xf32>
    %262 = vector.broadcast %261 : vector<24x1xf32> to vector<24x128xf32>
    %263 = arith.mulf %252, %262 : vector<24x128xf32>
    %264 = arith.addf %251, %263 : vector<24x128xf32>
    %c18_88 = arith.constant 18 : index
    %c0_89 = arith.constant 0 : index
    %265 = vector.load %arg8[%c18_88, %c0_89] : memref<56x128xf32, #tpu.memory_space<vmem>>, vector<24x128xf32>
    %266 = vector.extract_strided_slice %265 {offsets = [0, 112], sizes = [24, 16], strides = [1, 1]} : vector<24x128xf32> to vector<24x16xf32>
    %267 = vector.extract_strided_slice %265 {offsets = [0, 0], sizes = [24, 112], strides = [1, 1]} : vector<24x128xf32> to vector<24x112xf32>
    %268 = tpu.concatenate %266, %267 in 1 : vector<24x16xf32>, vector<24x112xf32> -> vector<24x128xf32>
    %269 = arith.addf %264, %268 : vector<24x128xf32>
    %c19 = arith.constant 19 : index
    %c0_90 = arith.constant 0 : index
    %270 = vector.load %arg8[%c19, %c0_90] : memref<56x128xf32, #tpu.memory_space<vmem>>, vector<24x128xf32>
    %c1_i32_91 = arith.constant 1 : i32
    %271 = vector.broadcast %c1_i32_91 : i32 to vector<24x1xi32>
    %272 = arith.addi %29, %271 : vector<24x1xi32>
    %c0_i32_92 = arith.constant 0 : i32
    %273 = vector.broadcast %c0_i32_92 : i32 to vector<24x1xi32>
    %274 = arith.cmpi sge, %272, %273 : vector<24x1xi32>
    %c2_i32_93 = arith.constant 2 : i32
    %275 = vector.broadcast %c2_i32_93 : i32 to vector<24x1xi32>
    %276 = arith.cmpi slt, %272, %275 : vector<24x1xi32>
    %277 = arith.andi %274, %276 : vector<24x1xi1>
    %278 = arith.extui %277 : vector<24x1xi1> to vector<24x1xi32>
    %279 = arith.sitofp %278 : vector<24x1xi32> to vector<24x1xf32>
    %280 = vector.broadcast %279 : vector<24x1xf32> to vector<24x128xf32>
    %281 = arith.mulf %270, %280 : vector<24x128xf32>
    %282 = vector.extract_strided_slice %281 {offsets = [0, 96], sizes = [24, 32], strides = [1, 1]} : vector<24x128xf32> to vector<24x32xf32>
    %283 = vector.extract_strided_slice %281 {offsets = [0, 0], sizes = [24, 96], strides = [1, 1]} : vector<24x128xf32> to vector<24x96xf32>
    %284 = tpu.concatenate %282, %283 in 1 : vector<24x32xf32>, vector<24x96xf32> -> vector<24x128xf32>
    %285 = arith.addf %269, %284 : vector<24x128xf32>
    %c20 = arith.constant 20 : index
    %c0_94 = arith.constant 0 : index
    %286 = vector.load %arg8[%c20, %c0_94] : memref<56x128xf32, #tpu.memory_space<vmem>>, vector<24x128xf32>
    %c2_i32_95 = arith.constant 2 : i32
    %287 = vector.broadcast %c2_i32_95 : i32 to vector<24x1xi32>
    %288 = arith.addi %29, %287 : vector<24x1xi32>
    %c0_i32_96 = arith.constant 0 : i32
    %289 = vector.broadcast %c0_i32_96 : i32 to vector<24x1xi32>
    %290 = arith.cmpi sge, %288, %289 : vector<24x1xi32>
    %c2_i32_97 = arith.constant 2 : i32
    %291 = vector.broadcast %c2_i32_97 : i32 to vector<24x1xi32>
    %292 = arith.cmpi slt, %288, %291 : vector<24x1xi32>
    %293 = arith.andi %290, %292 : vector<24x1xi1>
    %294 = arith.extui %293 : vector<24x1xi1> to vector<24x1xi32>
    %295 = arith.sitofp %294 : vector<24x1xi32> to vector<24x1xf32>
    %296 = vector.broadcast %295 : vector<24x1xf32> to vector<24x128xf32>
    %297 = arith.mulf %286, %296 : vector<24x128xf32>
    %298 = vector.extract_strided_slice %297 {offsets = [0, 80], sizes = [24, 48], strides = [1, 1]} : vector<24x128xf32> to vector<24x48xf32>
    %299 = vector.extract_strided_slice %297 {offsets = [0, 0], sizes = [24, 80], strides = [1, 1]} : vector<24x128xf32> to vector<24x80xf32>
    %300 = tpu.concatenate %298, %299 in 1 : vector<24x48xf32>, vector<24x80xf32> -> vector<24x128xf32>
    %301 = arith.addf %285, %300 : vector<24x128xf32>
    %c18_98 = arith.constant 18 : index
    %c0_99 = arith.constant 0 : index
    %302 = vector.load %arg8[%c18_98, %c0_99] : memref<56x128xf32, #tpu.memory_space<vmem>>, vector<24x128xf32>
    %c-2_i32_100 = arith.constant -2 : i32
    %303 = vector.broadcast %c-2_i32_100 : i32 to vector<24x1xi32>
    %304 = arith.addi %29, %303 : vector<24x1xi32>
    %c0_i32_101 = arith.constant 0 : i32
    %305 = vector.broadcast %c0_i32_101 : i32 to vector<24x1xi32>
    %306 = arith.cmpi sge, %304, %305 : vector<24x1xi32>
    %c2_i32_102 = arith.constant 2 : i32
    %307 = vector.broadcast %c2_i32_102 : i32 to vector<24x1xi32>
    %308 = arith.cmpi slt, %304, %307 : vector<24x1xi32>
    %309 = arith.andi %306, %308 : vector<24x1xi1>
    %310 = arith.extui %309 : vector<24x1xi1> to vector<24x1xi32>
    %311 = arith.sitofp %310 : vector<24x1xi32> to vector<24x1xf32>
    %312 = vector.broadcast %311 : vector<24x1xf32> to vector<24x128xf32>
    %313 = arith.mulf %302, %312 : vector<24x128xf32>
    %314 = vector.extract_strided_slice %313 {offsets = [0, 64], sizes = [24, 64], strides = [1, 1]} : vector<24x128xf32> to vector<24x64xf32>
    %315 = vector.extract_strided_slice %313 {offsets = [0, 0], sizes = [24, 64], strides = [1, 1]} : vector<24x128xf32> to vector<24x64xf32>
    %316 = tpu.concatenate %314, %315 in 1 : vector<24x64xf32>, vector<24x64xf32> -> vector<24x128xf32>
    %317 = arith.addf %301, %316 : vector<24x128xf32>
    %c19_103 = arith.constant 19 : index
    %c0_104 = arith.constant 0 : index
    %318 = vector.load %arg8[%c19_103, %c0_104] : memref<56x128xf32, #tpu.memory_space<vmem>>, vector<24x128xf32>
    %c-1_i32_105 = arith.constant -1 : i32
    %319 = vector.broadcast %c-1_i32_105 : i32 to vector<24x1xi32>
    %320 = arith.addi %29, %319 : vector<24x1xi32>
    %c0_i32_106 = arith.constant 0 : i32
    %321 = vector.broadcast %c0_i32_106 : i32 to vector<24x1xi32>
    %322 = arith.cmpi sge, %320, %321 : vector<24x1xi32>
    %c2_i32_107 = arith.constant 2 : i32
    %323 = vector.broadcast %c2_i32_107 : i32 to vector<24x1xi32>
    %324 = arith.cmpi slt, %320, %323 : vector<24x1xi32>
    %325 = arith.andi %322, %324 : vector<24x1xi1>
    %326 = arith.extui %325 : vector<24x1xi1> to vector<24x1xi32>
    %327 = arith.sitofp %326 : vector<24x1xi32> to vector<24x1xf32>
    %328 = vector.broadcast %327 : vector<24x1xf32> to vector<24x128xf32>
    %329 = arith.mulf %318, %328 : vector<24x128xf32>
    %330 = vector.extract_strided_slice %329 {offsets = [0, 48], sizes = [24, 80], strides = [1, 1]} : vector<24x128xf32> to vector<24x80xf32>
    %331 = vector.extract_strided_slice %329 {offsets = [0, 0], sizes = [24, 48], strides = [1, 1]} : vector<24x128xf32> to vector<24x48xf32>
    %332 = tpu.concatenate %330, %331 in 1 : vector<24x80xf32>, vector<24x48xf32> -> vector<24x128xf32>
    %333 = arith.addf %317, %332 : vector<24x128xf32>
    %c20_108 = arith.constant 20 : index
    %c0_109 = arith.constant 0 : index
    %334 = vector.load %arg8[%c20_108, %c0_109] : memref<56x128xf32, #tpu.memory_space<vmem>>, vector<24x128xf32>
    %335 = vector.extract_strided_slice %334 {offsets = [0, 32], sizes = [24, 96], strides = [1, 1]} : vector<24x128xf32> to vector<24x96xf32>
    %336 = vector.extract_strided_slice %334 {offsets = [0, 0], sizes = [24, 32], strides = [1, 1]} : vector<24x128xf32> to vector<24x32xf32>
    %337 = tpu.concatenate %335, %336 in 1 : vector<24x96xf32>, vector<24x32xf32> -> vector<24x128xf32>
    %338 = arith.addf %333, %337 : vector<24x128xf32>
    %c21 = arith.constant 21 : index
    %c0_110 = arith.constant 0 : index
    %339 = vector.load %arg8[%c21, %c0_110] : memref<56x128xf32, #tpu.memory_space<vmem>>, vector<24x128xf32>
    %c1_i32_111 = arith.constant 1 : i32
    %340 = vector.broadcast %c1_i32_111 : i32 to vector<24x1xi32>
    %341 = arith.addi %29, %340 : vector<24x1xi32>
    %c0_i32_112 = arith.constant 0 : i32
    %342 = vector.broadcast %c0_i32_112 : i32 to vector<24x1xi32>
    %343 = arith.cmpi sge, %341, %342 : vector<24x1xi32>
    %c2_i32_113 = arith.constant 2 : i32
    %344 = vector.broadcast %c2_i32_113 : i32 to vector<24x1xi32>
    %345 = arith.cmpi slt, %341, %344 : vector<24x1xi32>
    %346 = arith.andi %343, %345 : vector<24x1xi1>
    %347 = arith.extui %346 : vector<24x1xi1> to vector<24x1xi32>
    %348 = arith.sitofp %347 : vector<24x1xi32> to vector<24x1xf32>
    %349 = vector.broadcast %348 : vector<24x1xf32> to vector<24x128xf32>
    %350 = arith.mulf %339, %349 : vector<24x128xf32>
    %351 = vector.extract_strided_slice %350 {offsets = [0, 16], sizes = [24, 112], strides = [1, 1]} : vector<24x128xf32> to vector<24x112xf32>
    %352 = vector.extract_strided_slice %350 {offsets = [0, 0], sizes = [24, 16], strides = [1, 1]} : vector<24x128xf32> to vector<24x16xf32>
    %353 = tpu.concatenate %351, %352 in 1 : vector<24x112xf32>, vector<24x16xf32> -> vector<24x128xf32>
    %354 = arith.addf %338, %353 : vector<24x128xf32>
    %c0_114 = arith.constant 0 : index
    %c256 = arith.constant 256 : index
    %355 = vector.load %arg10[%c0_114, %c256] : memref<24x512xf32, #tpu.memory_space<vmem>>, vector<24x128xf32>
    tpu.vector_store %arg10[%c0_114, %c256], %354 {strides = array<i32>} : memref<24x512xf32, #tpu.memory_space<vmem>>, vector<24x128xf32>,
    %cst_115 = arith.constant 0.000000e+00 : f32
    %356 = vector.broadcast %cst_115 : f32 to vector<24x128xf32>
    %c22 = arith.constant 22 : index
    %c0_116 = arith.constant 0 : index
    %357 = vector.load %arg8[%c22, %c0_116] : memref<56x128xf32, #tpu.memory_space<vmem>>, vector<24x128xf32>
    %c2_i32_117 = arith.constant 2 : i32
    %358 = vector.broadcast %c2_i32_117 : i32 to vector<24x1xi32>
    %359 = arith.addi %29, %358 : vector<24x1xi32>
    %c0_i32_118 = arith.constant 0 : i32
    %360 = vector.broadcast %c0_i32_118 : i32 to vector<24x1xi32>
    %361 = arith.cmpi sge, %359, %360 : vector<24x1xi32>
    %c2_i32_119 = arith.constant 2 : i32
    %362 = vector.broadcast %c2_i32_119 : i32 to vector<24x1xi32>
    %363 = arith.cmpi slt, %359, %362 : vector<24x1xi32>
    %364 = arith.andi %361, %363 : vector<24x1xi1>
    %365 = arith.extui %364 : vector<24x1xi1> to vector<24x1xi32>
    %366 = arith.sitofp %365 : vector<24x1xi32> to vector<24x1xf32>
    %367 = vector.broadcast %366 : vector<24x1xf32> to vector<24x128xf32>
    %368 = arith.mulf %357, %367 : vector<24x128xf32>
    %369 = arith.addf %356, %368 : vector<24x128xf32>
    %c0_120 = arith.constant 0 : index
    %c384 = arith.constant 384 : index
    %370 = vector.load %arg10[%c0_120, %c384] : memref<24x512xf32, #tpu.memory_space<vmem>>, vector<24x128xf32>
    tpu.vector_store %arg10[%c0_120, %c384], %369 {strides = array<i32>} : memref<24x512xf32, #tpu.memory_space<vmem>>, vector<24x128xf32>,
    %c0_121 = arith.constant 0 : index
    %c0_122 = arith.constant 0 : index
    %371 = vector.load %arg10[%c0_121, %c0_122] : memref<24x512xf32, #tpu.memory_space<vmem>>, vector<24x512xf32>
    %c0_123 = arith.constant 0 : index
    %c0_124 = arith.constant 0 : index
    %372 = vector.load %arg3[%c0_123, %c0_124] : memref<512x128xf32, #tpu.memory_space<vmem>>, vector<512x128xf32>
    %cst_125 = arith.constant dense<0.000000e+00> : vector<24x128xf32>
    %373 = tpu.matmul %371, %372, %cst_125 {dimension_numbers = #tpu.dot_dimension_numbers<[1], [0], [0], [1], [0, 0, 1, 1], [], []>} : vector<24x512xf32>, vector<512x128xf32>, vector<24x128xf32> -> vector<24x128xf32>
    %c0_126 = arith.constant 0 : index
    %c0_127 = arith.constant 0 : index
    %374 = vector.load %arg4[%c0_126, %c0_127] : memref<1x128xf32, #tpu.memory_space<vmem>>, vector<1x128xf32>
    %375 = vector.broadcast %374 : vector<1x128xf32> to vector<24x128xf32>
    %376 = arith.addf %373, %375 : vector<24x128xf32>
    %cst_128 = arith.constant 0.707106769 : f32
    %377 = vector.broadcast %cst_128 : f32 to vector<24x128xf32>
    %378 = arith.mulf %376, %377 : vector<24x128xf32>
    %cst_129 = arith.constant 0.000000e+00 : f32
    %379 = vector.broadcast %cst_129 : f32 to vector<24x128xf32>
    %380 = arith.cmpf oge, %378, %379 : vector<24x128xf32>
    %cst_130 = arith.constant 1.000000e+00 : f32
    %cst_131 = arith.constant -1.000000e+00 : f32
    %381 = vector.broadcast %cst_130 : f32 to vector<24x128xf32>
    %382 = vector.broadcast %cst_131 : f32 to vector<24x128xf32>
    %383 = arith.select %380, %381, %382 : vector<24x128xi1>, vector<24x128xf32>
    %384 = math.absf %378 : vector<24x128xf32>
    %cst_132 = arith.constant 0.327591091 : f32
    %385 = vector.broadcast %cst_132 : f32 to vector<24x128xf32>
    %386 = arith.mulf %385, %384 : vector<24x128xf32>
    %cst_133 = arith.constant 1.000000e+00 : f32
    %387 = vector.broadcast %cst_133 : f32 to vector<24x128xf32>
    %388 = arith.addf %387, %386 : vector<24x128xf32>
    %cst_134 = arith.constant 1.000000e+00 : f32
    %389 = vector.broadcast %cst_134 : f32 to vector<24x128xf32>
    %390 = arith.divf %389, %388 : vector<24x128xf32>
    %cst_135 = arith.constant 1.06140542 : f32
    %391 = vector.broadcast %cst_135 : f32 to vector<24x128xf32>
    %392 = arith.mulf %391, %390 : vector<24x128xf32>
    %cst_136 = arith.constant -1.45315206 : f32
    %393 = vector.broadcast %cst_136 : f32 to vector<24x128xf32>
    %394 = arith.addf %392, %393 : vector<24x128xf32>
    %395 = arith.mulf %394, %390 : vector<24x128xf32>
    %cst_137 = arith.constant 1.42141378 : f32
    %396 = vector.broadcast %cst_137 : f32 to vector<24x128xf32>
    %397 = arith.addf %395, %396 : vector<24x128xf32>
    %398 = arith.mulf %397, %390 : vector<24x128xf32>
    %cst_138 = arith.constant -0.284496725 : f32
    %399 = vector.broadcast %cst_138 : f32 to vector<24x128xf32>
    %400 = arith.addf %398, %399 : vector<24x128xf32>
    %401 = arith.mulf %400, %390 : vector<24x128xf32>
    %cst_139 = arith.constant 0.254829586 : f32
    %402 = vector.broadcast %cst_139 : f32 to vector<24x128xf32>
    %403 = arith.addf %401, %402 : vector<24x128xf32>
    %404 = arith.mulf %403, %390 : vector<24x128xf32>
    %cst_140 = arith.constant 0.000000e+00 : f32
    %405 = vector.broadcast %cst_140 : f32 to vector<24x128xf32>
    %406 = arith.subf %405, %384 : vector<24x128xf32>
    %407 = arith.mulf %406, %384 : vector<24x128xf32>
    %408 = math.exp %407 : vector<24x128xf32>
    %409 = arith.mulf %404, %408 : vector<24x128xf32>
    %cst_141 = arith.constant 1.000000e+00 : f32
    %410 = vector.broadcast %cst_141 : f32 to vector<24x128xf32>
    %411 = arith.subf %410, %409 : vector<24x128xf32>
    %412 = arith.mulf %383, %411 : vector<24x128xf32>
    %cst_142 = arith.constant 5.000000e-01 : f32
    %413 = vector.broadcast %cst_142 : f32 to vector<24x128xf32>
    %414 = arith.mulf %413, %376 : vector<24x128xf32>
    %cst_143 = arith.constant 1.000000e+00 : f32
    %415 = vector.broadcast %cst_143 : f32 to vector<24x128xf32>
    %416 = arith.addf %415, %412 : vector<24x128xf32>
    %417 = arith.mulf %414, %416 : vector<24x128xf32>
    %c16_i32 = arith.constant 16 : i32
    %418 = vector.broadcast %c16_i32 : i32 to vector<24x1xi32>
    %419 = arith.cmpi slt, %13, %418 : vector<24x1xi32>
    %420 = arith.extui %419 : vector<24x1xi1> to vector<24x1xi32>
    %421 = arith.sitofp %420 : vector<24x1xi32> to vector<24x1xf32>
    %422 = vector.broadcast %421 : vector<24x1xf32> to vector<24x128xf32>
    %423 = arith.mulf %417, %422 : vector<24x128xf32>
    %c16_144 = arith.constant 16 : index
    %c0_145 = arith.constant 0 : index
    %424 = vector.load %arg9[%c16_144, %c0_145] : memref<56x128xf32, #tpu.memory_space<vmem>>, vector<24x128xf32>
    tpu.vector_store %arg9[%c16_144, %c0_145], %423 {strides = array<i32>} : memref<56x128xf32, #tpu.memory_space<vmem>>, vector<24x128xf32>,
    %cst_146 = arith.constant 0.000000e+00 : f32
    %425 = vector.broadcast %cst_146 : f32 to vector<24x128xf32>
    %c10_147 = arith.constant 10 : index
    %c0_148 = arith.constant 0 : index
    %426 = vector.load %arg9[%c10_147, %c0_148] : memref<56x128xf32, #tpu.memory_space<vmem>>, vector<24x128xf32>
    %c-2_i32_149 = arith.constant -2 : i32
    %427 = vector.broadcast %c-2_i32_149 : i32 to vector<24x1xi32>
    %428 = arith.addi %29, %427 : vector<24x1xi32>
    %c0_i32_150 = arith.constant 0 : i32
    %429 = vector.broadcast %c0_i32_150 : i32 to vector<24x1xi32>
    %430 = arith.cmpi sge, %428, %429 : vector<24x1xi32>
    %c2_i32_151 = arith.constant 2 : i32
    %431 = vector.broadcast %c2_i32_151 : i32 to vector<24x1xi32>
    %432 = arith.cmpi slt, %428, %431 : vector<24x1xi32>
    %433 = arith.andi %430, %432 : vector<24x1xi1>
    %434 = arith.extui %433 : vector<24x1xi1> to vector<24x1xi32>
    %435 = arith.sitofp %434 : vector<24x1xi32> to vector<24x1xf32>
    %436 = vector.broadcast %435 : vector<24x1xf32> to vector<24x128xf32>
    %437 = arith.mulf %426, %436 : vector<24x128xf32>
    %438 = arith.addf %425, %437 : vector<24x128xf32>
    %c11_152 = arith.constant 11 : index
    %c0_153 = arith.constant 0 : index
    %439 = vector.load %arg9[%c11_152, %c0_153] : memref<56x128xf32, #tpu.memory_space<vmem>>, vector<24x128xf32>
    %c-1_i32_154 = arith.constant -1 : i32
    %440 = vector.broadcast %c-1_i32_154 : i32 to vector<24x1xi32>
    %441 = arith.addi %29, %440 : vector<24x1xi32>
    %c0_i32_155 = arith.constant 0 : i32
    %442 = vector.broadcast %c0_i32_155 : i32 to vector<24x1xi32>
    %443 = arith.cmpi sge, %441, %442 : vector<24x1xi32>
    %c2_i32_156 = arith.constant 2 : i32
    %444 = vector.broadcast %c2_i32_156 : i32 to vector<24x1xi32>
    %445 = arith.cmpi slt, %441, %444 : vector<24x1xi32>
    %446 = arith.andi %443, %445 : vector<24x1xi1>
    %447 = arith.extui %446 : vector<24x1xi1> to vector<24x1xi32>
    %448 = arith.sitofp %447 : vector<24x1xi32> to vector<24x1xf32>
    %449 = vector.broadcast %448 : vector<24x1xf32> to vector<24x128xf32>
    %450 = arith.mulf %439, %449 : vector<24x128xf32>
    %451 = vector.extract_strided_slice %450 {offsets = [0, 96], sizes = [24, 32], strides = [1, 1]} : vector<24x128xf32> to vector<24x32xf32>
    %452 = vector.extract_strided_slice %450 {offsets = [0, 0], sizes = [24, 96], strides = [1, 1]} : vector<24x128xf32> to vector<24x96xf32>
    %453 = tpu.concatenate %451, %452 in 1 : vector<24x32xf32>, vector<24x96xf32> -> vector<24x128xf32>
    %454 = arith.addf %438, %453 : vector<24x128xf32>
    %c12_157 = arith.constant 12 : index
    %c0_158 = arith.constant 0 : index
    %455 = vector.load %arg9[%c12_157, %c0_158] : memref<56x128xf32, #tpu.memory_space<vmem>>, vector<24x128xf32>
    %456 = vector.extract_strided_slice %455 {offsets = [0, 64], sizes = [24, 64], strides = [1, 1]} : vector<24x128xf32> to vector<24x64xf32>
    %457 = vector.extract_strided_slice %455 {offsets = [0, 0], sizes = [24, 64], strides = [1, 1]} : vector<24x128xf32> to vector<24x64xf32>
    %458 = tpu.concatenate %456, %457 in 1 : vector<24x64xf32>, vector<24x64xf32> -> vector<24x128xf32>
    %459 = arith.addf %454, %458 : vector<24x128xf32>
    %c13_159 = arith.constant 13 : index
    %c0_160 = arith.constant 0 : index
    %460 = vector.load %arg9[%c13_159, %c0_160] : memref<56x128xf32, #tpu.memory_space<vmem>>, vector<24x128xf32>
    %c1_i32_161 = arith.constant 1 : i32
    %461 = vector.broadcast %c1_i32_161 : i32 to vector<24x1xi32>
    %462 = arith.addi %29, %461 : vector<24x1xi32>
    %c0_i32_162 = arith.constant 0 : i32
    %463 = vector.broadcast %c0_i32_162 : i32 to vector<24x1xi32>
    %464 = arith.cmpi sge, %462, %463 : vector<24x1xi32>
    %c2_i32_163 = arith.constant 2 : i32
    %465 = vector.broadcast %c2_i32_163 : i32 to vector<24x1xi32>
    %466 = arith.cmpi slt, %462, %465 : vector<24x1xi32>
    %467 = arith.andi %464, %466 : vector<24x1xi1>
    %468 = arith.extui %467 : vector<24x1xi1> to vector<24x1xi32>
    %469 = arith.sitofp %468 : vector<24x1xi32> to vector<24x1xf32>
    %470 = vector.broadcast %469 : vector<24x1xf32> to vector<24x128xf32>
    %471 = arith.mulf %460, %470 : vector<24x128xf32>
    %472 = vector.extract_strided_slice %471 {offsets = [0, 32], sizes = [24, 96], strides = [1, 1]} : vector<24x128xf32> to vector<24x96xf32>
    %473 = vector.extract_strided_slice %471 {offsets = [0, 0], sizes = [24, 32], strides = [1, 1]} : vector<24x128xf32> to vector<24x32xf32>
    %474 = tpu.concatenate %472, %473 in 1 : vector<24x96xf32>, vector<24x32xf32> -> vector<24x128xf32>
    %475 = arith.addf %459, %474 : vector<24x128xf32>
    %c0_164 = arith.constant 0 : index
    %c0_165 = arith.constant 0 : index
    %476 = vector.load %arg11[%c0_164, %c0_165] : memref<24x896xf32, #tpu.memory_space<vmem>>, vector<24x128xf32>
    tpu.vector_store %arg11[%c0_164, %c0_165], %475 {strides = array<i32>} : memref<24x896xf32, #tpu.memory_space<vmem>>, vector<24x128xf32>,
    %cst_166 = arith.constant 0.000000e+00 : f32
    %477 = vector.broadcast %cst_166 : f32 to vector<24x128xf32>
    %c14_167 = arith.constant 14 : index
    %c0_168 = arith.constant 0 : index
    %478 = vector.load %arg9[%c14_167, %c0_168] : memref<56x128xf32, #tpu.memory_space<vmem>>, vector<24x128xf32>
    %c2_i32_169 = arith.constant 2 : i32
    %479 = vector.broadcast %c2_i32_169 : i32 to vector<24x1xi32>
    %480 = arith.addi %29, %479 : vector<24x1xi32>
    %c0_i32_170 = arith.constant 0 : i32
    %481 = vector.broadcast %c0_i32_170 : i32 to vector<24x1xi32>
    %482 = arith.cmpi sge, %480, %481 : vector<24x1xi32>
    %c2_i32_171 = arith.constant 2 : i32
    %483 = vector.broadcast %c2_i32_171 : i32 to vector<24x1xi32>
    %484 = arith.cmpi slt, %480, %483 : vector<24x1xi32>
    %485 = arith.andi %482, %484 : vector<24x1xi1>
    %486 = arith.extui %485 : vector<24x1xi1> to vector<24x1xi32>
    %487 = arith.sitofp %486 : vector<24x1xi32> to vector<24x1xf32>
    %488 = vector.broadcast %487 : vector<24x1xf32> to vector<24x128xf32>
    %489 = arith.mulf %478, %488 : vector<24x128xf32>
    %490 = arith.addf %477, %489 : vector<24x128xf32>
    %c12_172 = arith.constant 12 : index
    %c0_173 = arith.constant 0 : index
    %491 = vector.load %arg9[%c12_172, %c0_173] : memref<56x128xf32, #tpu.memory_space<vmem>>, vector<24x128xf32>
    %c-2_i32_174 = arith.constant -2 : i32
    %492 = vector.broadcast %c-2_i32_174 : i32 to vector<24x1xi32>
    %493 = arith.addi %29, %492 : vector<24x1xi32>
    %c0_i32_175 = arith.constant 0 : i32
    %494 = vector.broadcast %c0_i32_175 : i32 to vector<24x1xi32>
    %495 = arith.cmpi sge, %493, %494 : vector<24x1xi32>
    %c2_i32_176 = arith.constant 2 : i32
    %496 = vector.broadcast %c2_i32_176 : i32 to vector<24x1xi32>
    %497 = arith.cmpi slt, %493, %496 : vector<24x1xi32>
    %498 = arith.andi %495, %497 : vector<24x1xi1>
    %499 = arith.extui %498 : vector<24x1xi1> to vector<24x1xi32>
    %500 = arith.sitofp %499 : vector<24x1xi32> to vector<24x1xf32>
    %501 = vector.broadcast %500 : vector<24x1xf32> to vector<24x128xf32>
    %502 = arith.mulf %491, %501 : vector<24x128xf32>
    %503 = vector.extract_strided_slice %502 {offsets = [0, 96], sizes = [24, 32], strides = [1, 1]} : vector<24x128xf32> to vector<24x32xf32>
    %504 = vector.extract_strided_slice %502 {offsets = [0, 0], sizes = [24, 96], strides = [1, 1]} : vector<24x128xf32> to vector<24x96xf32>
    %505 = tpu.concatenate %503, %504 in 1 : vector<24x32xf32>, vector<24x96xf32> -> vector<24x128xf32>
    %506 = arith.addf %490, %505 : vector<24x128xf32>
    %c13_177 = arith.constant 13 : index
    %c0_178 = arith.constant 0 : index
    %507 = vector.load %arg9[%c13_177, %c0_178] : memref<56x128xf32, #tpu.memory_space<vmem>>, vector<24x128xf32>
    %c-1_i32_179 = arith.constant -1 : i32
    %508 = vector.broadcast %c-1_i32_179 : i32 to vector<24x1xi32>
    %509 = arith.addi %29, %508 : vector<24x1xi32>
    %c0_i32_180 = arith.constant 0 : i32
    %510 = vector.broadcast %c0_i32_180 : i32 to vector<24x1xi32>
    %511 = arith.cmpi sge, %509, %510 : vector<24x1xi32>
    %c2_i32_181 = arith.constant 2 : i32
    %512 = vector.broadcast %c2_i32_181 : i32 to vector<24x1xi32>
    %513 = arith.cmpi slt, %509, %512 : vector<24x1xi32>
    %514 = arith.andi %511, %513 : vector<24x1xi1>
    %515 = arith.extui %514 : vector<24x1xi1> to vector<24x1xi32>
    %516 = arith.sitofp %515 : vector<24x1xi32> to vector<24x1xf32>
    %517 = vector.broadcast %516 : vector<24x1xf32> to vector<24x128xf32>
    %518 = arith.mulf %507, %517 : vector<24x128xf32>
    %519 = vector.extract_strided_slice %518 {offsets = [0, 64], sizes = [24, 64], strides = [1, 1]} : vector<24x128xf32> to vector<24x64xf32>
    %520 = vector.extract_strided_slice %518 {offsets = [0, 0], sizes = [24, 64], strides = [1, 1]} : vector<24x128xf32> to vector<24x64xf32>
    %521 = tpu.concatenate %519, %520 in 1 : vector<24x64xf32>, vector<24x64xf32> -> vector<24x128xf32>
    %522 = arith.addf %506, %521 : vector<24x128xf32>
    %c14_182 = arith.constant 14 : index
    %c0_183 = arith.constant 0 : index
    %523 = vector.load %arg9[%c14_182, %c0_183] : memref<56x128xf32, #tpu.memory_space<vmem>>, vector<24x128xf32>
    %524 = vector.extract_strided_slice %523 {offsets = [0, 32], sizes = [24, 96], strides = [1, 1]} : vector<24x128xf32> to vector<24x96xf32>
    %525 = vector.extract_strided_slice %523 {offsets = [0, 0], sizes = [24, 32], strides = [1, 1]} : vector<24x128xf32> to vector<24x32xf32>
    %526 = tpu.concatenate %524, %525 in 1 : vector<24x96xf32>, vector<24x32xf32> -> vector<24x128xf32>
    %527 = arith.addf %522, %526 : vector<24x128xf32>
    %c0_184 = arith.constant 0 : index
    %c128_185 = arith.constant 128 : index
    %528 = vector.load %arg11[%c0_184, %c128_185] : memref<24x896xf32, #tpu.memory_space<vmem>>, vector<24x128xf32>
    tpu.vector_store %arg11[%c0_184, %c128_185], %527 {strides = array<i32>} : memref<24x896xf32, #tpu.memory_space<vmem>>, vector<24x128xf32>,
    %cst_186 = arith.constant 0.000000e+00 : f32
    %529 = vector.broadcast %cst_186 : f32 to vector<24x128xf32>
    %c15_187 = arith.constant 15 : index
    %c0_188 = arith.constant 0 : index
    %530 = vector.load %arg9[%c15_187, %c0_188] : memref<56x128xf32, #tpu.memory_space<vmem>>, vector<24x128xf32>
    %c1_i32_189 = arith.constant 1 : i32
    %531 = vector.broadcast %c1_i32_189 : i32 to vector<24x1xi32>
    %532 = arith.addi %29, %531 : vector<24x1xi32>
    %c0_i32_190 = arith.constant 0 : i32
    %533 = vector.broadcast %c0_i32_190 : i32 to vector<24x1xi32>
    %534 = arith.cmpi sge, %532, %533 : vector<24x1xi32>
    %c2_i32_191 = arith.constant 2 : i32
    %535 = vector.broadcast %c2_i32_191 : i32 to vector<24x1xi32>
    %536 = arith.cmpi slt, %532, %535 : vector<24x1xi32>
    %537 = arith.andi %534, %536 : vector<24x1xi1>
    %538 = arith.extui %537 : vector<24x1xi1> to vector<24x1xi32>
    %539 = arith.sitofp %538 : vector<24x1xi32> to vector<24x1xf32>
    %540 = vector.broadcast %539 : vector<24x1xf32> to vector<24x128xf32>
    %541 = arith.mulf %530, %540 : vector<24x128xf32>
    %542 = arith.addf %529, %541 : vector<24x128xf32>
    %c16_192 = arith.constant 16 : index
    %c0_193 = arith.constant 0 : index
    %543 = vector.load %arg9[%c16_192, %c0_193] : memref<56x128xf32, #tpu.memory_space<vmem>>, vector<24x128xf32>
    %c2_i32_194 = arith.constant 2 : i32
    %544 = vector.broadcast %c2_i32_194 : i32 to vector<24x1xi32>
    %545 = arith.addi %29, %544 : vector<24x1xi32>
    %c0_i32_195 = arith.constant 0 : i32
    %546 = vector.broadcast %c0_i32_195 : i32 to vector<24x1xi32>
    %547 = arith.cmpi sge, %545, %546 : vector<24x1xi32>
    %c2_i32_196 = arith.constant 2 : i32
    %548 = vector.broadcast %c2_i32_196 : i32 to vector<24x1xi32>
    %549 = arith.cmpi slt, %545, %548 : vector<24x1xi32>
    %550 = arith.andi %547, %549 : vector<24x1xi1>
    %551 = arith.extui %550 : vector<24x1xi1> to vector<24x1xi32>
    %552 = arith.sitofp %551 : vector<24x1xi32> to vector<24x1xf32>
    %553 = vector.broadcast %552 : vector<24x1xf32> to vector<24x128xf32>
    %554 = arith.mulf %543, %553 : vector<24x128xf32>
    %555 = vector.extract_strided_slice %554 {offsets = [0, 96], sizes = [24, 32], strides = [1, 1]} : vector<24x128xf32> to vector<24x32xf32>
    %556 = vector.extract_strided_slice %554 {offsets = [0, 0], sizes = [24, 96], strides = [1, 1]} : vector<24x128xf32> to vector<24x96xf32>
    %557 = tpu.concatenate %555, %556 in 1 : vector<24x32xf32>, vector<24x96xf32> -> vector<24x128xf32>
    %558 = arith.addf %542, %557 : vector<24x128xf32>
    %c14_197 = arith.constant 14 : index
    %c0_198 = arith.constant 0 : index
    %559 = vector.load %arg9[%c14_197, %c0_198] : memref<56x128xf32, #tpu.memory_space<vmem>>, vector<24x128xf32>
    %c-2_i32_199 = arith.constant -2 : i32
    %560 = vector.broadcast %c-2_i32_199 : i32 to vector<24x1xi32>
    %561 = arith.addi %29, %560 : vector<24x1xi32>
    %c0_i32_200 = arith.constant 0 : i32
    %562 = vector.broadcast %c0_i32_200 : i32 to vector<24x1xi32>
    %563 = arith.cmpi sge, %561, %562 : vector<24x1xi32>
    %c2_i32_201 = arith.constant 2 : i32
    %564 = vector.broadcast %c2_i32_201 : i32 to vector<24x1xi32>
    %565 = arith.cmpi slt, %561, %564 : vector<24x1xi32>
    %566 = arith.andi %563, %565 : vector<24x1xi1>
    %567 = arith.extui %566 : vector<24x1xi1> to vector<24x1xi32>
    %568 = arith.sitofp %567 : vector<24x1xi32> to vector<24x1xf32>
    %569 = vector.broadcast %568 : vector<24x1xf32> to vector<24x128xf32>
    %570 = arith.mulf %559, %569 : vector<24x128xf32>
    %571 = vector.extract_strided_slice %570 {offsets = [0, 64], sizes = [24, 64], strides = [1, 1]} : vector<24x128xf32> to vector<24x64xf32>
    %572 = vector.extract_strided_slice %570 {offsets = [0, 0], sizes = [24, 64], strides = [1, 1]} : vector<24x128xf32> to vector<24x64xf32>
    %573 = tpu.concatenate %571, %572 in 1 : vector<24x64xf32>, vector<24x64xf32> -> vector<24x128xf32>
    %574 = arith.addf %558, %573 : vector<24x128xf32>
    %c15_202 = arith.constant 15 : index
    %c0_203 = arith.constant 0 : index
    %575 = vector.load %arg9[%c15_202, %c0_203] : memref<56x128xf32, #tpu.memory_space<vmem>>, vector<24x128xf32>
    %c-1_i32_204 = arith.constant -1 : i32
    %576 = vector.broadcast %c-1_i32_204 : i32 to vector<24x1xi32>
    %577 = arith.addi %29, %576 : vector<24x1xi32>
    %c0_i32_205 = arith.constant 0 : i32
    %578 = vector.broadcast %c0_i32_205 : i32 to vector<24x1xi32>
    %579 = arith.cmpi sge, %577, %578 : vector<24x1xi32>
    %c2_i32_206 = arith.constant 2 : i32
    %580 = vector.broadcast %c2_i32_206 : i32 to vector<24x1xi32>
    %581 = arith.cmpi slt, %577, %580 : vector<24x1xi32>
    %582 = arith.andi %579, %581 : vector<24x1xi1>
    %583 = arith.extui %582 : vector<24x1xi1> to vector<24x1xi32>
    %584 = arith.sitofp %583 : vector<24x1xi32> to vector<24x1xf32>
    %585 = vector.broadcast %584 : vector<24x1xf32> to vector<24x128xf32>
    %586 = arith.mulf %575, %585 : vector<24x128xf32>
    %587 = vector.extract_strided_slice %586 {offsets = [0, 32], sizes = [24, 96], strides = [1, 1]} : vector<24x128xf32> to vector<24x96xf32>
    %588 = vector.extract_strided_slice %586 {offsets = [0, 0], sizes = [24, 32], strides = [1, 1]} : vector<24x128xf32> to vector<24x32xf32>
    %589 = tpu.concatenate %587, %588 in 1 : vector<24x96xf32>, vector<24x32xf32> -> vector<24x128xf32>
    %590 = arith.addf %574, %589 : vector<24x128xf32>
    %c0_207 = arith.constant 0 : index
    %c256_208 = arith.constant 256 : index
    %591 = vector.load %arg11[%c0_207, %c256_208] : memref<24x896xf32, #tpu.memory_space<vmem>>, vector<24x128xf32>
    tpu.vector_store %arg11[%c0_207, %c256_208], %590 {strides = array<i32>} : memref<24x896xf32, #tpu.memory_space<vmem>>, vector<24x128xf32>,
    %cst_209 = arith.constant 0.000000e+00 : f32
    %592 = vector.broadcast %cst_209 : f32 to vector<24x128xf32>
    %c16_210 = arith.constant 16 : index
    %c0_211 = arith.constant 0 : index
    %593 = vector.load %arg9[%c16_210, %c0_211] : memref<56x128xf32, #tpu.memory_space<vmem>>, vector<24x128xf32>
    %594 = arith.addf %592, %593 : vector<24x128xf32>
    %c17_212 = arith.constant 17 : index
    %c0_213 = arith.constant 0 : index
    %595 = vector.load %arg9[%c17_212, %c0_213] : memref<56x128xf32, #tpu.memory_space<vmem>>, vector<24x128xf32>
    %c1_i32_214 = arith.constant 1 : i32
    %596 = vector.broadcast %c1_i32_214 : i32 to vector<24x1xi32>
    %597 = arith.addi %29, %596 : vector<24x1xi32>
    %c0_i32_215 = arith.constant 0 : i32
    %598 = vector.broadcast %c0_i32_215 : i32 to vector<24x1xi32>
    %599 = arith.cmpi sge, %597, %598 : vector<24x1xi32>
    %c2_i32_216 = arith.constant 2 : i32
    %600 = vector.broadcast %c2_i32_216 : i32 to vector<24x1xi32>
    %601 = arith.cmpi slt, %597, %600 : vector<24x1xi32>
    %602 = arith.andi %599, %601 : vector<24x1xi1>
    %603 = arith.extui %602 : vector<24x1xi1> to vector<24x1xi32>
    %604 = arith.sitofp %603 : vector<24x1xi32> to vector<24x1xf32>
    %605 = vector.broadcast %604 : vector<24x1xf32> to vector<24x128xf32>
    %606 = arith.mulf %595, %605 : vector<24x128xf32>
    %607 = vector.extract_strided_slice %606 {offsets = [0, 96], sizes = [24, 32], strides = [1, 1]} : vector<24x128xf32> to vector<24x32xf32>
    %608 = vector.extract_strided_slice %606 {offsets = [0, 0], sizes = [24, 96], strides = [1, 1]} : vector<24x128xf32> to vector<24x96xf32>
    %609 = tpu.concatenate %607, %608 in 1 : vector<24x32xf32>, vector<24x96xf32> -> vector<24x128xf32>
    %610 = arith.addf %594, %609 : vector<24x128xf32>
    %c18_217 = arith.constant 18 : index
    %c0_218 = arith.constant 0 : index
    %611 = vector.load %arg9[%c18_217, %c0_218] : memref<56x128xf32, #tpu.memory_space<vmem>>, vector<24x128xf32>
    %c2_i32_219 = arith.constant 2 : i32
    %612 = vector.broadcast %c2_i32_219 : i32 to vector<24x1xi32>
    %613 = arith.addi %29, %612 : vector<24x1xi32>
    %c0_i32_220 = arith.constant 0 : i32
    %614 = vector.broadcast %c0_i32_220 : i32 to vector<24x1xi32>
    %615 = arith.cmpi sge, %613, %614 : vector<24x1xi32>
    %c2_i32_221 = arith.constant 2 : i32
    %616 = vector.broadcast %c2_i32_221 : i32 to vector<24x1xi32>
    %617 = arith.cmpi slt, %613, %616 : vector<24x1xi32>
    %618 = arith.andi %615, %617 : vector<24x1xi1>
    %619 = arith.extui %618 : vector<24x1xi1> to vector<24x1xi32>
    %620 = arith.sitofp %619 : vector<24x1xi32> to vector<24x1xf32>
    %621 = vector.broadcast %620 : vector<24x1xf32> to vector<24x128xf32>
    %622 = arith.mulf %611, %621 : vector<24x128xf32>
    %623 = vector.extract_strided_slice %622 {offsets = [0, 64], sizes = [24, 64], strides = [1, 1]} : vector<24x128xf32> to vector<24x64xf32>
    %624 = vector.extract_strided_slice %622 {offsets = [0, 0], sizes = [24, 64], strides = [1, 1]} : vector<24x128xf32> to vector<24x64xf32>
    %625 = tpu.concatenate %623, %624 in 1 : vector<24x64xf32>, vector<24x64xf32> -> vector<24x128xf32>
    %626 = arith.addf %610, %625 : vector<24x128xf32>
    %c16_222 = arith.constant 16 : index
    %c0_223 = arith.constant 0 : index
    %627 = vector.load %arg9[%c16_222, %c0_223] : memref<56x128xf32, #tpu.memory_space<vmem>>, vector<24x128xf32>
    %c-2_i32_224 = arith.constant -2 : i32
    %628 = vector.broadcast %c-2_i32_224 : i32 to vector<24x1xi32>
    %629 = arith.addi %29, %628 : vector<24x1xi32>
    %c0_i32_225 = arith.constant 0 : i32
    %630 = vector.broadcast %c0_i32_225 : i32 to vector<24x1xi32>
    %631 = arith.cmpi sge, %629, %630 : vector<24x1xi32>
    %c2_i32_226 = arith.constant 2 : i32
    %632 = vector.broadcast %c2_i32_226 : i32 to vector<24x1xi32>
    %633 = arith.cmpi slt, %629, %632 : vector<24x1xi32>
    %634 = arith.andi %631, %633 : vector<24x1xi1>
    %635 = arith.extui %634 : vector<24x1xi1> to vector<24x1xi32>
    %636 = arith.sitofp %635 : vector<24x1xi32> to vector<24x1xf32>
    %637 = vector.broadcast %636 : vector<24x1xf32> to vector<24x128xf32>
    %638 = arith.mulf %627, %637 : vector<24x128xf32>
    %639 = vector.extract_strided_slice %638 {offsets = [0, 32], sizes = [24, 96], strides = [1, 1]} : vector<24x128xf32> to vector<24x96xf32>
    %640 = vector.extract_strided_slice %638 {offsets = [0, 0], sizes = [24, 32], strides = [1, 1]} : vector<24x128xf32> to vector<24x32xf32>
    %641 = tpu.concatenate %639, %640 in 1 : vector<24x96xf32>, vector<24x32xf32> -> vector<24x128xf32>
    %642 = arith.addf %626, %641 : vector<24x128xf32>
    %c0_227 = arith.constant 0 : index
    %c384_228 = arith.constant 384 : index
    %643 = vector.load %arg11[%c0_227, %c384_228] : memref<24x896xf32, #tpu.memory_space<vmem>>, vector<24x128xf32>
    tpu.vector_store %arg11[%c0_227, %c384_228], %642 {strides = array<i32>} : memref<24x896xf32, #tpu.memory_space<vmem>>, vector<24x128xf32>,
    %cst_229 = arith.constant 0.000000e+00 : f32
    %644 = vector.broadcast %cst_229 : f32 to vector<24x128xf32>
    %c17_230 = arith.constant 17 : index
    %c0_231 = arith.constant 0 : index
    %645 = vector.load %arg9[%c17_230, %c0_231] : memref<56x128xf32, #tpu.memory_space<vmem>>, vector<24x128xf32>
    %c-1_i32_232 = arith.constant -1 : i32
    %646 = vector.broadcast %c-1_i32_232 : i32 to vector<24x1xi32>
    %647 = arith.addi %29, %646 : vector<24x1xi32>
    %c0_i32_233 = arith.constant 0 : i32
    %648 = vector.broadcast %c0_i32_233 : i32 to vector<24x1xi32>
    %649 = arith.cmpi sge, %647, %648 : vector<24x1xi32>
    %c2_i32_234 = arith.constant 2 : i32
    %650 = vector.broadcast %c2_i32_234 : i32 to vector<24x1xi32>
    %651 = arith.cmpi slt, %647, %650 : vector<24x1xi32>
    %652 = arith.andi %649, %651 : vector<24x1xi1>
    %653 = arith.extui %652 : vector<24x1xi1> to vector<24x1xi32>
    %654 = arith.sitofp %653 : vector<24x1xi32> to vector<24x1xf32>
    %655 = vector.broadcast %654 : vector<24x1xf32> to vector<24x128xf32>
    %656 = arith.mulf %645, %655 : vector<24x128xf32>
    %657 = arith.addf %644, %656 : vector<24x128xf32>
    %c18_235 = arith.constant 18 : index
    %c0_236 = arith.constant 0 : index
    %658 = vector.load %arg9[%c18_235, %c0_236] : memref<56x128xf32, #tpu.memory_space<vmem>>, vector<24x128xf32>
    %659 = vector.extract_strided_slice %658 {offsets = [0, 96], sizes = [24, 32], strides = [1, 1]} : vector<24x128xf32> to vector<24x32xf32>
    %660 = vector.extract_strided_slice %658 {offsets = [0, 0], sizes = [24, 96], strides = [1, 1]} : vector<24x128xf32> to vector<24x96xf32>
    %661 = tpu.concatenate %659, %660 in 1 : vector<24x32xf32>, vector<24x96xf32> -> vector<24x128xf32>
    %662 = arith.addf %657, %661 : vector<24x128xf32>
    %c19_237 = arith.constant 19 : index
    %c0_238 = arith.constant 0 : index
    %663 = vector.load %arg9[%c19_237, %c0_238] : memref<56x128xf32, #tpu.memory_space<vmem>>, vector<24x128xf32>
    %c1_i32_239 = arith.constant 1 : i32
    %664 = vector.broadcast %c1_i32_239 : i32 to vector<24x1xi32>
    %665 = arith.addi %29, %664 : vector<24x1xi32>
    %c0_i32_240 = arith.constant 0 : i32
    %666 = vector.broadcast %c0_i32_240 : i32 to vector<24x1xi32>
    %667 = arith.cmpi sge, %665, %666 : vector<24x1xi32>
    %c2_i32_241 = arith.constant 2 : i32
    %668 = vector.broadcast %c2_i32_241 : i32 to vector<24x1xi32>
    %669 = arith.cmpi slt, %665, %668 : vector<24x1xi32>
    %670 = arith.andi %667, %669 : vector<24x1xi1>
    %671 = arith.extui %670 : vector<24x1xi1> to vector<24x1xi32>
    %672 = arith.sitofp %671 : vector<24x1xi32> to vector<24x1xf32>
    %673 = vector.broadcast %672 : vector<24x1xf32> to vector<24x128xf32>
    %674 = arith.mulf %663, %673 : vector<24x128xf32>
    %675 = vector.extract_strided_slice %674 {offsets = [0, 64], sizes = [24, 64], strides = [1, 1]} : vector<24x128xf32> to vector<24x64xf32>
    %676 = vector.extract_strided_slice %674 {offsets = [0, 0], sizes = [24, 64], strides = [1, 1]} : vector<24x128xf32> to vector<24x64xf32>
    %677 = tpu.concatenate %675, %676 in 1 : vector<24x64xf32>, vector<24x64xf32> -> vector<24x128xf32>
    %678 = arith.addf %662, %677 : vector<24x128xf32>
    %c20_242 = arith.constant 20 : index
    %c0_243 = arith.constant 0 : index
    %679 = vector.load %arg9[%c20_242, %c0_243] : memref<56x128xf32, #tpu.memory_space<vmem>>, vector<24x128xf32>
    %c2_i32_244 = arith.constant 2 : i32
    %680 = vector.broadcast %c2_i32_244 : i32 to vector<24x1xi32>
    %681 = arith.addi %29, %680 : vector<24x1xi32>
    %c0_i32_245 = arith.constant 0 : i32
    %682 = vector.broadcast %c0_i32_245 : i32 to vector<24x1xi32>
    %683 = arith.cmpi sge, %681, %682 : vector<24x1xi32>
    %c2_i32_246 = arith.constant 2 : i32
    %684 = vector.broadcast %c2_i32_246 : i32 to vector<24x1xi32>
    %685 = arith.cmpi slt, %681, %684 : vector<24x1xi32>
    %686 = arith.andi %683, %685 : vector<24x1xi1>
    %687 = arith.extui %686 : vector<24x1xi1> to vector<24x1xi32>
    %688 = arith.sitofp %687 : vector<24x1xi32> to vector<24x1xf32>
    %689 = vector.broadcast %688 : vector<24x1xf32> to vector<24x128xf32>
    %690 = arith.mulf %679, %689 : vector<24x128xf32>
    %691 = vector.extract_strided_slice %690 {offsets = [0, 32], sizes = [24, 96], strides = [1, 1]} : vector<24x128xf32> to vector<24x96xf32>
    %692 = vector.extract_strided_slice %690 {offsets = [0, 0], sizes = [24, 32], strides = [1, 1]} : vector<24x128xf32> to vector<24x32xf32>
    %693 = tpu.concatenate %691, %692 in 1 : vector<24x96xf32>, vector<24x32xf32> -> vector<24x128xf32>
    %694 = arith.addf %678, %693 : vector<24x128xf32>
    %c0_247 = arith.constant 0 : index
    %c512 = arith.constant 512 : index
    %695 = vector.load %arg11[%c0_247, %c512] : memref<24x896xf32, #tpu.memory_space<vmem>>, vector<24x128xf32>
    tpu.vector_store %arg11[%c0_247, %c512], %694 {strides = array<i32>} : memref<24x896xf32, #tpu.memory_space<vmem>>, vector<24x128xf32>,
    %cst_248 = arith.constant 0.000000e+00 : f32
    %696 = vector.broadcast %cst_248 : f32 to vector<24x128xf32>
    %c18_249 = arith.constant 18 : index
    %c0_250 = arith.constant 0 : index
    %697 = vector.load %arg9[%c18_249, %c0_250] : memref<56x128xf32, #tpu.memory_space<vmem>>, vector<24x128xf32>
    %c-2_i32_251 = arith.constant -2 : i32
    %698 = vector.broadcast %c-2_i32_251 : i32 to vector<24x1xi32>
    %699 = arith.addi %29, %698 : vector<24x1xi32>
    %c0_i32_252 = arith.constant 0 : i32
    %700 = vector.broadcast %c0_i32_252 : i32 to vector<24x1xi32>
    %701 = arith.cmpi sge, %699, %700 : vector<24x1xi32>
    %c2_i32_253 = arith.constant 2 : i32
    %702 = vector.broadcast %c2_i32_253 : i32 to vector<24x1xi32>
    %703 = arith.cmpi slt, %699, %702 : vector<24x1xi32>
    %704 = arith.andi %701, %703 : vector<24x1xi1>
    %705 = arith.extui %704 : vector<24x1xi1> to vector<24x1xi32>
    %706 = arith.sitofp %705 : vector<24x1xi32> to vector<24x1xf32>
    %707 = vector.broadcast %706 : vector<24x1xf32> to vector<24x128xf32>
    %708 = arith.mulf %697, %707 : vector<24x128xf32>
    %709 = arith.addf %696, %708 : vector<24x128xf32>
    %c19_254 = arith.constant 19 : index
    %c0_255 = arith.constant 0 : index
    %710 = vector.load %arg9[%c19_254, %c0_255] : memref<56x128xf32, #tpu.memory_space<vmem>>, vector<24x128xf32>
    %c-1_i32_256 = arith.constant -1 : i32
    %711 = vector.broadcast %c-1_i32_256 : i32 to vector<24x1xi32>
    %712 = arith.addi %29, %711 : vector<24x1xi32>
    %c0_i32_257 = arith.constant 0 : i32
    %713 = vector.broadcast %c0_i32_257 : i32 to vector<24x1xi32>
    %714 = arith.cmpi sge, %712, %713 : vector<24x1xi32>
    %c2_i32_258 = arith.constant 2 : i32
    %715 = vector.broadcast %c2_i32_258 : i32 to vector<24x1xi32>
    %716 = arith.cmpi slt, %712, %715 : vector<24x1xi32>
    %717 = arith.andi %714, %716 : vector<24x1xi1>
    %718 = arith.extui %717 : vector<24x1xi1> to vector<24x1xi32>
    %719 = arith.sitofp %718 : vector<24x1xi32> to vector<24x1xf32>
    %720 = vector.broadcast %719 : vector<24x1xf32> to vector<24x128xf32>
    %721 = arith.mulf %710, %720 : vector<24x128xf32>
    %722 = vector.extract_strided_slice %721 {offsets = [0, 96], sizes = [24, 32], strides = [1, 1]} : vector<24x128xf32> to vector<24x32xf32>
    %723 = vector.extract_strided_slice %721 {offsets = [0, 0], sizes = [24, 96], strides = [1, 1]} : vector<24x128xf32> to vector<24x96xf32>
    %724 = tpu.concatenate %722, %723 in 1 : vector<24x32xf32>, vector<24x96xf32> -> vector<24x128xf32>
    %725 = arith.addf %709, %724 : vector<24x128xf32>
    %c20_259 = arith.constant 20 : index
    %c0_260 = arith.constant 0 : index
    %726 = vector.load %arg9[%c20_259, %c0_260] : memref<56x128xf32, #tpu.memory_space<vmem>>, vector<24x128xf32>
    %727 = vector.extract_strided_slice %726 {offsets = [0, 64], sizes = [24, 64], strides = [1, 1]} : vector<24x128xf32> to vector<24x64xf32>
    %728 = vector.extract_strided_slice %726 {offsets = [0, 0], sizes = [24, 64], strides = [1, 1]} : vector<24x128xf32> to vector<24x64xf32>
    %729 = tpu.concatenate %727, %728 in 1 : vector<24x64xf32>, vector<24x64xf32> -> vector<24x128xf32>
    %730 = arith.addf %725, %729 : vector<24x128xf32>
    %c21_261 = arith.constant 21 : index
    %c0_262 = arith.constant 0 : index
    %731 = vector.load %arg9[%c21_261, %c0_262] : memref<56x128xf32, #tpu.memory_space<vmem>>, vector<24x128xf32>
    %c1_i32_263 = arith.constant 1 : i32
    %732 = vector.broadcast %c1_i32_263 : i32 to vector<24x1xi32>
    %733 = arith.addi %29, %732 : vector<24x1xi32>
    %c0_i32_264 = arith.constant 0 : i32
    %734 = vector.broadcast %c0_i32_264 : i32 to vector<24x1xi32>
    %735 = arith.cmpi sge, %733, %734 : vector<24x1xi32>
    %c2_i32_265 = arith.constant 2 : i32
    %736 = vector.broadcast %c2_i32_265 : i32 to vector<24x1xi32>
    %737 = arith.cmpi slt, %733, %736 : vector<24x1xi32>
    %738 = arith.andi %735, %737 : vector<24x1xi1>
    %739 = arith.extui %738 : vector<24x1xi1> to vector<24x1xi32>
    %740 = arith.sitofp %739 : vector<24x1xi32> to vector<24x1xf32>
    %741 = vector.broadcast %740 : vector<24x1xf32> to vector<24x128xf32>
    %742 = arith.mulf %731, %741 : vector<24x128xf32>
    %743 = vector.extract_strided_slice %742 {offsets = [0, 32], sizes = [24, 96], strides = [1, 1]} : vector<24x128xf32> to vector<24x96xf32>
    %744 = vector.extract_strided_slice %742 {offsets = [0, 0], sizes = [24, 32], strides = [1, 1]} : vector<24x128xf32> to vector<24x32xf32>
    %745 = tpu.concatenate %743, %744 in 1 : vector<24x96xf32>, vector<24x32xf32> -> vector<24x128xf32>
    %746 = arith.addf %730, %745 : vector<24x128xf32>
    %c0_266 = arith.constant 0 : index
    %c640 = arith.constant 640 : index
    %747 = vector.load %arg11[%c0_266, %c640] : memref<24x896xf32, #tpu.memory_space<vmem>>, vector<24x128xf32>
    tpu.vector_store %arg11[%c0_266, %c640], %746 {strides = array<i32>} : memref<24x896xf32, #tpu.memory_space<vmem>>, vector<24x128xf32>,
    %cst_267 = arith.constant 0.000000e+00 : f32
    %748 = vector.broadcast %cst_267 : f32 to vector<24x128xf32>
    %c22_268 = arith.constant 22 : index
    %c0_269 = arith.constant 0 : index
    %749 = vector.load %arg9[%c22_268, %c0_269] : memref<56x128xf32, #tpu.memory_space<vmem>>, vector<24x128xf32>
    %c2_i32_270 = arith.constant 2 : i32
    %750 = vector.broadcast %c2_i32_270 : i32 to vector<24x1xi32>
    %751 = arith.addi %29, %750 : vector<24x1xi32>
    %c0_i32_271 = arith.constant 0 : i32
    %752 = vector.broadcast %c0_i32_271 : i32 to vector<24x1xi32>
    %753 = arith.cmpi sge, %751, %752 : vector<24x1xi32>
    %c2_i32_272 = arith.constant 2 : i32
    %754 = vector.broadcast %c2_i32_272 : i32 to vector<24x1xi32>
    %755 = arith.cmpi slt, %751, %754 : vector<24x1xi32>
    %756 = arith.andi %753, %755 : vector<24x1xi1>
    %757 = arith.extui %756 : vector<24x1xi1> to vector<24x1xi32>
    %758 = arith.sitofp %757 : vector<24x1xi32> to vector<24x1xf32>
    %759 = vector.broadcast %758 : vector<24x1xf32> to vector<24x128xf32>
    %760 = arith.mulf %749, %759 : vector<24x128xf32>
    %761 = arith.addf %748, %760 : vector<24x128xf32>
    %c0_273 = arith.constant 0 : index
    %c768 = arith.constant 768 : index
    %762 = vector.load %arg11[%c0_273, %c768] : memref<24x896xf32, #tpu.memory_space<vmem>>, vector<24x128xf32>
    tpu.vector_store %arg11[%c0_273, %c768], %761 {strides = array<i32>} : memref<24x896xf32, #tpu.memory_space<vmem>>, vector<24x128xf32>,
    %c0_274 = arith.constant 0 : index
    %c0_275 = arith.constant 0 : index
    %763 = vector.load %arg11[%c0_274, %c0_275] : memref<24x896xf32, #tpu.memory_space<vmem>>, vector<24x896xf32>
    %c0_276 = arith.constant 0 : index
    %c0_277 = arith.constant 0 : index
    %764 = vector.load %arg5[%c0_276, %c0_277] : memref<896x128xf32, #tpu.memory_space<vmem>>, vector<896x128xf32>
    %cst_278 = arith.constant dense<0.000000e+00> : vector<24x128xf32>
    %765 = tpu.matmul %763, %764, %cst_278 {dimension_numbers = #tpu.dot_dimension_numbers<[1], [0], [0], [1], [0, 0, 1, 1], [], []>} : vector<24x896xf32>, vector<896x128xf32>, vector<24x128xf32> -> vector<24x128xf32>
    %c0_279 = arith.constant 0 : index
    %c0_280 = arith.constant 0 : index
    %766 = vector.load %arg6[%c0_279, %c0_280] : memref<1x128xf32, #tpu.memory_space<vmem>>, vector<1x128xf32>
    %767 = vector.broadcast %766 : vector<1x128xf32> to vector<24x128xf32>
    %768 = arith.addf %765, %767 : vector<24x128xf32>
    %769 = arith.index_cast %arg0 : i32 to index
    %c0_281 = arith.constant 0 : index
    %770 = memref.load %arg1[%769, %c0_281] : memref<2x2xf32, #tpu.memory_space<smem>>
    %771 = vector.extract_strided_slice %768 {offsets = [0, 0], sizes = [16, 128], strides = [1, 1]} : vector<24x128xf32> to vector<16x128xf32>
    %772 = vector.broadcast %770 : f32 to vector<16x128xf32>
    %773 = arith.mulf %772, %771 : vector<16x128xf32>
    %774 = arith.addf %3, %773 : vector<16x128xf32>
    %c5_i32 = arith.constant 5 : i32
    %c0_i32_282 = arith.constant 0 : i32
    %775 = arith.cmpi eq, %c5_i32, %c0_i32_282 : i32
    %c1_i32_283 = arith.constant 1 : i32
    %776 = arith.select %775, %c1_i32_283, %c5_i32 : i32
    %777 = vector.broadcast %776 : i32 to vector<24x1xi32>
    %778 = arith.remsi %13, %777 : vector<24x1xi32>
    %c0_i32_284 = arith.constant 0 : i32
    %779 = vector.broadcast %c0_i32_284 : i32 to vector<24x1xi32>
    %780 = arith.cmpi ne, %778, %779 : vector<24x1xi32>
    %c0_i32_285 = arith.constant 0 : i32
    %781 = vector.broadcast %c0_i32_285 : i32 to vector<24x1xi32>
    %782 = arith.cmpi slt, %778, %781 : vector<24x1xi32>
    %c0_i32_286 = arith.constant 0 : i32
    %783 = arith.cmpi slt, %776, %c0_i32_286 : i32
    %784 = vector.broadcast %783 : i1 to vector<24x1xi1>
    %785 = vector.broadcast %784 : vector<24x1xi1> to vector<24x1xi1>
    %786 = arith.xori %782, %785 : vector<24x1xi1>
    %787 = arith.andi %786, %780 : vector<24x1xi1>
    %788 = vector.broadcast %776 : i32 to vector<24x1xi32>
    %789 = arith.addi %778, %788 : vector<24x1xi32>
    %790 = arith.select %787, %789, %778 : vector<24x1xi1>, vector<24x1xi32>
    %cst_287 = arith.constant 0.000000e+00 : f32
    %791 = vector.broadcast %cst_287 : f32 to vector<24x128xf32>
    %c4 = arith.constant 4 : index
    %c0_288 = arith.constant 0 : index
    %792 = vector.load %arg8[%c4, %c0_288] : memref<56x128xf32, #tpu.memory_space<vmem>>, vector<24x128xf32>
    %c-2_i32_289 = arith.constant -2 : i32
    %793 = vector.broadcast %c-2_i32_289 : i32 to vector<24x1xi32>
    %794 = arith.addi %790, %793 : vector<24x1xi32>
    %c0_i32_290 = arith.constant 0 : i32
    %795 = vector.broadcast %c0_i32_290 : i32 to vector<24x1xi32>
    %796 = arith.cmpi sge, %794, %795 : vector<24x1xi32>
    %c5_i32_291 = arith.constant 5 : i32
    %797 = vector.broadcast %c5_i32_291 : i32 to vector<24x1xi32>
    %798 = arith.cmpi slt, %794, %797 : vector<24x1xi32>
    %799 = arith.andi %796, %798 : vector<24x1xi1>
    %800 = arith.extui %799 : vector<24x1xi1> to vector<24x1xi32>
    %801 = arith.sitofp %800 : vector<24x1xi32> to vector<24x1xf32>
    %802 = vector.broadcast %801 : vector<24x1xf32> to vector<24x128xf32>
    %803 = arith.mulf %792, %802 : vector<24x128xf32>
    %804 = arith.addf %791, %803 : vector<24x128xf32>
    %c5 = arith.constant 5 : index
    %c0_292 = arith.constant 0 : index
    %805 = vector.load %arg8[%c5, %c0_292] : memref<56x128xf32, #tpu.memory_space<vmem>>, vector<24x128xf32>
    %c-1_i32_293 = arith.constant -1 : i32
    %806 = vector.broadcast %c-1_i32_293 : i32 to vector<24x1xi32>
    %807 = arith.addi %790, %806 : vector<24x1xi32>
    %c0_i32_294 = arith.constant 0 : i32
    %808 = vector.broadcast %c0_i32_294 : i32 to vector<24x1xi32>
    %809 = arith.cmpi sge, %807, %808 : vector<24x1xi32>
    %c5_i32_295 = arith.constant 5 : i32
    %810 = vector.broadcast %c5_i32_295 : i32 to vector<24x1xi32>
    %811 = arith.cmpi slt, %807, %810 : vector<24x1xi32>
    %812 = arith.andi %809, %811 : vector<24x1xi1>
    %813 = arith.extui %812 : vector<24x1xi1> to vector<24x1xi32>
    %814 = arith.sitofp %813 : vector<24x1xi32> to vector<24x1xf32>
    %815 = vector.broadcast %814 : vector<24x1xf32> to vector<24x128xf32>
    %816 = arith.mulf %805, %815 : vector<24x128xf32>
    %817 = vector.extract_strided_slice %816 {offsets = [0, 112], sizes = [24, 16], strides = [1, 1]} : vector<24x128xf32> to vector<24x16xf32>
    %818 = vector.extract_strided_slice %816 {offsets = [0, 0], sizes = [24, 112], strides = [1, 1]} : vector<24x128xf32> to vector<24x112xf32>
    %819 = tpu.concatenate %817, %818 in 1 : vector<24x16xf32>, vector<24x112xf32> -> vector<24x128xf32>
    %820 = arith.addf %804, %819 : vector<24x128xf32>
    %c6 = arith.constant 6 : index
    %c0_296 = arith.constant 0 : index
    %821 = vector.load %arg8[%c6, %c0_296] : memref<56x128xf32, #tpu.memory_space<vmem>>, vector<24x128xf32>
    %822 = vector.extract_strided_slice %821 {offsets = [0, 96], sizes = [24, 32], strides = [1, 1]} : vector<24x128xf32> to vector<24x32xf32>
    %823 = vector.extract_strided_slice %821 {offsets = [0, 0], sizes = [24, 96], strides = [1, 1]} : vector<24x128xf32> to vector<24x96xf32>
    %824 = tpu.concatenate %822, %823 in 1 : vector<24x32xf32>, vector<24x96xf32> -> vector<24x128xf32>
    %825 = arith.addf %820, %824 : vector<24x128xf32>
    %c7 = arith.constant 7 : index
    %c0_297 = arith.constant 0 : index
    %826 = vector.load %arg8[%c7, %c0_297] : memref<56x128xf32, #tpu.memory_space<vmem>>, vector<24x128xf32>
    %c1_i32_298 = arith.constant 1 : i32
    %827 = vector.broadcast %c1_i32_298 : i32 to vector<24x1xi32>
    %828 = arith.addi %790, %827 : vector<24x1xi32>
    %c0_i32_299 = arith.constant 0 : i32
    %829 = vector.broadcast %c0_i32_299 : i32 to vector<24x1xi32>
    %830 = arith.cmpi sge, %828, %829 : vector<24x1xi32>
    %c5_i32_300 = arith.constant 5 : i32
    %831 = vector.broadcast %c5_i32_300 : i32 to vector<24x1xi32>
    %832 = arith.cmpi slt, %828, %831 : vector<24x1xi32>
    %833 = arith.andi %830, %832 : vector<24x1xi1>
    %834 = arith.extui %833 : vector<24x1xi1> to vector<24x1xi32>
    %835 = arith.sitofp %834 : vector<24x1xi32> to vector<24x1xf32>
    %836 = vector.broadcast %835 : vector<24x1xf32> to vector<24x128xf32>
    %837 = arith.mulf %826, %836 : vector<24x128xf32>
    %838 = vector.extract_strided_slice %837 {offsets = [0, 80], sizes = [24, 48], strides = [1, 1]} : vector<24x128xf32> to vector<24x48xf32>
    %839 = vector.extract_strided_slice %837 {offsets = [0, 0], sizes = [24, 80], strides = [1, 1]} : vector<24x128xf32> to vector<24x80xf32>
    %840 = tpu.concatenate %838, %839 in 1 : vector<24x48xf32>, vector<24x80xf32> -> vector<24x128xf32>
    %841 = arith.addf %825, %840 : vector<24x128xf32>
    %c8 = arith.constant 8 : index
    %c0_301 = arith.constant 0 : index
    %842 = vector.load %arg8[%c8, %c0_301] : memref<56x128xf32, #tpu.memory_space<vmem>>, vector<24x128xf32>
    %c2_i32_302 = arith.constant 2 : i32
    %843 = vector.broadcast %c2_i32_302 : i32 to vector<24x1xi32>
    %844 = arith.addi %790, %843 : vector<24x1xi32>
    %c0_i32_303 = arith.constant 0 : i32
    %845 = vector.broadcast %c0_i32_303 : i32 to vector<24x1xi32>
    %846 = arith.cmpi sge, %844, %845 : vector<24x1xi32>
    %c5_i32_304 = arith.constant 5 : i32
    %847 = vector.broadcast %c5_i32_304 : i32 to vector<24x1xi32>
    %848 = arith.cmpi slt, %844, %847 : vector<24x1xi32>
    %849 = arith.andi %846, %848 : vector<24x1xi1>
    %850 = arith.extui %849 : vector<24x1xi1> to vector<24x1xi32>
    %851 = arith.sitofp %850 : vector<24x1xi32> to vector<24x1xf32>
    %852 = vector.broadcast %851 : vector<24x1xf32> to vector<24x128xf32>
    %853 = arith.mulf %842, %852 : vector<24x128xf32>
    %854 = vector.extract_strided_slice %853 {offsets = [0, 64], sizes = [24, 64], strides = [1, 1]} : vector<24x128xf32> to vector<24x64xf32>
    %855 = vector.extract_strided_slice %853 {offsets = [0, 0], sizes = [24, 64], strides = [1, 1]} : vector<24x128xf32> to vector<24x64xf32>
    %856 = tpu.concatenate %854, %855 in 1 : vector<24x64xf32>, vector<24x64xf32> -> vector<24x128xf32>
    %857 = arith.addf %841, %856 : vector<24x128xf32>
    %c9 = arith.constant 9 : index
    %c0_305 = arith.constant 0 : index
    %858 = vector.load %arg8[%c9, %c0_305] : memref<56x128xf32, #tpu.memory_space<vmem>>, vector<24x128xf32>
    %c-2_i32_306 = arith.constant -2 : i32
    %859 = vector.broadcast %c-2_i32_306 : i32 to vector<24x1xi32>
    %860 = arith.addi %790, %859 : vector<24x1xi32>
    %c0_i32_307 = arith.constant 0 : i32
    %861 = vector.broadcast %c0_i32_307 : i32 to vector<24x1xi32>
    %862 = arith.cmpi sge, %860, %861 : vector<24x1xi32>
    %c5_i32_308 = arith.constant 5 : i32
    %863 = vector.broadcast %c5_i32_308 : i32 to vector<24x1xi32>
    %864 = arith.cmpi slt, %860, %863 : vector<24x1xi32>
    %865 = arith.andi %862, %864 : vector<24x1xi1>
    %866 = arith.extui %865 : vector<24x1xi1> to vector<24x1xi32>
    %867 = arith.sitofp %866 : vector<24x1xi32> to vector<24x1xf32>
    %868 = vector.broadcast %867 : vector<24x1xf32> to vector<24x128xf32>
    %869 = arith.mulf %858, %868 : vector<24x128xf32>
    %870 = vector.extract_strided_slice %869 {offsets = [0, 48], sizes = [24, 80], strides = [1, 1]} : vector<24x128xf32> to vector<24x80xf32>
    %871 = vector.extract_strided_slice %869 {offsets = [0, 0], sizes = [24, 48], strides = [1, 1]} : vector<24x128xf32> to vector<24x48xf32>
    %872 = tpu.concatenate %870, %871 in 1 : vector<24x80xf32>, vector<24x48xf32> -> vector<24x128xf32>
    %873 = arith.addf %857, %872 : vector<24x128xf32>
    %c10_309 = arith.constant 10 : index
    %c0_310 = arith.constant 0 : index
    %874 = vector.load %arg8[%c10_309, %c0_310] : memref<56x128xf32, #tpu.memory_space<vmem>>, vector<24x128xf32>
    %c-1_i32_311 = arith.constant -1 : i32
    %875 = vector.broadcast %c-1_i32_311 : i32 to vector<24x1xi32>
    %876 = arith.addi %790, %875 : vector<24x1xi32>
    %c0_i32_312 = arith.constant 0 : i32
    %877 = vector.broadcast %c0_i32_312 : i32 to vector<24x1xi32>
    %878 = arith.cmpi sge, %876, %877 : vector<24x1xi32>
    %c5_i32_313 = arith.constant 5 : i32
    %879 = vector.broadcast %c5_i32_313 : i32 to vector<24x1xi32>
    %880 = arith.cmpi slt, %876, %879 : vector<24x1xi32>
    %881 = arith.andi %878, %880 : vector<24x1xi1>
    %882 = arith.extui %881 : vector<24x1xi1> to vector<24x1xi32>
    %883 = arith.sitofp %882 : vector<24x1xi32> to vector<24x1xf32>
    %884 = vector.broadcast %883 : vector<24x1xf32> to vector<24x128xf32>
    %885 = arith.mulf %874, %884 : vector<24x128xf32>
    %886 = vector.extract_strided_slice %885 {offsets = [0, 32], sizes = [24, 96], strides = [1, 1]} : vector<24x128xf32> to vector<24x96xf32>
    %887 = vector.extract_strided_slice %885 {offsets = [0, 0], sizes = [24, 32], strides = [1, 1]} : vector<24x128xf32> to vector<24x32xf32>
    %888 = tpu.concatenate %886, %887 in 1 : vector<24x96xf32>, vector<24x32xf32> -> vector<24x128xf32>
    %889 = arith.addf %873, %888 : vector<24x128xf32>
    %c11_314 = arith.constant 11 : index
    %c0_315 = arith.constant 0 : index
    %890 = vector.load %arg8[%c11_314, %c0_315] : memref<56x128xf32, #tpu.memory_space<vmem>>, vector<24x128xf32>
    %891 = vector.extract_strided_slice %890 {offsets = [0, 16], sizes = [24, 112], strides = [1, 1]} : vector<24x128xf32> to vector<24x112xf32>
    %892 = vector.extract_strided_slice %890 {offsets = [0, 0], sizes = [24, 16], strides = [1, 1]} : vector<24x128xf32> to vector<24x16xf32>
    %893 = tpu.concatenate %891, %892 in 1 : vector<24x112xf32>, vector<24x16xf32> -> vector<24x128xf32>
    %894 = arith.addf %889, %893 : vector<24x128xf32>
    %c0_316 = arith.constant 0 : index
    %c0_317 = arith.constant 0 : index
    %895 = vector.load %arg10[%c0_316, %c0_317] : memref<24x512xf32, #tpu.memory_space<vmem>>, vector<24x128xf32>
    tpu.vector_store %arg10[%c0_316, %c0_317], %894 {strides = array<i32>} : memref<24x512xf32, #tpu.memory_space<vmem>>, vector<24x128xf32>,
    %cst_318 = arith.constant 0.000000e+00 : f32
    %896 = vector.broadcast %cst_318 : f32 to vector<24x128xf32>
    %c12_319 = arith.constant 12 : index
    %c0_320 = arith.constant 0 : index
    %897 = vector.load %arg8[%c12_319, %c0_320] : memref<56x128xf32, #tpu.memory_space<vmem>>, vector<24x128xf32>
    %c1_i32_321 = arith.constant 1 : i32
    %898 = vector.broadcast %c1_i32_321 : i32 to vector<24x1xi32>
    %899 = arith.addi %790, %898 : vector<24x1xi32>
    %c0_i32_322 = arith.constant 0 : i32
    %900 = vector.broadcast %c0_i32_322 : i32 to vector<24x1xi32>
    %901 = arith.cmpi sge, %899, %900 : vector<24x1xi32>
    %c5_i32_323 = arith.constant 5 : i32
    %902 = vector.broadcast %c5_i32_323 : i32 to vector<24x1xi32>
    %903 = arith.cmpi slt, %899, %902 : vector<24x1xi32>
    %904 = arith.andi %901, %903 : vector<24x1xi1>
    %905 = arith.extui %904 : vector<24x1xi1> to vector<24x1xi32>
    %906 = arith.sitofp %905 : vector<24x1xi32> to vector<24x1xf32>
    %907 = vector.broadcast %906 : vector<24x1xf32> to vector<24x128xf32>
    %908 = arith.mulf %897, %907 : vector<24x128xf32>
    %909 = arith.addf %896, %908 : vector<24x128xf32>
    %c13_324 = arith.constant 13 : index
    %c0_325 = arith.constant 0 : index
    %910 = vector.load %arg8[%c13_324, %c0_325] : memref<56x128xf32, #tpu.memory_space<vmem>>, vector<24x128xf32>
    %c2_i32_326 = arith.constant 2 : i32
    %911 = vector.broadcast %c2_i32_326 : i32 to vector<24x1xi32>
    %912 = arith.addi %790, %911 : vector<24x1xi32>
    %c0_i32_327 = arith.constant 0 : i32
    %913 = vector.broadcast %c0_i32_327 : i32 to vector<24x1xi32>
    %914 = arith.cmpi sge, %912, %913 : vector<24x1xi32>
    %c5_i32_328 = arith.constant 5 : i32
    %915 = vector.broadcast %c5_i32_328 : i32 to vector<24x1xi32>
    %916 = arith.cmpi slt, %912, %915 : vector<24x1xi32>
    %917 = arith.andi %914, %916 : vector<24x1xi1>
    %918 = arith.extui %917 : vector<24x1xi1> to vector<24x1xi32>
    %919 = arith.sitofp %918 : vector<24x1xi32> to vector<24x1xf32>
    %920 = vector.broadcast %919 : vector<24x1xf32> to vector<24x128xf32>
    %921 = arith.mulf %910, %920 : vector<24x128xf32>
    %922 = vector.extract_strided_slice %921 {offsets = [0, 112], sizes = [24, 16], strides = [1, 1]} : vector<24x128xf32> to vector<24x16xf32>
    %923 = vector.extract_strided_slice %921 {offsets = [0, 0], sizes = [24, 112], strides = [1, 1]} : vector<24x128xf32> to vector<24x112xf32>
    %924 = tpu.concatenate %922, %923 in 1 : vector<24x16xf32>, vector<24x112xf32> -> vector<24x128xf32>
    %925 = arith.addf %909, %924 : vector<24x128xf32>
    %c14_329 = arith.constant 14 : index
    %c0_330 = arith.constant 0 : index
    %926 = vector.load %arg8[%c14_329, %c0_330] : memref<56x128xf32, #tpu.memory_space<vmem>>, vector<24x128xf32>
    %c-2_i32_331 = arith.constant -2 : i32
    %927 = vector.broadcast %c-2_i32_331 : i32 to vector<24x1xi32>
    %928 = arith.addi %790, %927 : vector<24x1xi32>
    %c0_i32_332 = arith.constant 0 : i32
    %929 = vector.broadcast %c0_i32_332 : i32 to vector<24x1xi32>
    %930 = arith.cmpi sge, %928, %929 : vector<24x1xi32>
    %c5_i32_333 = arith.constant 5 : i32
    %931 = vector.broadcast %c5_i32_333 : i32 to vector<24x1xi32>
    %932 = arith.cmpi slt, %928, %931 : vector<24x1xi32>
    %933 = arith.andi %930, %932 : vector<24x1xi1>
    %934 = arith.extui %933 : vector<24x1xi1> to vector<24x1xi32>
    %935 = arith.sitofp %934 : vector<24x1xi32> to vector<24x1xf32>
    %936 = vector.broadcast %935 : vector<24x1xf32> to vector<24x128xf32>
    %937 = arith.mulf %926, %936 : vector<24x128xf32>
    %938 = vector.extract_strided_slice %937 {offsets = [0, 96], sizes = [24, 32], strides = [1, 1]} : vector<24x128xf32> to vector<24x32xf32>
    %939 = vector.extract_strided_slice %937 {offsets = [0, 0], sizes = [24, 96], strides = [1, 1]} : vector<24x128xf32> to vector<24x96xf32>
    %940 = tpu.concatenate %938, %939 in 1 : vector<24x32xf32>, vector<24x96xf32> -> vector<24x128xf32>
    %941 = arith.addf %925, %940 : vector<24x128xf32>
    %c15_334 = arith.constant 15 : index
    %c0_335 = arith.constant 0 : index
    %942 = vector.load %arg8[%c15_334, %c0_335] : memref<56x128xf32, #tpu.memory_space<vmem>>, vector<24x128xf32>
    %c-1_i32_336 = arith.constant -1 : i32
    %943 = vector.broadcast %c-1_i32_336 : i32 to vector<24x1xi32>
    %944 = arith.addi %790, %943 : vector<24x1xi32>
    %c0_i32_337 = arith.constant 0 : i32
    %945 = vector.broadcast %c0_i32_337 : i32 to vector<24x1xi32>
    %946 = arith.cmpi sge, %944, %945 : vector<24x1xi32>
    %c5_i32_338 = arith.constant 5 : i32
    %947 = vector.broadcast %c5_i32_338 : i32 to vector<24x1xi32>
    %948 = arith.cmpi slt, %944, %947 : vector<24x1xi32>
    %949 = arith.andi %946, %948 : vector<24x1xi1>
    %950 = arith.extui %949 : vector<24x1xi1> to vector<24x1xi32>
    %951 = arith.sitofp %950 : vector<24x1xi32> to vector<24x1xf32>
    %952 = vector.broadcast %951 : vector<24x1xf32> to vector<24x128xf32>
    %953 = arith.mulf %942, %952 : vector<24x128xf32>
    %954 = vector.extract_strided_slice %953 {offsets = [0, 80], sizes = [24, 48], strides = [1, 1]} : vector<24x128xf32> to vector<24x48xf32>
    %955 = vector.extract_strided_slice %953 {offsets = [0, 0], sizes = [24, 80], strides = [1, 1]} : vector<24x128xf32> to vector<24x80xf32>
    %956 = tpu.concatenate %954, %955 in 1 : vector<24x48xf32>, vector<24x80xf32> -> vector<24x128xf32>
    %957 = arith.addf %941, %956 : vector<24x128xf32>
    %c16_339 = arith.constant 16 : index
    %c0_340 = arith.constant 0 : index
    %958 = vector.load %arg8[%c16_339, %c0_340] : memref<56x128xf32, #tpu.memory_space<vmem>>, vector<24x128xf32>
    %959 = vector.extract_strided_slice %958 {offsets = [0, 64], sizes = [24, 64], strides = [1, 1]} : vector<24x128xf32> to vector<24x64xf32>
    %960 = vector.extract_strided_slice %958 {offsets = [0, 0], sizes = [24, 64], strides = [1, 1]} : vector<24x128xf32> to vector<24x64xf32>
    %961 = tpu.concatenate %959, %960 in 1 : vector<24x64xf32>, vector<24x64xf32> -> vector<24x128xf32>
    %962 = arith.addf %957, %961 : vector<24x128xf32>
    %c17_341 = arith.constant 17 : index
    %c0_342 = arith.constant 0 : index
    %963 = vector.load %arg8[%c17_341, %c0_342] : memref<56x128xf32, #tpu.memory_space<vmem>>, vector<24x128xf32>
    %c1_i32_343 = arith.constant 1 : i32
    %964 = vector.broadcast %c1_i32_343 : i32 to vector<24x1xi32>
    %965 = arith.addi %790, %964 : vector<24x1xi32>
    %c0_i32_344 = arith.constant 0 : i32
    %966 = vector.broadcast %c0_i32_344 : i32 to vector<24x1xi32>
    %967 = arith.cmpi sge, %965, %966 : vector<24x1xi32>
    %c5_i32_345 = arith.constant 5 : i32
    %968 = vector.broadcast %c5_i32_345 : i32 to vector<24x1xi32>
    %969 = arith.cmpi slt, %965, %968 : vector<24x1xi32>
    %970 = arith.andi %967, %969 : vector<24x1xi1>
    %971 = arith.extui %970 : vector<24x1xi1> to vector<24x1xi32>
    %972 = arith.sitofp %971 : vector<24x1xi32> to vector<24x1xf32>
    %973 = vector.broadcast %972 : vector<24x1xf32> to vector<24x128xf32>
    %974 = arith.mulf %963, %973 : vector<24x128xf32>
    %975 = vector.extract_strided_slice %974 {offsets = [0, 48], sizes = [24, 80], strides = [1, 1]} : vector<24x128xf32> to vector<24x80xf32>
    %976 = vector.extract_strided_slice %974 {offsets = [0, 0], sizes = [24, 48], strides = [1, 1]} : vector<24x128xf32> to vector<24x48xf32>
    %977 = tpu.concatenate %975, %976 in 1 : vector<24x80xf32>, vector<24x48xf32> -> vector<24x128xf32>
    %978 = arith.addf %962, %977 : vector<24x128xf32>
    %c18_346 = arith.constant 18 : index
    %c0_347 = arith.constant 0 : index
    %979 = vector.load %arg8[%c18_346, %c0_347] : memref<56x128xf32, #tpu.memory_space<vmem>>, vector<24x128xf32>
    %c2_i32_348 = arith.constant 2 : i32
    %980 = vector.broadcast %c2_i32_348 : i32 to vector<24x1xi32>
    %981 = arith.addi %790, %980 : vector<24x1xi32>
    %c0_i32_349 = arith.constant 0 : i32
    %982 = vector.broadcast %c0_i32_349 : i32 to vector<24x1xi32>
    %983 = arith.cmpi sge, %981, %982 : vector<24x1xi32>
    %c5_i32_350 = arith.constant 5 : i32
    %984 = vector.broadcast %c5_i32_350 : i32 to vector<24x1xi32>
    %985 = arith.cmpi slt, %981, %984 : vector<24x1xi32>
    %986 = arith.andi %983, %985 : vector<24x1xi1>
    %987 = arith.extui %986 : vector<24x1xi1> to vector<24x1xi32>
    %988 = arith.sitofp %987 : vector<24x1xi32> to vector<24x1xf32>
    %989 = vector.broadcast %988 : vector<24x1xf32> to vector<24x128xf32>
    %990 = arith.mulf %979, %989 : vector<24x128xf32>
    %991 = vector.extract_strided_slice %990 {offsets = [0, 32], sizes = [24, 96], strides = [1, 1]} : vector<24x128xf32> to vector<24x96xf32>
    %992 = vector.extract_strided_slice %990 {offsets = [0, 0], sizes = [24, 32], strides = [1, 1]} : vector<24x128xf32> to vector<24x32xf32>
    %993 = tpu.concatenate %991, %992 in 1 : vector<24x96xf32>, vector<24x32xf32> -> vector<24x128xf32>
    %994 = arith.addf %978, %993 : vector<24x128xf32>
    %c19_351 = arith.constant 19 : index
    %c0_352 = arith.constant 0 : index
    %995 = vector.load %arg8[%c19_351, %c0_352] : memref<56x128xf32, #tpu.memory_space<vmem>>, vector<24x128xf32>
    %c-2_i32_353 = arith.constant -2 : i32
    %996 = vector.broadcast %c-2_i32_353 : i32 to vector<24x1xi32>
    %997 = arith.addi %790, %996 : vector<24x1xi32>
    %c0_i32_354 = arith.constant 0 : i32
    %998 = vector.broadcast %c0_i32_354 : i32 to vector<24x1xi32>
    %999 = arith.cmpi sge, %997, %998 : vector<24x1xi32>
    %c5_i32_355 = arith.constant 5 : i32
    %1000 = vector.broadcast %c5_i32_355 : i32 to vector<24x1xi32>
    %1001 = arith.cmpi slt, %997, %1000 : vector<24x1xi32>
    %1002 = arith.andi %999, %1001 : vector<24x1xi1>
    %1003 = arith.extui %1002 : vector<24x1xi1> to vector<24x1xi32>
    %1004 = arith.sitofp %1003 : vector<24x1xi32> to vector<24x1xf32>
    %1005 = vector.broadcast %1004 : vector<24x1xf32> to vector<24x128xf32>
    %1006 = arith.mulf %995, %1005 : vector<24x128xf32>
    %1007 = vector.extract_strided_slice %1006 {offsets = [0, 16], sizes = [24, 112], strides = [1, 1]} : vector<24x128xf32> to vector<24x112xf32>
    %1008 = vector.extract_strided_slice %1006 {offsets = [0, 0], sizes = [24, 16], strides = [1, 1]} : vector<24x128xf32> to vector<24x16xf32>
    %1009 = tpu.concatenate %1007, %1008 in 1 : vector<24x112xf32>, vector<24x16xf32> -> vector<24x128xf32>
    %1010 = arith.addf %994, %1009 : vector<24x128xf32>
    %c0_356 = arith.constant 0 : index
    %c128_357 = arith.constant 128 : index
    %1011 = vector.load %arg10[%c0_356, %c128_357] : memref<24x512xf32, #tpu.memory_space<vmem>>, vector<24x128xf32>
    tpu.vector_store %arg10[%c0_356, %c128_357], %1010 {strides = array<i32>} : memref<24x512xf32, #tpu.memory_space<vmem>>, vector<24x128xf32>,
    %cst_358 = arith.constant 0.000000e+00 : f32
    %1012 = vector.broadcast %cst_358 : f32 to vector<24x128xf32>
    %c20_359 = arith.constant 20 : index
    %c0_360 = arith.constant 0 : index
    %1013 = vector.load %arg8[%c20_359, %c0_360] : memref<56x128xf32, #tpu.memory_space<vmem>>, vector<24x128xf32>
    %c-1_i32_361 = arith.constant -1 : i32
    %1014 = vector.broadcast %c-1_i32_361 : i32 to vector<24x1xi32>
    %1015 = arith.addi %790, %1014 : vector<24x1xi32>
    %c0_i32_362 = arith.constant 0 : i32
    %1016 = vector.broadcast %c0_i32_362 : i32 to vector<24x1xi32>
    %1017 = arith.cmpi sge, %1015, %1016 : vector<24x1xi32>
    %c5_i32_363 = arith.constant 5 : i32
    %1018 = vector.broadcast %c5_i32_363 : i32 to vector<24x1xi32>
    %1019 = arith.cmpi slt, %1015, %1018 : vector<24x1xi32>
    %1020 = arith.andi %1017, %1019 : vector<24x1xi1>
    %1021 = arith.extui %1020 : vector<24x1xi1> to vector<24x1xi32>
    %1022 = arith.sitofp %1021 : vector<24x1xi32> to vector<24x1xf32>
    %1023 = vector.broadcast %1022 : vector<24x1xf32> to vector<24x128xf32>
    %1024 = arith.mulf %1013, %1023 : vector<24x128xf32>
    %1025 = arith.addf %1012, %1024 : vector<24x128xf32>
    %c21_364 = arith.constant 21 : index
    %c0_365 = arith.constant 0 : index
    %1026 = vector.load %arg8[%c21_364, %c0_365] : memref<56x128xf32, #tpu.memory_space<vmem>>, vector<24x128xf32>
    %1027 = vector.extract_strided_slice %1026 {offsets = [0, 112], sizes = [24, 16], strides = [1, 1]} : vector<24x128xf32> to vector<24x16xf32>
    %1028 = vector.extract_strided_slice %1026 {offsets = [0, 0], sizes = [24, 112], strides = [1, 1]} : vector<24x128xf32> to vector<24x112xf32>
    %1029 = tpu.concatenate %1027, %1028 in 1 : vector<24x16xf32>, vector<24x112xf32> -> vector<24x128xf32>
    %1030 = arith.addf %1025, %1029 : vector<24x128xf32>
    %c22_366 = arith.constant 22 : index
    %c0_367 = arith.constant 0 : index
    %1031 = vector.load %arg8[%c22_366, %c0_367] : memref<56x128xf32, #tpu.memory_space<vmem>>, vector<24x128xf32>
    %c1_i32_368 = arith.constant 1 : i32
    %1032 = vector.broadcast %c1_i32_368 : i32 to vector<24x1xi32>
    %1033 = arith.addi %790, %1032 : vector<24x1xi32>
    %c0_i32_369 = arith.constant 0 : i32
    %1034 = vector.broadcast %c0_i32_369 : i32 to vector<24x1xi32>
    %1035 = arith.cmpi sge, %1033, %1034 : vector<24x1xi32>
    %c5_i32_370 = arith.constant 5 : i32
    %1036 = vector.broadcast %c5_i32_370 : i32 to vector<24x1xi32>
    %1037 = arith.cmpi slt, %1033, %1036 : vector<24x1xi32>
    %1038 = arith.andi %1035, %1037 : vector<24x1xi1>
    %1039 = arith.extui %1038 : vector<24x1xi1> to vector<24x1xi32>
    %1040 = arith.sitofp %1039 : vector<24x1xi32> to vector<24x1xf32>
    %1041 = vector.broadcast %1040 : vector<24x1xf32> to vector<24x128xf32>
    %1042 = arith.mulf %1031, %1041 : vector<24x128xf32>
    %1043 = vector.extract_strided_slice %1042 {offsets = [0, 96], sizes = [24, 32], strides = [1, 1]} : vector<24x128xf32> to vector<24x32xf32>
    %1044 = vector.extract_strided_slice %1042 {offsets = [0, 0], sizes = [24, 96], strides = [1, 1]} : vector<24x128xf32> to vector<24x96xf32>
    %1045 = tpu.concatenate %1043, %1044 in 1 : vector<24x32xf32>, vector<24x96xf32> -> vector<24x128xf32>
    %1046 = arith.addf %1030, %1045 : vector<24x128xf32>
    %c23 = arith.constant 23 : index
    %c0_371 = arith.constant 0 : index
    %1047 = vector.load %arg8[%c23, %c0_371] : memref<56x128xf32, #tpu.memory_space<vmem>>, vector<24x128xf32>
    %c2_i32_372 = arith.constant 2 : i32
    %1048 = vector.broadcast %c2_i32_372 : i32 to vector<24x1xi32>
    %1049 = arith.addi %790, %1048 : vector<24x1xi32>
    %c0_i32_373 = arith.constant 0 : i32
    %1050 = vector.broadcast %c0_i32_373 : i32 to vector<24x1xi32>
    %1051 = arith.cmpi sge, %1049, %1050 : vector<24x1xi32>
    %c5_i32_374 = arith.constant 5 : i32
    %1052 = vector.broadcast %c5_i32_374 : i32 to vector<24x1xi32>
    %1053 = arith.cmpi slt, %1049, %1052 : vector<24x1xi32>
    %1054 = arith.andi %1051, %1053 : vector<24x1xi1>
    %1055 = arith.extui %1054 : vector<24x1xi1> to vector<24x1xi32>
    %1056 = arith.sitofp %1055 : vector<24x1xi32> to vector<24x1xf32>
    %1057 = vector.broadcast %1056 : vector<24x1xf32> to vector<24x128xf32>
    %1058 = arith.mulf %1047, %1057 : vector<24x128xf32>
    %1059 = vector.extract_strided_slice %1058 {offsets = [0, 80], sizes = [24, 48], strides = [1, 1]} : vector<24x128xf32> to vector<24x48xf32>
    %1060 = vector.extract_strided_slice %1058 {offsets = [0, 0], sizes = [24, 80], strides = [1, 1]} : vector<24x128xf32> to vector<24x80xf32>
    %1061 = tpu.concatenate %1059, %1060 in 1 : vector<24x48xf32>, vector<24x80xf32> -> vector<24x128xf32>
    %1062 = arith.addf %1046, %1061 : vector<24x128xf32>
    %c24 = arith.constant 24 : index
    %c0_375 = arith.constant 0 : index
    %1063 = vector.load %arg8[%c24, %c0_375] : memref<56x128xf32, #tpu.memory_space<vmem>>, vector<24x128xf32>
    %c-2_i32_376 = arith.constant -2 : i32
    %1064 = vector.broadcast %c-2_i32_376 : i32 to vector<24x1xi32>
    %1065 = arith.addi %790, %1064 : vector<24x1xi32>
    %c0_i32_377 = arith.constant 0 : i32
    %1066 = vector.broadcast %c0_i32_377 : i32 to vector<24x1xi32>
    %1067 = arith.cmpi sge, %1065, %1066 : vector<24x1xi32>
    %c5_i32_378 = arith.constant 5 : i32
    %1068 = vector.broadcast %c5_i32_378 : i32 to vector<24x1xi32>
    %1069 = arith.cmpi slt, %1065, %1068 : vector<24x1xi32>
    %1070 = arith.andi %1067, %1069 : vector<24x1xi1>
    %1071 = arith.extui %1070 : vector<24x1xi1> to vector<24x1xi32>
    %1072 = arith.sitofp %1071 : vector<24x1xi32> to vector<24x1xf32>
    %1073 = vector.broadcast %1072 : vector<24x1xf32> to vector<24x128xf32>
    %1074 = arith.mulf %1063, %1073 : vector<24x128xf32>
    %1075 = vector.extract_strided_slice %1074 {offsets = [0, 64], sizes = [24, 64], strides = [1, 1]} : vector<24x128xf32> to vector<24x64xf32>
    %1076 = vector.extract_strided_slice %1074 {offsets = [0, 0], sizes = [24, 64], strides = [1, 1]} : vector<24x128xf32> to vector<24x64xf32>
    %1077 = tpu.concatenate %1075, %1076 in 1 : vector<24x64xf32>, vector<24x64xf32> -> vector<24x128xf32>
    %1078 = arith.addf %1062, %1077 : vector<24x128xf32>
    %c25 = arith.constant 25 : index
    %c0_379 = arith.constant 0 : index
    %1079 = vector.load %arg8[%c25, %c0_379] : memref<56x128xf32, #tpu.memory_space<vmem>>, vector<24x128xf32>
    %c-1_i32_380 = arith.constant -1 : i32
    %1080 = vector.broadcast %c-1_i32_380 : i32 to vector<24x1xi32>
    %1081 = arith.addi %790, %1080 : vector<24x1xi32>
    %c0_i32_381 = arith.constant 0 : i32
    %1082 = vector.broadcast %c0_i32_381 : i32 to vector<24x1xi32>
    %1083 = arith.cmpi sge, %1081, %1082 : vector<24x1xi32>
    %c5_i32_382 = arith.constant 5 : i32
    %1084 = vector.broadcast %c5_i32_382 : i32 to vector<24x1xi32>
    %1085 = arith.cmpi slt, %1081, %1084 : vector<24x1xi32>
    %1086 = arith.andi %1083, %1085 : vector<24x1xi1>
    %1087 = arith.extui %1086 : vector<24x1xi1> to vector<24x1xi32>
    %1088 = arith.sitofp %1087 : vector<24x1xi32> to vector<24x1xf32>
    %1089 = vector.broadcast %1088 : vector<24x1xf32> to vector<24x128xf32>
    %1090 = arith.mulf %1079, %1089 : vector<24x128xf32>
    %1091 = vector.extract_strided_slice %1090 {offsets = [0, 48], sizes = [24, 80], strides = [1, 1]} : vector<24x128xf32> to vector<24x80xf32>
    %1092 = vector.extract_strided_slice %1090 {offsets = [0, 0], sizes = [24, 48], strides = [1, 1]} : vector<24x128xf32> to vector<24x48xf32>
    %1093 = tpu.concatenate %1091, %1092 in 1 : vector<24x80xf32>, vector<24x48xf32> -> vector<24x128xf32>
    %1094 = arith.addf %1078, %1093 : vector<24x128xf32>
    %c26 = arith.constant 26 : index
    %c0_383 = arith.constant 0 : index
    %1095 = vector.load %arg8[%c26, %c0_383] : memref<56x128xf32, #tpu.memory_space<vmem>>, vector<24x128xf32>
    %1096 = vector.extract_strided_slice %1095 {offsets = [0, 32], sizes = [24, 96], strides = [1, 1]} : vector<24x128xf32> to vector<24x96xf32>
    %1097 = vector.extract_strided_slice %1095 {offsets = [0, 0], sizes = [24, 32], strides = [1, 1]} : vector<24x128xf32> to vector<24x32xf32>
    %1098 = tpu.concatenate %1096, %1097 in 1 : vector<24x96xf32>, vector<24x32xf32> -> vector<24x128xf32>
    %1099 = arith.addf %1094, %1098 : vector<24x128xf32>
    %c27 = arith.constant 27 : index
    %c0_384 = arith.constant 0 : index
    %1100 = vector.load %arg8[%c27, %c0_384] : memref<56x128xf32, #tpu.memory_space<vmem>>, vector<24x128xf32>
    %c1_i32_385 = arith.constant 1 : i32
    %1101 = vector.broadcast %c1_i32_385 : i32 to vector<24x1xi32>
    %1102 = arith.addi %790, %1101 : vector<24x1xi32>
    %c0_i32_386 = arith.constant 0 : i32
    %1103 = vector.broadcast %c0_i32_386 : i32 to vector<24x1xi32>
    %1104 = arith.cmpi sge, %1102, %1103 : vector<24x1xi32>
    %c5_i32_387 = arith.constant 5 : i32
    %1105 = vector.broadcast %c5_i32_387 : i32 to vector<24x1xi32>
    %1106 = arith.cmpi slt, %1102, %1105 : vector<24x1xi32>
    %1107 = arith.andi %1104, %1106 : vector<24x1xi1>
    %1108 = arith.extui %1107 : vector<24x1xi1> to vector<24x1xi32>
    %1109 = arith.sitofp %1108 : vector<24x1xi32> to vector<24x1xf32>
    %1110 = vector.broadcast %1109 : vector<24x1xf32> to vector<24x128xf32>
    %1111 = arith.mulf %1100, %1110 : vector<24x128xf32>
    %1112 = vector.extract_strided_slice %1111 {offsets = [0, 16], sizes = [24, 112], strides = [1, 1]} : vector<24x128xf32> to vector<24x112xf32>
    %1113 = vector.extract_strided_slice %1111 {offsets = [0, 0], sizes = [24, 16], strides = [1, 1]} : vector<24x128xf32> to vector<24x16xf32>
    %1114 = tpu.concatenate %1112, %1113 in 1 : vector<24x112xf32>, vector<24x16xf32> -> vector<24x128xf32>
    %1115 = arith.addf %1099, %1114 : vector<24x128xf32>
    %c0_388 = arith.constant 0 : index
    %c256_389 = arith.constant 256 : index
    %1116 = vector.load %arg10[%c0_388, %c256_389] : memref<24x512xf32, #tpu.memory_space<vmem>>, vector<24x128xf32>
    tpu.vector_store %arg10[%c0_388, %c256_389], %1115 {strides = array<i32>} : memref<24x512xf32, #tpu.memory_space<vmem>>, vector<24x128xf32>,
    %cst_390 = arith.constant 0.000000e+00 : f32
    %1117 = vector.broadcast %cst_390 : f32 to vector<24x128xf32>
    %c28 = arith.constant 28 : index
    %c0_391 = arith.constant 0 : index
    %1118 = vector.load %arg8[%c28, %c0_391] : memref<56x128xf32, #tpu.memory_space<vmem>>, vector<24x128xf32>
    %c2_i32_392 = arith.constant 2 : i32
    %1119 = vector.broadcast %c2_i32_392 : i32 to vector<24x1xi32>
    %1120 = arith.addi %790, %1119 : vector<24x1xi32>
    %c0_i32_393 = arith.constant 0 : i32
    %1121 = vector.broadcast %c0_i32_393 : i32 to vector<24x1xi32>
    %1122 = arith.cmpi sge, %1120, %1121 : vector<24x1xi32>
    %c5_i32_394 = arith.constant 5 : i32
    %1123 = vector.broadcast %c5_i32_394 : i32 to vector<24x1xi32>
    %1124 = arith.cmpi slt, %1120, %1123 : vector<24x1xi32>
    %1125 = arith.andi %1122, %1124 : vector<24x1xi1>
    %1126 = arith.extui %1125 : vector<24x1xi1> to vector<24x1xi32>
    %1127 = arith.sitofp %1126 : vector<24x1xi32> to vector<24x1xf32>
    %1128 = vector.broadcast %1127 : vector<24x1xf32> to vector<24x128xf32>
    %1129 = arith.mulf %1118, %1128 : vector<24x128xf32>
    %1130 = arith.addf %1117, %1129 : vector<24x128xf32>
    %c0_395 = arith.constant 0 : index
    %c384_396 = arith.constant 384 : index
    %1131 = vector.load %arg10[%c0_395, %c384_396] : memref<24x512xf32, #tpu.memory_space<vmem>>, vector<24x128xf32>
    tpu.vector_store %arg10[%c0_395, %c384_396], %1130 {strides = array<i32>} : memref<24x512xf32, #tpu.memory_space<vmem>>, vector<24x128xf32>,
    %c0_397 = arith.constant 0 : index
    %c0_398 = arith.constant 0 : index
    %1132 = vector.load %arg10[%c0_397, %c0_398] : memref<24x512xf32, #tpu.memory_space<vmem>>, vector<24x512xf32>
    %c0_399 = arith.constant 0 : index
    %c0_400 = arith.constant 0 : index
    %1133 = vector.load %arg3[%c0_399, %c0_400] : memref<512x128xf32, #tpu.memory_space<vmem>>, vector<512x128xf32>
    %cst_401 = arith.constant dense<0.000000e+00> : vector<24x128xf32>
    %1134 = tpu.matmul %1132, %1133, %cst_401 {dimension_numbers = #tpu.dot_dimension_numbers<[1], [0], [0], [1], [0, 0, 1, 1], [], []>} : vector<24x512xf32>, vector<512x128xf32>, vector<24x128xf32> -> vector<24x128xf32>
    %c0_402 = arith.constant 0 : index
    %c0_403 = arith.constant 0 : index
    %1135 = vector.load %arg4[%c0_402, %c0_403] : memref<1x128xf32, #tpu.memory_space<vmem>>, vector<1x128xf32>
    %1136 = vector.broadcast %1135 : vector<1x128xf32> to vector<24x128xf32>
    %1137 = arith.addf %1134, %1136 : vector<24x128xf32>
    %cst_404 = arith.constant 0.707106769 : f32
    %1138 = vector.broadcast %cst_404 : f32 to vector<24x128xf32>
    %1139 = arith.mulf %1137, %1138 : vector<24x128xf32>
    %cst_405 = arith.constant 0.000000e+00 : f32
    %1140 = vector.broadcast %cst_405 : f32 to vector<24x128xf32>
    %1141 = arith.cmpf oge, %1139, %1140 : vector<24x128xf32>
    %cst_406 = arith.constant 1.000000e+00 : f32
    %cst_407 = arith.constant -1.000000e+00 : f32
    %1142 = vector.broadcast %cst_406 : f32 to vector<24x128xf32>
    %1143 = vector.broadcast %cst_407 : f32 to vector<24x128xf32>
    %1144 = arith.select %1141, %1142, %1143 : vector<24x128xi1>, vector<24x128xf32>
    %1145 = math.absf %1139 : vector<24x128xf32>
    %cst_408 = arith.constant 0.327591091 : f32
    %1146 = vector.broadcast %cst_408 : f32 to vector<24x128xf32>
    %1147 = arith.mulf %1146, %1145 : vector<24x128xf32>
    %cst_409 = arith.constant 1.000000e+00 : f32
    %1148 = vector.broadcast %cst_409 : f32 to vector<24x128xf32>
    %1149 = arith.addf %1148, %1147 : vector<24x128xf32>
    %cst_410 = arith.constant 1.000000e+00 : f32
    %1150 = vector.broadcast %cst_410 : f32 to vector<24x128xf32>
    %1151 = arith.divf %1150, %1149 : vector<24x128xf32>
    %cst_411 = arith.constant 1.06140542 : f32
    %1152 = vector.broadcast %cst_411 : f32 to vector<24x128xf32>
    %1153 = arith.mulf %1152, %1151 : vector<24x128xf32>
    %cst_412 = arith.constant -1.45315206 : f32
    %1154 = vector.broadcast %cst_412 : f32 to vector<24x128xf32>
    %1155 = arith.addf %1153, %1154 : vector<24x128xf32>
    %1156 = arith.mulf %1155, %1151 : vector<24x128xf32>
    %cst_413 = arith.constant 1.42141378 : f32
    %1157 = vector.broadcast %cst_413 : f32 to vector<24x128xf32>
    %1158 = arith.addf %1156, %1157 : vector<24x128xf32>
    %1159 = arith.mulf %1158, %1151 : vector<24x128xf32>
    %cst_414 = arith.constant -0.284496725 : f32
    %1160 = vector.broadcast %cst_414 : f32 to vector<24x128xf32>
    %1161 = arith.addf %1159, %1160 : vector<24x128xf32>
    %1162 = arith.mulf %1161, %1151 : vector<24x128xf32>
    %cst_415 = arith.constant 0.254829586 : f32
    %1163 = vector.broadcast %cst_415 : f32 to vector<24x128xf32>
    %1164 = arith.addf %1162, %1163 : vector<24x128xf32>
    %1165 = arith.mulf %1164, %1151 : vector<24x128xf32>
    %cst_416 = arith.constant 0.000000e+00 : f32
    %1166 = vector.broadcast %cst_416 : f32 to vector<24x128xf32>
    %1167 = arith.subf %1166, %1145 : vector<24x128xf32>
    %1168 = arith.mulf %1167, %1145 : vector<24x128xf32>
    %1169 = math.exp %1168 : vector<24x128xf32>
    %1170 = arith.mulf %1165, %1169 : vector<24x128xf32>
    %cst_417 = arith.constant 1.000000e+00 : f32
    %1171 = vector.broadcast %cst_417 : f32 to vector<24x128xf32>
    %1172 = arith.subf %1171, %1170 : vector<24x128xf32>
    %1173 = arith.mulf %1144, %1172 : vector<24x128xf32>
    %cst_418 = arith.constant 5.000000e-01 : f32
    %1174 = vector.broadcast %cst_418 : f32 to vector<24x128xf32>
    %1175 = arith.mulf %1174, %1137 : vector<24x128xf32>
    %cst_419 = arith.constant 1.000000e+00 : f32
    %1176 = vector.broadcast %cst_419 : f32 to vector<24x128xf32>
    %1177 = arith.addf %1176, %1173 : vector<24x128xf32>
    %1178 = arith.mulf %1175, %1177 : vector<24x128xf32>
    %c20_i32 = arith.constant 20 : i32
    %1179 = vector.broadcast %c20_i32 : i32 to vector<24x1xi32>
    %1180 = arith.cmpi slt, %13, %1179 : vector<24x1xi32>
    %1181 = arith.extui %1180 : vector<24x1xi1> to vector<24x1xi32>
    %1182 = arith.sitofp %1181 : vector<24x1xi32> to vector<24x1xf32>
    %1183 = vector.broadcast %1182 : vector<24x1xf32> to vector<24x128xf32>
    %1184 = arith.mulf %1178, %1183 : vector<24x128xf32>
    %c16_420 = arith.constant 16 : index
    %c0_421 = arith.constant 0 : index
    %1185 = vector.load %arg9[%c16_420, %c0_421] : memref<56x128xf32, #tpu.memory_space<vmem>>, vector<24x128xf32>
    tpu.vector_store %arg9[%c16_420, %c0_421], %1184 {strides = array<i32>} : memref<56x128xf32, #tpu.memory_space<vmem>>, vector<24x128xf32>,
    %cst_422 = arith.constant 0.000000e+00 : f32
    %1186 = vector.broadcast %cst_422 : f32 to vector<24x128xf32>
    %c4_423 = arith.constant 4 : index
    %c0_424 = arith.constant 0 : index
    %1187 = vector.load %arg9[%c4_423, %c0_424] : memref<56x128xf32, #tpu.memory_space<vmem>>, vector<24x128xf32>
    %c-2_i32_425 = arith.constant -2 : i32
    %1188 = vector.broadcast %c-2_i32_425 : i32 to vector<24x1xi32>
    %1189 = arith.addi %790, %1188 : vector<24x1xi32>
    %c0_i32_426 = arith.constant 0 : i32
    %1190 = vector.broadcast %c0_i32_426 : i32 to vector<24x1xi32>
    %1191 = arith.cmpi sge, %1189, %1190 : vector<24x1xi32>
    %c5_i32_427 = arith.constant 5 : i32
    %1192 = vector.broadcast %c5_i32_427 : i32 to vector<24x1xi32>
    %1193 = arith.cmpi slt, %1189, %1192 : vector<24x1xi32>
    %1194 = arith.andi %1191, %1193 : vector<24x1xi1>
    %1195 = arith.extui %1194 : vector<24x1xi1> to vector<24x1xi32>
    %1196 = arith.sitofp %1195 : vector<24x1xi32> to vector<24x1xf32>
    %1197 = vector.broadcast %1196 : vector<24x1xf32> to vector<24x128xf32>
    %1198 = arith.mulf %1187, %1197 : vector<24x128xf32>
    %1199 = arith.addf %1186, %1198 : vector<24x128xf32>
    %c5_428 = arith.constant 5 : index
    %c0_429 = arith.constant 0 : index
    %1200 = vector.load %arg9[%c5_428, %c0_429] : memref<56x128xf32, #tpu.memory_space<vmem>>, vector<24x128xf32>
    %c-1_i32_430 = arith.constant -1 : i32
    %1201 = vector.broadcast %c-1_i32_430 : i32 to vector<24x1xi32>
    %1202 = arith.addi %790, %1201 : vector<24x1xi32>
    %c0_i32_431 = arith.constant 0 : i32
    %1203 = vector.broadcast %c0_i32_431 : i32 to vector<24x1xi32>
    %1204 = arith.cmpi sge, %1202, %1203 : vector<24x1xi32>
    %c5_i32_432 = arith.constant 5 : i32
    %1205 = vector.broadcast %c5_i32_432 : i32 to vector<24x1xi32>
    %1206 = arith.cmpi slt, %1202, %1205 : vector<24x1xi32>
    %1207 = arith.andi %1204, %1206 : vector<24x1xi1>
    %1208 = arith.extui %1207 : vector<24x1xi1> to vector<24x1xi32>
    %1209 = arith.sitofp %1208 : vector<24x1xi32> to vector<24x1xf32>
    %1210 = vector.broadcast %1209 : vector<24x1xf32> to vector<24x128xf32>
    %1211 = arith.mulf %1200, %1210 : vector<24x128xf32>
    %1212 = vector.extract_strided_slice %1211 {offsets = [0, 96], sizes = [24, 32], strides = [1, 1]} : vector<24x128xf32> to vector<24x32xf32>
    %1213 = vector.extract_strided_slice %1211 {offsets = [0, 0], sizes = [24, 96], strides = [1, 1]} : vector<24x128xf32> to vector<24x96xf32>
    %1214 = tpu.concatenate %1212, %1213 in 1 : vector<24x32xf32>, vector<24x96xf32> -> vector<24x128xf32>
    %1215 = arith.addf %1199, %1214 : vector<24x128xf32>
    %c6_433 = arith.constant 6 : index
    %c0_434 = arith.constant 0 : index
    %1216 = vector.load %arg9[%c6_433, %c0_434] : memref<56x128xf32, #tpu.memory_space<vmem>>, vector<24x128xf32>
    %1217 = vector.extract_strided_slice %1216 {offsets = [0, 64], sizes = [24, 64], strides = [1, 1]} : vector<24x128xf32> to vector<24x64xf32>
    %1218 = vector.extract_strided_slice %1216 {offsets = [0, 0], sizes = [24, 64], strides = [1, 1]} : vector<24x128xf32> to vector<24x64xf32>
    %1219 = tpu.concatenate %1217, %1218 in 1 : vector<24x64xf32>, vector<24x64xf32> -> vector<24x128xf32>
    %1220 = arith.addf %1215, %1219 : vector<24x128xf32>
    %c7_435 = arith.constant 7 : index
    %c0_436 = arith.constant 0 : index
    %1221 = vector.load %arg9[%c7_435, %c0_436] : memref<56x128xf32, #tpu.memory_space<vmem>>, vector<24x128xf32>
    %c1_i32_437 = arith.constant 1 : i32
    %1222 = vector.broadcast %c1_i32_437 : i32 to vector<24x1xi32>
    %1223 = arith.addi %790, %1222 : vector<24x1xi32>
    %c0_i32_438 = arith.constant 0 : i32
    %1224 = vector.broadcast %c0_i32_438 : i32 to vector<24x1xi32>
    %1225 = arith.cmpi sge, %1223, %1224 : vector<24x1xi32>
    %c5_i32_439 = arith.constant 5 : i32
    %1226 = vector.broadcast %c5_i32_439 : i32 to vector<24x1xi32>
    %1227 = arith.cmpi slt, %1223, %1226 : vector<24x1xi32>
    %1228 = arith.andi %1225, %1227 : vector<24x1xi1>
    %1229 = arith.extui %1228 : vector<24x1xi1> to vector<24x1xi32>
    %1230 = arith.sitofp %1229 : vector<24x1xi32> to vector<24x1xf32>
    %1231 = vector.broadcast %1230 : vector<24x1xf32> to vector<24x128xf32>
    %1232 = arith.mulf %1221, %1231 : vector<24x128xf32>
    %1233 = vector.extract_strided_slice %1232 {offsets = [0, 32], sizes = [24, 96], strides = [1, 1]} : vector<24x128xf32> to vector<24x96xf32>
    %1234 = vector.extract_strided_slice %1232 {offsets = [0, 0], sizes = [24, 32], strides = [1, 1]} : vector<24x128xf32> to vector<24x32xf32>
    %1235 = tpu.concatenate %1233, %1234 in 1 : vector<24x96xf32>, vector<24x32xf32> -> vector<24x128xf32>
    %1236 = arith.addf %1220, %1235 : vector<24x128xf32>
    %c0_440 = arith.constant 0 : index
    %c0_441 = arith.constant 0 : index
    %1237 = vector.load %arg11[%c0_440, %c0_441] : memref<24x896xf32, #tpu.memory_space<vmem>>, vector<24x128xf32>
    tpu.vector_store %arg11[%c0_440, %c0_441], %1236 {strides = array<i32>} : memref<24x896xf32, #tpu.memory_space<vmem>>, vector<24x128xf32>,
    %cst_442 = arith.constant 0.000000e+00 : f32
    %1238 = vector.broadcast %cst_442 : f32 to vector<24x128xf32>
    %c8_443 = arith.constant 8 : index
    %c0_444 = arith.constant 0 : index
    %1239 = vector.load %arg9[%c8_443, %c0_444] : memref<56x128xf32, #tpu.memory_space<vmem>>, vector<24x128xf32>
    %c2_i32_445 = arith.constant 2 : i32
    %1240 = vector.broadcast %c2_i32_445 : i32 to vector<24x1xi32>
    %1241 = arith.addi %790, %1240 : vector<24x1xi32>
    %c0_i32_446 = arith.constant 0 : i32
    %1242 = vector.broadcast %c0_i32_446 : i32 to vector<24x1xi32>
    %1243 = arith.cmpi sge, %1241, %1242 : vector<24x1xi32>
    %c5_i32_447 = arith.constant 5 : i32
    %1244 = vector.broadcast %c5_i32_447 : i32 to vector<24x1xi32>
    %1245 = arith.cmpi slt, %1241, %1244 : vector<24x1xi32>
    %1246 = arith.andi %1243, %1245 : vector<24x1xi1>
    %1247 = arith.extui %1246 : vector<24x1xi1> to vector<24x1xi32>
    %1248 = arith.sitofp %1247 : vector<24x1xi32> to vector<24x1xf32>
    %1249 = vector.broadcast %1248 : vector<24x1xf32> to vector<24x128xf32>
    %1250 = arith.mulf %1239, %1249 : vector<24x128xf32>
    %1251 = arith.addf %1238, %1250 : vector<24x128xf32>
    %c9_448 = arith.constant 9 : index
    %c0_449 = arith.constant 0 : index
    %1252 = vector.load %arg9[%c9_448, %c0_449] : memref<56x128xf32, #tpu.memory_space<vmem>>, vector<24x128xf32>
    %c-2_i32_450 = arith.constant -2 : i32
    %1253 = vector.broadcast %c-2_i32_450 : i32 to vector<24x1xi32>
    %1254 = arith.addi %790, %1253 : vector<24x1xi32>
    %c0_i32_451 = arith.constant 0 : i32
    %1255 = vector.broadcast %c0_i32_451 : i32 to vector<24x1xi32>
    %1256 = arith.cmpi sge, %1254, %1255 : vector<24x1xi32>
    %c5_i32_452 = arith.constant 5 : i32
    %1257 = vector.broadcast %c5_i32_452 : i32 to vector<24x1xi32>
    %1258 = arith.cmpi slt, %1254, %1257 : vector<24x1xi32>
    %1259 = arith.andi %1256, %1258 : vector<24x1xi1>
    %1260 = arith.extui %1259 : vector<24x1xi1> to vector<24x1xi32>
    %1261 = arith.sitofp %1260 : vector<24x1xi32> to vector<24x1xf32>
    %1262 = vector.broadcast %1261 : vector<24x1xf32> to vector<24x128xf32>
    %1263 = arith.mulf %1252, %1262 : vector<24x128xf32>
    %1264 = vector.extract_strided_slice %1263 {offsets = [0, 96], sizes = [24, 32], strides = [1, 1]} : vector<24x128xf32> to vector<24x32xf32>
    %1265 = vector.extract_strided_slice %1263 {offsets = [0, 0], sizes = [24, 96], strides = [1, 1]} : vector<24x128xf32> to vector<24x96xf32>
    %1266 = tpu.concatenate %1264, %1265 in 1 : vector<24x32xf32>, vector<24x96xf32> -> vector<24x128xf32>
    %1267 = arith.addf %1251, %1266 : vector<24x128xf32>
    %c10_453 = arith.constant 10 : index
    %c0_454 = arith.constant 0 : index
    %1268 = vector.load %arg9[%c10_453, %c0_454] : memref<56x128xf32, #tpu.memory_space<vmem>>, vector<24x128xf32>
    %c-1_i32_455 = arith.constant -1 : i32
    %1269 = vector.broadcast %c-1_i32_455 : i32 to vector<24x1xi32>
    %1270 = arith.addi %790, %1269 : vector<24x1xi32>
    %c0_i32_456 = arith.constant 0 : i32
    %1271 = vector.broadcast %c0_i32_456 : i32 to vector<24x1xi32>
    %1272 = arith.cmpi sge, %1270, %1271 : vector<24x1xi32>
    %c5_i32_457 = arith.constant 5 : i32
    %1273 = vector.broadcast %c5_i32_457 : i32 to vector<24x1xi32>
    %1274 = arith.cmpi slt, %1270, %1273 : vector<24x1xi32>
    %1275 = arith.andi %1272, %1274 : vector<24x1xi1>
    %1276 = arith.extui %1275 : vector<24x1xi1> to vector<24x1xi32>
    %1277 = arith.sitofp %1276 : vector<24x1xi32> to vector<24x1xf32>
    %1278 = vector.broadcast %1277 : vector<24x1xf32> to vector<24x128xf32>
    %1279 = arith.mulf %1268, %1278 : vector<24x128xf32>
    %1280 = vector.extract_strided_slice %1279 {offsets = [0, 64], sizes = [24, 64], strides = [1, 1]} : vector<24x128xf32> to vector<24x64xf32>
    %1281 = vector.extract_strided_slice %1279 {offsets = [0, 0], sizes = [24, 64], strides = [1, 1]} : vector<24x128xf32> to vector<24x64xf32>
    %1282 = tpu.concatenate %1280, %1281 in 1 : vector<24x64xf32>, vector<24x64xf32> -> vector<24x128xf32>
    %1283 = arith.addf %1267, %1282 : vector<24x128xf32>
    %c11_458 = arith.constant 11 : index
    %c0_459 = arith.constant 0 : index
    %1284 = vector.load %arg9[%c11_458, %c0_459] : memref<56x128xf32, #tpu.memory_space<vmem>>, vector<24x128xf32>
    %1285 = vector.extract_strided_slice %1284 {offsets = [0, 32], sizes = [24, 96], strides = [1, 1]} : vector<24x128xf32> to vector<24x96xf32>
    %1286 = vector.extract_strided_slice %1284 {offsets = [0, 0], sizes = [24, 32], strides = [1, 1]} : vector<24x128xf32> to vector<24x32xf32>
    %1287 = tpu.concatenate %1285, %1286 in 1 : vector<24x96xf32>, vector<24x32xf32> -> vector<24x128xf32>
    %1288 = arith.addf %1283, %1287 : vector<24x128xf32>
    %c0_460 = arith.constant 0 : index
    %c128_461 = arith.constant 128 : index
    %1289 = vector.load %arg11[%c0_460, %c128_461] : memref<24x896xf32, #tpu.memory_space<vmem>>, vector<24x128xf32>
    tpu.vector_store %arg11[%c0_460, %c128_461], %1288 {strides = array<i32>} : memref<24x896xf32, #tpu.memory_space<vmem>>, vector<24x128xf32>,
    %cst_462 = arith.constant 0.000000e+00 : f32
    %1290 = vector.broadcast %cst_462 : f32 to vector<24x128xf32>
    %c12_463 = arith.constant 12 : index
    %c0_464 = arith.constant 0 : index
    %1291 = vector.load %arg9[%c12_463, %c0_464] : memref<56x128xf32, #tpu.memory_space<vmem>>, vector<24x128xf32>
    %c1_i32_465 = arith.constant 1 : i32
    %1292 = vector.broadcast %c1_i32_465 : i32 to vector<24x1xi32>
    %1293 = arith.addi %790, %1292 : vector<24x1xi32>
    %c0_i32_466 = arith.constant 0 : i32
    %1294 = vector.broadcast %c0_i32_466 : i32 to vector<24x1xi32>
    %1295 = arith.cmpi sge, %1293, %1294 : vector<24x1xi32>
    %c5_i32_467 = arith.constant 5 : i32
    %1296 = vector.broadcast %c5_i32_467 : i32 to vector<24x1xi32>
    %1297 = arith.cmpi slt, %1293, %1296 : vector<24x1xi32>
    %1298 = arith.andi %1295, %1297 : vector<24x1xi1>
    %1299 = arith.extui %1298 : vector<24x1xi1> to vector<24x1xi32>
    %1300 = arith.sitofp %1299 : vector<24x1xi32> to vector<24x1xf32>
    %1301 = vector.broadcast %1300 : vector<24x1xf32> to vector<24x128xf32>
    %1302 = arith.mulf %1291, %1301 : vector<24x128xf32>
    %1303 = arith.addf %1290, %1302 : vector<24x128xf32>
    %c13_468 = arith.constant 13 : index
    %c0_469 = arith.constant 0 : index
    %1304 = vector.load %arg9[%c13_468, %c0_469] : memref<56x128xf32, #tpu.memory_space<vmem>>, vector<24x128xf32>
    %c2_i32_470 = arith.constant 2 : i32
    %1305 = vector.broadcast %c2_i32_470 : i32 to vector<24x1xi32>
    %1306 = arith.addi %790, %1305 : vector<24x1xi32>
    %c0_i32_471 = arith.constant 0 : i32
    %1307 = vector.broadcast %c0_i32_471 : i32 to vector<24x1xi32>
    %1308 = arith.cmpi sge, %1306, %1307 : vector<24x1xi32>
    %c5_i32_472 = arith.constant 5 : i32
    %1309 = vector.broadcast %c5_i32_472 : i32 to vector<24x1xi32>
    %1310 = arith.cmpi slt, %1306, %1309 : vector<24x1xi32>
    %1311 = arith.andi %1308, %1310 : vector<24x1xi1>
    %1312 = arith.extui %1311 : vector<24x1xi1> to vector<24x1xi32>
    %1313 = arith.sitofp %1312 : vector<24x1xi32> to vector<24x1xf32>
    %1314 = vector.broadcast %1313 : vector<24x1xf32> to vector<24x128xf32>
    %1315 = arith.mulf %1304, %1314 : vector<24x128xf32>
    %1316 = vector.extract_strided_slice %1315 {offsets = [0, 96], sizes = [24, 32], strides = [1, 1]} : vector<24x128xf32> to vector<24x32xf32>
    %1317 = vector.extract_strided_slice %1315 {offsets = [0, 0], sizes = [24, 96], strides = [1, 1]} : vector<24x128xf32> to vector<24x96xf32>
    %1318 = tpu.concatenate %1316, %1317 in 1 : vector<24x32xf32>, vector<24x96xf32> -> vector<24x128xf32>
    %1319 = arith.addf %1303, %1318 : vector<24x128xf32>
    %c14_473 = arith.constant 14 : index
    %c0_474 = arith.constant 0 : index
    %1320 = vector.load %arg9[%c14_473, %c0_474] : memref<56x128xf32, #tpu.memory_space<vmem>>, vector<24x128xf32>
    %c-2_i32_475 = arith.constant -2 : i32
    %1321 = vector.broadcast %c-2_i32_475 : i32 to vector<24x1xi32>
    %1322 = arith.addi %790, %1321 : vector<24x1xi32>
    %c0_i32_476 = arith.constant 0 : i32
    %1323 = vector.broadcast %c0_i32_476 : i32 to vector<24x1xi32>
    %1324 = arith.cmpi sge, %1322, %1323 : vector<24x1xi32>
    %c5_i32_477 = arith.constant 5 : i32
    %1325 = vector.broadcast %c5_i32_477 : i32 to vector<24x1xi32>
    %1326 = arith.cmpi slt, %1322, %1325 : vector<24x1xi32>
    %1327 = arith.andi %1324, %1326 : vector<24x1xi1>
    %1328 = arith.extui %1327 : vector<24x1xi1> to vector<24x1xi32>
    %1329 = arith.sitofp %1328 : vector<24x1xi32> to vector<24x1xf32>
    %1330 = vector.broadcast %1329 : vector<24x1xf32> to vector<24x128xf32>
    %1331 = arith.mulf %1320, %1330 : vector<24x128xf32>
    %1332 = vector.extract_strided_slice %1331 {offsets = [0, 64], sizes = [24, 64], strides = [1, 1]} : vector<24x128xf32> to vector<24x64xf32>
    %1333 = vector.extract_strided_slice %1331 {offsets = [0, 0], sizes = [24, 64], strides = [1, 1]} : vector<24x128xf32> to vector<24x64xf32>
    %1334 = tpu.concatenate %1332, %1333 in 1 : vector<24x64xf32>, vector<24x64xf32> -> vector<24x128xf32>
    %1335 = arith.addf %1319, %1334 : vector<24x128xf32>
    %c15_478 = arith.constant 15 : index
    %c0_479 = arith.constant 0 : index
    %1336 = vector.load %arg9[%c15_478, %c0_479] : memref<56x128xf32, #tpu.memory_space<vmem>>, vector<24x128xf32>
    %c-1_i32_480 = arith.constant -1 : i32
    %1337 = vector.broadcast %c-1_i32_480 : i32 to vector<24x1xi32>
    %1338 = arith.addi %790, %1337 : vector<24x1xi32>
    %c0_i32_481 = arith.constant 0 : i32
    %1339 = vector.broadcast %c0_i32_481 : i32 to vector<24x1xi32>
    %1340 = arith.cmpi sge, %1338, %1339 : vector<24x1xi32>
    %c5_i32_482 = arith.constant 5 : i32
    %1341 = vector.broadcast %c5_i32_482 : i32 to vector<24x1xi32>
    %1342 = arith.cmpi slt, %1338, %1341 : vector<24x1xi32>
    %1343 = arith.andi %1340, %1342 : vector<24x1xi1>
    %1344 = arith.extui %1343 : vector<24x1xi1> to vector<24x1xi32>
    %1345 = arith.sitofp %1344 : vector<24x1xi32> to vector<24x1xf32>
    %1346 = vector.broadcast %1345 : vector<24x1xf32> to vector<24x128xf32>
    %1347 = arith.mulf %1336, %1346 : vector<24x128xf32>
    %1348 = vector.extract_strided_slice %1347 {offsets = [0, 32], sizes = [24, 96], strides = [1, 1]} : vector<24x128xf32> to vector<24x96xf32>
    %1349 = vector.extract_strided_slice %1347 {offsets = [0, 0], sizes = [24, 32], strides = [1, 1]} : vector<24x128xf32> to vector<24x32xf32>
    %1350 = tpu.concatenate %1348, %1349 in 1 : vector<24x96xf32>, vector<24x32xf32> -> vector<24x128xf32>
    %1351 = arith.addf %1335, %1350 : vector<24x128xf32>
    %c0_483 = arith.constant 0 : index
    %c256_484 = arith.constant 256 : index
    %1352 = vector.load %arg11[%c0_483, %c256_484] : memref<24x896xf32, #tpu.memory_space<vmem>>, vector<24x128xf32>
    tpu.vector_store %arg11[%c0_483, %c256_484], %1351 {strides = array<i32>} : memref<24x896xf32, #tpu.memory_space<vmem>>, vector<24x128xf32>,
    %cst_485 = arith.constant 0.000000e+00 : f32
    %1353 = vector.broadcast %cst_485 : f32 to vector<24x128xf32>
    %c16_486 = arith.constant 16 : index
    %c0_487 = arith.constant 0 : index
    %1354 = vector.load %arg9[%c16_486, %c0_487] : memref<56x128xf32, #tpu.memory_space<vmem>>, vector<24x128xf32>
    %1355 = arith.addf %1353, %1354 : vector<24x128xf32>
    %c17_488 = arith.constant 17 : index
    %c0_489 = arith.constant 0 : index
    %1356 = vector.load %arg9[%c17_488, %c0_489] : memref<56x128xf32, #tpu.memory_space<vmem>>, vector<24x128xf32>
    %c1_i32_490 = arith.constant 1 : i32
    %1357 = vector.broadcast %c1_i32_490 : i32 to vector<24x1xi32>
    %1358 = arith.addi %790, %1357 : vector<24x1xi32>
    %c0_i32_491 = arith.constant 0 : i32
    %1359 = vector.broadcast %c0_i32_491 : i32 to vector<24x1xi32>
    %1360 = arith.cmpi sge, %1358, %1359 : vector<24x1xi32>
    %c5_i32_492 = arith.constant 5 : i32
    %1361 = vector.broadcast %c5_i32_492 : i32 to vector<24x1xi32>
    %1362 = arith.cmpi slt, %1358, %1361 : vector<24x1xi32>
    %1363 = arith.andi %1360, %1362 : vector<24x1xi1>
    %1364 = arith.extui %1363 : vector<24x1xi1> to vector<24x1xi32>
    %1365 = arith.sitofp %1364 : vector<24x1xi32> to vector<24x1xf32>
    %1366 = vector.broadcast %1365 : vector<24x1xf32> to vector<24x128xf32>
    %1367 = arith.mulf %1356, %1366 : vector<24x128xf32>
    %1368 = vector.extract_strided_slice %1367 {offsets = [0, 96], sizes = [24, 32], strides = [1, 1]} : vector<24x128xf32> to vector<24x32xf32>
    %1369 = vector.extract_strided_slice %1367 {offsets = [0, 0], sizes = [24, 96], strides = [1, 1]} : vector<24x128xf32> to vector<24x96xf32>
    %1370 = tpu.concatenate %1368, %1369 in 1 : vector<24x32xf32>, vector<24x96xf32> -> vector<24x128xf32>
    %1371 = arith.addf %1355, %1370 : vector<24x128xf32>
    %c18_493 = arith.constant 18 : index
    %c0_494 = arith.constant 0 : index
    %1372 = vector.load %arg9[%c18_493, %c0_494] : memref<56x128xf32, #tpu.memory_space<vmem>>, vector<24x128xf32>
    %c2_i32_495 = arith.constant 2 : i32
    %1373 = vector.broadcast %c2_i32_495 : i32 to vector<24x1xi32>
    %1374 = arith.addi %790, %1373 : vector<24x1xi32>
    %c0_i32_496 = arith.constant 0 : i32
    %1375 = vector.broadcast %c0_i32_496 : i32 to vector<24x1xi32>
    %1376 = arith.cmpi sge, %1374, %1375 : vector<24x1xi32>
    %c5_i32_497 = arith.constant 5 : i32
    %1377 = vector.broadcast %c5_i32_497 : i32 to vector<24x1xi32>
    %1378 = arith.cmpi slt, %1374, %1377 : vector<24x1xi32>
    %1379 = arith.andi %1376, %1378 : vector<24x1xi1>
    %1380 = arith.extui %1379 : vector<24x1xi1> to vector<24x1xi32>
    %1381 = arith.sitofp %1380 : vector<24x1xi32> to vector<24x1xf32>
    %1382 = vector.broadcast %1381 : vector<24x1xf32> to vector<24x128xf32>
    %1383 = arith.mulf %1372, %1382 : vector<24x128xf32>
    %1384 = vector.extract_strided_slice %1383 {offsets = [0, 64], sizes = [24, 64], strides = [1, 1]} : vector<24x128xf32> to vector<24x64xf32>
    %1385 = vector.extract_strided_slice %1383 {offsets = [0, 0], sizes = [24, 64], strides = [1, 1]} : vector<24x128xf32> to vector<24x64xf32>
    %1386 = tpu.concatenate %1384, %1385 in 1 : vector<24x64xf32>, vector<24x64xf32> -> vector<24x128xf32>
    %1387 = arith.addf %1371, %1386 : vector<24x128xf32>
    %c19_498 = arith.constant 19 : index
    %c0_499 = arith.constant 0 : index
    %1388 = vector.load %arg9[%c19_498, %c0_499] : memref<56x128xf32, #tpu.memory_space<vmem>>, vector<24x128xf32>
    %c-2_i32_500 = arith.constant -2 : i32
    %1389 = vector.broadcast %c-2_i32_500 : i32 to vector<24x1xi32>
    %1390 = arith.addi %790, %1389 : vector<24x1xi32>
    %c0_i32_501 = arith.constant 0 : i32
    %1391 = vector.broadcast %c0_i32_501 : i32 to vector<24x1xi32>
    %1392 = arith.cmpi sge, %1390, %1391 : vector<24x1xi32>
    %c5_i32_502 = arith.constant 5 : i32
    %1393 = vector.broadcast %c5_i32_502 : i32 to vector<24x1xi32>
    %1394 = arith.cmpi slt, %1390, %1393 : vector<24x1xi32>
    %1395 = arith.andi %1392, %1394 : vector<24x1xi1>
    %1396 = arith.extui %1395 : vector<24x1xi1> to vector<24x1xi32>
    %1397 = arith.sitofp %1396 : vector<24x1xi32> to vector<24x1xf32>
    %1398 = vector.broadcast %1397 : vector<24x1xf32> to vector<24x128xf32>
    %1399 = arith.mulf %1388, %1398 : vector<24x128xf32>
    %1400 = vector.extract_strided_slice %1399 {offsets = [0, 32], sizes = [24, 96], strides = [1, 1]} : vector<24x128xf32> to vector<24x96xf32>
    %1401 = vector.extract_strided_slice %1399 {offsets = [0, 0], sizes = [24, 32], strides = [1, 1]} : vector<24x128xf32> to vector<24x32xf32>
    %1402 = tpu.concatenate %1400, %1401 in 1 : vector<24x96xf32>, vector<24x32xf32> -> vector<24x128xf32>
    %1403 = arith.addf %1387, %1402 : vector<24x128xf32>
    %c0_503 = arith.constant 0 : index
    %c384_504 = arith.constant 384 : index
    %1404 = vector.load %arg11[%c0_503, %c384_504] : memref<24x896xf32, #tpu.memory_space<vmem>>, vector<24x128xf32>
    tpu.vector_store %arg11[%c0_503, %c384_504], %1403 {strides = array<i32>} : memref<24x896xf32, #tpu.memory_space<vmem>>, vector<24x128xf32>,
    %cst_505 = arith.constant 0.000000e+00 : f32
    %1405 = vector.broadcast %cst_505 : f32 to vector<24x128xf32>
    %c20_506 = arith.constant 20 : index
    %c0_507 = arith.constant 0 : index
    %1406 = vector.load %arg9[%c20_506, %c0_507] : memref<56x128xf32, #tpu.memory_space<vmem>>, vector<24x128xf32>
    %c-1_i32_508 = arith.constant -1 : i32
    %1407 = vector.broadcast %c-1_i32_508 : i32 to vector<24x1xi32>
    %1408 = arith.addi %790, %1407 : vector<24x1xi32>
    %c0_i32_509 = arith.constant 0 : i32
    %1409 = vector.broadcast %c0_i32_509 : i32 to vector<24x1xi32>
    %1410 = arith.cmpi sge, %1408, %1409 : vector<24x1xi32>
    %c5_i32_510 = arith.constant 5 : i32
    %1411 = vector.broadcast %c5_i32_510 : i32 to vector<24x1xi32>
    %1412 = arith.cmpi slt, %1408, %1411 : vector<24x1xi32>
    %1413 = arith.andi %1410, %1412 : vector<24x1xi1>
    %1414 = arith.extui %1413 : vector<24x1xi1> to vector<24x1xi32>
    %1415 = arith.sitofp %1414 : vector<24x1xi32> to vector<24x1xf32>
    %1416 = vector.broadcast %1415 : vector<24x1xf32> to vector<24x128xf32>
    %1417 = arith.mulf %1406, %1416 : vector<24x128xf32>
    %1418 = arith.addf %1405, %1417 : vector<24x128xf32>
    %c21_511 = arith.constant 21 : index
    %c0_512 = arith.constant 0 : index
    %1419 = vector.load %arg9[%c21_511, %c0_512] : memref<56x128xf32, #tpu.memory_space<vmem>>, vector<24x128xf32>
    %1420 = vector.extract_strided_slice %1419 {offsets = [0, 96], sizes = [24, 32], strides = [1, 1]} : vector<24x128xf32> to vector<24x32xf32>
    %1421 = vector.extract_strided_slice %1419 {offsets = [0, 0], sizes = [24, 96], strides = [1, 1]} : vector<24x128xf32> to vector<24x96xf32>
    %1422 = tpu.concatenate %1420, %1421 in 1 : vector<24x32xf32>, vector<24x96xf32> -> vector<24x128xf32>
    %1423 = arith.addf %1418, %1422 : vector<24x128xf32>
    %c22_513 = arith.constant 22 : index
    %c0_514 = arith.constant 0 : index
    %1424 = vector.load %arg9[%c22_513, %c0_514] : memref<56x128xf32, #tpu.memory_space<vmem>>, vector<24x128xf32>
    %c1_i32_515 = arith.constant 1 : i32
    %1425 = vector.broadcast %c1_i32_515 : i32 to vector<24x1xi32>
    %1426 = arith.addi %790, %1425 : vector<24x1xi32>
    %c0_i32_516 = arith.constant 0 : i32
    %1427 = vector.broadcast %c0_i32_516 : i32 to vector<24x1xi32>
    %1428 = arith.cmpi sge, %1426, %1427 : vector<24x1xi32>
    %c5_i32_517 = arith.constant 5 : i32
    %1429 = vector.broadcast %c5_i32_517 : i32 to vector<24x1xi32>
    %1430 = arith.cmpi slt, %1426, %1429 : vector<24x1xi32>
    %1431 = arith.andi %1428, %1430 : vector<24x1xi1>
    %1432 = arith.extui %1431 : vector<24x1xi1> to vector<24x1xi32>
    %1433 = arith.sitofp %1432 : vector<24x1xi32> to vector<24x1xf32>
    %1434 = vector.broadcast %1433 : vector<24x1xf32> to vector<24x128xf32>
    %1435 = arith.mulf %1424, %1434 : vector<24x128xf32>
    %1436 = vector.extract_strided_slice %1435 {offsets = [0, 64], sizes = [24, 64], strides = [1, 1]} : vector<24x128xf32> to vector<24x64xf32>
    %1437 = vector.extract_strided_slice %1435 {offsets = [0, 0], sizes = [24, 64], strides = [1, 1]} : vector<24x128xf32> to vector<24x64xf32>
    %1438 = tpu.concatenate %1436, %1437 in 1 : vector<24x64xf32>, vector<24x64xf32> -> vector<24x128xf32>
    %1439 = arith.addf %1423, %1438 : vector<24x128xf32>
    %c23_518 = arith.constant 23 : index
    %c0_519 = arith.constant 0 : index
    %1440 = vector.load %arg9[%c23_518, %c0_519] : memref<56x128xf32, #tpu.memory_space<vmem>>, vector<24x128xf32>
    %c2_i32_520 = arith.constant 2 : i32
    %1441 = vector.broadcast %c2_i32_520 : i32 to vector<24x1xi32>
    %1442 = arith.addi %790, %1441 : vector<24x1xi32>
    %c0_i32_521 = arith.constant 0 : i32
    %1443 = vector.broadcast %c0_i32_521 : i32 to vector<24x1xi32>
    %1444 = arith.cmpi sge, %1442, %1443 : vector<24x1xi32>
    %c5_i32_522 = arith.constant 5 : i32
    %1445 = vector.broadcast %c5_i32_522 : i32 to vector<24x1xi32>
    %1446 = arith.cmpi slt, %1442, %1445 : vector<24x1xi32>
    %1447 = arith.andi %1444, %1446 : vector<24x1xi1>
    %1448 = arith.extui %1447 : vector<24x1xi1> to vector<24x1xi32>
    %1449 = arith.sitofp %1448 : vector<24x1xi32> to vector<24x1xf32>
    %1450 = vector.broadcast %1449 : vector<24x1xf32> to vector<24x128xf32>
    %1451 = arith.mulf %1440, %1450 : vector<24x128xf32>
    %1452 = vector.extract_strided_slice %1451 {offsets = [0, 32], sizes = [24, 96], strides = [1, 1]} : vector<24x128xf32> to vector<24x96xf32>
    %1453 = vector.extract_strided_slice %1451 {offsets = [0, 0], sizes = [24, 32], strides = [1, 1]} : vector<24x128xf32> to vector<24x32xf32>
    %1454 = tpu.concatenate %1452, %1453 in 1 : vector<24x96xf32>, vector<24x32xf32> -> vector<24x128xf32>
    %1455 = arith.addf %1439, %1454 : vector<24x128xf32>
    %c0_523 = arith.constant 0 : index
    %c512_524 = arith.constant 512 : index
    %1456 = vector.load %arg11[%c0_523, %c512_524] : memref<24x896xf32, #tpu.memory_space<vmem>>, vector<24x128xf32>
    tpu.vector_store %arg11[%c0_523, %c512_524], %1455 {strides = array<i32>} : memref<24x896xf32, #tpu.memory_space<vmem>>, vector<24x128xf32>,
    %cst_525 = arith.constant 0.000000e+00 : f32
    %1457 = vector.broadcast %cst_525 : f32 to vector<24x128xf32>
    %c24_526 = arith.constant 24 : index
    %c0_527 = arith.constant 0 : index
    %1458 = vector.load %arg9[%c24_526, %c0_527] : memref<56x128xf32, #tpu.memory_space<vmem>>, vector<24x128xf32>
    %c-2_i32_528 = arith.constant -2 : i32
    %1459 = vector.broadcast %c-2_i32_528 : i32 to vector<24x1xi32>
    %1460 = arith.addi %790, %1459 : vector<24x1xi32>
    %c0_i32_529 = arith.constant 0 : i32
    %1461 = vector.broadcast %c0_i32_529 : i32 to vector<24x1xi32>
    %1462 = arith.cmpi sge, %1460, %1461 : vector<24x1xi32>
    %c5_i32_530 = arith.constant 5 : i32
    %1463 = vector.broadcast %c5_i32_530 : i32 to vector<24x1xi32>
    %1464 = arith.cmpi slt, %1460, %1463 : vector<24x1xi32>
    %1465 = arith.andi %1462, %1464 : vector<24x1xi1>
    %1466 = arith.extui %1465 : vector<24x1xi1> to vector<24x1xi32>
    %1467 = arith.sitofp %1466 : vector<24x1xi32> to vector<24x1xf32>
    %1468 = vector.broadcast %1467 : vector<24x1xf32> to vector<24x128xf32>
    %1469 = arith.mulf %1458, %1468 : vector<24x128xf32>
    %1470 = arith.addf %1457, %1469 : vector<24x128xf32>
    %c25_531 = arith.constant 25 : index
    %c0_532 = arith.constant 0 : index
    %1471 = vector.load %arg9[%c25_531, %c0_532] : memref<56x128xf32, #tpu.memory_space<vmem>>, vector<24x128xf32>
    %c-1_i32_533 = arith.constant -1 : i32
    %1472 = vector.broadcast %c-1_i32_533 : i32 to vector<24x1xi32>
    %1473 = arith.addi %790, %1472 : vector<24x1xi32>
    %c0_i32_534 = arith.constant 0 : i32
    %1474 = vector.broadcast %c0_i32_534 : i32 to vector<24x1xi32>
    %1475 = arith.cmpi sge, %1473, %1474 : vector<24x1xi32>
    %c5_i32_535 = arith.constant 5 : i32
    %1476 = vector.broadcast %c5_i32_535 : i32 to vector<24x1xi32>
    %1477 = arith.cmpi slt, %1473, %1476 : vector<24x1xi32>
    %1478 = arith.andi %1475, %1477 : vector<24x1xi1>
    %1479 = arith.extui %1478 : vector<24x1xi1> to vector<24x1xi32>
    %1480 = arith.sitofp %1479 : vector<24x1xi32> to vector<24x1xf32>
    %1481 = vector.broadcast %1480 : vector<24x1xf32> to vector<24x128xf32>
    %1482 = arith.mulf %1471, %1481 : vector<24x128xf32>
    %1483 = vector.extract_strided_slice %1482 {offsets = [0, 96], sizes = [24, 32], strides = [1, 1]} : vector<24x128xf32> to vector<24x32xf32>
    %1484 = vector.extract_strided_slice %1482 {offsets = [0, 0], sizes = [24, 96], strides = [1, 1]} : vector<24x128xf32> to vector<24x96xf32>
    %1485 = tpu.concatenate %1483, %1484 in 1 : vector<24x32xf32>, vector<24x96xf32> -> vector<24x128xf32>
    %1486 = arith.addf %1470, %1485 : vector<24x128xf32>
    %c26_536 = arith.constant 26 : index
    %c0_537 = arith.constant 0 : index
    %1487 = vector.load %arg9[%c26_536, %c0_537] : memref<56x128xf32, #tpu.memory_space<vmem>>, vector<24x128xf32>
    %1488 = vector.extract_strided_slice %1487 {offsets = [0, 64], sizes = [24, 64], strides = [1, 1]} : vector<24x128xf32> to vector<24x64xf32>
    %1489 = vector.extract_strided_slice %1487 {offsets = [0, 0], sizes = [24, 64], strides = [1, 1]} : vector<24x128xf32> to vector<24x64xf32>
    %1490 = tpu.concatenate %1488, %1489 in 1 : vector<24x64xf32>, vector<24x64xf32> -> vector<24x128xf32>
    %1491 = arith.addf %1486, %1490 : vector<24x128xf32>
    %c27_538 = arith.constant 27 : index
    %c0_539 = arith.constant 0 : index
    %1492 = vector.load %arg9[%c27_538, %c0_539] : memref<56x128xf32, #tpu.memory_space<vmem>>, vector<24x128xf32>
    %c1_i32_540 = arith.constant 1 : i32
    %1493 = vector.broadcast %c1_i32_540 : i32 to vector<24x1xi32>
    %1494 = arith.addi %790, %1493 : vector<24x1xi32>
    %c0_i32_541 = arith.constant 0 : i32
    %1495 = vector.broadcast %c0_i32_541 : i32 to vector<24x1xi32>
    %1496 = arith.cmpi sge, %1494, %1495 : vector<24x1xi32>
    %c5_i32_542 = arith.constant 5 : i32
    %1497 = vector.broadcast %c5_i32_542 : i32 to vector<24x1xi32>
    %1498 = arith.cmpi slt, %1494, %1497 : vector<24x1xi32>
    %1499 = arith.andi %1496, %1498 : vector<24x1xi1>
    %1500 = arith.extui %1499 : vector<24x1xi1> to vector<24x1xi32>
    %1501 = arith.sitofp %1500 : vector<24x1xi32> to vector<24x1xf32>
    %1502 = vector.broadcast %1501 : vector<24x1xf32> to vector<24x128xf32>
    %1503 = arith.mulf %1492, %1502 : vector<24x128xf32>
    %1504 = vector.extract_strided_slice %1503 {offsets = [0, 32], sizes = [24, 96], strides = [1, 1]} : vector<24x128xf32> to vector<24x96xf32>
    %1505 = vector.extract_strided_slice %1503 {offsets = [0, 0], sizes = [24, 32], strides = [1, 1]} : vector<24x128xf32> to vector<24x32xf32>
    %1506 = tpu.concatenate %1504, %1505 in 1 : vector<24x96xf32>, vector<24x32xf32> -> vector<24x128xf32>
    %1507 = arith.addf %1491, %1506 : vector<24x128xf32>
    %c0_543 = arith.constant 0 : index
    %c640_544 = arith.constant 640 : index
    %1508 = vector.load %arg11[%c0_543, %c640_544] : memref<24x896xf32, #tpu.memory_space<vmem>>, vector<24x128xf32>
    tpu.vector_store %arg11[%c0_543, %c640_544], %1507 {strides = array<i32>} : memref<24x896xf32, #tpu.memory_space<vmem>>, vector<24x128xf32>,
    %cst_545 = arith.constant 0.000000e+00 : f32
    %1509 = vector.broadcast %cst_545 : f32 to vector<24x128xf32>
    %c28_546 = arith.constant 28 : index
    %c0_547 = arith.constant 0 : index
    %1510 = vector.load %arg9[%c28_546, %c0_547] : memref<56x128xf32, #tpu.memory_space<vmem>>, vector<24x128xf32>
    %c2_i32_548 = arith.constant 2 : i32
    %1511 = vector.broadcast %c2_i32_548 : i32 to vector<24x1xi32>
    %1512 = arith.addi %790, %1511 : vector<24x1xi32>
    %c0_i32_549 = arith.constant 0 : i32
    %1513 = vector.broadcast %c0_i32_549 : i32 to vector<24x1xi32>
    %1514 = arith.cmpi sge, %1512, %1513 : vector<24x1xi32>
    %c5_i32_550 = arith.constant 5 : i32
    %1515 = vector.broadcast %c5_i32_550 : i32 to vector<24x1xi32>
    %1516 = arith.cmpi slt, %1512, %1515 : vector<24x1xi32>
    %1517 = arith.andi %1514, %1516 : vector<24x1xi1>
    %1518 = arith.extui %1517 : vector<24x1xi1> to vector<24x1xi32>
    %1519 = arith.sitofp %1518 : vector<24x1xi32> to vector<24x1xf32>
    %1520 = vector.broadcast %1519 : vector<24x1xf32> to vector<24x128xf32>
    %1521 = arith.mulf %1510, %1520 : vector<24x128xf32>
    %1522 = arith.addf %1509, %1521 : vector<24x128xf32>
    %c0_551 = arith.constant 0 : index
    %c768_552 = arith.constant 768 : index
    %1523 = vector.load %arg11[%c0_551, %c768_552] : memref<24x896xf32, #tpu.memory_space<vmem>>, vector<24x128xf32>
    tpu.vector_store %arg11[%c0_551, %c768_552], %1522 {strides = array<i32>} : memref<24x896xf32, #tpu.memory_space<vmem>>, vector<24x128xf32>,
    %c0_553 = arith.constant 0 : index
    %c0_554 = arith.constant 0 : index
    %1524 = vector.load %arg11[%c0_553, %c0_554] : memref<24x896xf32, #tpu.memory_space<vmem>>, vector<24x896xf32>
    %c0_555 = arith.constant 0 : index
    %c0_556 = arith.constant 0 : index
    %1525 = vector.load %arg5[%c0_555, %c0_556] : memref<896x128xf32, #tpu.memory_space<vmem>>, vector<896x128xf32>
    %cst_557 = arith.constant dense<0.000000e+00> : vector<24x128xf32>
    %1526 = tpu.matmul %1524, %1525, %cst_557 {dimension_numbers = #tpu.dot_dimension_numbers<[1], [0], [0], [1], [0, 0, 1, 1], [], []>} : vector<24x896xf32>, vector<896x128xf32>, vector<24x128xf32> -> vector<24x128xf32>
    %c0_558 = arith.constant 0 : index
    %c0_559 = arith.constant 0 : index
    %1527 = vector.load %arg6[%c0_558, %c0_559] : memref<1x128xf32, #tpu.memory_space<vmem>>, vector<1x128xf32>
    %1528 = vector.broadcast %1527 : vector<1x128xf32> to vector<24x128xf32>
    %1529 = arith.addf %1526, %1528 : vector<24x128xf32>
    %1530 = arith.index_cast %arg0 : i32 to index
    %c1 = arith.constant 1 : index
    %1531 = memref.load %arg1[%1530, %c1] : memref<2x2xf32, #tpu.memory_space<smem>>
    %1532 = vector.extract_strided_slice %1529 {offsets = [0, 0], sizes = [16, 128], strides = [1, 1]} : vector<24x128xf32> to vector<16x128xf32>
    %1533 = vector.broadcast %1531 : f32 to vector<16x128xf32>
    %1534 = arith.mulf %1533, %1532 : vector<16x128xf32>
    %1535 = arith.addf %774, %1534 : vector<16x128xf32>
    %c0_560 = arith.constant 0 : index
    %c0_561 = arith.constant 0 : index
    %c0_562 = arith.constant 0 : index
    %1536 = vector.load %arg7[%c0_560, %c0_561, %c0_562] : memref<1x16x128xf32, #tpu.memory_space<vmem>>, vector<1x16x128xf32>
    %1537 = vector.shape_cast %1536 : vector<1x16x128xf32> to vector<16x128xf32>
    %1538 = vector.shape_cast %1535 : vector<16x128xf32> to vector<1x16x128xf32>
    tpu.vector_store %arg7[%c0_560, %c0_561, %c0_562], %1538 {strides = array<i32>} : memref<1x16x128xf32, #tpu.memory_space<vmem>>, vector<1x16x128xf32>,
    return
  }
  func.func @transform_0(%arg0: i32) -> (i32, i32) {
    %c0_i32 = arith.constant 0 : i32
    %c0_i32_0 = arith.constant 0 : i32
    %c0_i32_1 = arith.constant 0 : i32
    return %c0_i32, %c0_i32_0 : i32, i32
  }
  func.func @transform_1(%arg0: i32) -> (i32, i32, i32) {
    %c0_i32 = arith.constant 0 : i32
    %c0_i32_0 = arith.constant 0 : i32
    %c0_i32_1 = arith.constant 0 : i32
    return %arg0, %c0_i32, %c0_i32_0 : i32, i32, i32
  }
  func.func @transform_2(%arg0: i32) -> (i32, i32) {
    %c0_i32 = arith.constant 0 : i32
    %c0_i32_0 = arith.constant 0 : i32
    %c0_i32_1 = arith.constant 0 : i32
    return %c0_i32, %c0_i32_0 : i32, i32
  }
  func.func @transform_3(%arg0: i32) -> (i32, i32) {
    %c0_i32 = arith.constant 0 : i32
    %c0_i32_0 = arith.constant 0 : i32
    %c0_i32_1 = arith.constant 0 : i32
    return %c0_i32, %c0_i32_0 : i32, i32
  }
  func.func @transform_4(%arg0: i32) -> (i32, i32) {
    %c0_i32 = arith.constant 0 : i32
    %c0_i32_0 = arith.constant 0 : i32
    %c0_i32_1 = arith.constant 0 : i32
    return %c0_i32, %c0_i32_0 : i32, i32
  }
  func.func @transform_5(%arg0: i32) -> (i32, i32) {
    %c0_i32 = arith.constant 0 : i32
    %c0_i32_0 = arith.constant 0 : i32
    %c0_i32_1 = arith.constant 0 : i32
    return %c0_i32, %c0_i32_0 : i32, i32
  }
  func.func @transform_6(%arg0: i32) -> (i32, i32, i32) {
    %c0_i32 = arith.constant 0 : i32
    %c0_i32_0 = arith.constant 0 : i32
    %c0_i32_1 = arith.constant 0 : i32
    return %arg0, %c0_i32, %c0_i32_0 : i32, i32, i32
  }
}

</mosaic_0001>

<llo_original>
// kernel: run.1
$region0: #{run.1}
  #allocation0 [shape = 'u32[]', space=smem, size = 0x4, offset = 0x4, fixed_abs, tag = 'smem constant byte address 0x4 - core index']
  #allocation1 [shape = 'u32[144,128]{1,0:T(1,128)}', space=vmem, size = 0x12000, scoped, tag = 'internal scratch']
  #allocation2 [shape = 'f32[56,128]{1,0:T(8,128)}', space=vmem, size = 0x7000, scoped, tag = 'scratch operand']
  #allocation3 [shape = 'f32[56,128]{1,0:T(8,128)}', space=vmem, size = 0x7000, scoped, tag = 'scratch operand']
  #allocation4 [shape = 'f32[24,512]{1,0:T(8,128)}', space=vmem, size = 0xc000, scoped, tag = 'scratch operand']
  #allocation5 [shape = 'f32[24,896]{1,0:T(8,128)}', space=vmem, size = 0x15000, scoped, tag = 'scratch operand']
  %s0 = inlined_call_operand.vmem [shape: f32[2,2], index: 0, kind: input, shape index: {}]
  %s1 = inlined_call_operand.hbm [shape: f32[2,16,16], index: 1, kind: input, shape index: {}]
  %s2 = inlined_call_operand.hbm [shape: f32[512,128], index: 2, kind: input, shape index: {}]
  %s3 = inlined_call_operand.vmem [shape: f32[1,128], index: 3, kind: input, shape index: {}]
  %s4 = inlined_call_operand.hbm [shape: f32[896,128], index: 4, kind: input, shape index: {}]
  %s5 = inlined_call_operand.vmem [shape: f32[1,128], index: 5, kind: input, shape index: {}]
  %s6 = inlined_call_operand.hbm [shape: f32[2,16,128], index: 6, kind: output, shape index: {}]
  %s7 = sld [smem:[#allocation0]]
  $region73: #{run.1} parent=0
    _
  %s9 = ssub.s32 1, %s7
  %s10 = scalar_select 0, %s9, %s7
  $region1: #{run.1} parent=0
    #allocation6 [shape = 'u8[1024]{0}', space=smem, size = 0x400, scoped, tag = 'input window, operand 0, single buffered']
    #allocation7 [shape = 's32[2]{0}', space=sflag, size = 0x8, scoped, tag = 'scoped memory for run.1']
    #allocation8 [shape = 's32[2]{0}', space=sflag, size = 0x8, scoped, tag = 'scoped memory for run.1']
    #allocation9 [shape = 's32[2]{0}', space=sflag, size = 0x8, scoped, tag = 'scoped memory for run.1']
    #allocation10 [shape = 'u8[16384]{0}', space=vmem, size = 0x4000, scoped, tag = 'input window, operand 1']
    #allocation11 [shape = 'u8[262144]{0}', space=vmem, size = 0x40000, scoped, tag = 'input window, operand 2, single buffered']
    #allocation12 [shape = 's32[1]{0}', space=sflag, size = 0x4, scoped, tag = 'scoped memory for run.1']
    #allocation13 [shape = 'u8[458752]{0}', space=vmem, size = 0x70000, scoped, tag = 'input window, operand 4, single buffered']
    #allocation14 [shape = 'u8[16384]{0}', space=vmem, size = 0x4000, scoped, tag = 'output window, operand 0']
    %11 = vsyncpa [#allocation9], 0
    %12 = vsyncpa [#allocation7], 0
    %s13 = scalar_lea.sflag [#allocation7], 1
    %14 = vsyncpa %s13, 0
    %15 = vsyncpa [#allocation12], 0
    %16 = vsyncpa [#allocation8], 0
    %s17 = scalar_lea.sflag [#allocation8], 1
    %18 = vsyncpa %s17, 0
    loop: start=0, step=1, limit=4
    $region2: #{run.1} parent=1 // loop_pre_header
      _
    $region3: #{run.1} parent=1 // loop_header
      %s20 = sphi 0, %s24
      %p21 = scmp.ge.s32.totalorder %s20, 4
      %s28 = sphi 0, %s28
      %s30 = sphi 0, %s28
      %s31 = sphi 0, %s30
      %s45 = sphi 0, %s31
      %s51 = sphi 0, %s53
      %s54 = sphi 0, %s51
      %s55 = sphi 0, %s54
      %s71 = sphi 0, %s55
      %s75 = sphi 0, %s75
      %s77 = sphi 0, %s75
      %s78 = sphi 0, %s77
      %s92 = sphi 0, %s78
      %s96 = sphi 0, %s96
      %s98 = sphi 0, %s96
      %s99 = sphi 0, %s98
      %s113 = sphi 0, %s99
      %s117 = sphi 0, %s117
      %s119 = sphi 0, %s117
      %s120 = sphi 0, %s119
      %s134 = sphi 0, %s120
      %s138 = sphi 0, %s138
      %s140 = sphi 0, %s138
      %s141 = sphi 0, %s140
      %s155 = sphi 0, %s141
      %s161 = sphi 0, %s163
      %s164 = sphi 0, %s161
      %s165 = sphi 0, %s164
      %s181 = sphi 0, %s165
    $region4: #{run.1} parent=1 // loop_header_branch
      %23 = sbr.rel (%p21) target = $region8
    $region5: #{run.1} parent=1 // loop_body
      %s25 = ssub.s32 %s20, 1
      %s26 = ssub.s32 %s20, 2
      %s27 = sadd.s32 %s20, 1
      %s29 = sadd.s32 %s28, 1
      %p32 = scmp.eq.s32.totalorder %s20, 1
      %p33 = scmp.ne.s32.totalorder %s28, %s30
      %p34 = scmp.eq.s32.totalorder %s20, 0
      %p35 = por %p33, %p34
      %p36 = scmp.ne.s32.totalorder %s28, %s30
      %p37 = scmp.eq.s32.totalorder %s25, 1
      %p38 = por %p36, %p37
      %p39 = scmp.ne.s32.totalorder %s30, %s31
      %p40 = scmp.eq.s32.totalorder %s25, 0
      %p41 = por %p39, %p40
      %p42 = scmp.ne.s32.totalorder %s30, %s31
      %p43 = scmp.eq.s32.totalorder %s26, 1
      %p44 = por %p42, %p43
      %p46 = scmp.ne.s32.totalorder %s31, %s45
      %p47 = scmp.eq.s32.totalorder %s26, 0
      %p48 = por %p46, %p47
      %s49 = ssub.s32 %s20, %s27
      %p50 = scmp.eq.s32.totalorder %s49, 0
      %s52 = sadd.s32 %s51, 1
      %s53 = scalar_select %p50, %s51, %s52
      %p56 = pneg %p50
      %p57 = scmp.eq.s32.totalorder %s20, 1
      %p58 = por %p56, %p57
      %p59 = scmp.ne.s32.totalorder %s51, %s54
      %p60 = scmp.eq.s32.totalorder %s20, 0
      %p61 = por %p59, %p60
      %p62 = scmp.ne.s32.totalorder %s51, %s54
      %p63 = scmp.eq.s32.totalorder %s25, 1
      %p64 = por %p62, %p63
      %p65 = scmp.ne.s32.totalorder %s54, %s55
      %p66 = scmp.eq.s32.totalorder %s25, 0
      %p67 = por %p65, %p66
      %p68 = scmp.ne.s32.totalorder %s54, %s55
      %p69 = scmp.eq.s32.totalorder %s26, 1
      %p70 = por %p68, %p69
      %p72 = scmp.ne.s32.totalorder %s55, %s71
      %p73 = scmp.eq.s32.totalorder %s26, 0
      %p74 = por %p72, %p73
      %s76 = sadd.s32 %s75, 1
      %p79 = scmp.eq.s32.totalorder %s20, 1
      %p80 = scmp.ne.s32.totalorder %s75, %s77
      %p81 = scmp.eq.s32.totalorder %s20, 0
      %p82 = por %p80, %p81
      %p83 = scmp.ne.s32.totalorder %s75, %s77
      %p84 = scmp.eq.s32.totalorder %s25, 1
      %p85 = por %p83, %p84
      %p86 = scmp.ne.s32.totalorder %s77, %s78
      %p87 = scmp.eq.s32.totalorder %s25, 0
      %p88 = por %p86, %p87
      %p89 = scmp.ne.s32.totalorder %s77, %s78
      %p90 = scmp.eq.s32.totalorder %s26, 1
      %p91 = por %p89, %p90
      %p93 = scmp.ne.s32.totalorder %s78, %s92
      %p94 = scmp.eq.s32.totalorder %s26, 0
      %p95 = por %p93, %p94
      %s97 = sadd.s32 %s96, 1
      %p100 = scmp.eq.s32.totalorder %s20, 1
      %p101 = scmp.ne.s32.totalorder %s96, %s98
      %p102 = scmp.eq.s32.totalorder %s20, 0
      %p103 = por %p101, %p102
      %p104 = scmp.ne.s32.totalorder %s96, %s98
      %p105 = scmp.eq.s32.totalorder %s25, 1
      %p106 = por %p104, %p105
      %p107 = scmp.ne.s32.totalorder %s98, %s99
      %p108 = scmp.eq.s32.totalorder %s25, 0
      %p109 = por %p107, %p108
      %p110 = scmp.ne.s32.totalorder %s98, %s99
      %p111 = scmp.eq.s32.totalorder %s26, 1
      %p112 = por %p110, %p111
      %p114 = scmp.ne.s32.totalorder %s99, %s113
      %p115 = scmp.eq.s32.totalorder %s26, 0
      %p116 = por %p114, %p115
      %s118 = sadd.s32 %s117, 1
      %p121 = scmp.eq.s32.totalorder %s20, 1
      %p122 = scmp.ne.s32.totalorder %s117, %s119
      %p123 = scmp.eq.s32.totalorder %s20, 0
      %p124 = por %p122, %p123
      %p125 = scmp.ne.s32.totalorder %s117, %s119
      %p126 = scmp.eq.s32.totalorder %s25, 1
      %p127 = por %p125, %p126
      %p128 = scmp.ne.s32.totalorder %s119, %s120
      %p129 = scmp.eq.s32.totalorder %s25, 0
      %p130 = por %p128, %p129
      %p131 = scmp.ne.s32.totalorder %s119, %s120
      %p132 = scmp.eq.s32.totalorder %s26, 1
      %p133 = por %p131, %p132
      %p135 = scmp.ne.s32.totalorder %s120, %s134
      %p136 = scmp.eq.s32.totalorder %s26, 0
      %p137 = por %p135, %p136
      %s139 = sadd.s32 %s138, 1
      %p142 = scmp.eq.s32.totalorder %s20, 1
      %p143 = scmp.ne.s32.totalorder %s138, %s140
      %p144 = scmp.eq.s32.totalorder %s20, 0
      %p145 = por %p143, %p144
      %p146 = scmp.ne.s32.totalorder %s138, %s140
      %p147 = scmp.eq.s32.totalorder %s25, 1
      %p148 = por %p146, %p147
      %p149 = scmp.ne.s32.totalorder %s140, %s141
      %p150 = scmp.eq.s32.totalorder %s25, 0
      %p151 = por %p149, %p150
      %p152 = scmp.ne.s32.totalorder %s140, %s141
      %p153 = scmp.eq.s32.totalorder %s26, 1
      %p154 = por %p152, %p153
      %p156 = scmp.ne.s32.totalorder %s141, %s155
      %p157 = scmp.eq.s32.totalorder %s26, 0
      %p158 = por %p156, %p157
      %s159 = ssub.s32 %s20, %s27
      %p160 = scmp.eq.s32.totalorder %s159, 0
      %s162 = sadd.s32 %s161, 1
      %s163 = scalar_select %p160, %s161, %s162
      %p166 = pneg %p160
      %p167 = scmp.eq.s32.totalorder %s20, 1
      %p168 = por %p166, %p167
      %p169 = scmp.ne.s32.totalorder %s161, %s164
      %p170 = scmp.eq.s32.totalorder %s20, 0
      %p171 = por %p169, %p170
      %p172 = scmp.ne.s32.totalorder %s161, %s164
      %p173 = scmp.eq.s32.totalorder %s25, 1
      %p174 = por %p172, %p173
      %p175 = scmp.ne.s32.totalorder %s164, %s165
      %p176 = scmp.eq.s32.totalorder %s25, 0
      %p177 = por %p175, %p176
      %p178 = scmp.ne.s32.totalorder %s164, %s165
      %p179 = scmp.eq.s32.totalorder %s26, 1
      %p180 = por %p178, %p179
      %p182 = scmp.ne.s32.totalorder %s165, %s181
      %p183 = scmp.eq.s32.totalorder %s26, 0
      %p184 = por %p182, %p183
      %p185 = scmp.le.s32.totalorder 1, %s20
      %p186 = scmp.lt.s32.totalorder %s20, 3
      %p187 = pnand %p185, %p186
      %p188 = pneg %p187
      // Predicated region
      $region9: #{run.1} parent=5 // pred_check
        _
      $region10: #{run.1} parent=5 // pred_check_branch
        %190 = sbr.rel (%p187) target = $region12
      $region11: #{run.1} parent=5 // pred_region
        %s191 = ssub.s32 %s20, 1
        // Predicated region
        $region13: #{run.1} parent=11 // pred_check
          %p192 = pneg %p41
        $region14: #{run.1} parent=11 // pred_check_branch
          %194 = sbr.rel (%p192) target = $region16
        $region15: #{run.1} parent=11 // pred_region
          %s196 = ssub.s32 32, 32
          %197 = vsyncadd [#allocation9], %s196
          %s199 = sshll.u32 %s0, 4
          %s200 = int_to_ptr.vmem [resolvable:$true] %s199
          %202 = dma.vmem_to_smem %s200, 32, [#allocation6], [#allocation9]
        $region16: #{run.1} parent=11 // pred_fallthru
          _
        // Predicated region
        $region17: #{run.1} parent=11 // pred_check
          %p203 = pneg %p88
        $region18: #{run.1} parent=11 // pred_check_branch
          %205 = sbr.rel (%p203) target = $region20
        $region19: #{run.1} parent=11 // pred_region
          %s207 = ssub.s32 8192, 8192
          %208 = vsyncadd [#allocation12], %s207
          %s209 = sshll.u32 [#allocation11], 4
          %s210 = int_to_ptr.vmem [resolvable:$true] %s209
          %215 = dma.hbm_to_vmem [thread:$0]  %s2, 8192, %s210, [#allocation12], 128, 128, 8
        $region20: #{run.1} parent=11 // pred_fallthru
          _
        // Predicated region
        $region21: #{run.1} parent=11 // pred_check
          %p216 = pneg %p109
        $region22: #{run.1} parent=11 // pred_check_branch
          %218 = sbr.rel (%p216) target = $region24
        $region23: #{run.1} parent=11 // pred_region
          _
        $region24: #{run.1} parent=11 // pred_fallthru
          _
        // Predicated region
        $region25: #{run.1} parent=11 // pred_check
          %p219 = pneg %p130
        $region26: #{run.1} parent=11 // pred_check_branch
          %221 = sbr.rel (%p219) target = $region28
        $region27: #{run.1} parent=11 // pred_region
          %s223 = ssub.s32 14336, 14336
          %224 = vsyncadd [#allocation12], %s223
          %s225 = sshll.u32 [#allocation13], 4
          %s226 = int_to_ptr.vmem [resolvable:$true] %s225
          %231 = dma.hbm_to_vmem [thread:$0]  %s4, 14336, %s226, [#allocation12], 128, 128, 8
        $region28: #{run.1} parent=11 // pred_fallthru
          _
        // Predicated region
        $region29: #{run.1} parent=11 // pred_check
          %p232 = pneg %p151
        $region30: #{run.1} parent=11 // pred_check_branch
          %234 = sbr.rel (%p232) target = $region32
        $region31: #{run.1} parent=11 // pred_region
          _
        $region32: #{run.1} parent=11 // pred_fallthru
          _
      $region12: #{run.1} parent=5 // pred_fallthru
        _
      %p235 = scmp.lt.s32.totalorder %s20, 2
      // Predicated region
      $region33: #{run.1} parent=5 // pred_check
        %p236 = pneg %p235
      $region34: #{run.1} parent=5 // pred_check_branch
        %238 = sbr.rel (%p236) target = $region36
      $region35: #{run.1} parent=5 // pred_region
        // Predicated region
        $region37: #{run.1} parent=35 // pred_check
          %p239 = pneg %p61
        $region38: #{run.1} parent=35 // pred_check_branch
          %241 = sbr.rel (%p239) target = $region40
        $region39: #{run.1} parent=35 // pred_region
          %s242 = sand.u32 %s51, 1
          %s243 = scalar_lea.sflag [#allocation7], %s242
          %s244 = sand.u32 %s51, 1
          %s245 = smul.addr %s244, 16
          %s246 = scalar_lea.vmem [#allocation10], %s245
          %s248 = ssub.s32 256, 256
          %249 = vsyncadd %s243, %s248
          %s250 = smul.addr %s20, 2
          %s251 = smul.addr %s250, 128
          %s252 = scalar_lea.hbm %s1, %s251
          %s253 = sshll.u32 %s246, 4
          %s254 = int_to_ptr.vmem [resolvable:$true] %s253
          %259 = dma.hbm_to_vmem [thread:$0]  %s252, 256, %s254, %s243, 128, 128, 8
        $region40: #{run.1} parent=35 // pred_fallthru
          _
      $region36: #{run.1} parent=5 // pred_fallthru
        _
      %p260 = scmp.le.s32.totalorder 1, %s20
      %p261 = scmp.lt.s32.totalorder %s20, 3
      %p262 = pnand %p260, %p261
      %p263 = pneg %p262
      // Predicated region
      $region41: #{run.1} parent=5 // pred_check
        _
      $region42: #{run.1} parent=5 // pred_check_branch
        %265 = sbr.rel (%p262) target = $region44
      $region43: #{run.1} parent=5 // pred_region
        %s266 = ssub.s32 %s20, 1
        // Predicated region
        $region45: #{run.1} parent=43 // pred_check
          %p267 = pneg %p41
        $region46: #{run.1} parent=43 // pred_check_branch
          %269 = sbr.rel (%p267) target = $region48
        $region47: #{run.1} parent=43 // pred_region
          %270 = dma.done [#allocation9], 32
        $region48: #{run.1} parent=43 // pred_fallthru
          _
        %s271 = sand.u32 %s54, 1
        %s272 = scalar_lea.sflag [#allocation7], %s271
        %s273 = sand.u32 %s54, 1
        %s274 = smul.addr %s273, 16
        %s275 = scalar_lea.vmem [#allocation10], %s274
        // Predicated region
        $region49: #{run.1} parent=43 // pred_check
          %p276 = pneg %p67
        $region50: #{run.1} parent=43 // pred_check_branch
          %278 = sbr.rel (%p276) target = $region52
        $region51: #{run.1} parent=43 // pred_region
          %279 = dma.done %s272, 256
        $region52: #{run.1} parent=43 // pred_fallthru
          _
        // Predicated region
        $region53: #{run.1} parent=43 // pred_check
          %p280 = pneg %p88
        $region54: #{run.1} parent=43 // pred_check_branch
          %282 = sbr.rel (%p280) target = $region56
        $region55: #{run.1} parent=43 // pred_region
          %283 = dma.done [#allocation12], 8192
        $region56: #{run.1} parent=43 // pred_fallthru
          _
        // Predicated region
        $region57: #{run.1} parent=43 // pred_check
          %p284 = pneg %p130
        $region58: #{run.1} parent=43 // pred_check_branch
          %286 = sbr.rel (%p284) target = $region60
        $region59: #{run.1} parent=43 // pred_region
          %287 = dma.done [#allocation12], 14336
        $region60: #{run.1} parent=43 // pred_fallthru
          _
        %288 = sfence
        %p289 = pneg %p41
        %p290 = pneg %p38
        %s291 = sand.u32 %s54, 1
        %s292 = scalar_lea.sflag [#allocation7], %s291
        %s293 = sand.u32 %s54, 1
        %s294 = smul.addr %s293, 16
        %s295 = scalar_lea.vmem [#allocation10], %s294
        %p296 = pneg %p67
        %p297 = pneg %p64
        %p298 = pneg %p88
        %p299 = pneg %p85
        %p300 = pneg %p109
        %p301 = pneg %p106
        %p302 = pneg %p130
        %p303 = pneg %p127
        %p304 = pneg %p151
        %p305 = pneg %p148
        %p306 = pneg %p177
        %p307 = pneg %p174
        %s308 = sand.u32 %s164, 1
        %s309 = scalar_lea.sflag [#allocation8], %s308
        %s310 = sand.u32 %s164, 1
        %s311 = smul.addr %s310, 16
        %s312 = scalar_lea.vmem [#allocation14], %s311
        %v313 = vld [vmem:[%s275] sm:$0xff]
        %v314 = vld [vmem:[%s275 + $0x8] sm:$0xff]
        %vm315 = vcmask 130048
        %v316 = vsel %vm315, %v313, 0.0
        %v317 = vsel %vm315, %v314, 0.0
        %318 = vst [vmem:[#allocation2] sm:$0xff] 0.0
        %319 = vst [vmem:[#allocation2 + $0x8] sm:$0xff] 0.0
        %320 = vst [vmem:[#allocation2 + $0x10] sm:$0xff] %v316
        %321 = vst [vmem:[#allocation2 + $0x18] sm:$0xff] %v317
        %322 = vst [vmem:[#allocation2 + $0x20] sm:$0xff] 0.0
        %323 = vst [vmem:[#allocation2 + $0x28] sm:$0xff] 0.0
        %324 = vst [vmem:[#allocation2 + $0x30] sm:$0xff] 0.0
        %325 = vst [vmem:[#allocation3] sm:$0xff] 0.0
        %326 = vst [vmem:[#allocation3 + $0x8] sm:$0xff] 0.0
        %327 = vst [vmem:[#allocation3 + $0x28] sm:$0xff] 0.0
        %328 = vst [vmem:[#allocation3 + $0x30] sm:$0xff] 0.0
        %v329 = vlaneseq
        %v330 = vshrl.u32 %v329, 7
        %v331 = vadd.s32 %v330, 8
        %v332 = vadd.s32 %v330, 16
        %vm333 = vcmp.lt.s32.totalorder %v330, 0
        %v334 = vsub.s32 0, %v330
        %v335 = vsel %vm333, %v334, %v330
        %v336 = vshrl.u32 %v335, 1
        %v337 = vand.u32 %v335, 1
        %v338 = vsub.s32 0, %v337
        %v339 = vsel %vm333, %v338, %v337
        %vm340 = vcmp.lt.s32.totalorder %v331, 0
        %v341 = vsub.s32 0, %v331
        %v342 = vsel %vm340, %v341, %v331
        %v343 = vshrl.u32 %v342, 1
        %v344 = vand.u32 %v342, 1
        %v345 = vsub.s32 0, %v344
        %v346 = vsel %vm340, %v345, %v344
        %vm347 = vcmp.lt.s32.totalorder %v332, 0
        %v348 = vsub.s32 0, %v332
        %v349 = vsel %vm347, %v348, %v332
        %v350 = vshrl.u32 %v349, 1
        %v351 = vand.u32 %v349, 1
        %v352 = vsub.s32 0, %v351
        %v353 = vsel %vm347, %v352, %v351
        %vm354 = vcmp.ne.s32.totalorder %v339, 0
        %vm355 = vcmp.ne.s32.totalorder %v346, 0
        %vm356 = vcmp.ne.s32.totalorder %v353, 0
        %vm357 = vcmp.lt.s32.totalorder %v339, 0
        %vm358 = vcmp.lt.s32.totalorder %v346, 0
        %vm359 = vcmp.lt.s32.totalorder %v353, 0
        %vm360 = vmand %vm357, %vm354
        %vm361 = vmand %vm358, %vm355
        %vm362 = vmand %vm359, %vm356
        %v363 = vadd.s32 %v339, 2
        %v364 = vadd.s32 %v346, 2
        %v365 = vadd.s32 %v353, 2
        %v366 = vsel %vm360, %v363, %v339
        %v367 = vsel %vm361, %v364, %v346
        %v368 = vsel %vm362, %v365, %v353
        %v369 = vld [vmem:[#allocation2 + $0xa] sm:$0xff]
        %v370 = vld [vmem:[#allocation2 + $0x12] sm:$0xff]
        %v371 = vld [vmem:[#allocation2 + $0x1a] sm:$0xff]
        %v372 = vadd.s32 %v366, 4294967294
        %v373 = vadd.s32 %v367, 4294967294
        %v374 = vadd.s32 %v368, 4294967294
        %vm375 = vcmp.ge.s32.totalorder %v372, 0
        %vm376 = vcmp.ge.s32.totalorder %v373, 0
        %vm377 = vcmp.ge.s32.totalorder %v374, 0
        %vm378 = vcmp.lt.s32.totalorder %v372, 2
        %vm379 = vcmp.lt.s32.totalorder %v373, 2
        %vm380 = vcmp.lt.s32.totalorder %v374, 2
        %vm381 = vmand %vm375, %vm378
        %vm382 = vmand %vm376, %vm379
        %vm383 = vmand %vm377, %vm380
        %v384 = vsel %vm381, 1, 0
        %v385 = vsel %vm382, 1, 0
        %v386 = vsel %vm383, 1, 0
        %v387 = vcvt.s32.f32 %v384
        %v388 = vcvt.s32.f32 %v385
        %v389 = vcvt.s32.f32 %v386
        %v390 = vmul.f32 %v369, %v387
        %v391 = vmul.f32 %v370, %v388
        %v392 = vmul.f32 %v371, %v389
        %v393 = vadd.f32 %v390, 0.0
        %v394 = vadd.f32 %v391, 0.0
        %v395 = vadd.f32 %v392, 0.0
        %v396 = vld [vmem:[#allocation2 + $0xb] sm:$0xff]
        %v397 = vld [vmem:[#allocation2 + $0x13] sm:$0xff]
        %v398 = vld [vmem:[#allocation2 + $0x1b] sm:$0xff]
        %v399 = vadd.s32 %v366, 4294967295
        %v400 = vadd.s32 %v367, 4294967295
        %v401 = vadd.s32 %v368, 4294967295
        %vm402 = vcmp.ge.s32.totalorder %v399, 0
        %vm403 = vcmp.ge.s32.totalorder %v400, 0
        %vm404 = vcmp.ge.s32.totalorder %v401, 0
        %vm405 = vcmp.lt.s32.totalorder %v399, 2
        %vm406 = vcmp.lt.s32.totalorder %v400, 2
        %vm407 = vcmp.lt.s32.totalorder %v401, 2
        %vm408 = vmand %vm402, %vm405
        %vm409 = vmand %vm403, %vm406
        %vm410 = vmand %vm404, %vm407
        %v411 = vsel %vm408, 1, 0
        %v412 = vsel %vm409, 1, 0
        %v413 = vsel %vm410, 1, 0
        %v414 = vcvt.s32.f32 %v411
        %v415 = vcvt.s32.f32 %v412
        %v416 = vcvt.s32.f32 %v413
        %v417 = vmul.f32 %v396, %v414
        %v418 = vmul.f32 %v397, %v415
        %v419 = vmul.f32 %v398, %v416
        %423 = vrot.lane.b32.xlu0 %v417, 16
        %v424 = vpop.permute.xlu0 %423
        %425 = vrot.lane.b32.xlu0 %v418, 16
        %v426 = vpop.permute.xlu0 %425
        %427 = vrot.lane.b32.xlu0 %v419, 16
        %v428 = vpop.permute.xlu0 %427
        %v432 = vadd.f32 %v393, %v424
        %v433 = vadd.f32 %v394, %v426
        %v434 = vadd.f32 %v395, %v428
        %v435 = vld [vmem:[#allocation2 + $0xc] sm:$0xff]
        %v436 = vld [vmem:[#allocation2 + $0x14] sm:$0xff]
        %v437 = vld [vmem:[#allocation2 + $0x1c] sm:$0xff]
        %441 = vrot.lane.b32.xlu0 %v435, 32
        %v442 = vpop.permute.xlu0 %441
        %443 = vrot.lane.b32.xlu0 %v436, 32
        %v444 = vpop.permute.xlu0 %443
        %445 = vrot.lane.b32.xlu0 %v437, 32
        %v446 = vpop.permute.xlu0 %445
        %v450 = vadd.f32 %v432, %v442
        %v451 = vadd.f32 %v433, %v444
        %v452 = vadd.f32 %v434, %v446
        %v453 = vld [vmem:[#allocation2 + $0xd] sm:$0xff]
        %v454 = vld [vmem:[#allocation2 + $0x15] sm:$0xff]
        %v455 = vld [vmem:[#allocation2 + $0x1d] sm:$0xff]
        %v456 = vadd.s32 %v366, 1
        %v457 = vadd.s32 %v367, 1
        %v458 = vadd.s32 %v368, 1
        %vm459 = vcmp.ge.s32.totalorder %v456, 0
        %vm460 = vcmp.ge.s32.totalorder %v457, 0
        %vm461 = vcmp.ge.s32.totalorder %v458, 0
        %vm462 = vcmp.lt.s32.totalorder %v456, 2
        %vm463 = vcmp.lt.s32.totalorder %v457, 2
        %vm464 = vcmp.lt.s32.totalorder %v458, 2
        %vm465 = vmand %vm459, %vm462
        %vm466 = vmand %vm460, %vm463
        %vm467 = vmand %vm461, %vm464
        %v468 = vsel %vm465, 1, 0
        %v469 = vsel %vm466, 1, 0
        %v470 = vsel %vm467, 1, 0
        %v471 = vcvt.s32.f32 %v468
        %v472 = vcvt.s32.f32 %v469
        %v473 = vcvt.s32.f32 %v470
        %v474 = vmul.f32 %v453, %v471
        %v475 = vmul.f32 %v454, %v472
        %v476 = vmul.f32 %v455, %v473
        %480 = vrot.lane.b32.xlu0 %v474, 48
        %v481 = vpop.permute.xlu0 %480
        %482 = vrot.lane.b32.xlu0 %v475, 48
        %v483 = vpop.permute.xlu0 %482
        %484 = vrot.lane.b32.xlu0 %v476, 48
        %v485 = vpop.permute.xlu0 %484
        %v489 = vadd.f32 %v450, %v481
        %v490 = vadd.f32 %v451, %v483
        %v491 = vadd.f32 %v452, %v485
        %v492 = vld [vmem:[#allocation2 + $0xe] sm:$0xff]
        %v493 = vld [vmem:[#allocation2 + $0x16] sm:$0xff]
        %v494 = vld [vmem:[#allocation2 + $0x1e] sm:$0xff]
        %v495 = vadd.s32 %v366, 2
        %v496 = vadd.s32 %v367, 2
        %v497 = vadd.s32 %v368, 2
        %vm498 = vcmp.ge.s32.totalorder %v495, 0
        %vm499 = vcmp.ge.s32.totalorder %v496, 0
        %vm500 = vcmp.ge.s32.totalorder %v497, 0
        %vm501 = vcmp.lt.s32.totalorder %v495, 2
        %vm502 = vcmp.lt.s32.totalorder %v496, 2
        %vm503 = vcmp.lt.s32.totalorder %v497, 2
        %vm504 = vmand %vm498, %vm501
        %vm505 = vmand %vm499, %vm502
        %vm506 = vmand %vm500, %vm503
        %v507 = vsel %vm504, 1, 0
        %v508 = vsel %vm505, 1, 0
        %v509 = vsel %vm506, 1, 0
        %v510 = vcvt.s32.f32 %v507
        %v511 = vcvt.s32.f32 %v508
        %v512 = vcvt.s32.f32 %v509
        %v513 = vmul.f32 %v492, %v510
        %v514 = vmul.f32 %v493, %v511
        %v515 = vmul.f32 %v494, %v512
        %519 = vrot.lane.b32.xlu0 %v513, 64
        %v520 = vpop.permute.xlu0 %519
        %521 = vrot.lane.b32.xlu0 %v514, 64
        %v522 = vpop.permute.xlu0 %521
        %523 = vrot.lane.b32.xlu0 %v515, 64
        %v524 = vpop.permute.xlu0 %523
        %v528 = vadd.f32 %v489, %v520
        %v529 = vadd.f32 %v490, %v522
        %v530 = vadd.f32 %v491, %v524
        %v531 = vmul.f32 %v435, %v387
        %v532 = vmul.f32 %v436, %v388
        %v533 = vmul.f32 %v437, %v389
        %537 = vrot.lane.b32.xlu0 %v531, 80
        %v538 = vpop.permute.xlu0 %537
        %539 = vrot.lane.b32.xlu0 %v532, 80
        %v540 = vpop.permute.xlu0 %539
        %541 = vrot.lane.b32.xlu0 %v533, 80
        %v542 = vpop.permute.xlu0 %541
        %v546 = vadd.f32 %v528, %v538
        %v547 = vadd.f32 %v529, %v540
        %v548 = vadd.f32 %v530, %v542
        %v549 = vmul.f32 %v453, %v414
        %v550 = vmul.f32 %v454, %v415
        %v551 = vmul.f32 %v455, %v416
        %555 = vrot.lane.b32.xlu0 %v549, 96
        %v556 = vpop.permute.xlu0 %555
        %557 = vrot.lane.b32.xlu0 %v550, 96
        %v558 = vpop.permute.xlu0 %557
        %559 = vrot.lane.b32.xlu0 %v551, 96
        %v560 = vpop.permute.xlu0 %559
        %v564 = vadd.f32 %v546, %v556
        %v565 = vadd.f32 %v547, %v558
        %v566 = vadd.f32 %v548, %v560
        %570 = vrot.lane.b32.xlu0 %v492, 112
        %v571 = vpop.permute.xlu0 %570
        %572 = vrot.lane.b32.xlu0 %v493, 112
        %v573 = vpop.permute.xlu0 %572
        %574 = vrot.lane.b32.xlu0 %v494, 112
        %v575 = vpop.permute.xlu0 %574
        %v579 = vadd.f32 %v564, %v571
        %v580 = vadd.f32 %v565, %v573
        %v581 = vadd.f32 %v566, %v575
        %582 = vst [vmem:[#allocation4] sm:$0xff] %v579
        %583 = vst [vmem:[#allocation4 + $0x20] sm:$0xff] %v580
        %584 = vst [vmem:[#allocation4 + $0x40] sm:$0xff] %v581
        %v585 = vld [vmem:[#allocation2 + $0xf] sm:$0xff]
        %v586 = vld [vmem:[#allocation2 + $0x17] sm:$0xff]
        %v587 = vld [vmem:[#allocation2 + $0x1f] sm:$0xff]
        %v588 = vmul.f32 %v585, %v471
        %v589 = vmul.f32 %v586, %v472
        %v590 = vmul.f32 %v587, %v473
        %v591 = vadd.f32 %v588, 0.0
        %v592 = vadd.f32 %v589, 0.0
        %v593 = vadd.f32 %v590, 0.0
        %v594 = vld [vmem:[#allocation2 + $0x10] sm:$0xff]
        %v595 = vld [vmem:[#allocation2 + $0x18] sm:$0xff]
        %v596 = vld [vmem:[#allocation2 + $0x20] sm:$0xff]
        %v597 = vmul.f32 %v594, %v510
        %v598 = vmul.f32 %v595, %v511
        %v599 = vmul.f32 %v596, %v512
        %603 = vrot.lane.b32.xlu0 %v597, 16
        %v604 = vpop.permute.xlu0 %603
        %605 = vrot.lane.b32.xlu0 %v598, 16
        %v606 = vpop.permute.xlu0 %605
        %607 = vrot.lane.b32.xlu0 %v599, 16
        %v608 = vpop.permute.xlu0 %607
        %v612 = vadd.f32 %v591, %v604
        %v613 = vadd.f32 %v592, %v606
        %v614 = vadd.f32 %v593, %v608
        %v615 = vld [vmem:[#allocation2 + $0xe] sm:$0xff]
        %v616 = vld [vmem:[#allocation2 + $0x16] sm:$0xff]
        %v617 = vld [vmem:[#allocation2 + $0x1e] sm:$0xff]
        %v618 = vmul.f32 %v615, %v387
        %v619 = vmul.f32 %v616, %v388
        %v620 = vmul.f32 %v617, %v389
        %624 = vrot.lane.b32.xlu0 %v618, 32
        %v625 = vpop.permute.xlu0 %624
        %626 = vrot.lane.b32.xlu0 %v619, 32
        %v627 = vpop.permute.xlu0 %626
        %628 = vrot.lane.b32.xlu0 %v620, 32
        %v629 = vpop.permute.xlu0 %628
        %v633 = vadd.f32 %v612, %v625
        %v634 = vadd.f32 %v613, %v627
        %v635 = vadd.f32 %v614, %v629
        %v636 = vmul.f32 %v585, %v414
        %v637 = vmul.f32 %v586, %v415
        %v638 = vmul.f32 %v587, %v416
        %642 = vrot.lane.b32.xlu0 %v636, 48
        %v643 = vpop.permute.xlu0 %642
        %644 = vrot.lane.b32.xlu0 %v637, 48
        %v645 = vpop.permute.xlu0 %644
        %646 = vrot.lane.b32.xlu0 %v638, 48
        %v647 = vpop.permute.xlu0 %646
        %v651 = vadd.f32 %v633, %v643
        %v652 = vadd.f32 %v634, %v645
        %v653 = vadd.f32 %v635, %v647
        %657 = vrot.lane.b32.xlu0 %v594, 64
        %v658 = vpop.permute.xlu0 %657
        %659 = vrot.lane.b32.xlu0 %v595, 64
        %v660 = vpop.permute.xlu0 %659
        %661 = vrot.lane.b32.xlu0 %v596, 64
        %v662 = vpop.permute.xlu0 %661
        %v666 = vadd.f32 %v651, %v658
        %v667 = vadd.f32 %v652, %v660
        %v668 = vadd.f32 %v653, %v662
        %v669 = vld [vmem:[#allocation2 + $0x11] sm:$0xff]
        %v670 = vld [vmem:[#allocation2 + $0x19] sm:$0xff]
        %v671 = vld [vmem:[#allocation2 + $0x21] sm:$0xff]
        %v672 = vmul.f32 %v669, %v471
        %v673 = vmul.f32 %v670, %v472
        %v674 = vmul.f32 %v671, %v473
        %678 = vrot.lane.b32.xlu0 %v672, 80
        %v679 = vpop.permute.xlu0 %678
        %680 = vrot.lane.b32.xlu0 %v673, 80
        %v681 = vpop.permute.xlu0 %680
        %682 = vrot.lane.b32.xlu0 %v674, 80
        %v683 = vpop.permute.xlu0 %682
        %v687 = vadd.f32 %v666, %v679
        %v688 = vadd.f32 %v667, %v681
        %v689 = vadd.f32 %v668, %v683
        %v690 = vld [vmem:[#allocation2 + $0x12] sm:$0xff]
        %v691 = vld [vmem:[#allocation2 + $0x1a] sm:$0xff]
        %v692 = vld [vmem:[#allocation2 + $0x22] sm:$0xff]
        %v693 = vmul.f32 %v690, %v510
        %v694 = vmul.f32 %v691, %v511
        %v695 = vmul.f32 %v692, %v512
        %699 = vrot.lane.b32.xlu0 %v693, 96
        %v700 = vpop.permute.xlu0 %699
        %701 = vrot.lane.b32.xlu0 %v694, 96
        %v702 = vpop.permute.xlu0 %701
        %703 = vrot.lane.b32.xlu0 %v695, 96
        %v704 = vpop.permute.xlu0 %703
        %v708 = vadd.f32 %v687, %v700
        %v709 = vadd.f32 %v688, %v702
        %v710 = vadd.f32 %v689, %v704
        %v711 = vmul.f32 %v594, %v387
        %v712 = vmul.f32 %v595, %v388
        %v713 = vmul.f32 %v596, %v389
        %717 = vrot.lane.b32.xlu0 %v711, 112
        %v718 = vpop.permute.xlu0 %717
        %719 = vrot.lane.b32.xlu0 %v712, 112
        %v720 = vpop.permute.xlu0 %719
        %721 = vrot.lane.b32.xlu0 %v713, 112
        %v722 = vpop.permute.xlu0 %721
        %v726 = vadd.f32 %v708, %v718
        %v727 = vadd.f32 %v709, %v720
        %v728 = vadd.f32 %v710, %v722
        %729 = vst [vmem:[#allocation4 + $0x8] sm:$0xff] %v726
        %730 = vst [vmem:[#allocation4 + $0x28] sm:$0xff] %v727
        %731 = vst [vmem:[#allocation4 + $0x48] sm:$0xff] %v728
        %v732 = vld [vmem:[#allocation2 + $0x11] sm:$0xff]
        %v733 = vld [vmem:[#allocation2 + $0x19] sm:$0xff]
        %v734 = vld [vmem:[#allocation2 + $0x21] sm:$0xff]
        %v735 = vmul.f32 %v732, %v414
        %v736 = vmul.f32 %v733, %v415
        %v737 = vmul.f32 %v734, %v416
        %v738 = vadd.f32 %v735, 0.0
        %v739 = vadd.f32 %v736, 0.0
        %v740 = vadd.f32 %v737, 0.0
        %v741 = vld [vmem:[#allocation2 + $0x12] sm:$0xff]
        %v742 = vld [vmem:[#allocation2 + $0x1a] sm:$0xff]
        %v743 = vld [vmem:[#allocation2 + $0x22] sm:$0xff]
        %747 = vrot.lane.b32.xlu0 %v741, 16
        %v748 = vpop.permute.xlu0 %747
        %749 = vrot.lane.b32.xlu0 %v742, 16
        %v750 = vpop.permute.xlu0 %749
        %751 = vrot.lane.b32.xlu0 %v743, 16
        %v752 = vpop.permute.xlu0 %751
        %v756 = vadd.f32 %v738, %v748
        %v757 = vadd.f32 %v739, %v750
        %v758 = vadd.f32 %v740, %v752
        %v759 = vld [vmem:[#allocation2 + $0x13] sm:$0xff]
        %v760 = vld [vmem:[#allocation2 + $0x1b] sm:$0xff]
        %v761 = vld [vmem:[#allocation2 + $0x23] sm:$0xff]
        %v762 = vmul.f32 %v759, %v471
        %v763 = vmul.f32 %v760, %v472
        %v764 = vmul.f32 %v761, %v473
        %768 = vrot.lane.b32.xlu0 %v762, 32
        %v769 = vpop.permute.xlu0 %768
        %770 = vrot.lane.b32.xlu0 %v763, 32
        %v771 = vpop.permute.xlu0 %770
        %772 = vrot.lane.b32.xlu0 %v764, 32
        %v773 = vpop.permute.xlu0 %772
        %v777 = vadd.f32 %v756, %v769
        %v778 = vadd.f32 %v757, %v771
        %v779 = vadd.f32 %v758, %v773
        %v780 = vld [vmem:[#allocation2 + $0x14] sm:$0xff]
        %v781 = vld [vmem:[#allocation2 + $0x1c] sm:$0xff]
        %v782 = vld [vmem:[#allocation2 + $0x24] sm:$0xff]
        %v783 = vmul.f32 %v780, %v510
        %v784 = vmul.f32 %v781, %v511
        %v785 = vmul.f32 %v782, %v512
        %789 = vrot.lane.b32.xlu0 %v783, 48
        %v790 = vpop.permute.xlu0 %789
        %791 = vrot.lane.b32.xlu0 %v784, 48
        %v792 = vpop.permute.xlu0 %791
        %793 = vrot.lane.b32.xlu0 %v785, 48
        %v794 = vpop.permute.xlu0 %793
        %v798 = vadd.f32 %v777, %v790
        %v799 = vadd.f32 %v778, %v792
        %v800 = vadd.f32 %v779, %v794
        %v801 = vmul.f32 %v741, %v387
        %v802 = vmul.f32 %v742, %v388
        %v803 = vmul.f32 %v743, %v389
        %807 = vrot.lane.b32.xlu0 %v801, 64
        %v808 = vpop.permute.xlu0 %807
        %809 = vrot.lane.b32.xlu0 %v802, 64
        %v810 = vpop.permute.xlu0 %809
        %811 = vrot.lane.b32.xlu0 %v803, 64
        %v812 = vpop.permute.xlu0 %811
        %v816 = vadd.f32 %v798, %v808
        %v817 = vadd.f32 %v799, %v810
        %v818 = vadd.f32 %v800, %v812
        %v819 = vmul.f32 %v759, %v414
        %v820 = vmul.f32 %v760, %v415
        %v821 = vmul.f32 %v761, %v416
        %825 = vrot.lane.b32.xlu0 %v819, 80
        %v826 = vpop.permute.xlu0 %825
        %827 = vrot.lane.b32.xlu0 %v820, 80
        %v828 = vpop.permute.xlu0 %827
        %829 = vrot.lane.b32.xlu0 %v821, 80
        %v830 = vpop.permute.xlu0 %829
        %v834 = vadd.f32 %v816, %v826
        %v835 = vadd.f32 %v817, %v828
        %v836 = vadd.f32 %v818, %v830
        %840 = vrot.lane.b32.xlu0 %v780, 96
        %v841 = vpop.permute.xlu0 %840
        %842 = vrot.lane.b32.xlu0 %v781, 96
        %v843 = vpop.permute.xlu0 %842
        %844 = vrot.lane.b32.xlu0 %v782, 96
        %v845 = vpop.permute.xlu0 %844
        %v849 = vadd.f32 %v834, %v841
        %v850 = vadd.f32 %v835, %v843
        %v851 = vadd.f32 %v836, %v845
        %v852 = vld [vmem:[#allocation2 + $0x15] sm:$0xff]
        %v853 = vld [vmem:[#allocation2 + $0x1d] sm:$0xff]
        %v854 = vld [vmem:[#allocation2 + $0x25] sm:$0xff]
        %v855 = vmul.f32 %v852, %v471
        %v856 = vmul.f32 %v853, %v472
        %v857 = vmul.f32 %v854, %v473
        %861 = vrot.lane.b32.xlu0 %v855, 112
        %v862 = vpop.permute.xlu0 %861
        %863 = vrot.lane.b32.xlu0 %v856, 112
        %v864 = vpop.permute.xlu0 %863
        %865 = vrot.lane.b32.xlu0 %v857, 112
        %v866 = vpop.permute.xlu0 %865
        %v870 = vadd.f32 %v849, %v862
        %v871 = vadd.f32 %v850, %v864
        %v872 = vadd.f32 %v851, %v866
        %873 = vst [vmem:[#allocation4 + $0x10] sm:$0xff] %v870
        %874 = vst [vmem:[#allocation4 + $0x30] sm:$0xff] %v871
        %875 = vst [vmem:[#allocation4 + $0x50] sm:$0xff] %v872
        %v876 = vld [vmem:[#allocation2 + $0x16] sm:$0xff]
        %v877 = vld [vmem:[#allocation2 + $0x1e] sm:$0xff]
        %v878 = vld [vmem:[#allocation2 + $0x26] sm:$0xff]
        %v879 = vmul.f32 %v876, %v510
        %v880 = vmul.f32 %v877, %v511
        %v881 = vmul.f32 %v878, %v512
        %v882 = vadd.f32 %v879, 0.0
        %v883 = vadd.f32 %v880, 0.0
        %v884 = vadd.f32 %v881, 0.0
        %885 = vst [vmem:[#allocation4 + $0x18] sm:$0xff] %v882
        %886 = vst [vmem:[#allocation4 + $0x38] sm:$0xff] %v883
        %887 = vst [vmem:[#allocation4 + $0x58] sm:$0xff] %v884
        %v888 = vld [vmem:[#allocation4] sm:$0xff]
        %v889 = vld [vmem:[#allocation4 + $0x8] sm:$0xff]
        %v890 = vld [vmem:[#allocation4 + $0x10] sm:$0xff]
        %v891 = vld [vmem:[#allocation4 + $0x18] sm:$0xff]
        %v892 = vld [vmem:[#allocation4 + $0x20] sm:$0xff]
        %v893 = vld [vmem:[#allocation4 + $0x28] sm:$0xff]
        %v894 = vld [vmem:[#allocation4 + $0x30] sm:$0xff]
        %v895 = vld [vmem:[#allocation4 + $0x38] sm:$0xff]
        %v896 = vld [vmem:[#allocation4 + $0x40] sm:$0xff]
        %v897 = vld [vmem:[#allocation4 + $0x48] sm:$0xff]
        %v898 = vld [vmem:[#allocation4 + $0x50] sm:$0xff]
        %v899 = vld [vmem:[#allocation4 + $0x58] sm:$0xff]
        %v900 = vld [vmem:[#allocation11] sm:$0xff]
        %v901 = vld [vmem:[#allocation11 + $0x8] sm:$0xff]
        %v902 = vld [vmem:[#allocation11 + $0x10] sm:$0xff]
        %v903 = vld [vmem:[#allocation11 + $0x18] sm:$0xff]
        %v904 = vld [vmem:[#allocation11 + $0x20] sm:$0xff]
        %v905 = vld [vmem:[#allocation11 + $0x28] sm:$0xff]
        %v906 = vld [vmem:[#allocation11 + $0x30] sm:$0xff]
        %v907 = vld [vmem:[#allocation11 + $0x38] sm:$0xff]
        %v908 = vld [vmem:[#allocation11 + $0x40] sm:$0xff]
        %v909 = vld [vmem:[#allocation11 + $0x48] sm:$0xff]
        %v910 = vld [vmem:[#allocation11 + $0x50] sm:$0xff]
        %v911 = vld [vmem:[#allocation11 + $0x58] sm:$0xff]
        %v912 = vld [vmem:[#allocation11 + $0x60] sm:$0xff]
        %v913 = vld [vmem:[#allocation11 + $0x68] sm:$0xff]
        %v914 = vld [vmem:[#allocation11 + $0x70] sm:$0xff]
        %v915 = vld [vmem:[#allocation11 + $0x78] sm:$0xff]
        %v916 = vld [vmem:[#allocation11 + $0x80] sm:$0xff]
        %v917 = vld [vmem:[#allocation11 + $0x88] sm:$0xff]
        %v918 = vld [vmem:[#allocation11 + $0x90] sm:$0xff]
        %v919 = vld [vmem:[#allocation11 + $0x98] sm:$0xff]
        %v920 = vld [vmem:[#allocation11 + $0xa0] sm:$0xff]
        %v921 = vld [vmem:[#allocation11 + $0xa8] sm:$0xff]
        %v922 = vld [vmem:[#allocation11 + $0xb0] sm:$0xff]
        %v923 = vld [vmem:[#allocation11 + $0xb8] sm:$0xff]
        %v924 = vld [vmem:[#allocation11 + $0xc0] sm:$0xff]
        %v925 = vld [vmem:[#allocation11 + $0xc8] sm:$0xff]
        %v926 = vld [vmem:[#allocation11 + $0xd0] sm:$0xff]
        %v927 = vld [vmem:[#allocation11 + $0xd8] sm:$0xff]
        %v928 = vld [vmem:[#allocation11 + $0xe0] sm:$0xff]
        %v929 = vld [vmem:[#allocation11 + $0xe8] sm:$0xff]
        %v930 = vld [vmem:[#allocation11 + $0xf0] sm:$0xff]
        %v931 = vld [vmem:[#allocation11 + $0xf8] sm:$0xff]
        %v932 = vld [vmem:[#allocation11 + $0x100] sm:$0xff]
        %v933 = vld [vmem:[#allocation11 + $0x108] sm:$0xff]
        %v934 = vld [vmem:[#allocation11 + $0x110] sm:$0xff]
        %v935 = vld [vmem:[#allocation11 + $0x118] sm:$0xff]
        %v936 = vld [vmem:[#allocation11 + $0x120] sm:$0xff]
        %v937 = vld [vmem:[#allocation11 + $0x128] sm:$0xff]
        %v938 = vld [vmem:[#allocation11 + $0x130] sm:$0xff]
        %v939 = vld [vmem:[#allocation11 + $0x138] sm:$0xff]
        %v940 = vld [vmem:[#allocation11 + $0x140] sm:$0xff]
        %v941 = vld [vmem:[#allocation11 + $0x148] sm:$0xff]
        %v942 = vld [vmem:[#allocation11 + $0x150] sm:$0xff]
        %v943 = vld [vmem:[#allocation11 + $0x158] sm:$0xff]
        %v944 = vld [vmem:[#allocation11 + $0x160] sm:$0xff]
        %v945 = vld [vmem:[#allocation11 + $0x168] sm:$0xff]
        %v946 = vld [vmem:[#allocation11 + $0x170] sm:$0xff]
        %v947 = vld [vmem:[#allocation11 + $0x178] sm:$0xff]
        %v948 = vld [vmem:[#allocation11 + $0x180] sm:$0xff]
        %v949 = vld [vmem:[#allocation11 + $0x188] sm:$0xff]
        %v950 = vld [vmem:[#allocation11 + $0x190] sm:$0xff]
        %v951 = vld [vmem:[#allocation11 + $0x198] sm:$0xff]
        %v952 = vld [vmem:[#allocation11 + $0x1a0] sm:$0xff]
        %v953 = vld [vmem:[#allocation11 + $0x1a8] sm:$0xff]
        %v954 = vld [vmem:[#allocation11 + $0x1b0] sm:$0xff]
        %v955 = vld [vmem:[#allocation11 + $0x1b8] sm:$0xff]
        %v956 = vld [vmem:[#allocation11 + $0x1c0] sm:$0xff]
        %v957 = vld [vmem:[#allocation11 + $0x1c8] sm:$0xff]
        %v958 = vld [vmem:[#allocation11 + $0x1d0] sm:$0xff]
        %v959 = vld [vmem:[#allocation11 + $0x1d8] sm:$0xff]
        %v960 = vld [vmem:[#allocation11 + $0x1e0] sm:$0xff]
        %v961 = vld [vmem:[#allocation11 + $0x1e8] sm:$0xff]
        %v962 = vld [vmem:[#allocation11 + $0x1f0] sm:$0xff]
        %v963 = vld [vmem:[#allocation11 + $0x1f8] sm:$0xff]
        %v964 = vld [vmem:[%s3] sm:$0x1]
        %v966 = vlaneseq
        %v967 = vshrl.u32 %v966, 7
        %v968 = vsub.s32 0, %v967
        %v969 = vrot.slane %v964, %v968
        %971 = vmatprep.subr.mxu0 0.0
        %972 = vmatpush1.msra.mxu0 %v900
        %973 = vmatprep.subr.mxu0 0.0
        %974 = vmatpush1.msra.mxu0 %v901
        %975 = vmatprep.subr.mxu0 0.0
        %976 = vmatpush1.msra.mxu0 %v902
        %977 = vmatprep.subr.mxu0 0.0
        %978 = vmatpush1.msra.mxu0 %v903
        %979 = vmatprep.subr.mxu0 0.0
        %980 = vmatpush1.msra.mxu0 %v904
        %981 = vmatprep.subr.mxu0 0.0
        %982 = vmatpush1.msra.mxu0 %v905
        %983 = vmatprep.subr.mxu0 0.0
        %984 = vmatpush1.msra.mxu0 %v906
        %985 = vmatprep.subr.mxu0 0.0
        %986 = vmatpush1.msra.mxu0 %v907
        %987 = vmatprep.subr.mxu0 0.0
        %988 = vmatpush1.msra.mxu0 %v908
        %989 = vmatprep.subr.mxu0 0.0
        %990 = vmatpush1.msra.mxu0 %v909
        %991 = vmatprep.subr.mxu0 0.0
        %992 = vmatpush1.msra.mxu0 %v910
        %993 = vmatprep.subr.mxu0 0.0
        %994 = vmatpush1.msra.mxu0 %v911
        %995 = vmatprep.subr.mxu0 0.0
        %996 = vmatpush1.msra.mxu0 %v912
        %997 = vmatprep.subr.mxu0 0.0
        %998 = vmatpush1.msra.mxu0 %v913
        %999 = vmatprep.subr.mxu0 0.0
        %1000 = vmatpush1.msra.mxu0 %v914
        %1001 = vmatprep.subr.mxu0 0.0
        %1002 = vmatpush1.msra.mxu0 %v915
        %1003 = vmatprep.subr.mxu0 0.0
        %1004 = vmatpush1.msra.mxu0 %v916
        %1005 = vmatprep.subr.mxu0 0.0
        %1006 = vmatpush1.msra.mxu0 %v917
        %1007 = vmatprep.subr.mxu0 0.0
        %1008 = vmatpush1.msra.mxu0 %v918
        %1009 = vmatprep.subr.mxu0 0.0
        %1010 = vmatpush1.msra.mxu0 %v919
        %1011 = vmatprep.subr.mxu0 0.0
        %1012 = vmatpush1.msra.mxu0 %v920
        %1013 = vmatprep.subr.mxu0 0.0
        %1014 = vmatpush1.msra.mxu0 %v921
        %1015 = vmatprep.subr.mxu0 0.0
        %1016 = vmatpush1.msra.mxu0 %v922
        %1017 = vmatprep.subr.mxu0 0.0
        %1018 = vmatpush1.msra.mxu0 %v923
        %1019 = vmatprep.subr.mxu0 0.0
        %1020 = vmatpush1.msra.mxu0 %v924
        %1021 = vmatprep.subr.mxu0 0.0
        %1022 = vmatpush1.msra.mxu0 %v925
        %1023 = vmatprep.subr.mxu0 0.0
        %1024 = vmatpush1.msra.mxu0 %v926
        %1025 = vmatprep.subr.mxu0 0.0
        %1026 = vmatpush1.msra.mxu0 %v927
        %1027 = vmatprep.subr.mxu0 0.0
        %1028 = vmatpush1.msra.mxu0 %v928
        %1029 = vmatprep.subr.mxu0 0.0
        %1030 = vmatpush1.msra.mxu0 %v929
        %1031 = vmatprep.subr.mxu0 0.0
        %1032 = vmatpush1.msra.mxu0 %v930
        %1033 = vmatprep.subr.mxu0 0.0
        %1034 = vmatpush1.msra.mxu0 %v931
        %1035 = vmatprep.mubr.f32.mxu0 %v889
        %1036 = vmatmul.mubr.f32.gmra.mrb[0].mxu0 %v888
        %v1037 = vpop.f32.mrb[0].mxu0
        %v1038 = vadd.f32 %v969, %v1037
        %v1039 = vpop.f32.mrb[0].mxu0
        %1040 = vmatprep.mubr.f32.mxu0 %v893
        %1041 = vmatmul.mubr.f32.gmra.mrb[0].mxu0 %v892
        %v1042 = vpop.f32.mrb[0].mxu0
        %v1043 = vadd.f32 %v969, %v1042
        %v1044 = vpop.f32.mrb[0].mxu0
        %1045 = vmatprep.mubr.f32.mxu0 %v897
        %1046 = vmatmul.mubr.f32.gmra.mrb[0].mxu0 %v896
        %v1047 = vpop.f32.mrb[0].mxu0
        %v1048 = vadd.f32 %v969, %v1047
        %v1049 = vpop.f32.mrb[0].mxu0
        %1050 = vdwg.mxu0
        %1051 = vmatprep.subr.mxu0 0.0
        %1052 = vmatpush1.msra.mxu0 %v932
        %1053 = vmatprep.subr.mxu0 0.0
        %1054 = vmatpush1.msra.mxu0 %v933
        %1055 = vmatprep.subr.mxu0 0.0
        %1056 = vmatpush1.msra.mxu0 %v934
        %1057 = vmatprep.subr.mxu0 0.0
        %1058 = vmatpush1.msra.mxu0 %v935
        %1059 = vmatprep.subr.mxu0 0.0
        %1060 = vmatpush1.msra.mxu0 %v936
        %1061 = vmatprep.subr.mxu0 0.0
        %1062 = vmatpush1.msra.mxu0 %v937
        %1063 = vmatprep.subr.mxu0 0.0
        %1064 = vmatpush1.msra.mxu0 %v938
        %1065 = vmatprep.subr.mxu0 0.0
        %1066 = vmatpush1.msra.mxu0 %v939
        %1067 = vmatprep.subr.mxu0 0.0
        %1068 = vmatpush1.msra.mxu0 %v940
        %1069 = vmatprep.subr.mxu0 0.0
        %1070 = vmatpush1.msra.mxu0 %v941
        %1071 = vmatprep.subr.mxu0 0.0
        %1072 = vmatpush1.msra.mxu0 %v942
        %1073 = vmatprep.subr.mxu0 0.0
        %1074 = vmatpush1.msra.mxu0 %v943
        %1075 = vmatprep.subr.mxu0 0.0
        %1076 = vmatpush1.msra.mxu0 %v944
        %1077 = vmatprep.subr.mxu0 0.0
        %1078 = vmatpush1.msra.mxu0 %v945
        %1079 = vmatprep.subr.mxu0 0.0
        %1080 = vmatpush1.msra.mxu0 %v946
        %1081 = vmatprep.subr.mxu0 0.0
        %1082 = vmatpush1.msra.mxu0 %v947
        %1083 = vmatprep.subr.mxu0 0.0
        %1084 = vmatpush1.msra.mxu0 %v948
        %1085 = vmatprep.subr.mxu0 0.0
        %1086 = vmatpush1.msra.mxu0 %v949
        %1087 = vmatprep.subr.mxu0 0.0
        %1088 = vmatpush1.msra.mxu0 %v950
        %1089 = vmatprep.subr.mxu0 0.0
        %1090 = vmatpush1.msra.mxu0 %v951
        %1091 = vmatprep.subr.mxu0 0.0
        %1092 = vmatpush1.msra.mxu0 %v952
        %1093 = vmatprep.subr.mxu0 0.0
        %1094 = vmatpush1.msra.mxu0 %v953
        %1095 = vmatprep.subr.mxu0 0.0
        %1096 = vmatpush1.msra.mxu0 %v954
        %1097 = vmatprep.subr.mxu0 0.0
        %1098 = vmatpush1.msra.mxu0 %v955
        %1099 = vmatprep.subr.mxu0 0.0
        %1100 = vmatpush1.msra.mxu0 %v956
        %1101 = vmatprep.subr.mxu0 0.0
        %1102 = vmatpush1.msra.mxu0 %v957
        %1103 = vmatprep.subr.mxu0 0.0
        %1104 = vmatpush1.msra.mxu0 %v958
        %1105 = vmatprep.subr.mxu0 0.0
        %1106 = vmatpush1.msra.mxu0 %v959
        %1107 = vmatprep.subr.mxu0 0.0
        %1108 = vmatpush1.msra.mxu0 %v960
        %1109 = vmatprep.subr.mxu0 0.0
        %1110 = vmatpush1.msra.mxu0 %v961
        %1111 = vmatprep.subr.mxu0 0.0
        %1112 = vmatpush1.msra.mxu0 %v962
        %1113 = vmatprep.subr.mxu0 0.0
        %1114 = vmatpush1.msra.mxu0 %v963
        %1115 = vmatprep.mubr.f32.mxu0 %v891
        %1116 = vmatmul.mubr.f32.gmra.mrb[0].mxu0 %v890
        %v1117 = vpop.f32.mrb[0].mxu0
        %v1118 = vadd.f32 %v1038, %v1117
        %v1119 = vpop.f32.mrb[0].mxu0
        %1120 = vmatprep.mubr.f32.mxu0 %v895
        %1121 = vmatmul.mubr.f32.gmra.mrb[0].mxu0 %v894
        %v1122 = vpop.f32.mrb[0].mxu0
        %v1123 = vadd.f32 %v1043, %v1122
        %v1124 = vpop.f32.mrb[0].mxu0
        %1125 = vmatprep.mubr.f32.mxu0 %v899
        %1126 = vmatmul.mubr.f32.gmra.mrb[0].mxu0 %v898
        %v1127 = vpop.f32.mrb[0].mxu0
        %v1128 = vadd.f32 %v1048, %v1127
        %v1129 = vpop.f32.mrb[0].mxu0
        %1130 = vdwg.mxu0
        %v1131 = vmul.f32 %v1118, 0.70710677
        %v1132 = vmul.f32 %v1123, 0.70710677
        %v1133 = vmul.f32 %v1128, 0.70710677
        %vm1134 = vcmp.ge.f32.partialorder %v1131, 0.0
        %vm1135 = vcmp.ge.f32.partialorder %v1132, 0.0
        %vm1136 = vcmp.ge.f32.partialorder %v1133, 0.0
        %v1137 = vsel %vm1134, 1.0, -1.0
        %v1138 = vsel %vm1135, 1.0, -1.0
        %v1139 = vsel %vm1136, 1.0, -1.0
        %v1140 = vand.u32 2147483647, %v1131
        %v1141 = vand.u32 2147483647, %v1132
        %v1142 = vand.u32 2147483647, %v1133
        %v1143 = vmul.f32 %v1140, 0.3275911
        %v1144 = vmul.f32 %v1141, 0.3275911
        %v1145 = vmul.f32 %v1142, 0.3275911
        %v1146 = vadd.f32 %v1143, 1.0
        %v1147 = vadd.f32 %v1144, 1.0
        %v1148 = vadd.f32 %v1145, 1.0
        %v1149 = vrcp.pop %v1146
        %v1150 = vmul.f32 1.0, %v1149
        %v1151 = vrcp.pop %v1147
        %v1152 = vmul.f32 1.0, %v1151
        %v1153 = vrcp.pop %v1148
        %v1154 = vmul.f32 1.0, %v1153
        %v1155 = vmul.f32 %v1150, 1.0614054
        %v1156 = vmul.f32 %v1152, 1.0614054
        %v1157 = vmul.f32 %v1154, 1.0614054
        %v1158 = vadd.f32 %v1155, -1.4531521
        %v1159 = vadd.f32 %v1156, -1.4531521
        %v1160 = vadd.f32 %v1157, -1.4531521
        %v1161 = vmul.f32 %v1158, %v1150
        %v1162 = vmul.f32 %v1159, %v1152
        %v1163 = vmul.f32 %v1160, %v1154
        %v1164 = vadd.f32 %v1161, 1.4214138
        %v1165 = vadd.f32 %v1162, 1.4214138
        %v1166 = vadd.f32 %v1163, 1.4214138
        %v1167 = vmul.f32 %v1164, %v1150
        %v1168 = vmul.f32 %v1165, %v1152
        %v1169 = vmul.f32 %v1166, %v1154
        %v1170 = vadd.f32 %v1167, -0.28449672
        %v1171 = vadd.f32 %v1168, -0.28449672
        %v1172 = vadd.f32 %v1169, -0.28449672
        %v1173 = vmul.f32 %v1170, %v1150
        %v1174 = vmul.f32 %v1171, %v1152
        %v1175 = vmul.f32 %v1172, %v1154
        %v1176 = vadd.f32 %v1173, 0.2548296
        %v1177 = vadd.f32 %v1174, 0.2548296
        %v1178 = vadd.f32 %v1175, 0.2548296
        %v1179 = vmul.f32 %v1176, %v1150
        %v1180 = vmul.f32 %v1177, %v1152
        %v1181 = vmul.f32 %v1178, %v1154
        %v1182 = vsub.f32 0.0, %v1140
        %v1183 = vsub.f32 0.0, %v1141
        %v1184 = vsub.f32 0.0, %v1142
        %v1185 = vmul.f32 %v1182, %v1140
        %v1186 = vmul.f32 %v1183, %v1141
        %v1187 = vmul.f32 %v1184, %v1142
        %v1188 = vmul.f32 %v1185, 1.442695
        %v1189 = vpow.pop %v1188
        %v1190 = vmul.f32 %v1186, 1.442695
        %v1191 = vpow.pop %v1190
        %v1192 = vmul.f32 %v1187, 1.442695
        %v1193 = vpow.pop %v1192
        %v1194 = vmul.f32 %v1179, %v1189
        %v1195 = vmul.f32 %v1180, %v1191
        %v1196 = vmul.f32 %v1181, %v1193
        %v1197 = vsub.f32 1.0, %v1194
        %v1198 = vsub.f32 1.0, %v1195
        %v1199 = vsub.f32 1.0, %v1196
        %v1200 = vmul.f32 %v1137, %v1197
        %v1201 = vmul.f32 %v1138, %v1198
        %v1202 = vmul.f32 %v1139, %v1199
        %v1203 = vmul.f32 %v1118, 0.5
        %v1204 = vmul.f32 %v1123, 0.5
        %v1205 = vmul.f32 %v1128, 0.5
        %v1206 = vadd.f32 %v1200, 1.0
        %v1207 = vadd.f32 %v1201, 1.0
        %v1208 = vadd.f32 %v1202, 1.0
        %v1209 = vmul.f32 %v1203, %v1206
        %v1210 = vmul.f32 %v1204, %v1207
        %v1211 = vmul.f32 %v1205, %v1208
        %vm1212 = vcmp.lt.s32.totalorder %v330, 16
        %vm1213 = vcmp.lt.s32.totalorder %v331, 16
        %vm1214 = vcmp.lt.s32.totalorder %v332, 16
        %v1215 = vsel %vm1212, 1, 0
        %v1216 = vsel %vm1213, 1, 0
        %v1217 = vsel %vm1214, 1, 0
        %v1218 = vcvt.s32.f32 %v1215
        %v1219 = vcvt.s32.f32 %v1216
        %v1220 = vcvt.s32.f32 %v1217
        %v1221 = vmul.f32 %v1209, %v1218
        %v1222 = vmul.f32 %v1210, %v1219
        %v1223 = vmul.f32 %v1211, %v1220
        %1224 = vst [vmem:[#allocation3 + $0x10] sm:$0xff] %v1221
        %1225 = vst [vmem:[#allocation3 + $0x18] sm:$0xff] %v1222
        %1226 = vst [vmem:[#allocation3 + $0x20] sm:$0xff] %v1223
        %v1227 = vld [vmem:[#allocation3 + $0xa] sm:$0xff]
        %v1228 = vld [vmem:[#allocation3 + $0x12] sm:$0xff]
        %v1229 = vld [vmem:[#allocation3 + $0x1a] sm:$0xff]
        %v1230 = vmul.f32 %v1227, %v387
        %v1231 = vmul.f32 %v1228, %v388
        %v1232 = vmul.f32 %v1229, %v389
        %v1233 = vadd.f32 %v1230, 0.0
        %v1234 = vadd.f32 %v1231, 0.0
        %v1235 = vadd.f32 %v1232, 0.0
        %v1236 = vld [vmem:[#allocation3 + $0xb] sm:$0xff]
        %v1237 = vld [vmem:[#allocation3 + $0x13] sm:$0xff]
        %v1238 = vld [vmem:[#allocation3 + $0x1b] sm:$0xff]
        %v1239 = vmul.f32 %v1236, %v414
        %v1240 = vmul.f32 %v1237, %v415
        %v1241 = vmul.f32 %v1238, %v416
        %1245 = vrot.lane.b32.xlu0 %v1239, 32
        %v1246 = vpop.permute.xlu0 %1245
        %1247 = vrot.lane.b32.xlu0 %v1240, 32
        %v1248 = vpop.permute.xlu0 %1247
        %1249 = vrot.lane.b32.xlu0 %v1241, 32
        %v1250 = vpop.permute.xlu0 %1249
        %v1254 = vadd.f32 %v1233, %v1246
        %v1255 = vadd.f32 %v1234, %v1248
        %v1256 = vadd.f32 %v1235, %v1250
        %v1257 = vld [vmem:[#allocation3 + $0xc] sm:$0xff]
        %v1258 = vld [vmem:[#allocation3 + $0x14] sm:$0xff]
        %v1259 = vld [vmem:[#allocation3 + $0x1c] sm:$0xff]
        %1263 = vrot.lane.b32.xlu0 %v1257, 64
        %v1264 = vpop.permute.xlu0 %1263
        %1265 = vrot.lane.b32.xlu0 %v1258, 64
        %v1266 = vpop.permute.xlu0 %1265
        %1267 = vrot.lane.b32.xlu0 %v1259, 64
        %v1268 = vpop.permute.xlu0 %1267
        %v1272 = vadd.f32 %v1254, %v1264
        %v1273 = vadd.f32 %v1255, %v1266
        %v1274 = vadd.f32 %v1256, %v1268
        %v1275 = vld [vmem:[#allocation3 + $0xd] sm:$0xff]
        %v1276 = vld [vmem:[#allocation3 + $0x15] sm:$0xff]
        %v1277 = vld [vmem:[#allocation3 + $0x1d] sm:$0xff]
        %v1278 = vmul.f32 %v1275, %v471
        %v1279 = vmul.f32 %v1276, %v472
        %v1280 = vmul.f32 %v1277, %v473
        %1284 = vrot.lane.b32.xlu0 %v1278, 96
        %v1285 = vpop.permute.xlu0 %1284
        %1286 = vrot.lane.b32.xlu0 %v1279, 96
        %v1287 = vpop.permute.xlu0 %1286
        %1288 = vrot.lane.b32.xlu0 %v1280, 96
        %v1289 = vpop.permute.xlu0 %1288
        %v1293 = vadd.f32 %v1272, %v1285
        %v1294 = vadd.f32 %v1273, %v1287
        %v1295 = vadd.f32 %v1274, %v1289
        %1296 = vst [vmem:[#allocation5] sm:$0xff] %v1293
        %1297 = vst [vmem:[#allocation5 + $0x38] sm:$0xff] %v1294
        %1298 = vst [vmem:[#allocation5 + $0x70] sm:$0xff] %v1295
        %v1299 = vld [vmem:[#allocation3 + $0xe] sm:$0xff]
        %v1300 = vld [vmem:[#allocation3 + $0x16] sm:$0xff]
        %v1301 = vld [vmem:[#allocation3 + $0x1e] sm:$0xff]
        %v1302 = vmul.f32 %v1299, %v510
        %v1303 = vmul.f32 %v1300, %v511
        %v1304 = vmul.f32 %v1301, %v512
        %v1305 = vadd.f32 %v1302, 0.0
        %v1306 = vadd.f32 %v1303, 0.0
        %v1307 = vadd.f32 %v1304, 0.0
        %v1308 = vld [vmem:[#allocation3 + $0xc] sm:$0xff]
        %v1309 = vld [vmem:[#allocation3 + $0x14] sm:$0xff]
        %v1310 = vld [vmem:[#allocation3 + $0x1c] sm:$0xff]
        %v1311 = vmul.f32 %v1308, %v387
        %v1312 = vmul.f32 %v1309, %v388
        %v1313 = vmul.f32 %v1310, %v389
        %1317 = vrot.lane.b32.xlu0 %v1311, 32
        %v1318 = vpop.permute.xlu0 %1317
        %1319 = vrot.lane.b32.xlu0 %v1312, 32
        %v1320 = vpop.permute.xlu0 %1319
        %1321 = vrot.lane.b32.xlu0 %v1313, 32
        %v1322 = vpop.permute.xlu0 %1321
        %v1326 = vadd.f32 %v1305, %v1318
        %v1327 = vadd.f32 %v1306, %v1320
        %v1328 = vadd.f32 %v1307, %v1322
        %v1329 = vld [vmem:[#allocation3 + $0xd] sm:$0xff]
        %v1330 = vld [vmem:[#allocation3 + $0x15] sm:$0xff]
        %v1331 = vld [vmem:[#allocation3 + $0x1d] sm:$0xff]
        %v1332 = vmul.f32 %v1329, %v414
        %v1333 = vmul.f32 %v1330, %v415
        %v1334 = vmul.f32 %v1331, %v416
        %1338 = vrot.lane.b32.xlu0 %v1332, 64
        %v1339 = vpop.permute.xlu0 %1338
        %1340 = vrot.lane.b32.xlu0 %v1333, 64
        %v1341 = vpop.permute.xlu0 %1340
        %1342 = vrot.lane.b32.xlu0 %v1334, 64
        %v1343 = vpop.permute.xlu0 %1342
        %v1347 = vadd.f32 %v1326, %v1339
        %v1348 = vadd.f32 %v1327, %v1341
        %v1349 = vadd.f32 %v1328, %v1343
        %1353 = vrot.lane.b32.xlu0 %v1299, 96
        %v1354 = vpop.permute.xlu0 %1353
        %1355 = vrot.lane.b32.xlu0 %v1300, 96
        %v1356 = vpop.permute.xlu0 %1355
        %1357 = vrot.lane.b32.xlu0 %v1301, 96
        %v1358 = vpop.permute.xlu0 %1357
        %v1362 = vadd.f32 %v1347, %v1354
        %v1363 = vadd.f32 %v1348, %v1356
        %v1364 = vadd.f32 %v1349, %v1358
        %1365 = vst [vmem:[#allocation5 + $0x8] sm:$0xff] %v1362
        %1366 = vst [vmem:[#allocation5 + $0x40] sm:$0xff] %v1363
        %1367 = vst [vmem:[#allocation5 + $0x78] sm:$0xff] %v1364
        %v1368 = vld [vmem:[#allocation3 + $0xf] sm:$0xff]
        %v1369 = vld [vmem:[#allocation3 + $0x17] sm:$0xff]
        %v1370 = vld [vmem:[#allocation3 + $0x1f] sm:$0xff]
        %v1371 = vmul.f32 %v1368, %v471
        %v1372 = vmul.f32 %v1369, %v472
        %v1373 = vmul.f32 %v1370, %v473
        %v1374 = vadd.f32 %v1371, 0.0
        %v1375 = vadd.f32 %v1372, 0.0
        %v1376 = vadd.f32 %v1373, 0.0
        %v1377 = vld [vmem:[#allocation3 + $0x10] sm:$0xff]
        %v1378 = vld [vmem:[#allocation3 + $0x18] sm:$0xff]
        %v1379 = vld [vmem:[#allocation3 + $0x20] sm:$0xff]
        %v1380 = vmul.f32 %v1377, %v510
        %v1381 = vmul.f32 %v1378, %v511
        %v1382 = vmul.f32 %v1379, %v512
        %1386 = vrot.lane.b32.xlu0 %v1380, 32
        %v1387 = vpop.permute.xlu0 %1386
        %1388 = vrot.lane.b32.xlu0 %v1381, 32
        %v1389 = vpop.permute.xlu0 %1388
        %1390 = vrot.lane.b32.xlu0 %v1382, 32
        %v1391 = vpop.permute.xlu0 %1390
        %v1395 = vadd.f32 %v1374, %v1387
        %v1396 = vadd.f32 %v1375, %v1389
        %v1397 = vadd.f32 %v1376, %v1391
        %v1398 = vld [vmem:[#allocation3 + $0xe] sm:$0xff]
        %v1399 = vld [vmem:[#allocation3 + $0x16] sm:$0xff]
        %v1400 = vld [vmem:[#allocation3 + $0x1e] sm:$0xff]
        %v1401 = vmul.f32 %v1398, %v387
        %v1402 = vmul.f32 %v1399, %v388
        %v1403 = vmul.f32 %v1400, %v389
        %1407 = vrot.lane.b32.xlu0 %v1401, 64
        %v1408 = vpop.permute.xlu0 %1407
        %1409 = vrot.lane.b32.xlu0 %v1402, 64
        %v1410 = vpop.permute.xlu0 %1409
        %1411 = vrot.lane.b32.xlu0 %v1403, 64
        %v1412 = vpop.permute.xlu0 %1411
        %v1416 = vadd.f32 %v1395, %v1408
        %v1417 = vadd.f32 %v1396, %v1410
        %v1418 = vadd.f32 %v1397, %v1412
        %v1419 = vmul.f32 %v1368, %v414
        %v1420 = vmul.f32 %v1369, %v415
        %v1421 = vmul.f32 %v1370, %v416
        %1425 = vrot.lane.b32.xlu0 %v1419, 96
        %v1426 = vpop.permute.xlu0 %1425
        %1427 = vrot.lane.b32.xlu0 %v1420, 96
        %v1428 = vpop.permute.xlu0 %1427
        %1429 = vrot.lane.b32.xlu0 %v1421, 96
        %v1430 = vpop.permute.xlu0 %1429
        %v1434 = vadd.f32 %v1416, %v1426
        %v1435 = vadd.f32 %v1417, %v1428
        %v1436 = vadd.f32 %v1418, %v1430
        %1437 = vst [vmem:[#allocation5 + $0x10] sm:$0xff] %v1434
        %1438 = vst [vmem:[#allocation5 + $0x48] sm:$0xff] %v1435
        %1439 = vst [vmem:[#allocation5 + $0x80] sm:$0xff] %v1436
        %v1440 = vld [vmem:[#allocation3 + $0x10] sm:$0xff]
        %v1441 = vld [vmem:[#allocation3 + $0x18] sm:$0xff]
        %v1442 = vld [vmem:[#allocation3 + $0x20] sm:$0xff]
        %v1443 = vadd.f32 %v1440, 0.0
        %v1444 = vadd.f32 %v1441, 0.0
        %v1445 = vadd.f32 %v1442, 0.0
        %v1446 = vld [vmem:[#allocation3 + $0x11] sm:$0xff]
        %v1447 = vld [vmem:[#allocation3 + $0x19] sm:$0xff]
        %v1448 = vld [vmem:[#allocation3 + $0x21] sm:$0xff]
        %v1449 = vmul.f32 %v1446, %v471
        %v1450 = vmul.f32 %v1447, %v472
        %v1451 = vmul.f32 %v1448, %v473
        %1455 = vrot.lane.b32.xlu0 %v1449, 32
        %v1456 = vpop.permute.xlu0 %1455
        %1457 = vrot.lane.b32.xlu0 %v1450, 32
        %v1458 = vpop.permute.xlu0 %1457
        %1459 = vrot.lane.b32.xlu0 %v1451, 32
        %v1460 = vpop.permute.xlu0 %1459
        %v1464 = vadd.f32 %v1443, %v1456
        %v1465 = vadd.f32 %v1444, %v1458
        %v1466 = vadd.f32 %v1445, %v1460
        %v1467 = vld [vmem:[#allocation3 + $0x12] sm:$0xff]
        %v1468 = vld [vmem:[#allocation3 + $0x1a] sm:$0xff]
        %v1469 = vld [vmem:[#allocation3 + $0x22] sm:$0xff]
        %v1470 = vmul.f32 %v1467, %v510
        %v1471 = vmul.f32 %v1468, %v511
        %v1472 = vmul.f32 %v1469, %v512
        %1476 = vrot.lane.b32.xlu0 %v1470, 64
        %v1477 = vpop.permute.xlu0 %1476
        %1478 = vrot.lane.b32.xlu0 %v1471, 64
        %v1479 = vpop.permute.xlu0 %1478
        %1480 = vrot.lane.b32.xlu0 %v1472, 64
        %v1481 = vpop.permute.xlu0 %1480
        %v1485 = vadd.f32 %v1464, %v1477
        %v1486 = vadd.f32 %v1465, %v1479
        %v1487 = vadd.f32 %v1466, %v1481
        %v1488 = vmul.f32 %v1440, %v387
        %v1489 = vmul.f32 %v1441, %v388
        %v1490 = vmul.f32 %v1442, %v389
        %1494 = vrot.lane.b32.xlu0 %v1488, 96
        %v1495 = vpop.permute.xlu0 %1494
        %1496 = vrot.lane.b32.xlu0 %v1489, 96
        %v1497 = vpop.permute.xlu0 %1496
        %1498 = vrot.lane.b32.xlu0 %v1490, 96
        %v1499 = vpop.permute.xlu0 %1498
        %v1503 = vadd.f32 %v1485, %v1495
        %v1504 = vadd.f32 %v1486, %v1497
        %v1505 = vadd.f32 %v1487, %v1499
        %1506 = vst [vmem:[#allocation5 + $0x18] sm:$0xff] %v1503
        %1507 = vst [vmem:[#allocation5 + $0x50] sm:$0xff] %v1504
        %1508 = vst [vmem:[#allocation5 + $0x88] sm:$0xff] %v1505
        %v1509 = vld [vmem:[#allocation3 + $0x11] sm:$0xff]
        %v1510 = vld [vmem:[#allocation3 + $0x19] sm:$0xff]
        %v1511 = vld [vmem:[#allocation3 + $0x21] sm:$0xff]
        %v1512 = vmul.f32 %v1509, %v414
        %v1513 = vmul.f32 %v1510, %v415
        %v1514 = vmul.f32 %v1511, %v416
        %v1515 = vadd.f32 %v1512, 0.0
        %v1516 = vadd.f32 %v1513, 0.0
        %v1517 = vadd.f32 %v1514, 0.0
        %v1518 = vld [vmem:[#allocation3 + $0x12] sm:$0xff]
        %v1519 = vld [vmem:[#allocation3 + $0x1a] sm:$0xff]
        %v1520 = vld [vmem:[#allocation3 + $0x22] sm:$0xff]
        %1524 = vrot.lane.b32.xlu0 %v1518, 32
        %v1525 = vpop.permute.xlu0 %1524
        %1526 = vrot.lane.b32.xlu0 %v1519, 32
        %v1527 = vpop.permute.xlu0 %1526
        %1528 = vrot.lane.b32.xlu0 %v1520, 32
        %v1529 = vpop.permute.xlu0 %1528
        %v1533 = vadd.f32 %v1515, %v1525
        %v1534 = vadd.f32 %v1516, %v1527
        %v1535 = vadd.f32 %v1517, %v1529
        %v1536 = vld [vmem:[#allocation3 + $0x13] sm:$0xff]
        %v1537 = vld [vmem:[#allocation3 + $0x1b] sm:$0xff]
        %v1538 = vld [vmem:[#allocation3 + $0x23] sm:$0xff]
        %v1539 = vmul.f32 %v1536, %v471
        %v1540 = vmul.f32 %v1537, %v472
        %v1541 = vmul.f32 %v1538, %v473
        %1545 = vrot.lane.b32.xlu0 %v1539, 64
        %v1546 = vpop.permute.xlu0 %1545
        %1547 = vrot.lane.b32.xlu0 %v1540, 64
        %v1548 = vpop.permute.xlu0 %1547
        %1549 = vrot.lane.b32.xlu0 %v1541, 64
        %v1550 = vpop.permute.xlu0 %1549
        %v1554 = vadd.f32 %v1533, %v1546
        %v1555 = vadd.f32 %v1534, %v1548
        %v1556 = vadd.f32 %v1535, %v1550
        %v1557 = vld [vmem:[#allocation3 + $0x14] sm:$0xff]
        %v1558 = vld [vmem:[#allocation3 + $0x1c] sm:$0xff]
        %v1559 = vld [vmem:[#allocation3 + $0x24] sm:$0xff]
        %v1560 = vmul.f32 %v1557, %v510
        %v1561 = vmul.f32 %v1558, %v511
        %v1562 = vmul.f32 %v1559, %v512
        %1566 = vrot.lane.b32.xlu0 %v1560, 96
        %v1567 = vpop.permute.xlu0 %1566
        %1568 = vrot.lane.b32.xlu0 %v1561, 96
        %v1569 = vpop.permute.xlu0 %1568
        %1570 = vrot.lane.b32.xlu0 %v1562, 96
        %v1571 = vpop.permute.xlu0 %1570
        %v1575 = vadd.f32 %v1554, %v1567
        %v1576 = vadd.f32 %v1555, %v1569
        %v1577 = vadd.f32 %v1556, %v1571
        %1578 = vst [vmem:[#allocation5 + $0x20] sm:$0xff] %v1575
        %1579 = vst [vmem:[#allocation5 + $0x58] sm:$0xff] %v1576
        %1580 = vst [vmem:[#allocation5 + $0x90] sm:$0xff] %v1577
        %v1581 = vld [vmem:[#allocation3 + $0x12] sm:$0xff]
        %v1582 = vld [vmem:[#allocation3 + $0x1a] sm:$0xff]
        %v1583 = vld [vmem:[#allocation3 + $0x22] sm:$0xff]
        %v1584 = vmul.f32 %v1581, %v387
        %v1585 = vmul.f32 %v1582, %v388
        %v1586 = vmul.f32 %v1583, %v389
        %v1587 = vadd.f32 %v1584, 0.0
        %v1588 = vadd.f32 %v1585, 0.0
        %v1589 = vadd.f32 %v1586, 0.0
        %v1590 = vld [vmem:[#allocation3 + $0x13] sm:$0xff]
        %v1591 = vld [vmem:[#allocation3 + $0x1b] sm:$0xff]
        %v1592 = vld [vmem:[#allocation3 + $0x23] sm:$0xff]
        %v1593 = vmul.f32 %v1590, %v414
        %v1594 = vmul.f32 %v1591, %v415
        %v1595 = vmul.f32 %v1592, %v416
        %1599 = vrot.lane.b32.xlu0 %v1593, 32
        %v1600 = vpop.permute.xlu0 %1599
        %1601 = vrot.lane.b32.xlu0 %v1594, 32
        %v1602 = vpop.permute.xlu0 %1601
        %1603 = vrot.lane.b32.xlu0 %v1595, 32
        %v1604 = vpop.permute.xlu0 %1603
        %v1608 = vadd.f32 %v1587, %v1600
        %v1609 = vadd.f32 %v1588, %v1602
        %v1610 = vadd.f32 %v1589, %v1604
        %v1611 = vld [vmem:[#allocation3 + $0x14] sm:$0xff]
        %v1612 = vld [vmem:[#allocation3 + $0x1c] sm:$0xff]
        %v1613 = vld [vmem:[#allocation3 + $0x24] sm:$0xff]
        %1617 = vrot.lane.b32.xlu0 %v1611, 64
        %v1618 = vpop.permute.xlu0 %1617
        %1619 = vrot.lane.b32.xlu0 %v1612, 64
        %v1620 = vpop.permute.xlu0 %1619
        %1621 = vrot.lane.b32.xlu0 %v1613, 64
        %v1622 = vpop.permute.xlu0 %1621
        %v1626 = vadd.f32 %v1608, %v1618
        %v1627 = vadd.f32 %v1609, %v1620
        %v1628 = vadd.f32 %v1610, %v1622
        %v1629 = vld [vmem:[#allocation3 + $0x15] sm:$0xff]
        %v1630 = vld [vmem:[#allocation3 + $0x1d] sm:$0xff]
        %v1631 = vld [vmem:[#allocation3 + $0x25] sm:$0xff]
        %v1632 = vmul.f32 %v1629, %v471
        %v1633 = vmul.f32 %v1630, %v472
        %v1634 = vmul.f32 %v1631, %v473
        %1638 = vrot.lane.b32.xlu0 %v1632, 96
        %v1639 = vpop.permute.xlu0 %1638
        %1640 = vrot.lane.b32.xlu0 %v1633, 96
        %v1641 = vpop.permute.xlu0 %1640
        %1642 = vrot.lane.b32.xlu0 %v1634, 96
        %v1643 = vpop.permute.xlu0 %1642
        %v1647 = vadd.f32 %v1626, %v1639
        %v1648 = vadd.f32 %v1627, %v1641
        %v1649 = vadd.f32 %v1628, %v1643
        %1650 = vst [vmem:[#allocation5 + $0x28] sm:$0xff] %v1647
        %1651 = vst [vmem:[#allocation5 + $0x60] sm:$0xff] %v1648
        %1652 = vst [vmem:[#allocation5 + $0x98] sm:$0xff] %v1649
        %v1653 = vld [vmem:[#allocation3 + $0x16] sm:$0xff]
        %v1654 = vld [vmem:[#allocation3 + $0x1e] sm:$0xff]
        %v1655 = vld [vmem:[#allocation3 + $0x26] sm:$0xff]
        %v1656 = vmul.f32 %v1653, %v510
        %v1657 = vmul.f32 %v1654, %v511
        %v1658 = vmul.f32 %v1655, %v512
        %v1659 = vadd.f32 %v1656, 0.0
        %v1660 = vadd.f32 %v1657, 0.0
        %v1661 = vadd.f32 %v1658, 0.0
        %1662 = vst [vmem:[#allocation5 + $0x30] sm:$0xff] %v1659
        %1663 = vst [vmem:[#allocation5 + $0x68] sm:$0xff] %v1660
        %1664 = vst [vmem:[#allocation5 + $0xa0] sm:$0xff] %v1661
        %v1665 = vld [vmem:[#allocation5] sm:$0xff]
        %v1666 = vld [vmem:[#allocation5 + $0x8] sm:$0xff]
        %v1667 = vld [vmem:[#allocation5 + $0x10] sm:$0xff]
        %v1668 = vld [vmem:[#allocation5 + $0x18] sm:$0xff]
        %v1669 = vld [vmem:[#allocation5 + $0x20] sm:$0xff]
        %v1670 = vld [vmem:[#allocation5 + $0x28] sm:$0xff]
        %v1671 = vld [vmem:[#allocation5 + $0x30] sm:$0xff]
        %v1672 = vld [vmem:[#allocation5 + $0x38] sm:$0xff]
        %v1673 = vld [vmem:[#allocation5 + $0x40] sm:$0xff]
        %v1674 = vld [vmem:[#allocation5 + $0x48] sm:$0xff]
        %v1675 = vld [vmem:[#allocation5 + $0x50] sm:$0xff]
        %v1676 = vld [vmem:[#allocation5 + $0x58] sm:$0xff]
        %v1677 = vld [vmem:[#allocation5 + $0x60] sm:$0xff]
        %v1678 = vld [vmem:[#allocation5 + $0x68] sm:$0xff]
        %v1679 = vld [vmem:[#allocation5 + $0x70] sm:$0xff]
        %v1680 = vld [vmem:[#allocation5 + $0x78] sm:$0xff]
        %v1681 = vld [vmem:[#allocation5 + $0x80] sm:$0xff]
        %v1682 = vld [vmem:[#allocation5 + $0x88] sm:$0xff]
        %v1683 = vld [vmem:[#allocation5 + $0x90] sm:$0xff]
        %v1684 = vld [vmem:[#allocation5 + $0x98] sm:$0xff]
        %v1685 = vld [vmem:[#allocation5 + $0xa0] sm:$0xff]
        %v1686 = vld [vmem:[#allocation13] sm:$0xff]
        %v1687 = vld [vmem:[#allocation13 + $0x8] sm:$0xff]
        %v1688 = vld [vmem:[#allocation13 + $0x10] sm:$0xff]
        %v1689 = vld [vmem:[#allocation13 + $0x18] sm:$0xff]
        %v1690 = vld [vmem:[#allocation13 + $0x20] sm:$0xff]
        %v1691 = vld [vmem:[#allocation13 + $0x28] sm:$0xff]
        %v1692 = vld [vmem:[#allocation13 + $0x30] sm:$0xff]
        %v1693 = vld [vmem:[#allocation13 + $0x38] sm:$0xff]
        %v1694 = vld [vmem:[#allocation13 + $0x40] sm:$0xff]
        %v1695 = vld [vmem:[#allocation13 + $0x48] sm:$0xff]
        %v1696 = vld [vmem:[#allocation13 + $0x50] sm:$0xff]
        %v1697 = vld [vmem:[#allocation13 + $0x58] sm:$0xff]
        %v1698 = vld [vmem:[#allocation13 + $0x60] sm:$0xff]
        %v1699 = vld [vmem:[#allocation13 + $0x68] sm:$0xff]
        %v1700 = vld [vmem:[#allocation13 + $0x70] sm:$0xff]
        %v1701 = vld [vmem:[#allocation13 + $0x78] sm:$0xff]
        %v1702 = vld [vmem:[#allocation13 + $0x80] sm:$0xff]
        %v1703 = vld [vmem:[#allocation13 + $0x88] sm:$0xff]
        %v1704 = vld [vmem:[#allocation13 + $0x90] sm:$0xff]
        %v1705 = vld [vmem:[#allocation13 + $0x98] sm:$0xff]
        %v1706 = vld [vmem:[#allocation13 + $0xa0] sm:$0xff]
        %v1707 = vld [vmem:[#allocation13 + $0xa8] sm:$0xff]
        %v1708 = vld [vmem:[#allocation13 + $0xb0] sm:$0xff]
        %v1709 = vld [vmem:[#allocation13 + $0xb8] sm:$0xff]
        %v1710 = vld [vmem:[#allocation13 + $0xc0] sm:$0xff]
        %v1711 = vld [vmem:[#allocation13 + $0xc8] sm:$0xff]
        %v1712 = vld [vmem:[#allocation13 + $0xd0] sm:$0xff]
        %v1713 = vld [vmem:[#allocation13 + $0xd8] sm:$0xff]
        %v1714 = vld [vmem:[#allocation13 + $0xe0] sm:$0xff]
        %v1715 = vld [vmem:[#allocation13 + $0xe8] sm:$0xff]
        %v1716 = vld [vmem:[#allocation13 + $0xf0] sm:$0xff]
        %v1717 = vld [vmem:[#allocation13 + $0xf8] sm:$0xff]
        %v1718 = vld [vmem:[#allocation13 + $0x100] sm:$0xff]
        %v1719 = vld [vmem:[#allocation13 + $0x108] sm:$0xff]
        %v1720 = vld [vmem:[#allocation13 + $0x110] sm:$0xff]
        %v1721 = vld [vmem:[#allocation13 + $0x118] sm:$0xff]
        %v1722 = vld [vmem:[#allocation13 + $0x120] sm:$0xff]
        %v1723 = vld [vmem:[#allocation13 + $0x128] sm:$0xff]
        %v1724 = vld [vmem:[#allocation13 + $0x130] sm:$0xff]
        %v1725 = vld [vmem:[#allocation13 + $0x138] sm:$0xff]
        %v1726 = vld [vmem:[#allocation13 + $0x140] sm:$0xff]
        %v1727 = vld [vmem:[#allocation13 + $0x148] sm:$0xff]
        %v1728 = vld [vmem:[#allocation13 + $0x150] sm:$0xff]
        %v1729 = vld [vmem:[#allocation13 + $0x158] sm:$0xff]
        %v1730 = vld [vmem:[#allocation13 + $0x160] sm:$0xff]
        %v1731 = vld [vmem:[#allocation13 + $0x168] sm:$0xff]
        %v1732 = vld [vmem:[#allocation13 + $0x170] sm:$0xff]
        %v1733 = vld [vmem:[#allocation13 + $0x178] sm:$0xff]
        %v1734 = vld [vmem:[#allocation13 + $0x180] sm:$0xff]
        %v1735 = vld [vmem:[#allocation13 + $0x188] sm:$0xff]
        %v1736 = vld [vmem:[#allocation13 + $0x190] sm:$0xff]
        %v1737 = vld [vmem:[#allocation13 + $0x198] sm:$0xff]
        %v1738 = vld [vmem:[#allocation13 + $0x1a0] sm:$0xff]
        %v1739 = vld [vmem:[#allocation13 + $0x1a8] sm:$0xff]
        %v1740 = vld [vmem:[#allocation13 + $0x1b0] sm:$0xff]
        %v1741 = vld [vmem:[#allocation13 + $0x1b8] sm:$0xff]
        %v1742 = vld [vmem:[#allocation13 + $0x1c0] sm:$0xff]
        %v1743 = vld [vmem:[#allocation13 + $0x1c8] sm:$0xff]
        %v1744 = vld [vmem:[#allocation13 + $0x1d0] sm:$0xff]
        %v1745 = vld [vmem:[#allocation13 + $0x1d8] sm:$0xff]
        %v1746 = vld [vmem:[#allocation13 + $0x1e0] sm:$0xff]
        %v1747 = vld [vmem:[#allocation13 + $0x1e8] sm:$0xff]
        %v1748 = vld [vmem:[#allocation13 + $0x1f0] sm:$0xff]
        %v1749 = vld [vmem:[#allocation13 + $0x1f8] sm:$0xff]
        %v1750 = vld [vmem:[#allocation13 + $0x200] sm:$0xff]
        %v1751 = vld [vmem:[#allocation13 + $0x208] sm:$0xff]
        %v1752 = vld [vmem:[#allocation13 + $0x210] sm:$0xff]
        %v1753 = vld [vmem:[#allocation13 + $0x218] sm:$0xff]
        %v1754 = vld [vmem:[#allocation13 + $0x220] sm:$0xff]
        %v1755 = vld [vmem:[#allocation13 + $0x228] sm:$0xff]
        %v1756 = vld [vmem:[#allocation13 + $0x230] sm:$0xff]
        %v1757 = vld [vmem:[#allocation13 + $0x238] sm:$0xff]
        %v1758 = vld [vmem:[#allocation13 + $0x240] sm:$0xff]
        %v1759 = vld [vmem:[#allocation13 + $0x248] sm:$0xff]
        %v1760 = vld [vmem:[#allocation13 + $0x250] sm:$0xff]
        %v1761 = vld [vmem:[#allocation13 + $0x258] sm:$0xff]
        %v1762 = vld [vmem:[#allocation13 + $0x260] sm:$0xff]
        %v1763 = vld [vmem:[#allocation13 + $0x268] sm:$0xff]
        %v1764 = vld [vmem:[#allocation13 + $0x270] sm:$0xff]
        %v1765 = vld [vmem:[#allocation13 + $0x278] sm:$0xff]
        %v1766 = vld [vmem:[#allocation13 + $0x280] sm:$0xff]
        %v1767 = vld [vmem:[#allocation13 + $0x288] sm:$0xff]
        %v1768 = vld [vmem:[#allocation13 + $0x290] sm:$0xff]
        %v1769 = vld [vmem:[#allocation13 + $0x298] sm:$0xff]
        %v1770 = vld [vmem:[#allocation13 + $0x2a0] sm:$0xff]
        %v1771 = vld [vmem:[#allocation13 + $0x2a8] sm:$0xff]
        %v1772 = vld [vmem:[#allocation13 + $0x2b0] sm:$0xff]
        %v1773 = vld [vmem:[#allocation13 + $0x2b8] sm:$0xff]
        %v1774 = vld [vmem:[#allocation13 + $0x2c0] sm:$0xff]
        %v1775 = vld [vmem:[#allocation13 + $0x2c8] sm:$0xff]
        %v1776 = vld [vmem:[#allocation13 + $0x2d0] sm:$0xff]
        %v1777 = vld [vmem:[#allocation13 + $0x2d8] sm:$0xff]
        %v1778 = vld [vmem:[#allocation13 + $0x2e0] sm:$0xff]
        %v1779 = vld [vmem:[#allocation13 + $0x2e8] sm:$0xff]
        %v1780 = vld [vmem:[#allocation13 + $0x2f0] sm:$0xff]
        %v1781 = vld [vmem:[#allocation13 + $0x2f8] sm:$0xff]
        %v1782 = vld [vmem:[#allocation13 + $0x300] sm:$0xff]
        %v1783 = vld [vmem:[#allocation13 + $0x308] sm:$0xff]
        %v1784 = vld [vmem:[#allocation13 + $0x310] sm:$0xff]
        %v1785 = vld [vmem:[#allocation13 + $0x318] sm:$0xff]
        %v1786 = vld [vmem:[#allocation13 + $0x320] sm:$0xff]
        %v1787 = vld [vmem:[#allocation13 + $0x328] sm:$0xff]
        %v1788 = vld [vmem:[#allocation13 + $0x330] sm:$0xff]
        %v1789 = vld [vmem:[#allocation13 + $0x338] sm:$0xff]
        %v1790 = vld [vmem:[#allocation13 + $0x340] sm:$0xff]
        %v1791 = vld [vmem:[#allocation13 + $0x348] sm:$0xff]
        %v1792 = vld [vmem:[#allocation13 + $0x350] sm:$0xff]
        %v1793 = vld [vmem:[#allocation13 + $0x358] sm:$0xff]
        %v1794 = vld [vmem:[#allocation13 + $0x360] sm:$0xff]
        %v1795 = vld [vmem:[#allocation13 + $0x368] sm:$0xff]
        %v1796 = vld [vmem:[#allocation13 + $0x370] sm:$0xff]
        %v1797 = vld [vmem:[#allocation13 + $0x378] sm:$0xff]
        %v1798 = vld [vmem:[%s5] sm:$0x1]
        %v1800 = vlaneseq
        %v1801 = vshrl.u32 %v1800, 7
        %v1802 = vsub.s32 0, %v1801
        %v1803 = vrot.slane %v1798, %v1802
        %1805 = vmatprep.subr.mxu0 0.0
        %1806 = vmatpush1.msra.mxu0 %v1686
        %1807 = vmatprep.subr.mxu0 0.0
        %1808 = vmatpush1.msra.mxu0 %v1687
        %1809 = vmatprep.subr.mxu0 0.0
        %1810 = vmatpush1.msra.mxu0 %v1688
        %1811 = vmatprep.subr.mxu0 0.0
        %1812 = vmatpush1.msra.mxu0 %v1689
        %1813 = vmatprep.subr.mxu0 0.0
        %1814 = vmatpush1.msra.mxu0 %v1690
        %1815 = vmatprep.subr.mxu0 0.0
        %1816 = vmatpush1.msra.mxu0 %v1691
        %1817 = vmatprep.subr.mxu0 0.0
        %1818 = vmatpush1.msra.mxu0 %v1692
        %1819 = vmatprep.subr.mxu0 0.0
        %1820 = vmatpush1.msra.mxu0 %v1693
        %1821 = vmatprep.subr.mxu0 0.0
        %1822 = vmatpush1.msra.mxu0 %v1694
        %1823 = vmatprep.subr.mxu0 0.0
        %1824 = vmatpush1.msra.mxu0 %v1695
        %1825 = vmatprep.subr.mxu0 0.0
        %1826 = vmatpush1.msra.mxu0 %v1696
        %1827 = vmatprep.subr.mxu0 0.0
        %1828 = vmatpush1.msra.mxu0 %v1697
        %1829 = vmatprep.subr.mxu0 0.0
        %1830 = vmatpush1.msra.mxu0 %v1698
        %1831 = vmatprep.subr.mxu0 0.0
        %1832 = vmatpush1.msra.mxu0 %v1699
        %1833 = vmatprep.subr.mxu0 0.0
        %1834 = vmatpush1.msra.mxu0 %v1700
        %1835 = vmatprep.subr.mxu0 0.0
        %1836 = vmatpush1.msra.mxu0 %v1701
        %1837 = vmatprep.subr.mxu0 0.0
        %1838 = vmatpush1.msra.mxu0 %v1702
        %1839 = vmatprep.subr.mxu0 0.0
        %1840 = vmatpush1.msra.mxu0 %v1703
        %1841 = vmatprep.subr.mxu0 0.0
        %1842 = vmatpush1.msra.mxu0 %v1704
        %1843 = vmatprep.subr.mxu0 0.0
        %1844 = vmatpush1.msra.mxu0 %v1705
        %1845 = vmatprep.subr.mxu0 0.0
        %1846 = vmatpush1.msra.mxu0 %v1706
        %1847 = vmatprep.subr.mxu0 0.0
        %1848 = vmatpush1.msra.mxu0 %v1707
        %1849 = vmatprep.subr.mxu0 0.0
        %1850 = vmatpush1.msra.mxu0 %v1708
        %1851 = vmatprep.subr.mxu0 0.0
        %1852 = vmatpush1.msra.mxu0 %v1709
        %1853 = vmatprep.subr.mxu0 0.0
        %1854 = vmatpush1.msra.mxu0 %v1710
        %1855 = vmatprep.subr.mxu0 0.0
        %1856 = vmatpush1.msra.mxu0 %v1711
        %1857 = vmatprep.subr.mxu0 0.0
        %1858 = vmatpush1.msra.mxu0 %v1712
        %1859 = vmatprep.subr.mxu0 0.0
        %1860 = vmatpush1.msra.mxu0 %v1713
        %1861 = vmatprep.subr.mxu0 0.0
        %1862 = vmatpush1.msra.mxu0 %v1714
        %1863 = vmatprep.subr.mxu0 0.0
        %1864 = vmatpush1.msra.mxu0 %v1715
        %1865 = vmatprep.subr.mxu0 0.0
        %1866 = vmatpush1.msra.mxu0 %v1716
        %1867 = vmatprep.subr.mxu0 0.0
        %1868 = vmatpush1.msra.mxu0 %v1717
        %1869 = vmatprep.mubr.f32.mxu0 %v1666
        %1870 = vmatmul.mubr.f32.gmra.mrb[0].mxu0 %v1665
        %v1871 = vpop.f32.mrb[0].mxu0
        %v1872 = vadd.f32 %v1803, %v1871
        %v1873 = vpop.f32.mrb[0].mxu0
        %1874 = vmatprep.mubr.f32.mxu0 %v1673
        %1875 = vmatmul.mubr.f32.gmra.mrb[0].mxu0 %v1672
        %v1876 = vpop.f32.mrb[0].mxu0
        %v1877 = vadd.f32 %v1803, %v1876
        %v1878 = vpop.f32.mrb[0].mxu0
        %1879 = vmatprep.mubr.f32.mxu0 %v1680
        %1880 = vmatmul.mubr.f32.gmra.mrb[0].mxu0 %v1679
        %v1881 = vpop.f32.mrb[0].mxu0
        %v1882 = vpop.f32.mrb[0].mxu0
        %1883 = vdwg.mxu0
        %1884 = vmatprep.subr.mxu0 0.0
        %1885 = vmatpush1.msra.mxu0 %v1718
        %1886 = vmatprep.subr.mxu0 0.0
        %1887 = vmatpush1.msra.mxu0 %v1719
        %1888 = vmatprep.subr.mxu0 0.0
        %1889 = vmatpush1.msra.mxu0 %v1720
        %1890 = vmatprep.subr.mxu0 0.0
        %1891 = vmatpush1.msra.mxu0 %v1721
        %1892 = vmatprep.subr.mxu0 0.0
        %1893 = vmatpush1.msra.mxu0 %v1722
        %1894 = vmatprep.subr.mxu0 0.0
        %1895 = vmatpush1.msra.mxu0 %v1723
        %1896 = vmatprep.subr.mxu0 0.0
        %1897 = vmatpush1.msra.mxu0 %v1724
        %1898 = vmatprep.subr.mxu0 0.0
        %1899 = vmatpush1.msra.mxu0 %v1725
        %1900 = vmatprep.subr.mxu0 0.0
        %1901 = vmatpush1.msra.mxu0 %v1726
        %1902 = vmatprep.subr.mxu0 0.0
        %1903 = vmatpush1.msra.mxu0 %v1727
        %1904 = vmatprep.subr.mxu0 0.0
        %1905 = vmatpush1.msra.mxu0 %v1728
        %1906 = vmatprep.subr.mxu0 0.0
        %1907 = vmatpush1.msra.mxu0 %v1729
        %1908 = vmatprep.subr.mxu0 0.0
        %1909 = vmatpush1.msra.mxu0 %v1730
        %1910 = vmatprep.subr.mxu0 0.0
        %1911 = vmatpush1.msra.mxu0 %v1731
        %1912 = vmatprep.subr.mxu0 0.0
        %1913 = vmatpush1.msra.mxu0 %v1732
        %1914 = vmatprep.subr.mxu0 0.0
        %1915 = vmatpush1.msra.mxu0 %v1733
        %1916 = vmatprep.subr.mxu0 0.0
        %1917 = vmatpush1.msra.mxu0 %v1734
        %1918 = vmatprep.subr.mxu0 0.0
        %1919 = vmatpush1.msra.mxu0 %v1735
        %1920 = vmatprep.subr.mxu0 0.0
        %1921 = vmatpush1.msra.mxu0 %v1736
        %1922 = vmatprep.subr.mxu0 0.0
        %1923 = vmatpush1.msra.mxu0 %v1737
        %1924 = vmatprep.subr.mxu0 0.0
        %1925 = vmatpush1.msra.mxu0 %v1738
        %1926 = vmatprep.subr.mxu0 0.0
        %1927 = vmatpush1.msra.mxu0 %v1739
        %1928 = vmatprep.subr.mxu0 0.0
        %1929 = vmatpush1.msra.mxu0 %v1740
        %1930 = vmatprep.subr.mxu0 0.0
        %1931 = vmatpush1.msra.mxu0 %v1741
        %1932 = vmatprep.subr.mxu0 0.0
        %1933 = vmatpush1.msra.mxu0 %v1742
        %1934 = vmatprep.subr.mxu0 0.0
        %1935 = vmatpush1.msra.mxu0 %v1743
        %1936 = vmatprep.subr.mxu0 0.0
        %1937 = vmatpush1.msra.mxu0 %v1744
        %1938 = vmatprep.subr.mxu0 0.0
        %1939 = vmatpush1.msra.mxu0 %v1745
        %1940 = vmatprep.subr.mxu0 0.0
        %1941 = vmatpush1.msra.mxu0 %v1746
        %1942 = vmatprep.subr.mxu0 0.0
        %1943 = vmatpush1.msra.mxu0 %v1747
        %1944 = vmatprep.subr.mxu0 0.0
        %1945 = vmatpush1.msra.mxu0 %v1748
        %1946 = vmatprep.subr.mxu0 0.0
        %1947 = vmatpush1.msra.mxu0 %v1749
        %1948 = vmatprep.mubr.f32.mxu0 %v1668
        %1949 = vmatmul.mubr.f32.gmra.mrb[0].mxu0 %v1667
        %v1950 = vpop.f32.mrb[0].mxu0
        %v1951 = vadd.f32 %v1872, %v1950
        %v1952 = vpop.f32.mrb[0].mxu0
        %1953 = vmatprep.mubr.f32.mxu0 %v1675
        %1954 = vmatmul.mubr.f32.gmra.mrb[0].mxu0 %v1674
        %v1955 = vpop.f32.mrb[0].mxu0
        %v1956 = vadd.f32 %v1877, %v1955
        %v1957 = vpop.f32.mrb[0].mxu0
        %1958 = vmatprep.mubr.f32.mxu0 %v1682
        %1959 = vmatmul.mubr.f32.gmra.mrb[0].mxu0 %v1681
        %v1960 = vpop.f32.mrb[0].mxu0
        %v1961 = vpop.f32.mrb[0].mxu0
        %1962 = vdwg.mxu0
        %1963 = vmatprep.subr.mxu0 0.0
        %1964 = vmatpush1.msra.mxu0 %v1750
        %1965 = vmatprep.subr.mxu0 0.0
        %1966 = vmatpush1.msra.mxu0 %v1751
        %1967 = vmatprep.subr.mxu0 0.0
        %1968 = vmatpush1.msra.mxu0 %v1752
        %1969 = vmatprep.subr.mxu0 0.0
        %1970 = vmatpush1.msra.mxu0 %v1753
        %1971 = vmatprep.subr.mxu0 0.0
        %1972 = vmatpush1.msra.mxu0 %v1754
        %1973 = vmatprep.subr.mxu0 0.0
        %1974 = vmatpush1.msra.mxu0 %v1755
        %1975 = vmatprep.subr.mxu0 0.0
        %1976 = vmatpush1.msra.mxu0 %v1756
        %1977 = vmatprep.subr.mxu0 0.0
        %1978 = vmatpush1.msra.mxu0 %v1757
        %1979 = vmatprep.subr.mxu0 0.0
        %1980 = vmatpush1.msra.mxu0 %v1758
        %1981 = vmatprep.subr.mxu0 0.0
        %1982 = vmatpush1.msra.mxu0 %v1759
        %1983 = vmatprep.subr.mxu0 0.0
        %1984 = vmatpush1.msra.mxu0 %v1760
        %1985 = vmatprep.subr.mxu0 0.0
        %1986 = vmatpush1.msra.mxu0 %v1761
        %1987 = vmatprep.subr.mxu0 0.0
        %1988 = vmatpush1.msra.mxu0 %v1762
        %1989 = vmatprep.subr.mxu0 0.0
        %1990 = vmatpush1.msra.mxu0 %v1763
        %1991 = vmatprep.subr.mxu0 0.0
        %1992 = vmatpush1.msra.mxu0 %v1764
        %1993 = vmatprep.subr.mxu0 0.0
        %1994 = vmatpush1.msra.mxu0 %v1765
        %1995 = vmatprep.subr.mxu0 0.0
        %1996 = vmatpush1.msra.mxu0 %v1766
        %1997 = vmatprep.subr.mxu0 0.0
        %1998 = vmatpush1.msra.mxu0 %v1767
        %1999 = vmatprep.subr.mxu0 0.0
        %2000 = vmatpush1.msra.mxu0 %v1768
        %2001 = vmatprep.subr.mxu0 0.0
        %2002 = vmatpush1.msra.mxu0 %v1769
        %2003 = vmatprep.subr.mxu0 0.0
        %2004 = vmatpush1.msra.mxu0 %v1770
        %2005 = vmatprep.subr.mxu0 0.0
        %2006 = vmatpush1.msra.mxu0 %v1771
        %2007 = vmatprep.subr.mxu0 0.0
        %2008 = vmatpush1.msra.mxu0 %v1772
        %2009 = vmatprep.subr.mxu0 0.0
        %2010 = vmatpush1.msra.mxu0 %v1773
        %2011 = vmatprep.subr.mxu0 0.0
        %2012 = vmatpush1.msra.mxu0 %v1774
        %2013 = vmatprep.subr.mxu0 0.0
        %2014 = vmatpush1.msra.mxu0 %v1775
        %2015 = vmatprep.subr.mxu0 0.0
        %2016 = vmatpush1.msra.mxu0 %v1776
        %2017 = vmatprep.subr.mxu0 0.0
        %2018 = vmatpush1.msra.mxu0 %v1777
        %2019 = vmatprep.subr.mxu0 0.0
        %2020 = vmatpush1.msra.mxu0 %v1778
        %2021 = vmatprep.subr.mxu0 0.0
        %2022 = vmatpush1.msra.mxu0 %v1779
        %2023 = vmatprep.subr.mxu0 0.0
        %2024 = vmatpush1.msra.mxu0 %v1780
        %2025 = vmatprep.subr.mxu0 0.0
        %2026 = vmatpush1.msra.mxu0 %v1781
        %2027 = vmatprep.mubr.f32.mxu0 %v1670
        %2028 = vmatmul.mubr.f32.gmra.mrb[0].mxu0 %v1669
        %v2029 = vpop.f32.mrb[0].mxu0
        %v2030 = vadd.f32 %v1951, %v2029
        %v2031 = vpop.f32.mrb[0].mxu0
        %2032 = vmatprep.mubr.f32.mxu0 %v1677
        %2033 = vmatmul.mubr.f32.gmra.mrb[0].mxu0 %v1676
        %v2034 = vpop.f32.mrb[0].mxu0
        %v2035 = vadd.f32 %v1956, %v2034
        %v2036 = vpop.f32.mrb[0].mxu0
        %2037 = vmatprep.mubr.f32.mxu0 %v1684
        %2038 = vmatmul.mubr.f32.gmra.mrb[0].mxu0 %v1683
        %v2039 = vpop.f32.mrb[0].mxu0
        %v2040 = vpop.f32.mrb[0].mxu0
        %2041 = vdwg.mxu0
        %2042 = vmatprep.subr.mxu0 0.0
        %2043 = vmatpush1.msra.mxu0 %v1782
        %2044 = vmatprep.subr.mxu0 0.0
        %2045 = vmatpush1.msra.mxu0 %v1783
        %2046 = vmatprep.subr.mxu0 0.0
        %2047 = vmatpush1.msra.mxu0 %v1784
        %2048 = vmatprep.subr.mxu0 0.0
        %2049 = vmatpush1.msra.mxu0 %v1785
        %2050 = vmatprep.subr.mxu0 0.0
        %2051 = vmatpush1.msra.mxu0 %v1786
        %2052 = vmatprep.subr.mxu0 0.0
        %2053 = vmatpush1.msra.mxu0 %v1787
        %2054 = vmatprep.subr.mxu0 0.0
        %2055 = vmatpush1.msra.mxu0 %v1788
        %2056 = vmatprep.subr.mxu0 0.0
        %2057 = vmatpush1.msra.mxu0 %v1789
        %2058 = vmatprep.subr.mxu0 0.0
        %2059 = vmatpush1.msra.mxu0 %v1790
        %2060 = vmatprep.subr.mxu0 0.0
        %2061 = vmatpush1.msra.mxu0 %v1791
        %2062 = vmatprep.subr.mxu0 0.0
        %2063 = vmatpush1.msra.mxu0 %v1792
        %2064 = vmatprep.subr.mxu0 0.0
        %2065 = vmatpush1.msra.mxu0 %v1793
        %2066 = vmatprep.subr.mxu0 0.0
        %2067 = vmatpush1.msra.mxu0 %v1794
        %2068 = vmatprep.subr.mxu0 0.0
        %2069 = vmatpush1.msra.mxu0 %v1795
        %2070 = vmatprep.subr.mxu0 0.0
        %2071 = vmatpush1.msra.mxu0 %v1796
        %2072 = vmatprep.subr.mxu0 0.0
        %2073 = vmatpush1.msra.mxu0 %v1797
        %2074 = vmatprep.subr.mxu0 0.0
        %2075 = vmatpush1.msra.mxu0 0.0
        %2076 = vmatprep.subr.mxu0 0.0
        %2077 = vmatpush1.msra.mxu0 0.0
        %2078 = vmatprep.subr.mxu0 0.0
        %2079 = vmatpush1.msra.mxu0 0.0
        %2080 = vmatprep.subr.mxu0 0.0
        %2081 = vmatpush1.msra.mxu0 0.0
        %2082 = vmatprep.subr.mxu0 0.0
        %2083 = vmatpush1.msra.mxu0 0.0
        %2084 = vmatprep.subr.mxu0 0.0
        %2085 = vmatpush1.msra.mxu0 0.0
        %2086 = vmatprep.subr.mxu0 0.0
        %2087 = vmatpush1.msra.mxu0 0.0
        %2088 = vmatprep.subr.mxu0 0.0
        %2089 = vmatpush1.msra.mxu0 0.0
        %2090 = vmatprep.subr.mxu0 0.0
        %2091 = vmatpush1.msra.mxu0 0.0
        %2092 = vmatprep.subr.mxu0 0.0
        %2093 = vmatpush1.msra.mxu0 0.0
        %2094 = vmatprep.subr.mxu0 0.0
        %2095 = vmatpush1.msra.mxu0 0.0
        %2096 = vmatprep.subr.mxu0 0.0
        %2097 = vmatpush1.msra.mxu0 0.0
        %2098 = vmatprep.subr.mxu0 0.0
        %2099 = vmatpush1.msra.mxu0 0.0
        %2100 = vmatprep.subr.mxu0 0.0
        %2101 = vmatpush1.msra.mxu0 0.0
        %2102 = vmatprep.subr.mxu0 0.0
        %2103 = vmatpush1.msra.mxu0 0.0
        %2104 = vmatprep.subr.mxu0 0.0
        %2105 = vmatpush1.msra.mxu0 0.0
        %2106 = vmatprep.mubr.f32.mxu0 0.0
        %2107 = vmatmul.mubr.f32.gmra.mrb[0].mxu0 %v1671
        %v2108 = vpop.f32.mrb[0].mxu0
        %v2109 = vadd.f32 %v2030, %v2108
        %v2110 = vpop.f32.mrb[0].mxu0
        %2111 = vmatprep.mubr.f32.mxu0 0.0
        %2112 = vmatmul.mubr.f32.gmra.mrb[0].mxu0 %v1678
        %v2113 = vpop.f32.mrb[0].mxu0
        %v2114 = vadd.f32 %v2035, %v2113
        %v2115 = vpop.f32.mrb[0].mxu0
        %2116 = vmatprep.mubr.f32.mxu0 0.0
        %2117 = vmatmul.mubr.f32.gmra.mrb[0].mxu0 %v1685
        %v2118 = vpop.f32.mrb[0].mxu0
        %v2119 = vpop.f32.mrb[0].mxu0
        %2120 = vdwg.mxu0
        %s2121 = smul.u32 %s25, 128
        %s2122 = sld [smem:[#allocation6 + %s2121]]
        %v2123 = vstv %s2122
        %v2124 = vmul.f32 %v2123, %v2109
        %v2125 = vmul.f32 %v2123, %v2114
        %v2126 = vadd.f32 %v316, %v2124
        %v2127 = vadd.f32 %v317, %v2125
        %vm2128 = vcmp.lt.s32.totalorder %v330, 0
        %v2129 = vsub.s32 0, %v330
        %v2130 = vsel %vm2128, %v2129, %v330
        %v2131 = vmul.u32.u64.compose %v2130, 3435973837
        %v2132 = vextract.low.u32 %v2131
        %v2133 = vextract.high.u32 %v2131
        %v2134 = vshrl.u32 %v2133, 2
        %v2135 = vmul.u32 %v2134, 5
        %v2136 = vsub.s32 %v2130, %v2135
        %v2137 = vsub.s32 0, %v2136
        %v2138 = vsel %vm2128, %v2137, %v2136
        %vm2139 = vcmp.lt.s32.totalorder %v331, 0
        %v2140 = vsub.s32 0, %v331
        %v2141 = vsel %vm2139, %v2140, %v331
        %v2142 = vmul.u32.u64.compose %v2141, 3435973837
        %v2143 = vextract.low.u32 %v2142
        %v2144 = vextract.high.u32 %v2142
        %v2145 = vshrl.u32 %v2144, 2
        %v2146 = vmul.u32 %v2145, 5
        %v2147 = vsub.s32 %v2141, %v2146
        %v2148 = vsub.s32 0, %v2147
        %v2149 = vsel %vm2139, %v2148, %v2147
        %vm2150 = vcmp.lt.s32.totalorder %v332, 0
        %v2151 = vsub.s32 0, %v332
        %v2152 = vsel %vm2150, %v2151, %v332
        %v2153 = vmul.u32.u64.compose %v2152, 3435973837
        %v2154 = vextract.low.u32 %v2153
        %v2155 = vextract.high.u32 %v2153
        %v2156 = vshrl.u32 %v2155, 2
        %v2157 = vmul.u32 %v2156, 5
        %v2158 = vsub.s32 %v2152, %v2157
        %v2159 = vsub.s32 0, %v2158
        %v2160 = vsel %vm2150, %v2159, %v2158
        %vm2161 = vcmp.ne.s32.totalorder %v2138, 0
        %vm2162 = vcmp.ne.s32.totalorder %v2149, 0
        %vm2163 = vcmp.ne.s32.totalorder %v2160, 0
        %vm2164 = vcmp.lt.s32.totalorder %v2138, 0
        %vm2165 = vcmp.lt.s32.totalorder %v2149, 0
        %vm2166 = vcmp.lt.s32.totalorder %v2160, 0
        %vm2167 = vmand %vm2164, %vm2161
        %vm2168 = vmand %vm2165, %vm2162
        %vm2169 = vmand %vm2166, %vm2163
        %v2170 = vadd.s32 %v2138, 5
        %v2171 = vadd.s32 %v2149, 5
        %v2172 = vadd.s32 %v2160, 5
        %v2173 = vsel %vm2167, %v2170, %v2138
        %v2174 = vsel %vm2168, %v2171, %v2149
        %v2175 = vsel %vm2169, %v2172, %v2160
        %v2176 = vld [vmem:[#allocation2 + $0x4] sm:$0xff]
        %v2177 = vld [vmem:[#allocation2 + $0xc] sm:$0xff]
        %v2178 = vld [vmem:[#allocation2 + $0x14] sm:$0xff]
        %v2179 = vadd.s32 %v2173, 4294967294
        %v2180 = vadd.s32 %v2174, 4294967294
        %v2181 = vadd.s32 %v2175, 4294967294
        %vm2182 = vcmp.ge.s32.totalorder %v2179, 0
        %vm2183 = vcmp.ge.s32.totalorder %v2180, 0
        %vm2184 = vcmp.ge.s32.totalorder %v2181, 0
        %vm2185 = vcmp.lt.s32.totalorder %v2179, 5
        %vm2186 = vcmp.lt.s32.totalorder %v2180, 5
        %vm2187 = vcmp.lt.s32.totalorder %v2181, 5
        %vm2188 = vmand %vm2182, %vm2185
        %vm2189 = vmand %vm2183, %vm2186
        %vm2190 = vmand %vm2184, %vm2187
        %v2191 = vsel %vm2188, 1, 0
        %v2192 = vsel %vm2189, 1, 0
        %v2193 = vsel %vm2190, 1, 0
        %v2194 = vcvt.s32.f32 %v2191
        %v2195 = vcvt.s32.f32 %v2192
        %v2196 = vcvt.s32.f32 %v2193
        %v2197 = vmul.f32 %v2176, %v2194
        %v2198 = vmul.f32 %v2177, %v2195
        %v2199 = vmul.f32 %v2178, %v2196
        %v2200 = vadd.f32 %v2197, 0.0
        %v2201 = vadd.f32 %v2198, 0.0
        %v2202 = vadd.f32 %v2199, 0.0
        %v2203 = vld [vmem:[#allocation2 + $0x5] sm:$0xff]
        %v2204 = vld [vmem:[#allocation2 + $0xd] sm:$0xff]
        %v2205 = vld [vmem:[#allocation2 + $0x15] sm:$0xff]
        %v2206 = vadd.s32 %v2173, 4294967295
        %v2207 = vadd.s32 %v2174, 4294967295
        %v2208 = vadd.s32 %v2175, 4294967295
        %vm2209 = vcmp.ge.s32.totalorder %v2206, 0
        %vm2210 = vcmp.ge.s32.totalorder %v2207, 0
        %vm2211 = vcmp.ge.s32.totalorder %v2208, 0
        %vm2212 = vcmp.lt.s32.totalorder %v2206, 5
        %vm2213 = vcmp.lt.s32.totalorder %v2207, 5
        %vm2214 = vcmp.lt.s32.totalorder %v2208, 5
        %vm2215 = vmand %vm2209, %vm2212
        %vm2216 = vmand %vm2210, %vm2213
        %vm2217 = vmand %vm2211, %vm2214
        %v2218 = vsel %vm2215, 1, 0
        %v2219 = vsel %vm2216, 1, 0
        %v2220 = vsel %vm2217, 1, 0
        %v2221 = vcvt.s32.f32 %v2218
        %v2222 = vcvt.s32.f32 %v2219
        %v2223 = vcvt.s32.f32 %v2220
        %v2224 = vmul.f32 %v2203, %v2221
        %v2225 = vmul.f32 %v2204, %v2222
        %v2226 = vmul.f32 %v2205, %v2223
        %2230 = vrot.lane.b32.xlu0 %v2224, 16
        %v2231 = vpop.permute.xlu0 %2230
        %2232 = vrot.lane.b32.xlu0 %v2225, 16
        %v2233 = vpop.permute.xlu0 %2232
        %2234 = vrot.lane.b32.xlu0 %v2226, 16
        %v2235 = vpop.permute.xlu0 %2234
        %v2239 = vadd.f32 %v2200, %v2231
        %v2240 = vadd.f32 %v2201, %v2233
        %v2241 = vadd.f32 %v2202, %v2235
        %v2242 = vld [vmem:[#allocation2 + $0x6] sm:$0xff]
        %v2243 = vld [vmem:[#allocation2 + $0xe] sm:$0xff]
        %v2244 = vld [vmem:[#allocation2 + $0x16] sm:$0xff]
        %2248 = vrot.lane.b32.xlu0 %v2242, 32
        %v2249 = vpop.permute.xlu0 %2248
        %2250 = vrot.lane.b32.xlu0 %v2243, 32
        %v2251 = vpop.permute.xlu0 %2250
        %2252 = vrot.lane.b32.xlu0 %v2244, 32
        %v2253 = vpop.permute.xlu0 %2252
        %v2257 = vadd.f32 %v2239, %v2249
        %v2258 = vadd.f32 %v2240, %v2251
        %v2259 = vadd.f32 %v2241, %v2253
        %v2260 = vld [vmem:[#allocation2 + $0x7] sm:$0xff]
        %v2261 = vld [vmem:[#allocation2 + $0xf] sm:$0xff]
        %v2262 = vld [vmem:[#allocation2 + $0x17] sm:$0xff]
        %v2263 = vadd.s32 %v2173, 1
        %v2264 = vadd.s32 %v2174, 1
        %v2265 = vadd.s32 %v2175, 1
        %vm2266 = vcmp.ge.s32.totalorder %v2263, 0
        %vm2267 = vcmp.ge.s32.totalorder %v2264, 0
        %vm2268 = vcmp.ge.s32.totalorder %v2265, 0
        %vm2269 = vcmp.lt.s32.totalorder %v2263, 5
        %vm2270 = vcmp.lt.s32.totalorder %v2264, 5
        %vm2271 = vcmp.lt.s32.totalorder %v2265, 5
        %vm2272 = vmand %vm2266, %vm2269
        %vm2273 = vmand %vm2267, %vm2270
        %vm2274 = vmand %vm2268, %vm2271
        %v2275 = vsel %vm2272, 1, 0
        %v2276 = vsel %vm2273, 1, 0
        %v2277 = vsel %vm2274, 1, 0
        %v2278 = vcvt.s32.f32 %v2275
        %v2279 = vcvt.s32.f32 %v2276
        %v2280 = vcvt.s32.f32 %v2277
        %v2281 = vmul.f32 %v2260, %v2278
        %v2282 = vmul.f32 %v2261, %v2279
        %v2283 = vmul.f32 %v2262, %v2280
        %2287 = vrot.lane.b32.xlu0 %v2281, 48
        %v2288 = vpop.permute.xlu0 %2287
        %2289 = vrot.lane.b32.xlu0 %v2282, 48
        %v2290 = vpop.permute.xlu0 %2289
        %2291 = vrot.lane.b32.xlu0 %v2283, 48
        %v2292 = vpop.permute.xlu0 %2291
        %v2296 = vadd.f32 %v2257, %v2288
        %v2297 = vadd.f32 %v2258, %v2290
        %v2298 = vadd.f32 %v2259, %v2292
        %v2299 = vld [vmem:[#allocation2 + $0x8] sm:$0xff]
        %v2300 = vld [vmem:[#allocation2 + $0x10] sm:$0xff]
        %v2301 = vld [vmem:[#allocation2 + $0x18] sm:$0xff]
        %v2302 = vadd.s32 %v2173, 2
        %v2303 = vadd.s32 %v2174, 2
        %v2304 = vadd.s32 %v2175, 2
        %vm2305 = vcmp.ge.s32.totalorder %v2302, 0
        %vm2306 = vcmp.ge.s32.totalorder %v2303, 0
        %vm2307 = vcmp.ge.s32.totalorder %v2304, 0
        %vm2308 = vcmp.lt.s32.totalorder %v2302, 5
        %vm2309 = vcmp.lt.s32.totalorder %v2303, 5
        %vm2310 = vcmp.lt.s32.totalorder %v2304, 5
        %vm2311 = vmand %vm2305, %vm2308
        %vm2312 = vmand %vm2306, %vm2309
        %vm2313 = vmand %vm2307, %vm2310
        %v2314 = vsel %vm2311, 1, 0
        %v2315 = vsel %vm2312, 1, 0
        %v2316 = vsel %vm2313, 1, 0
        %v2317 = vcvt.s32.f32 %v2314
        %v2318 = vcvt.s32.f32 %v2315
        %v2319 = vcvt.s32.f32 %v2316
        %v2320 = vmul.f32 %v2299, %v2317
        %v2321 = vmul.f32 %v2300, %v2318
        %v2322 = vmul.f32 %v2301, %v2319
        %2326 = vrot.lane.b32.xlu0 %v2320, 64
        %v2327 = vpop.permute.xlu0 %2326
        %2328 = vrot.lane.b32.xlu0 %v2321, 64
        %v2329 = vpop.permute.xlu0 %2328
        %2330 = vrot.lane.b32.xlu0 %v2322, 64
        %v2331 = vpop.permute.xlu0 %2330
        %v2335 = vadd.f32 %v2296, %v2327
        %v2336 = vadd.f32 %v2297, %v2329
        %v2337 = vadd.f32 %v2298, %v2331
        %v2338 = vld [vmem:[#allocation2 + $0x9] sm:$0xff]
        %v2339 = vld [vmem:[#allocation2 + $0x11] sm:$0xff]
        %v2340 = vld [vmem:[#allocation2 + $0x19] sm:$0xff]
        %v2341 = vmul.f32 %v2338, %v2194
        %v2342 = vmul.f32 %v2339, %v2195
        %v2343 = vmul.f32 %v2340, %v2196
        %2347 = vrot.lane.b32.xlu0 %v2341, 80
        %v2348 = vpop.permute.xlu0 %2347
        %2349 = vrot.lane.b32.xlu0 %v2342, 80
        %v2350 = vpop.permute.xlu0 %2349
        %2351 = vrot.lane.b32.xlu0 %v2343, 80
        %v2352 = vpop.permute.xlu0 %2351
        %v2356 = vadd.f32 %v2335, %v2348
        %v2357 = vadd.f32 %v2336, %v2350
        %v2358 = vadd.f32 %v2337, %v2352
        %v2359 = vld [vmem:[#allocation2 + $0xa] sm:$0xff]
        %v2360 = vld [vmem:[#allocation2 + $0x12] sm:$0xff]
        %v2361 = vld [vmem:[#allocation2 + $0x1a] sm:$0xff]
        %v2362 = vmul.f32 %v2359, %v2221
        %v2363 = vmul.f32 %v2360, %v2222
        %v2364 = vmul.f32 %v2361, %v2223
        %2368 = vrot.lane.b32.xlu0 %v2362, 96
        %v2369 = vpop.permute.xlu0 %2368
        %2370 = vrot.lane.b32.xlu0 %v2363, 96
        %v2371 = vpop.permute.xlu0 %2370
        %2372 = vrot.lane.b32.xlu0 %v2364, 96
        %v2373 = vpop.permute.xlu0 %2372
        %v2377 = vadd.f32 %v2356, %v2369
        %v2378 = vadd.f32 %v2357, %v2371
        %v2379 = vadd.f32 %v2358, %v2373
        %v2380 = vld [vmem:[#allocation2 + $0xb] sm:$0xff]
        %v2381 = vld [vmem:[#allocation2 + $0x13] sm:$0xff]
        %v2382 = vld [vmem:[#allocation2 + $0x1b] sm:$0xff]
        %2386 = vrot.lane.b32.xlu0 %v2380, 112
        %v2387 = vpop.permute.xlu0 %2386
        %2388 = vrot.lane.b32.xlu0 %v2381, 112
        %v2389 = vpop.permute.xlu0 %2388
        %2390 = vrot.lane.b32.xlu0 %v2382, 112
        %v2391 = vpop.permute.xlu0 %2390
        %v2395 = vadd.f32 %v2377, %v2387
        %v2396 = vadd.f32 %v2378, %v2389
        %v2397 = vadd.f32 %v2379, %v2391
        %2398 = vst [vmem:[#allocation4] sm:$0xff] %v2395
        %2399 = vst [vmem:[#allocation4 + $0x20] sm:$0xff] %v2396
        %2400 = vst [vmem:[#allocation4 + $0x40] sm:$0xff] %v2397
        %v2401 = vld [vmem:[#allocation2 + $0xc] sm:$0xff]
        %v2402 = vld [vmem:[#allocation2 + $0x14] sm:$0xff]
        %v2403 = vld [vmem:[#allocation2 + $0x1c] sm:$0xff]
        %v2404 = vmul.f32 %v2401, %v2278
        %v2405 = vmul.f32 %v2402, %v2279
        %v2406 = vmul.f32 %v2403, %v2280
        %v2407 = vadd.f32 %v2404, 0.0
        %v2408 = vadd.f32 %v2405, 0.0
        %v2409 = vadd.f32 %v2406, 0.0
        %v2410 = vld [vmem:[#allocation2 + $0xd] sm:$0xff]
        %v2411 = vld [vmem:[#allocation2 + $0x15] sm:$0xff]
        %v2412 = vld [vmem:[#allocation2 + $0x1d] sm:$0xff]
        %v2413 = vmul.f32 %v2410, %v2317
        %v2414 = vmul.f32 %v2411, %v2318
        %v2415 = vmul.f32 %v2412, %v2319
        %2419 = vrot.lane.b32.xlu0 %v2413, 16
        %v2420 = vpop.permute.xlu0 %2419
        %2421 = vrot.lane.b32.xlu0 %v2414, 16
        %v2422 = vpop.permute.xlu0 %2421
        %2423 = vrot.lane.b32.xlu0 %v2415, 16
        %v2424 = vpop.permute.xlu0 %2423
        %v2428 = vadd.f32 %v2407, %v2420
        %v2429 = vadd.f32 %v2408, %v2422
        %v2430 = vadd.f32 %v2409, %v2424
        %v2431 = vld [vmem:[#allocation2 + $0xe] sm:$0xff]
        %v2432 = vld [vmem:[#allocation2 + $0x16] sm:$0xff]
        %v2433 = vld [vmem:[#allocation2 + $0x1e] sm:$0xff]
        %v2434 = vmul.f32 %v2431, %v2194
        %v2435 = vmul.f32 %v2432, %v2195
        %v2436 = vmul.f32 %v2433, %v2196
        %2440 = vrot.lane.b32.xlu0 %v2434, 32
        %v2441 = vpop.permute.xlu0 %2440
        %2442 = vrot.lane.b32.xlu0 %v2435, 32
        %v2443 = vpop.permute.xlu0 %2442
        %2444 = vrot.lane.b32.xlu0 %v2436, 32
        %v2445 = vpop.permute.xlu0 %2444
        %v2449 = vadd.f32 %v2428, %v2441
        %v2450 = vadd.f32 %v2429, %v2443
        %v2451 = vadd.f32 %v2430, %v2445
        %v2452 = vld [vmem:[#allocation2 + $0xf] sm:$0xff]
        %v2453 = vld [vmem:[#allocation2 + $0x17] sm:$0xff]
        %v2454 = vld [vmem:[#allocation2 + $0x1f] sm:$0xff]
        %v2455 = vmul.f32 %v2452, %v2221
        %v2456 = vmul.f32 %v2453, %v2222
        %v2457 = vmul.f32 %v2454, %v2223
        %2461 = vrot.lane.b32.xlu0 %v2455, 48
        %v2462 = vpop.permute.xlu0 %2461
        %2463 = vrot.lane.b32.xlu0 %v2456, 48
        %v2464 = vpop.permute.xlu0 %2463
        %2465 = vrot.lane.b32.xlu0 %v2457, 48
        %v2466 = vpop.permute.xlu0 %2465
        %v2470 = vadd.f32 %v2449, %v2462
        %v2471 = vadd.f32 %v2450, %v2464
        %v2472 = vadd.f32 %v2451, %v2466
        %v2473 = vld [vmem:[#allocation2 + $0x10] sm:$0xff]
        %v2474 = vld [vmem:[#allocation2 + $0x18] sm:$0xff]
        %v2475 = vld [vmem:[#allocation2 + $0x20] sm:$0xff]
        %2479 = vrot.lane.b32.xlu0 %v2473, 64
        %v2480 = vpop.permute.xlu0 %2479
        %2481 = vrot.lane.b32.xlu0 %v2474, 64
        %v2482 = vpop.permute.xlu0 %2481
        %2483 = vrot.lane.b32.xlu0 %v2475, 64
        %v2484 = vpop.permute.xlu0 %2483
        %v2488 = vadd.f32 %v2470, %v2480
        %v2489 = vadd.f32 %v2471, %v2482
        %v2490 = vadd.f32 %v2472, %v2484
        %v2491 = vld [vmem:[#allocation2 + $0x11] sm:$0xff]
        %v2492 = vld [vmem:[#allocation2 + $0x19] sm:$0xff]
        %v2493 = vld [vmem:[#allocation2 + $0x21] sm:$0xff]
        %v2494 = vmul.f32 %v2491, %v2278
        %v2495 = vmul.f32 %v2492, %v2279
        %v2496 = vmul.f32 %v2493, %v2280
        %2500 = vrot.lane.b32.xlu0 %v2494, 80
        %v2501 = vpop.permute.xlu0 %2500
        %2502 = vrot.lane.b32.xlu0 %v2495, 80
        %v2503 = vpop.permute.xlu0 %2502
        %2504 = vrot.lane.b32.xlu0 %v2496, 80
        %v2505 = vpop.permute.xlu0 %2504
        %v2509 = vadd.f32 %v2488, %v2501
        %v2510 = vadd.f32 %v2489, %v2503
        %v2511 = vadd.f32 %v2490, %v2505
        %v2512 = vld [vmem:[#allocation2 + $0x12] sm:$0xff]
        %v2513 = vld [vmem:[#allocation2 + $0x1a] sm:$0xff]
        %v2514 = vld [vmem:[#allocation2 + $0x22] sm:$0xff]
        %v2515 = vmul.f32 %v2512, %v2317
        %v2516 = vmul.f32 %v2513, %v2318
        %v2517 = vmul.f32 %v2514, %v2319
        %2521 = vrot.lane.b32.xlu0 %v2515, 96
        %v2522 = vpop.permute.xlu0 %2521
        %2523 = vrot.lane.b32.xlu0 %v2516, 96
        %v2524 = vpop.permute.xlu0 %2523
        %2525 = vrot.lane.b32.xlu0 %v2517, 96
        %v2526 = vpop.permute.xlu0 %2525
        %v2530 = vadd.f32 %v2509, %v2522
        %v2531 = vadd.f32 %v2510, %v2524
        %v2532 = vadd.f32 %v2511, %v2526
        %v2533 = vld [vmem:[#allocation2 + $0x13] sm:$0xff]
        %v2534 = vld [vmem:[#allocation2 + $0x1b] sm:$0xff]
        %v2535 = vld [vmem:[#allocation2 + $0x23] sm:$0xff]
        %v2536 = vmul.f32 %v2533, %v2194
        %v2537 = vmul.f32 %v2534, %v2195
        %v2538 = vmul.f32 %v2535, %v2196
        %2542 = vrot.lane.b32.xlu0 %v2536, 112
        %v2543 = vpop.permute.xlu0 %2542
        %2544 = vrot.lane.b32.xlu0 %v2537, 112
        %v2545 = vpop.permute.xlu0 %2544
        %2546 = vrot.lane.b32.xlu0 %v2538, 112
        %v2547 = vpop.permute.xlu0 %2546
        %v2551 = vadd.f32 %v2530, %v2543
        %v2552 = vadd.f32 %v2531, %v2545
        %v2553 = vadd.f32 %v2532, %v2547
        %2554 = vst [vmem:[#allocation4 + $0x8] sm:$0xff] %v2551
        %2555 = vst [vmem:[#allocation4 + $0x28] sm:$0xff] %v2552
        %2556 = vst [vmem:[#allocation4 + $0x48] sm:$0xff] %v2553
        %v2557 = vld [vmem:[#allocation2 + $0x14] sm:$0xff]
        %v2558 = vld [vmem:[#allocation2 + $0x1c] sm:$0xff]
        %v2559 = vld [vmem:[#allocation2 + $0x24] sm:$0xff]
        %v2560 = vmul.f32 %v2557, %v2221
        %v2561 = vmul.f32 %v2558, %v2222
        %v2562 = vmul.f32 %v2559, %v2223
        %v2563 = vadd.f32 %v2560, 0.0
        %v2564 = vadd.f32 %v2561, 0.0
        %v2565 = vadd.f32 %v2562, 0.0
        %v2566 = vld [vmem:[#allocation2 + $0x15] sm:$0xff]
        %v2567 = vld [vmem:[#allocation2 + $0x1d] sm:$0xff]
        %v2568 = vld [vmem:[#allocation2 + $0x25] sm:$0xff]
        %2572 = vrot.lane.b32.xlu0 %v2566, 16
        %v2573 = vpop.permute.xlu0 %2572
        %2574 = vrot.lane.b32.xlu0 %v2567, 16
        %v2575 = vpop.permute.xlu0 %2574
        %2576 = vrot.lane.b32.xlu0 %v2568, 16
        %v2577 = vpop.permute.xlu0 %2576
        %v2581 = vadd.f32 %v2563, %v2573
        %v2582 = vadd.f32 %v2564, %v2575
        %v2583 = vadd.f32 %v2565, %v2577
        %v2584 = vld [vmem:[#allocation2 + $0x16] sm:$0xff]
        %v2585 = vld [vmem:[#allocation2 + $0x1e] sm:$0xff]
        %v2586 = vld [vmem:[#allocation2 + $0x26] sm:$0xff]
        %v2587 = vmul.f32 %v2584, %v2278
        %v2588 = vmul.f32 %v2585, %v2279
        %v2589 = vmul.f32 %v2586, %v2280
        %2593 = vrot.lane.b32.xlu0 %v2587, 32
        %v2594 = vpop.permute.xlu0 %2593
        %2595 = vrot.lane.b32.xlu0 %v2588, 32
        %v2596 = vpop.permute.xlu0 %2595
        %2597 = vrot.lane.b32.xlu0 %v2589, 32
        %v2598 = vpop.permute.xlu0 %2597
        %v2602 = vadd.f32 %v2581, %v2594
        %v2603 = vadd.f32 %v2582, %v2596
        %v2604 = vadd.f32 %v2583, %v2598
        %v2605 = vld [vmem:[#allocation2 + $0x17] sm:$0xff]
        %v2606 = vld [vmem:[#allocation2 + $0x1f] sm:$0xff]
        %v2607 = vld [vmem:[#allocation2 + $0x27] sm:$0xff]
        %v2608 = vmul.f32 %v2605, %v2317
        %v2609 = vmul.f32 %v2606, %v2318
        %v2610 = vmul.f32 %v2607, %v2319
        %2614 = vrot.lane.b32.xlu0 %v2608, 48
        %v2615 = vpop.permute.xlu0 %2614
        %2616 = vrot.lane.b32.xlu0 %v2609, 48
        %v2617 = vpop.permute.xlu0 %2616
        %2618 = vrot.lane.b32.xlu0 %v2610, 48
        %v2619 = vpop.permute.xlu0 %2618
        %v2623 = vadd.f32 %v2602, %v2615
        %v2624 = vadd.f32 %v2603, %v2617
        %v2625 = vadd.f32 %v2604, %v2619
        %v2626 = vld [vmem:[#allocation2 + $0x18] sm:$0xff]
        %v2627 = vld [vmem:[#allocation2 + $0x20] sm:$0xff]
        %v2628 = vld [vmem:[#allocation2 + $0x28] sm:$0xff]
        %v2629 = vmul.f32 %v2626, %v2194
        %v2630 = vmul.f32 %v2627, %v2195
        %v2631 = vmul.f32 %v2628, %v2196
        %2635 = vrot.lane.b32.xlu0 %v2629, 64
        %v2636 = vpop.permute.xlu0 %2635
        %2637 = vrot.lane.b32.xlu0 %v2630, 64
        %v2638 = vpop.permute.xlu0 %2637
        %2639 = vrot.lane.b32.xlu0 %v2631, 64
        %v2640 = vpop.permute.xlu0 %2639
        %v2644 = vadd.f32 %v2623, %v2636
        %v2645 = vadd.f32 %v2624, %v2638
        %v2646 = vadd.f32 %v2625, %v2640
        %v2647 = vld [vmem:[#allocation2 + $0x19] sm:$0xff]
        %v2648 = vld [vmem:[#allocation2 + $0x21] sm:$0xff]
        %v2649 = vld [vmem:[#allocation2 + $0x29] sm:$0xff]
        %v2650 = vmul.f32 %v2647, %v2221
        %v2651 = vmul.f32 %v2648, %v2222
        %v2652 = vmul.f32 %v2649, %v2223
        %2656 = vrot.lane.b32.xlu0 %v2650, 80
        %v2657 = vpop.permute.xlu0 %2656
        %2658 = vrot.lane.b32.xlu0 %v2651, 80
        %v2659 = vpop.permute.xlu0 %2658
        %2660 = vrot.lane.b32.xlu0 %v2652, 80
        %v2661 = vpop.permute.xlu0 %2660
        %v2665 = vadd.f32 %v2644, %v2657
        %v2666 = vadd.f32 %v2645, %v2659
        %v2667 = vadd.f32 %v2646, %v2661
        %v2668 = vld [vmem:[#allocation2 + $0x1a] sm:$0xff]
        %v2669 = vld [vmem:[#allocation2 + $0x22] sm:$0xff]
        %v2670 = vld [vmem:[#allocation2 + $0x2a] sm:$0xff]
        %2674 = vrot.lane.b32.xlu0 %v2668, 96
        %v2675 = vpop.permute.xlu0 %2674
        %2676 = vrot.lane.b32.xlu0 %v2669, 96
        %v2677 = vpop.permute.xlu0 %2676
        %2678 = vrot.lane.b32.xlu0 %v2670, 96
        %v2679 = vpop.permute.xlu0 %2678
        %v2683 = vadd.f32 %v2665, %v2675
        %v2684 = vadd.f32 %v2666, %v2677
        %v2685 = vadd.f32 %v2667, %v2679
        %v2686 = vld [vmem:[#allocation2 + $0x1b] sm:$0xff]
        %v2687 = vld [vmem:[#allocation2 + $0x23] sm:$0xff]
        %v2688 = vld [vmem:[#allocation2 + $0x2b] sm:$0xff]
        %v2689 = vmul.f32 %v2686, %v2278
        %v2690 = vmul.f32 %v2687, %v2279
        %v2691 = vmul.f32 %v2688, %v2280
        %2695 = vrot.lane.b32.xlu0 %v2689, 112
        %v2696 = vpop.permute.xlu0 %2695
        %2697 = vrot.lane.b32.xlu0 %v2690, 112
        %v2698 = vpop.permute.xlu0 %2697
        %2699 = vrot.lane.b32.xlu0 %v2691, 112
        %v2700 = vpop.permute.xlu0 %2699
        %v2704 = vadd.f32 %v2683, %v2696
        %v2705 = vadd.f32 %v2684, %v2698
        %v2706 = vadd.f32 %v2685, %v2700
        %2707 = vst [vmem:[#allocation4 + $0x10] sm:$0xff] %v2704
        %2708 = vst [vmem:[#allocation4 + $0x30] sm:$0xff] %v2705
        %2709 = vst [vmem:[#allocation4 + $0x50] sm:$0xff] %v2706
        %v2710 = vld [vmem:[#allocation2 + $0x1c] sm:$0xff]
        %v2711 = vld [vmem:[#allocation2 + $0x24] sm:$0xff]
        %v2712 = vld [vmem:[#allocation2 + $0x2c] sm:$0xff]
        %v2713 = vmul.f32 %v2710, %v2317
        %v2714 = vmul.f32 %v2711, %v2318
        %v2715 = vmul.f32 %v2712, %v2319
        %v2716 = vadd.f32 %v2713, 0.0
        %v2717 = vadd.f32 %v2714, 0.0
        %v2718 = vadd.f32 %v2715, 0.0
        %2719 = vst [vmem:[#allocation4 + $0x18] sm:$0xff] %v2716
        %2720 = vst [vmem:[#allocation4 + $0x38] sm:$0xff] %v2717
        %2721 = vst [vmem:[#allocation4 + $0x58] sm:$0xff] %v2718
        %v2722 = vld [vmem:[#allocation4] sm:$0xff]
        %v2723 = vld [vmem:[#allocation4 + $0x8] sm:$0xff]
        %v2724 = vld [vmem:[#allocation4 + $0x10] sm:$0xff]
        %v2725 = vld [vmem:[#allocation4 + $0x18] sm:$0xff]
        %v2726 = vld [vmem:[#allocation4 + $0x20] sm:$0xff]
        %v2727 = vld [vmem:[#allocation4 + $0x28] sm:$0xff]
        %v2728 = vld [vmem:[#allocation4 + $0x30] sm:$0xff]
        %v2729 = vld [vmem:[#allocation4 + $0x38] sm:$0xff]
        %v2730 = vld [vmem:[#allocation4 + $0x40] sm:$0xff]
        %v2731 = vld [vmem:[#allocation4 + $0x48] sm:$0xff]
        %v2732 = vld [vmem:[#allocation4 + $0x50] sm:$0xff]
        %v2733 = vld [vmem:[#allocation4 + $0x58] sm:$0xff]
        %v2734 = vld [vmem:[#allocation11] sm:$0xff]
        %v2735 = vld [vmem:[#allocation11 + $0x8] sm:$0xff]
        %v2736 = vld [vmem:[#allocation11 + $0x10] sm:$0xff]
        %v2737 = vld [vmem:[#allocation11 + $0x18] sm:$0xff]
        %v2738 = vld [vmem:[#allocation11 + $0x20] sm:$0xff]
        %v2739 = vld [vmem:[#allocation11 + $0x28] sm:$0xff]
        %v2740 = vld [vmem:[#allocation11 + $0x30] sm:$0xff]
        %v2741 = vld [vmem:[#allocation11 + $0x38] sm:$0xff]
        %v2742 = vld [vmem:[#allocation11 + $0x40] sm:$0xff]
        %v2743 = vld [vmem:[#allocation11 + $0x48] sm:$0xff]
        %v2744 = vld [vmem:[#allocation11 + $0x50] sm:$0xff]
        %v2745 = vld [vmem:[#allocation11 + $0x58] sm:$0xff]
        %v2746 = vld [vmem:[#allocation11 + $0x60] sm:$0xff]
        %v2747 = vld [vmem:[#allocation11 + $0x68] sm:$0xff]
        %v2748 = vld [vmem:[#allocation11 + $0x70] sm:$0xff]
        %v2749 = vld [vmem:[#allocation11 + $0x78] sm:$0xff]
        %v2750 = vld [vmem:[#allocation11 + $0x80] sm:$0xff]
        %v2751 = vld [vmem:[#allocation11 + $0x88] sm:$0xff]
        %v2752 = vld [vmem:[#allocation11 + $0x90] sm:$0xff]
        %v2753 = vld [vmem:[#allocation11 + $0x98] sm:$0xff]
        %v2754 = vld [vmem:[#allocation11 + $0xa0] sm:$0xff]
        %v2755 = vld [vmem:[#allocation11 + $0xa8] sm:$0xff]
        %v2756 = vld [vmem:[#allocation11 + $0xb0] sm:$0xff]
        %v2757 = vld [vmem:[#allocation11 + $0xb8] sm:$0xff]
        %v2758 = vld [vmem:[#allocation11 + $0xc0] sm:$0xff]
        %v2759 = vld [vmem:[#allocation11 + $0xc8] sm:$0xff]
        %v2760 = vld [vmem:[#allocation11 + $0xd0] sm:$0xff]
        %v2761 = vld [vmem:[#allocation11 + $0xd8] sm:$0xff]
        %v2762 = vld [vmem:[#allocation11 + $0xe0] sm:$0xff]
        %v2763 = vld [vmem:[#allocation11 + $0xe8] sm:$0xff]
        %v2764 = vld [vmem:[#allocation11 + $0xf0] sm:$0xff]
        %v2765 = vld [vmem:[#allocation11 + $0xf8] sm:$0xff]
        %v2766 = vld [vmem:[#allocation11 + $0x100] sm:$0xff]
        %v2767 = vld [vmem:[#allocation11 + $0x108] sm:$0xff]
        %v2768 = vld [vmem:[#allocation11 + $0x110] sm:$0xff]
        %v2769 = vld [vmem:[#allocation11 + $0x118] sm:$0xff]
        %v2770 = vld [vmem:[#allocation11 + $0x120] sm:$0xff]
        %v2771 = vld [vmem:[#allocation11 + $0x128] sm:$0xff]
        %v2772 = vld [vmem:[#allocation11 + $0x130] sm:$0xff]
        %v2773 = vld [vmem:[#allocation11 + $0x138] sm:$0xff]
        %v2774 = vld [vmem:[#allocation11 + $0x140] sm:$0xff]
        %v2775 = vld [vmem:[#allocation11 + $0x148] sm:$0xff]
        %v2776 = vld [vmem:[#allocation11 + $0x150] sm:$0xff]
        %v2777 = vld [vmem:[#allocation11 + $0x158] sm:$0xff]
        %v2778 = vld [vmem:[#allocation11 + $0x160] sm:$0xff]
        %v2779 = vld [vmem:[#allocation11 + $0x168] sm:$0xff]
        %v2780 = vld [vmem:[#allocation11 + $0x170] sm:$0xff]
        %v2781 = vld [vmem:[#allocation11 + $0x178] sm:$0xff]
        %v2782 = vld [vmem:[#allocation11 + $0x180] sm:$0xff]
        %v2783 = vld [vmem:[#allocation11 + $0x188] sm:$0xff]
        %v2784 = vld [vmem:[#allocation11 + $0x190] sm:$0xff]
        %v2785 = vld [vmem:[#allocation11 + $0x198] sm:$0xff]
        %v2786 = vld [vmem:[#allocation11 + $0x1a0] sm:$0xff]
        %v2787 = vld [vmem:[#allocation11 + $0x1a8] sm:$0xff]
        %v2788 = vld [vmem:[#allocation11 + $0x1b0] sm:$0xff]
        %v2789 = vld [vmem:[#allocation11 + $0x1b8] sm:$0xff]
        %v2790 = vld [vmem:[#allocation11 + $0x1c0] sm:$0xff]
        %v2791 = vld [vmem:[#allocation11 + $0x1c8] sm:$0xff]
        %v2792 = vld [vmem:[#allocation11 + $0x1d0] sm:$0xff]
        %v2793 = vld [vmem:[#allocation11 + $0x1d8] sm:$0xff]
        %v2794 = vld [vmem:[#allocation11 + $0x1e0] sm:$0xff]
        %v2795 = vld [vmem:[#allocation11 + $0x1e8] sm:$0xff]
        %v2796 = vld [vmem:[#allocation11 + $0x1f0] sm:$0xff]
        %v2797 = vld [vmem:[#allocation11 + $0x1f8] sm:$0xff]
        %v2798 = vld [vmem:[%s3] sm:$0x1]
        %v2800 = vlaneseq
        %v2801 = vshrl.u32 %v2800, 7
        %v2802 = vsub.s32 0, %v2801
        %v2803 = vrot.slane %v2798, %v2802
        %2805 = vmatprep.subr.mxu0 0.0
        %2806 = vmatpush1.msra.mxu0 %v2734
        %2807 = vmatprep.subr.mxu0 0.0
        %2808 = vmatpush1.msra.mxu0 %v2735
        %2809 = vmatprep.subr.mxu0 0.0
        %2810 = vmatpush1.msra.mxu0 %v2736
        %2811 = vmatprep.subr.mxu0 0.0
        %2812 = vmatpush1.msra.mxu0 %v2737
        %2813 = vmatprep.subr.mxu0 0.0
        %2814 = vmatpush1.msra.mxu0 %v2738
        %2815 = vmatprep.subr.mxu0 0.0
        %2816 = vmatpush1.msra.mxu0 %v2739
        %2817 = vmatprep.subr.mxu0 0.0
        %2818 = vmatpush1.msra.mxu0 %v2740
        %2819 = vmatprep.subr.mxu0 0.0
        %2820 = vmatpush1.msra.mxu0 %v2741
        %2821 = vmatprep.subr.mxu0 0.0
        %2822 = vmatpush1.msra.mxu0 %v2742
        %2823 = vmatprep.subr.mxu0 0.0
        %2824 = vmatpush1.msra.mxu0 %v2743
        %2825 = vmatprep.subr.mxu0 0.0
        %2826 = vmatpush1.msra.mxu0 %v2744
        %2827 = vmatprep.subr.mxu0 0.0
        %2828 = vmatpush1.msra.mxu0 %v2745
        %2829 = vmatprep.subr.mxu0 0.0
        %2830 = vmatpush1.msra.mxu0 %v2746
        %2831 = vmatprep.subr.mxu0 0.0
        %2832 = vmatpush1.msra.mxu0 %v2747
        %2833 = vmatprep.subr.mxu0 0.0
        %2834 = vmatpush1.msra.mxu0 %v2748
        %2835 = vmatprep.subr.mxu0 0.0
        %2836 = vmatpush1.msra.mxu0 %v2749
        %2837 = vmatprep.subr.mxu0 0.0
        %2838 = vmatpush1.msra.mxu0 %v2750
        %2839 = vmatprep.subr.mxu0 0.0
        %2840 = vmatpush1.msra.mxu0 %v2751
        %2841 = vmatprep.subr.mxu0 0.0
        %2842 = vmatpush1.msra.mxu0 %v2752
        %2843 = vmatprep.subr.mxu0 0.0
        %2844 = vmatpush1.msra.mxu0 %v2753
        %2845 = vmatprep.subr.mxu0 0.0
        %2846 = vmatpush1.msra.mxu0 %v2754
        %2847 = vmatprep.subr.mxu0 0.0
        %2848 = vmatpush1.msra.mxu0 %v2755
        %2849 = vmatprep.subr.mxu0 0.0
        %2850 = vmatpush1.msra.mxu0 %v2756
        %2851 = vmatprep.subr.mxu0 0.0
        %2852 = vmatpush1.msra.mxu0 %v2757
        %2853 = vmatprep.subr.mxu0 0.0
        %2854 = vmatpush1.msra.mxu0 %v2758
        %2855 = vmatprep.subr.mxu0 0.0
        %2856 = vmatpush1.msra.mxu0 %v2759
        %2857 = vmatprep.subr.mxu0 0.0
        %2858 = vmatpush1.msra.mxu0 %v2760
        %2859 = vmatprep.subr.mxu0 0.0
        %2860 = vmatpush1.msra.mxu0 %v2761
        %2861 = vmatprep.subr.mxu0 0.0
        %2862 = vmatpush1.msra.mxu0 %v2762
        %2863 = vmatprep.subr.mxu0 0.0
        %2864 = vmatpush1.msra.mxu0 %v2763
        %2865 = vmatprep.subr.mxu0 0.0
        %2866 = vmatpush1.msra.mxu0 %v2764
        %2867 = vmatprep.subr.mxu0 0.0
        %2868 = vmatpush1.msra.mxu0 %v2765
        %2869 = vmatprep.mubr.f32.mxu0 %v2723
        %2870 = vmatmul.mubr.f32.gmra.mrb[0].mxu0 %v2722
        %v2871 = vpop.f32.mrb[0].mxu0
        %v2872 = vadd.f32 %v2803, %v2871
        %v2873 = vpop.f32.mrb[0].mxu0
        %2874 = vmatprep.mubr.f32.mxu0 %v2727
        %2875 = vmatmul.mubr.f32.gmra.mrb[0].mxu0 %v2726
        %v2876 = vpop.f32.mrb[0].mxu0
        %v2877 = vadd.f32 %v2803, %v2876
        %v2878 = vpop.f32.mrb[0].mxu0
        %2879 = vmatprep.mubr.f32.mxu0 %v2731
        %2880 = vmatmul.mubr.f32.gmra.mrb[0].mxu0 %v2730
        %v2881 = vpop.f32.mrb[0].mxu0
        %v2882 = vadd.f32 %v2803, %v2881
        %v2883 = vpop.f32.mrb[0].mxu0
        %2884 = vdwg.mxu0
        %2885 = vmatprep.subr.mxu0 0.0
        %2886 = vmatpush1.msra.mxu0 %v2766
        %2887 = vmatprep.subr.mxu0 0.0
        %2888 = vmatpush1.msra.mxu0 %v2767
        %2889 = vmatprep.subr.mxu0 0.0
        %2890 = vmatpush1.msra.mxu0 %v2768
        %2891 = vmatprep.subr.mxu0 0.0
        %2892 = vmatpush1.msra.mxu0 %v2769
        %2893 = vmatprep.subr.mxu0 0.0
        %2894 = vmatpush1.msra.mxu0 %v2770
        %2895 = vmatprep.subr.mxu0 0.0
        %2896 = vmatpush1.msra.mxu0 %v2771
        %2897 = vmatprep.subr.mxu0 0.0
        %2898 = vmatpush1.msra.mxu0 %v2772
        %2899 = vmatprep.subr.mxu0 0.0
        %2900 = vmatpush1.msra.mxu0 %v2773
        %2901 = vmatprep.subr.mxu0 0.0
        %2902 = vmatpush1.msra.mxu0 %v2774
        %2903 = vmatprep.subr.mxu0 0.0
        %2904 = vmatpush1.msra.mxu0 %v2775
        %2905 = vmatprep.subr.mxu0 0.0
        %2906 = vmatpush1.msra.mxu0 %v2776
        %2907 = vmatprep.subr.mxu0 0.0
        %2908 = vmatpush1.msra.mxu0 %v2777
        %2909 = vmatprep.subr.mxu0 0.0
        %2910 = vmatpush1.msra.mxu0 %v2778
        %2911 = vmatprep.subr.mxu0 0.0
        %2912 = vmatpush1.msra.mxu0 %v2779
        %2913 = vmatprep.subr.mxu0 0.0
        %2914 = vmatpush1.msra.mxu0 %v2780
        %2915 = vmatprep.subr.mxu0 0.0
        %2916 = vmatpush1.msra.mxu0 %v2781
        %2917 = vmatprep.subr.mxu0 0.0
        %2918 = vmatpush1.msra.mxu0 %v2782
        %2919 = vmatprep.subr.mxu0 0.0
        %2920 = vmatpush1.msra.mxu0 %v2783
        %2921 = vmatprep.subr.mxu0 0.0
        %2922 = vmatpush1.msra.mxu0 %v2784
        %2923 = vmatprep.subr.mxu0 0.0
        %2924 = vmatpush1.msra.mxu0 %v2785
        %2925 = vmatprep.subr.mxu0 0.0
        %2926 = vmatpush1.msra.mxu0 %v2786
        %2927 = vmatprep.subr.mxu0 0.0
        %2928 = vmatpush1.msra.mxu0 %v2787
        %2929 = vmatprep.subr.mxu0 0.0
        %2930 = vmatpush1.msra.mxu0 %v2788
        %2931 = vmatprep.subr.mxu0 0.0
        %2932 = vmatpush1.msra.mxu0 %v2789
        %2933 = vmatprep.subr.mxu0 0.0
        %2934 = vmatpush1.msra.mxu0 %v2790
        %2935 = vmatprep.subr.mxu0 0.0
        %2936 = vmatpush1.msra.mxu0 %v2791
        %2937 = vmatprep.subr.mxu0 0.0
        %2938 = vmatpush1.msra.mxu0 %v2792
        %2939 = vmatprep.subr.mxu0 0.0
        %2940 = vmatpush1.msra.mxu0 %v2793
        %2941 = vmatprep.subr.mxu0 0.0
        %2942 = vmatpush1.msra.mxu0 %v2794
        %2943 = vmatprep.subr.mxu0 0.0
        %2944 = vmatpush1.msra.mxu0 %v2795
        %2945 = vmatprep.subr.mxu0 0.0
        %2946 = vmatpush1.msra.mxu0 %v2796
        %2947 = vmatprep.subr.mxu0 0.0
        %2948 = vmatpush1.msra.mxu0 %v2797
        %2949 = vmatprep.mubr.f32.mxu0 %v2725
        %2950 = vmatmul.mubr.f32.gmra.mrb[0].mxu0 %v2724
        %v2951 = vpop.f32.mrb[0].mxu0
        %v2952 = vadd.f32 %v2872, %v2951
        %v2953 = vpop.f32.mrb[0].mxu0
        %2954 = vmatprep.mubr.f32.mxu0 %v2729
        %2955 = vmatmul.mubr.f32.gmra.mrb[0].mxu0 %v2728
        %v2956 = vpop.f32.mrb[0].mxu0
        %v2957 = vadd.f32 %v2877, %v2956
        %v2958 = vpop.f32.mrb[0].mxu0
        %2959 = vmatprep.mubr.f32.mxu0 %v2733
        %2960 = vmatmul.mubr.f32.gmra.mrb[0].mxu0 %v2732
        %v2961 = vpop.f32.mrb[0].mxu0
        %v2962 = vadd.f32 %v2882, %v2961
        %v2963 = vpop.f32.mrb[0].mxu0
        %2964 = vdwg.mxu0
        %v2965 = vmul.f32 %v2952, 0.70710677
        %v2966 = vmul.f32 %v2957, 0.70710677
        %v2967 = vmul.f32 %v2962, 0.70710677
        %vm2968 = vcmp.ge.f32.partialorder %v2965, 0.0
        %vm2969 = vcmp.ge.f32.partialorder %v2966, 0.0
        %vm2970 = vcmp.ge.f32.partialorder %v2967, 0.0
        %v2971 = vsel %vm2968, 1.0, -1.0
        %v2972 = vsel %vm2969, 1.0, -1.0
        %v2973 = vsel %vm2970, 1.0, -1.0
        %v2974 = vand.u32 2147483647, %v2965
        %v2975 = vand.u32 2147483647, %v2966
        %v2976 = vand.u32 2147483647, %v2967
        %v2977 = vmul.f32 %v2974, 0.3275911
        %v2978 = vmul.f32 %v2975, 0.3275911
        %v2979 = vmul.f32 %v2976, 0.3275911
        %v2980 = vadd.f32 %v2977, 1.0
        %v2981 = vadd.f32 %v2978, 1.0
        %v2982 = vadd.f32 %v2979, 1.0
        %v2983 = vrcp.pop %v2980
        %v2984 = vmul.f32 1.0, %v2983
        %v2985 = vrcp.pop %v2981
        %v2986 = vmul.f32 1.0, %v2985
        %v2987 = vrcp.pop %v2982
        %v2988 = vmul.f32 1.0, %v2987
        %v2989 = vmul.f32 %v2984, 1.0614054
        %v2990 = vmul.f32 %v2986, 1.0614054
        %v2991 = vmul.f32 %v2988, 1.0614054
        %v2992 = vadd.f32 %v2989, -1.4531521
        %v2993 = vadd.f32 %v2990, -1.4531521
        %v2994 = vadd.f32 %v2991, -1.4531521
        %v2995 = vmul.f32 %v2992, %v2984
        %v2996 = vmul.f32 %v2993, %v2986
        %v2997 = vmul.f32 %v2994, %v2988
        %v2998 = vadd.f32 %v2995, 1.4214138
        %v2999 = vadd.f32 %v2996, 1.4214138
        %v3000 = vadd.f32 %v2997, 1.4214138
        %v3001 = vmul.f32 %v2998, %v2984
        %v3002 = vmul.f32 %v2999, %v2986
        %v3003 = vmul.f32 %v3000, %v2988
        %v3004 = vadd.f32 %v3001, -0.28449672
        %v3005 = vadd.f32 %v3002, -0.28449672
        %v3006 = vadd.f32 %v3003, -0.28449672
        %v3007 = vmul.f32 %v3004, %v2984
        %v3008 = vmul.f32 %v3005, %v2986
        %v3009 = vmul.f32 %v3006, %v2988
        %v3010 = vadd.f32 %v3007, 0.2548296
        %v3011 = vadd.f32 %v3008, 0.2548296
        %v3012 = vadd.f32 %v3009, 0.2548296
        %v3013 = vmul.f32 %v3010, %v2984
        %v3014 = vmul.f32 %v3011, %v2986
        %v3015 = vmul.f32 %v3012, %v2988
        %v3016 = vsub.f32 0.0, %v2974
        %v3017 = vsub.f32 0.0, %v2975
        %v3018 = vsub.f32 0.0, %v2976
        %v3019 = vmul.f32 %v3016, %v2974
        %v3020 = vmul.f32 %v3017, %v2975
        %v3021 = vmul.f32 %v3018, %v2976
        %v3022 = vmul.f32 %v3019, 1.442695
        %v3023 = vpow.pop %v3022
        %v3024 = vmul.f32 %v3020, 1.442695
        %v3025 = vpow.pop %v3024
        %v3026 = vmul.f32 %v3021, 1.442695
        %v3027 = vpow.pop %v3026
        %v3028 = vmul.f32 %v3013, %v3023
        %v3029 = vmul.f32 %v3014, %v3025
        %v3030 = vmul.f32 %v3015, %v3027
        %v3031 = vsub.f32 1.0, %v3028
        %v3032 = vsub.f32 1.0, %v3029
        %v3033 = vsub.f32 1.0, %v3030
        %v3034 = vmul.f32 %v2971, %v3031
        %v3035 = vmul.f32 %v2972, %v3032
        %v3036 = vmul.f32 %v2973, %v3033
        %v3037 = vmul.f32 %v2952, 0.5
        %v3038 = vmul.f32 %v2957, 0.5
        %v3039 = vmul.f32 %v2962, 0.5
        %v3040 = vadd.f32 %v3034, 1.0
        %v3041 = vadd.f32 %v3035, 1.0
        %v3042 = vadd.f32 %v3036, 1.0
        %v3043 = vmul.f32 %v3037, %v3040
        %v3044 = vmul.f32 %v3038, %v3041
        %v3045 = vmul.f32 %v3039, %v3042
        %vm3046 = vcmp.lt.s32.totalorder %v330, 20
        %vm3047 = vcmp.lt.s32.totalorder %v331, 20
        %vm3048 = vcmp.lt.s32.totalorder %v332, 20
        %v3049 = vsel %vm3046, 1, 0
        %v3050 = vsel %vm3047, 1, 0
        %v3051 = vsel %vm3048, 1, 0
        %v3052 = vcvt.s32.f32 %v3049
        %v3053 = vcvt.s32.f32 %v3050
        %v3054 = vcvt.s32.f32 %v3051
        %v3055 = vmul.f32 %v3043, %v3052
        %v3056 = vmul.f32 %v3044, %v3053
        %v3057 = vmul.f32 %v3045, %v3054
        %3058 = vst [vmem:[#allocation3 + $0x10] sm:$0xff] %v3055
        %3059 = vst [vmem:[#allocation3 + $0x18] sm:$0xff] %v3056
        %3060 = vst [vmem:[#allocation3 + $0x20] sm:$0xff] %v3057
        %v3061 = vld [vmem:[#allocation3 + $0x4] sm:$0xff]
        %v3062 = vld [vmem:[#allocation3 + $0xc] sm:$0xff]
        %v3063 = vld [vmem:[#allocation3 + $0x14] sm:$0xff]
        %v3064 = vmul.f32 %v3061, %v2194
        %v3065 = vmul.f32 %v3062, %v2195
        %v3066 = vmul.f32 %v3063, %v2196
        %v3067 = vadd.f32 %v3064, 0.0
        %v3068 = vadd.f32 %v3065, 0.0
        %v3069 = vadd.f32 %v3066, 0.0
        %v3070 = vld [vmem:[#allocation3 + $0x5] sm:$0xff]
        %v3071 = vld [vmem:[#allocation3 + $0xd] sm:$0xff]
        %v3072 = vld [vmem:[#allocation3 + $0x15] sm:$0xff]
        %v3073 = vmul.f32 %v3070, %v2221
        %v3074 = vmul.f32 %v3071, %v2222
        %v3075 = vmul.f32 %v3072, %v2223
        %3079 = vrot.lane.b32.xlu0 %v3073, 32
        %v3080 = vpop.permute.xlu0 %3079
        %3081 = vrot.lane.b32.xlu0 %v3074, 32
        %v3082 = vpop.permute.xlu0 %3081
        %3083 = vrot.lane.b32.xlu0 %v3075, 32
        %v3084 = vpop.permute.xlu0 %3083
        %v3088 = vadd.f32 %v3067, %v3080
        %v3089 = vadd.f32 %v3068, %v3082
        %v3090 = vadd.f32 %v3069, %v3084
        %v3091 = vld [vmem:[#allocation3 + $0x6] sm:$0xff]
        %v3092 = vld [vmem:[#allocation3 + $0xe] sm:$0xff]
        %v3093 = vld [vmem:[#allocation3 + $0x16] sm:$0xff]
        %3097 = vrot.lane.b32.xlu0 %v3091, 64
        %v3098 = vpop.permute.xlu0 %3097
        %3099 = vrot.lane.b32.xlu0 %v3092, 64
        %v3100 = vpop.permute.xlu0 %3099
        %3101 = vrot.lane.b32.xlu0 %v3093, 64
        %v3102 = vpop.permute.xlu0 %3101
        %v3106 = vadd.f32 %v3088, %v3098
        %v3107 = vadd.f32 %v3089, %v3100
        %v3108 = vadd.f32 %v3090, %v3102
        %v3109 = vld [vmem:[#allocation3 + $0x7] sm:$0xff]
        %v3110 = vld [vmem:[#allocation3 + $0xf] sm:$0xff]
        %v3111 = vld [vmem:[#allocation3 + $0x17] sm:$0xff]
        %v3112 = vmul.f32 %v3109, %v2278
        %v3113 = vmul.f32 %v3110, %v2279
        %v3114 = vmul.f32 %v3111, %v2280
        %3118 = vrot.lane.b32.xlu0 %v3112, 96
        %v3119 = vpop.permute.xlu0 %3118
        %3120 = vrot.lane.b32.xlu0 %v3113, 96
        %v3121 = vpop.permute.xlu0 %3120
        %3122 = vrot.lane.b32.xlu0 %v3114, 96
        %v3123 = vpop.permute.xlu0 %3122
        %v3127 = vadd.f32 %v3106, %v3119
        %v3128 = vadd.f32 %v3107, %v3121
        %v3129 = vadd.f32 %v3108, %v3123
        %3130 = vst [vmem:[#allocation5] sm:$0xff] %v3127
        %3131 = vst [vmem:[#allocation5 + $0x38] sm:$0xff] %v3128
        %3132 = vst [vmem:[#allocation5 + $0x70] sm:$0xff] %v3129
        %v3133 = vld [vmem:[#allocation3 + $0x8] sm:$0xff]
        %v3134 = vld [vmem:[#allocation3 + $0x10] sm:$0xff]
        %v3135 = vld [vmem:[#allocation3 + $0x18] sm:$0xff]
        %v3136 = vmul.f32 %v3133, %v2317
        %v3137 = vmul.f32 %v3134, %v2318
        %v3138 = vmul.f32 %v3135, %v2319
        %v3139 = vadd.f32 %v3136, 0.0
        %v3140 = vadd.f32 %v3137, 0.0
        %v3141 = vadd.f32 %v3138, 0.0
        %v3142 = vld [vmem:[#allocation3 + $0x9] sm:$0xff]
        %v3143 = vld [vmem:[#allocation3 + $0x11] sm:$0xff]
        %v3144 = vld [vmem:[#allocation3 + $0x19] sm:$0xff]
        %v3145 = vmul.f32 %v3142, %v2194
        %v3146 = vmul.f32 %v3143, %v2195
        %v3147 = vmul.f32 %v3144, %v2196
        %3151 = vrot.lane.b32.xlu0 %v3145, 32
        %v3152 = vpop.permute.xlu0 %3151
        %3153 = vrot.lane.b32.xlu0 %v3146, 32
        %v3154 = vpop.permute.xlu0 %3153
        %3155 = vrot.lane.b32.xlu0 %v3147, 32
        %v3156 = vpop.permute.xlu0 %3155
        %v3160 = vadd.f32 %v3139, %v3152
        %v3161 = vadd.f32 %v3140, %v3154
        %v3162 = vadd.f32 %v3141, %v3156
        %v3163 = vld [vmem:[#allocation3 + $0xa] sm:$0xff]
        %v3164 = vld [vmem:[#allocation3 + $0x12] sm:$0xff]
        %v3165 = vld [vmem:[#allocation3 + $0x1a] sm:$0xff]
        %v3166 = vmul.f32 %v3163, %v2221
        %v3167 = vmul.f32 %v3164, %v2222
        %v3168 = vmul.f32 %v3165, %v2223
        %3172 = vrot.lane.b32.xlu0 %v3166, 64
        %v3173 = vpop.permute.xlu0 %3172
        %3174 = vrot.lane.b32.xlu0 %v3167, 64
        %v3175 = vpop.permute.xlu0 %3174
        %3176 = vrot.lane.b32.xlu0 %v3168, 64
        %v3177 = vpop.permute.xlu0 %3176
        %v3181 = vadd.f32 %v3160, %v3173
        %v3182 = vadd.f32 %v3161, %v3175
        %v3183 = vadd.f32 %v3162, %v3177
        %v3184 = vld [vmem:[#allocation3 + $0xb] sm:$0xff]
        %v3185 = vld [vmem:[#allocation3 + $0x13] sm:$0xff]
        %v3186 = vld [vmem:[#allocation3 + $0x1b] sm:$0xff]
        %3190 = vrot.lane.b32.xlu0 %v3184, 96
        %v3191 = vpop.permute.xlu0 %3190
        %3192 = vrot.lane.b32.xlu0 %v3185, 96
        %v3193 = vpop.permute.xlu0 %3192
        %3194 = vrot.lane.b32.xlu0 %v3186, 96
        %v3195 = vpop.permute.xlu0 %3194
        %v3199 = vadd.f32 %v3181, %v3191
        %v3200 = vadd.f32 %v3182, %v3193
        %v3201 = vadd.f32 %v3183, %v3195
        %3202 = vst [vmem:[#allocation5 + $0x8] sm:$0xff] %v3199
        %3203 = vst [vmem:[#allocation5 + $0x40] sm:$0xff] %v3200
        %3204 = vst [vmem:[#allocation5 + $0x78] sm:$0xff] %v3201
        %v3205 = vld [vmem:[#allocation3 + $0xc] sm:$0xff]
        %v3206 = vld [vmem:[#allocation3 + $0x14] sm:$0xff]
        %v3207 = vld [vmem:[#allocation3 + $0x1c] sm:$0xff]
        %v3208 = vmul.f32 %v3205, %v2278
        %v3209 = vmul.f32 %v3206, %v2279
        %v3210 = vmul.f32 %v3207, %v2280
        %v3211 = vadd.f32 %v3208, 0.0
        %v3212 = vadd.f32 %v3209, 0.0
        %v3213 = vadd.f32 %v3210, 0.0
        %v3214 = vld [vmem:[#allocation3 + $0xd] sm:$0xff]
        %v3215 = vld [vmem:[#allocation3 + $0x15] sm:$0xff]
        %v3216 = vld [vmem:[#allocation3 + $0x1d] sm:$0xff]
        %v3217 = vmul.f32 %v3214, %v2317
        %v3218 = vmul.f32 %v3215, %v2318
        %v3219 = vmul.f32 %v3216, %v2319
        %3223 = vrot.lane.b32.xlu0 %v3217, 32
        %v3224 = vpop.permute.xlu0 %3223
        %3225 = vrot.lane.b32.xlu0 %v3218, 32
        %v3226 = vpop.permute.xlu0 %3225
        %3227 = vrot.lane.b32.xlu0 %v3219, 32
        %v3228 = vpop.permute.xlu0 %3227
        %v3232 = vadd.f32 %v3211, %v3224
        %v3233 = vadd.f32 %v3212, %v3226
        %v3234 = vadd.f32 %v3213, %v3228
        %v3235 = vld [vmem:[#allocation3 + $0xe] sm:$0xff]
        %v3236 = vld [vmem:[#allocation3 + $0x16] sm:$0xff]
        %v3237 = vld [vmem:[#allocation3 + $0x1e] sm:$0xff]
        %v3238 = vmul.f32 %v3235, %v2194
        %v3239 = vmul.f32 %v3236, %v2195
        %v3240 = vmul.f32 %v3237, %v2196
        %3244 = vrot.lane.b32.xlu0 %v3238, 64
        %v3245 = vpop.permute.xlu0 %3244
        %3246 = vrot.lane.b32.xlu0 %v3239, 64
        %v3247 = vpop.permute.xlu0 %3246
        %3248 = vrot.lane.b32.xlu0 %v3240, 64
        %v3249 = vpop.permute.xlu0 %3248
        %v3253 = vadd.f32 %v3232, %v3245
        %v3254 = vadd.f32 %v3233, %v3247
        %v3255 = vadd.f32 %v3234, %v3249
        %v3256 = vld [vmem:[#allocation3 + $0xf] sm:$0xff]
        %v3257 = vld [vmem:[#allocation3 + $0x17] sm:$0xff]
        %v3258 = vld [vmem:[#allocation3 + $0x1f] sm:$0xff]
        %v3259 = vmul.f32 %v3256, %v2221
        %v3260 = vmul.f32 %v3257, %v2222
        %v3261 = vmul.f32 %v3258, %v2223
        %3265 = vrot.lane.b32.xlu0 %v3259, 96
        %v3266 = vpop.permute.xlu0 %3265
        %3267 = vrot.lane.b32.xlu0 %v3260, 96
        %v3268 = vpop.permute.xlu0 %3267
        %3269 = vrot.lane.b32.xlu0 %v3261, 96
        %v3270 = vpop.permute.xlu0 %3269
        %v3274 = vadd.f32 %v3253, %v3266
        %v3275 = vadd.f32 %v3254, %v3268
        %v3276 = vadd.f32 %v3255, %v3270
        %3277 = vst [vmem:[#allocation5 + $0x10] sm:$0xff] %v3274
        %3278 = vst [vmem:[#allocation5 + $0x48] sm:$0xff] %v3275
        %3279 = vst [vmem:[#allocation5 + $0x80] sm:$0xff] %v3276
        %v3280 = vld [vmem:[#allocation3 + $0x10] sm:$0xff]
        %v3281 = vld [vmem:[#allocation3 + $0x18] sm:$0xff]
        %v3282 = vld [vmem:[#allocation3 + $0x20] sm:$0xff]
        %v3283 = vadd.f32 %v3280, 0.0
        %v3284 = vadd.f32 %v3281, 0.0
        %v3285 = vadd.f32 %v3282, 0.0
        %v3286 = vld [vmem:[#allocation3 + $0x11] sm:$0xff]
        %v3287 = vld [vmem:[#allocation3 + $0x19] sm:$0xff]
        %v3288 = vld [vmem:[#allocation3 + $0x21] sm:$0xff]
        %v3289 = vmul.f32 %v3286, %v2278
        %v3290 = vmul.f32 %v3287, %v2279
        %v3291 = vmul.f32 %v3288, %v2280
        %3295 = vrot.lane.b32.xlu0 %v3289, 32
        %v3296 = vpop.permute.xlu0 %3295
        %3297 = vrot.lane.b32.xlu0 %v3290, 32
        %v3298 = vpop.permute.xlu0 %3297
        %3299 = vrot.lane.b32.xlu0 %v3291, 32
        %v3300 = vpop.permute.xlu0 %3299
        %v3304 = vadd.f32 %v3283, %v3296
        %v3305 = vadd.f32 %v3284, %v3298
        %v3306 = vadd.f32 %v3285, %v3300
        %v3307 = vld [vmem:[#allocation3 + $0x12] sm:$0xff]
        %v3308 = vld [vmem:[#allocation3 + $0x1a] sm:$0xff]
        %v3309 = vld [vmem:[#allocation3 + $0x22] sm:$0xff]
        %v3310 = vmul.f32 %v3307, %v2317
        %v3311 = vmul.f32 %v3308, %v2318
        %v3312 = vmul.f32 %v3309, %v2319
        %3316 = vrot.lane.b32.xlu0 %v3310, 64
        %v3317 = vpop.permute.xlu0 %3316
        %3318 = vrot.lane.b32.xlu0 %v3311, 64
        %v3319 = vpop.permute.xlu0 %3318
        %3320 = vrot.lane.b32.xlu0 %v3312, 64
        %v3321 = vpop.permute.xlu0 %3320
        %v3325 = vadd.f32 %v3304, %v3317
        %v3326 = vadd.f32 %v3305, %v3319
        %v3327 = vadd.f32 %v3306, %v3321
        %v3328 = vld [vmem:[#allocation3 + $0x13] sm:$0xff]
        %v3329 = vld [vmem:[#allocation3 + $0x1b] sm:$0xff]
        %v3330 = vld [vmem:[#allocation3 + $0x23] sm:$0xff]
        %v3331 = vmul.f32 %v3328, %v2194
        %v3332 = vmul.f32 %v3329, %v2195
        %v3333 = vmul.f32 %v3330, %v2196
        %3337 = vrot.lane.b32.xlu0 %v3331, 96
        %v3338 = vpop.permute.xlu0 %3337
        %3339 = vrot.lane.b32.xlu0 %v3332, 96
        %v3340 = vpop.permute.xlu0 %3339
        %3341 = vrot.lane.b32.xlu0 %v3333, 96
        %v3342 = vpop.permute.xlu0 %3341
        %v3346 = vadd.f32 %v3325, %v3338
        %v3347 = vadd.f32 %v3326, %v3340
        %v3348 = vadd.f32 %v3327, %v3342
        %3349 = vst [vmem:[#allocation5 + $0x18] sm:$0xff] %v3346
        %3350 = vst [vmem:[#allocation5 + $0x50] sm:$0xff] %v3347
        %3351 = vst [vmem:[#allocation5 + $0x88] sm:$0xff] %v3348
        %v3352 = vld [vmem:[#allocation3 + $0x14] sm:$0xff]
        %v3353 = vld [vmem:[#allocation3 + $0x1c] sm:$0xff]
        %v3354 = vld [vmem:[#allocation3 + $0x24] sm:$0xff]
        %v3355 = vmul.f32 %v3352, %v2221
        %v3356 = vmul.f32 %v3353, %v2222
        %v3357 = vmul.f32 %v3354, %v2223
        %v3358 = vadd.f32 %v3355, 0.0
        %v3359 = vadd.f32 %v3356, 0.0
        %v3360 = vadd.f32 %v3357, 0.0
        %v3361 = vld [vmem:[#allocation3 + $0x15] sm:$0xff]
        %v3362 = vld [vmem:[#allocation3 + $0x1d] sm:$0xff]
        %v3363 = vld [vmem:[#allocation3 + $0x25] sm:$0xff]
        %3367 = vrot.lane.b32.xlu0 %v3361, 32
        %v3368 = vpop.permute.xlu0 %3367
        %3369 = vrot.lane.b32.xlu0 %v3362, 32
        %v3370 = vpop.permute.xlu0 %3369
        %3371 = vrot.lane.b32.xlu0 %v3363, 32
        %v3372 = vpop.permute.xlu0 %3371
        %v3376 = vadd.f32 %v3358, %v3368
        %v3377 = vadd.f32 %v3359, %v3370
        %v3378 = vadd.f32 %v3360, %v3372
        %v3379 = vld [vmem:[#allocation3 + $0x16] sm:$0xff]
        %v3380 = vld [vmem:[#allocation3 + $0x1e] sm:$0xff]
        %v3381 = vld [vmem:[#allocation3 + $0x26] sm:$0xff]
        %v3382 = vmul.f32 %v3379, %v2278
        %v3383 = vmul.f32 %v3380, %v2279
        %v3384 = vmul.f32 %v3381, %v2280
        %3388 = vrot.lane.b32.xlu0 %v3382, 64
        %v3389 = vpop.permute.xlu0 %3388
        %3390 = vrot.lane.b32.xlu0 %v3383, 64
        %v3391 = vpop.permute.xlu0 %3390
        %3392 = vrot.lane.b32.xlu0 %v3384, 64
        %v3393 = vpop.permute.xlu0 %3392
        %v3397 = vadd.f32 %v3376, %v3389
        %v3398 = vadd.f32 %v3377, %v3391
        %v3399 = vadd.f32 %v3378, %v3393
        %v3400 = vld [vmem:[#allocation3 + $0x17] sm:$0xff]
        %v3401 = vld [vmem:[#allocation3 + $0x1f] sm:$0xff]
        %v3402 = vld [vmem:[#allocation3 + $0x27] sm:$0xff]
        %v3403 = vmul.f32 %v3400, %v2317
        %v3404 = vmul.f32 %v3401, %v2318
        %v3405 = vmul.f32 %v3402, %v2319
        %3409 = vrot.lane.b32.xlu0 %v3403, 96
        %v3410 = vpop.permute.xlu0 %3409
        %3411 = vrot.lane.b32.xlu0 %v3404, 96
        %v3412 = vpop.permute.xlu0 %3411
        %3413 = vrot.lane.b32.xlu0 %v3405, 96
        %v3414 = vpop.permute.xlu0 %3413
        %v3418 = vadd.f32 %v3397, %v3410
        %v3419 = vadd.f32 %v3398, %v3412
        %v3420 = vadd.f32 %v3399, %v3414
        %3421 = vst [vmem:[#allocation5 + $0x20] sm:$0xff] %v3418
        %3422 = vst [vmem:[#allocation5 + $0x58] sm:$0xff] %v3419
        %3423 = vst [vmem:[#allocation5 + $0x90] sm:$0xff] %v3420
        %v3424 = vld [vmem:[#allocation3 + $0x18] sm:$0xff]
        %v3425 = vld [vmem:[#allocation3 + $0x20] sm:$0xff]
        %v3426 = vld [vmem:[#allocation3 + $0x28] sm:$0xff]
        %v3427 = vmul.f32 %v3424, %v2194
        %v3428 = vmul.f32 %v3425, %v2195
        %v3429 = vmul.f32 %v3426, %v2196
        %v3430 = vadd.f32 %v3427, 0.0
        %v3431 = vadd.f32 %v3428, 0.0
        %v3432 = vadd.f32 %v3429, 0.0
        %v3433 = vld [vmem:[#allocation3 + $0x19] sm:$0xff]
        %v3434 = vld [vmem:[#allocation3 + $0x21] sm:$0xff]
        %v3435 = vld [vmem:[#allocation3 + $0x29] sm:$0xff]
        %v3436 = vmul.f32 %v3433, %v2221
        %v3437 = vmul.f32 %v3434, %v2222
        %v3438 = vmul.f32 %v3435, %v2223
        %3442 = vrot.lane.b32.xlu0 %v3436, 32
        %v3443 = vpop.permute.xlu0 %3442
        %3444 = vrot.lane.b32.xlu0 %v3437, 32
        %v3445 = vpop.permute.xlu0 %3444
        %3446 = vrot.lane.b32.xlu0 %v3438, 32
        %v3447 = vpop.permute.xlu0 %3446
        %v3451 = vadd.f32 %v3430, %v3443
        %v3452 = vadd.f32 %v3431, %v3445
        %v3453 = vadd.f32 %v3432, %v3447
        %v3454 = vld [vmem:[#allocation3 + $0x1a] sm:$0xff]
        %v3455 = vld [vmem:[#allocation3 + $0x22] sm:$0xff]
        %v3456 = vld [vmem:[#allocation3 + $0x2a] sm:$0xff]
        %3460 = vrot.lane.b32.xlu0 %v3454, 64
        %v3461 = vpop.permute.xlu0 %3460
        %3462 = vrot.lane.b32.xlu0 %v3455, 64
        %v3463 = vpop.permute.xlu0 %3462
        %3464 = vrot.lane.b32.xlu0 %v3456, 64
        %v3465 = vpop.permute.xlu0 %3464
        %v3469 = vadd.f32 %v3451, %v3461
        %v3470 = vadd.f32 %v3452, %v3463
        %v3471 = vadd.f32 %v3453, %v3465
        %v3472 = vld [vmem:[#allocation3 + $0x1b] sm:$0xff]
        %v3473 = vld [vmem:[#allocation3 + $0x23] sm:$0xff]
        %v3474 = vld [vmem:[#allocation3 + $0x2b] sm:$0xff]
        %v3475 = vmul.f32 %v3472, %v2278
        %v3476 = vmul.f32 %v3473, %v2279
        %v3477 = vmul.f32 %v3474, %v2280
        %3481 = vrot.lane.b32.xlu0 %v3475, 96
        %v3482 = vpop.permute.xlu0 %3481
        %3483 = vrot.lane.b32.xlu0 %v3476, 96
        %v3484 = vpop.permute.xlu0 %3483
        %3485 = vrot.lane.b32.xlu0 %v3477, 96
        %v3486 = vpop.permute.xlu0 %3485
        %v3490 = vadd.f32 %v3469, %v3482
        %v3491 = vadd.f32 %v3470, %v3484
        %v3492 = vadd.f32 %v3471, %v3486
        %3493 = vst [vmem:[#allocation5 + $0x28] sm:$0xff] %v3490
        %3494 = vst [vmem:[#allocation5 + $0x60] sm:$0xff] %v3491
        %3495 = vst [vmem:[#allocation5 + $0x98] sm:$0xff] %v3492
        %v3496 = vld [vmem:[#allocation3 + $0x1c] sm:$0xff]
        %v3497 = vld [vmem:[#allocation3 + $0x24] sm:$0xff]
        %v3498 = vld [vmem:[#allocation3 + $0x2c] sm:$0xff]
        %v3499 = vmul.f32 %v3496, %v2317
        %v3500 = vmul.f32 %v3497, %v2318
        %v3501 = vmul.f32 %v3498, %v2319
        %v3502 = vadd.f32 %v3499, 0.0
        %v3503 = vadd.f32 %v3500, 0.0
        %v3504 = vadd.f32 %v3501, 0.0
        %3505 = vst [vmem:[#allocation5 + $0x30] sm:$0xff] %v3502
        %3506 = vst [vmem:[#allocation5 + $0x68] sm:$0xff] %v3503
        %3507 = vst [vmem:[#allocation5 + $0xa0] sm:$0xff] %v3504
        %v3508 = vld [vmem:[#allocation5] sm:$0xff]
        %v3509 = vld [vmem:[#allocation5 + $0x8] sm:$0xff]
        %v3510 = vld [vmem:[#allocation5 + $0x10] sm:$0xff]
        %v3511 = vld [vmem:[#allocation5 + $0x18] sm:$0xff]
        %v3512 = vld [vmem:[#allocation5 + $0x20] sm:$0xff]
        %v3513 = vld [vmem:[#allocation5 + $0x28] sm:$0xff]
        %v3514 = vld [vmem:[#allocation5 + $0x30] sm:$0xff]
        %v3515 = vld [vmem:[#allocation5 + $0x38] sm:$0xff]
        %v3516 = vld [vmem:[#allocation5 + $0x40] sm:$0xff]
        %v3517 = vld [vmem:[#allocation5 + $0x48] sm:$0xff]
        %v3518 = vld [vmem:[#allocation5 + $0x50] sm:$0xff]
        %v3519 = vld [vmem:[#allocation5 + $0x58] sm:$0xff]
        %v3520 = vld [vmem:[#allocation5 + $0x60] sm:$0xff]
        %v3521 = vld [vmem:[#allocation5 + $0x68] sm:$0xff]
        %v3522 = vld [vmem:[#allocation5 + $0x70] sm:$0xff]
        %v3523 = vld [vmem:[#allocation5 + $0x78] sm:$0xff]
        %v3524 = vld [vmem:[#allocation5 + $0x80] sm:$0xff]
        %v3525 = vld [vmem:[#allocation5 + $0x88] sm:$0xff]
        %v3526 = vld [vmem:[#allocation5 + $0x90] sm:$0xff]
        %v3527 = vld [vmem:[#allocation5 + $0x98] sm:$0xff]
        %v3528 = vld [vmem:[#allocation5 + $0xa0] sm:$0xff]
        %v3529 = vld [vmem:[#allocation13] sm:$0xff]
        %v3530 = vld [vmem:[#allocation13 + $0x8] sm:$0xff]
        %v3531 = vld [vmem:[#allocation13 + $0x10] sm:$0xff]
        %v3532 = vld [vmem:[#allocation13 + $0x18] sm:$0xff]
        %v3533 = vld [vmem:[#allocation13 + $0x20] sm:$0xff]
        %v3534 = vld [vmem:[#allocation13 + $0x28] sm:$0xff]
        %v3535 = vld [vmem:[#allocation13 + $0x30] sm:$0xff]
        %v3536 = vld [vmem:[#allocation13 + $0x38] sm:$0xff]
        %v3537 = vld [vmem:[#allocation13 + $0x40] sm:$0xff]
        %v3538 = vld [vmem:[#allocation13 + $0x48] sm:$0xff]
        %v3539 = vld [vmem:[#allocation13 + $0x50] sm:$0xff]
        %v3540 = vld [vmem:[#allocation13 + $0x58] sm:$0xff]
        %v3541 = vld [vmem:[#allocation13 + $0x60] sm:$0xff]
        %v3542 = vld [vmem:[#allocation13 + $0x68] sm:$0xff]
        %v3543 = vld [vmem:[#allocation13 + $0x70] sm:$0xff]
        %v3544 = vld [vmem:[#allocation13 + $0x78] sm:$0xff]
        %v3545 = vld [vmem:[#allocation13 + $0x80] sm:$0xff]
        %v3546 = vld [vmem:[#allocation13 + $0x88] sm:$0xff]
        %v3547 = vld [vmem:[#allocation13 + $0x90] sm:$0xff]
        %v3548 = vld [vmem:[#allocation13 + $0x98] sm:$0xff]
        %v3549 = vld [vmem:[#allocation13 + $0xa0] sm:$0xff]
        %v3550 = vld [vmem:[#allocation13 + $0xa8] sm:$0xff]
        %v3551 = vld [vmem:[#allocation13 + $0xb0] sm:$0xff]
        %v3552 = vld [vmem:[#allocation13 + $0xb8] sm:$0xff]
        %v3553 = vld [vmem:[#allocation13 + $0xc0] sm:$0xff]
        %v3554 = vld [vmem:[#allocation13 + $0xc8] sm:$0xff]
        %v3555 = vld [vmem:[#allocation13 + $0xd0] sm:$0xff]
        %v3556 = vld [vmem:[#allocation13 + $0xd8] sm:$0xff]
        %v3557 = vld [vmem:[#allocation13 + $0xe0] sm:$0xff]
        %v3558 = vld [vmem:[#allocation13 + $0xe8] sm:$0xff]
        %v3559 = vld [vmem:[#allocation13 + $0xf0] sm:$0xff]
        %v3560 = vld [vmem:[#allocation13 + $0xf8] sm:$0xff]
        %v3561 = vld [vmem:[#allocation13 + $0x100] sm:$0xff]
        %v3562 = vld [vmem:[#allocation13 + $0x108] sm:$0xff]
        %v3563 = vld [vmem:[#allocation13 + $0x110] sm:$0xff]
        %v3564 = vld [vmem:[#allocation13 + $0x118] sm:$0xff]
        %v3565 = vld [vmem:[#allocation13 + $0x120] sm:$0xff]
        %v3566 = vld [vmem:[#allocation13 + $0x128] sm:$0xff]
        %v3567 = vld [vmem:[#allocation13 + $0x130] sm:$0xff]
        %v3568 = vld [vmem:[#allocation13 + $0x138] sm:$0xff]
        %v3569 = vld [vmem:[#allocation13 + $0x140] sm:$0xff]
        %v3570 = vld [vmem:[#allocation13 + $0x148] sm:$0xff]
        %v3571 = vld [vmem:[#allocation13 + $0x150] sm:$0xff]
        %v3572 = vld [vmem:[#allocation13 + $0x158] sm:$0xff]
        %v3573 = vld [vmem:[#allocation13 + $0x160] sm:$0xff]
        %v3574 = vld [vmem:[#allocation13 + $0x168] sm:$0xff]
        %v3575 = vld [vmem:[#allocation13 + $0x170] sm:$0xff]
        %v3576 = vld [vmem:[#allocation13 + $0x178] sm:$0xff]
        %v3577 = vld [vmem:[#allocation13 + $0x180] sm:$0xff]
        %v3578 = vld [vmem:[#allocation13 + $0x188] sm:$0xff]
        %v3579 = vld [vmem:[#allocation13 + $0x190] sm:$0xff]
        %v3580 = vld [vmem:[#allocation13 + $0x198] sm:$0xff]
        %v3581 = vld [vmem:[#allocation13 + $0x1a0] sm:$0xff]
        %v3582 = vld [vmem:[#allocation13 + $0x1a8] sm:$0xff]
        %v3583 = vld [vmem:[#allocation13 + $0x1b0] sm:$0xff]
        %v3584 = vld [vmem:[#allocation13 + $0x1b8] sm:$0xff]
        %v3585 = vld [vmem:[#allocation13 + $0x1c0] sm:$0xff]
        %v3586 = vld [vmem:[#allocation13 + $0x1c8] sm:$0xff]
        %v3587 = vld [vmem:[#allocation13 + $0x1d0] sm:$0xff]
        %v3588 = vld [vmem:[#allocation13 + $0x1d8] sm:$0xff]
        %v3589 = vld [vmem:[#allocation13 + $0x1e0] sm:$0xff]
        %v3590 = vld [vmem:[#allocation13 + $0x1e8] sm:$0xff]
        %v3591 = vld [vmem:[#allocation13 + $0x1f0] sm:$0xff]
        %v3592 = vld [vmem:[#allocation13 + $0x1f8] sm:$0xff]
        %v3593 = vld [vmem:[#allocation13 + $0x200] sm:$0xff]
        %v3594 = vld [vmem:[#allocation13 + $0x208] sm:$0xff]
        %v3595 = vld [vmem:[#allocation13 + $0x210] sm:$0xff]
        %v3596 = vld [vmem:[#allocation13 + $0x218] sm:$0xff]
        %v3597 = vld [vmem:[#allocation13 + $0x220] sm:$0xff]
        %v3598 = vld [vmem:[#allocation13 + $0x228] sm:$0xff]
        %v3599 = vld [vmem:[#allocation13 + $0x230] sm:$0xff]
        %v3600 = vld [vmem:[#allocation13 + $0x238] sm:$0xff]
        %v3601 = vld [vmem:[#allocation13 + $0x240] sm:$0xff]
        %v3602 = vld [vmem:[#allocation13 + $0x248] sm:$0xff]
        %v3603 = vld [vmem:[#allocation13 + $0x250] sm:$0xff]
        %v3604 = vld [vmem:[#allocation13 + $0x258] sm:$0xff]
        %v3605 = vld [vmem:[#allocation13 + $0x260] sm:$0xff]
        %v3606 = vld [vmem:[#allocation13 + $0x268] sm:$0xff]
        %v3607 = vld [vmem:[#allocation13 + $0x270] sm:$0xff]
        %v3608 = vld [vmem:[#allocation13 + $0x278] sm:$0xff]
        %v3609 = vld [vmem:[#allocation13 + $0x280] sm:$0xff]
        %v3610 = vld [vmem:[#allocation13 + $0x288] sm:$0xff]
        %v3611 = vld [vmem:[#allocation13 + $0x290] sm:$0xff]
        %v3612 = vld [vmem:[#allocation13 + $0x298] sm:$0xff]
        %v3613 = vld [vmem:[#allocation13 + $0x2a0] sm:$0xff]
        %v3614 = vld [vmem:[#allocation13 + $0x2a8] sm:$0xff]
        %v3615 = vld [vmem:[#allocation13 + $0x2b0] sm:$0xff]
        %v3616 = vld [vmem:[#allocation13 + $0x2b8] sm:$0xff]
        %v3617 = vld [vmem:[#allocation13 + $0x2c0] sm:$0xff]
        %v3618 = vld [vmem:[#allocation13 + $0x2c8] sm:$0xff]
        %v3619 = vld [vmem:[#allocation13 + $0x2d0] sm:$0xff]
        %v3620 = vld [vmem:[#allocation13 + $0x2d8] sm:$0xff]
        %v3621 = vld [vmem:[#allocation13 + $0x2e0] sm:$0xff]
        %v3622 = vld [vmem:[#allocation13 + $0x2e8] sm:$0xff]
        %v3623 = vld [vmem:[#allocation13 + $0x2f0] sm:$0xff]
        %v3624 = vld [vmem:[#allocation13 + $0x2f8] sm:$0xff]
        %v3625 = vld [vmem:[#allocation13 + $0x300] sm:$0xff]
        %v3626 = vld [vmem:[#allocation13 + $0x308] sm:$0xff]
        %v3627 = vld [vmem:[#allocation13 + $0x310] sm:$0xff]
        %v3628 = vld [vmem:[#allocation13 + $0x318] sm:$0xff]
        %v3629 = vld [vmem:[#allocation13 + $0x320] sm:$0xff]
        %v3630 = vld [vmem:[#allocation13 + $0x328] sm:$0xff]
        %v3631 = vld [vmem:[#allocation13 + $0x330] sm:$0xff]
        %v3632 = vld [vmem:[#allocation13 + $0x338] sm:$0xff]
        %v3633 = vld [vmem:[#allocation13 + $0x340] sm:$0xff]
        %v3634 = vld [vmem:[#allocation13 + $0x348] sm:$0xff]
        %v3635 = vld [vmem:[#allocation13 + $0x350] sm:$0xff]
        %v3636 = vld [vmem:[#allocation13 + $0x358] sm:$0xff]
        %v3637 = vld [vmem:[#allocation13 + $0x360] sm:$0xff]
        %v3638 = vld [vmem:[#allocation13 + $0x368] sm:$0xff]
        %v3639 = vld [vmem:[#allocation13 + $0x370] sm:$0xff]
        %v3640 = vld [vmem:[#allocation13 + $0x378] sm:$0xff]
        %v3641 = vld [vmem:[%s5] sm:$0x1]
        %v3643 = vlaneseq
        %v3644 = vshrl.u32 %v3643, 7
        %v3645 = vsub.s32 0, %v3644
        %v3646 = vrot.slane %v3641, %v3645
        %3648 = vmatprep.subr.mxu0 0.0
        %3649 = vmatpush1.msra.mxu0 %v3529
        %3650 = vmatprep.subr.mxu0 0.0
        %3651 = vmatpush1.msra.mxu0 %v3530
        %3652 = vmatprep.subr.mxu0 0.0
        %3653 = vmatpush1.msra.mxu0 %v3531
        %3654 = vmatprep.subr.mxu0 0.0
        %3655 = vmatpush1.msra.mxu0 %v3532
        %3656 = vmatprep.subr.mxu0 0.0
        %3657 = vmatpush1.msra.mxu0 %v3533
        %3658 = vmatprep.subr.mxu0 0.0
        %3659 = vmatpush1.msra.mxu0 %v3534
        %3660 = vmatprep.subr.mxu0 0.0
        %3661 = vmatpush1.msra.mxu0 %v3535
        %3662 = vmatprep.subr.mxu0 0.0
        %3663 = vmatpush1.msra.mxu0 %v3536
        %3664 = vmatprep.subr.mxu0 0.0
        %3665 = vmatpush1.msra.mxu0 %v3537
        %3666 = vmatprep.subr.mxu0 0.0
        %3667 = vmatpush1.msra.mxu0 %v3538
        %3668 = vmatprep.subr.mxu0 0.0
        %3669 = vmatpush1.msra.mxu0 %v3539
        %3670 = vmatprep.subr.mxu0 0.0
        %3671 = vmatpush1.msra.mxu0 %v3540
        %3672 = vmatprep.subr.mxu0 0.0
        %3673 = vmatpush1.msra.mxu0 %v3541
        %3674 = vmatprep.subr.mxu0 0.0
        %3675 = vmatpush1.msra.mxu0 %v3542
        %3676 = vmatprep.subr.mxu0 0.0
        %3677 = vmatpush1.msra.mxu0 %v3543
        %3678 = vmatprep.subr.mxu0 0.0
        %3679 = vmatpush1.msra.mxu0 %v3544
        %3680 = vmatprep.subr.mxu0 0.0
        %3681 = vmatpush1.msra.mxu0 %v3545
        %3682 = vmatprep.subr.mxu0 0.0
        %3683 = vmatpush1.msra.mxu0 %v3546
        %3684 = vmatprep.subr.mxu0 0.0
        %3685 = vmatpush1.msra.mxu0 %v3547
        %3686 = vmatprep.subr.mxu0 0.0
        %3687 = vmatpush1.msra.mxu0 %v3548
        %3688 = vmatprep.subr.mxu0 0.0
        %3689 = vmatpush1.msra.mxu0 %v3549
        %3690 = vmatprep.subr.mxu0 0.0
        %3691 = vmatpush1.msra.mxu0 %v3550
        %3692 = vmatprep.subr.mxu0 0.0
        %3693 = vmatpush1.msra.mxu0 %v3551
        %3694 = vmatprep.subr.mxu0 0.0
        %3695 = vmatpush1.msra.mxu0 %v3552
        %3696 = vmatprep.subr.mxu0 0.0
        %3697 = vmatpush1.msra.mxu0 %v3553
        %3698 = vmatprep.subr.mxu0 0.0
        %3699 = vmatpush1.msra.mxu0 %v3554
        %3700 = vmatprep.subr.mxu0 0.0
        %3701 = vmatpush1.msra.mxu0 %v3555
        %3702 = vmatprep.subr.mxu0 0.0
        %3703 = vmatpush1.msra.mxu0 %v3556
        %3704 = vmatprep.subr.mxu0 0.0
        %3705 = vmatpush1.msra.mxu0 %v3557
        %3706 = vmatprep.subr.mxu0 0.0
        %3707 = vmatpush1.msra.mxu0 %v3558
        %3708 = vmatprep.subr.mxu0 0.0
        %3709 = vmatpush1.msra.mxu0 %v3559
        %3710 = vmatprep.subr.mxu0 0.0
        %3711 = vmatpush1.msra.mxu0 %v3560
        %3712 = vmatprep.mubr.f32.mxu0 %v3509
        %3713 = vmatmul.mubr.f32.gmra.mrb[0].mxu0 %v3508
        %v3714 = vpop.f32.mrb[0].mxu0
        %v3715 = vadd.f32 %v3646, %v3714
        %v3716 = vpop.f32.mrb[0].mxu0
        %3717 = vmatprep.mubr.f32.mxu0 %v3516
        %3718 = vmatmul.mubr.f32.gmra.mrb[0].mxu0 %v3515
        %v3719 = vpop.f32.mrb[0].mxu0
        %v3720 = vadd.f32 %v3646, %v3719
        %v3721 = vpop.f32.mrb[0].mxu0
        %3722 = vmatprep.mubr.f32.mxu0 %v3523
        %3723 = vmatmul.mubr.f32.gmra.mrb[0].mxu0 %v3522
        %v3724 = vpop.f32.mrb[0].mxu0
        %v3725 = vpop.f32.mrb[0].mxu0
        %3726 = vdwg.mxu0
        %3727 = vmatprep.subr.mxu0 0.0
        %3728 = vmatpush1.msra.mxu0 %v3561
        %3729 = vmatprep.subr.mxu0 0.0
        %3730 = vmatpush1.msra.mxu0 %v3562
        %3731 = vmatprep.subr.mxu0 0.0
        %3732 = vmatpush1.msra.mxu0 %v3563
        %3733 = vmatprep.subr.mxu0 0.0
        %3734 = vmatpush1.msra.mxu0 %v3564
        %3735 = vmatprep.subr.mxu0 0.0
        %3736 = vmatpush1.msra.mxu0 %v3565
        %3737 = vmatprep.subr.mxu0 0.0
        %3738 = vmatpush1.msra.mxu0 %v3566
        %3739 = vmatprep.subr.mxu0 0.0
        %3740 = vmatpush1.msra.mxu0 %v3567
        %3741 = vmatprep.subr.mxu0 0.0
        %3742 = vmatpush1.msra.mxu0 %v3568
        %3743 = vmatprep.subr.mxu0 0.0
        %3744 = vmatpush1.msra.mxu0 %v3569
        %3745 = vmatprep.subr.mxu0 0.0
        %3746 = vmatpush1.msra.mxu0 %v3570
        %3747 = vmatprep.subr.mxu0 0.0
        %3748 = vmatpush1.msra.mxu0 %v3571
        %3749 = vmatprep.subr.mxu0 0.0
        %3750 = vmatpush1.msra.mxu0 %v3572
        %3751 = vmatprep.subr.mxu0 0.0
        %3752 = vmatpush1.msra.mxu0 %v3573
        %3753 = vmatprep.subr.mxu0 0.0
        %3754 = vmatpush1.msra.mxu0 %v3574
        %3755 = vmatprep.subr.mxu0 0.0
        %3756 = vmatpush1.msra.mxu0 %v3575
        %3757 = vmatprep.subr.mxu0 0.0
        %3758 = vmatpush1.msra.mxu0 %v3576
        %3759 = vmatprep.subr.mxu0 0.0
        %3760 = vmatpush1.msra.mxu0 %v3577
        %3761 = vmatprep.subr.mxu0 0.0
        %3762 = vmatpush1.msra.mxu0 %v3578
        %3763 = vmatprep.subr.mxu0 0.0
        %3764 = vmatpush1.msra.mxu0 %v3579
        %3765 = vmatprep.subr.mxu0 0.0
        %3766 = vmatpush1.msra.mxu0 %v3580
        %3767 = vmatprep.subr.mxu0 0.0
        %3768 = vmatpush1.msra.mxu0 %v3581
        %3769 = vmatprep.subr.mxu0 0.0
        %3770 = vmatpush1.msra.mxu0 %v3582
        %3771 = vmatprep.subr.mxu0 0.0
        %3772 = vmatpush1.msra.mxu0 %v3583
        %3773 = vmatprep.subr.mxu0 0.0
        %3774 = vmatpush1.msra.mxu0 %v3584
        %3775 = vmatprep.subr.mxu0 0.0
        %3776 = vmatpush1.msra.mxu0 %v3585
        %3777 = vmatprep.subr.mxu0 0.0
        %3778 = vmatpush1.msra.mxu0 %v3586
        %3779 = vmatprep.subr.mxu0 0.0
        %3780 = vmatpush1.msra.mxu0 %v3587
        %3781 = vmatprep.subr.mxu0 0.0
        %3782 = vmatpush1.msra.mxu0 %v3588
        %3783 = vmatprep.subr.mxu0 0.0
        %3784 = vmatpush1.msra.mxu0 %v3589
        %3785 = vmatprep.subr.mxu0 0.0
        %3786 = vmatpush1.msra.mxu0 %v3590
        %3787 = vmatprep.subr.mxu0 0.0
        %3788 = vmatpush1.msra.mxu0 %v3591
        %3789 = vmatprep.subr.mxu0 0.0
        %3790 = vmatpush1.msra.mxu0 %v3592
        %3791 = vmatprep.mubr.f32.mxu0 %v3511
        %3792 = vmatmul.mubr.f32.gmra.mrb[0].mxu0 %v3510
        %v3793 = vpop.f32.mrb[0].mxu0
        %v3794 = vadd.f32 %v3715, %v3793
        %v3795 = vpop.f32.mrb[0].mxu0
        %3796 = vmatprep.mubr.f32.mxu0 %v3518
        %3797 = vmatmul.mubr.f32.gmra.mrb[0].mxu0 %v3517
        %v3798 = vpop.f32.mrb[0].mxu0
        %v3799 = vadd.f32 %v3720, %v3798
        %v3800 = vpop.f32.mrb[0].mxu0
        %3801 = vmatprep.mubr.f32.mxu0 %v3525
        %3802 = vmatmul.mubr.f32.gmra.mrb[0].mxu0 %v3524
        %v3803 = vpop.f32.mrb[0].mxu0
        %v3804 = vpop.f32.mrb[0].mxu0
        %3805 = vdwg.mxu0
        %3806 = vmatprep.subr.mxu0 0.0
        %3807 = vmatpush1.msra.mxu0 %v3593
        %3808 = vmatprep.subr.mxu0 0.0
        %3809 = vmatpush1.msra.mxu0 %v3594
        %3810 = vmatprep.subr.mxu0 0.0
        %3811 = vmatpush1.msra.mxu0 %v3595
        %3812 = vmatprep.subr.mxu0 0.0
        %3813 = vmatpush1.msra.mxu0 %v3596
        %3814 = vmatprep.subr.mxu0 0.0
        %3815 = vmatpush1.msra.mxu0 %v3597
        %3816 = vmatprep.subr.mxu0 0.0
        %3817 = vmatpush1.msra.mxu0 %v3598
        %3818 = vmatprep.subr.mxu0 0.0
        %3819 = vmatpush1.msra.mxu0 %v3599
        %3820 = vmatprep.subr.mxu0 0.0
        %3821 = vmatpush1.msra.mxu0 %v3600
        %3822 = vmatprep.subr.mxu0 0.0
        %3823 = vmatpush1.msra.mxu0 %v3601
        %3824 = vmatprep.subr.mxu0 0.0
        %3825 = vmatpush1.msra.mxu0 %v3602
        %3826 = vmatprep.subr.mxu0 0.0
        %3827 = vmatpush1.msra.mxu0 %v3603
        %3828 = vmatprep.subr.mxu0 0.0
        %3829 = vmatpush1.msra.mxu0 %v3604
        %3830 = vmatprep.subr.mxu0 0.0
        %3831 = vmatpush1.msra.mxu0 %v3605
        %3832 = vmatprep.subr.mxu0 0.0
        %3833 = vmatpush1.msra.mxu0 %v3606
        %3834 = vmatprep.subr.mxu0 0.0
        %3835 = vmatpush1.msra.mxu0 %v3607
        %3836 = vmatprep.subr.mxu0 0.0
        %3837 = vmatpush1.msra.mxu0 %v3608
        %3838 = vmatprep.subr.mxu0 0.0
        %3839 = vmatpush1.msra.mxu0 %v3609
        %3840 = vmatprep.subr.mxu0 0.0
        %3841 = vmatpush1.msra.mxu0 %v3610
        %3842 = vmatprep.subr.mxu0 0.0
        %3843 = vmatpush1.msra.mxu0 %v3611
        %3844 = vmatprep.subr.mxu0 0.0
        %3845 = vmatpush1.msra.mxu0 %v3612
        %3846 = vmatprep.subr.mxu0 0.0
        %3847 = vmatpush1.msra.mxu0 %v3613
        %3848 = vmatprep.subr.mxu0 0.0
        %3849 = vmatpush1.msra.mxu0 %v3614
        %3850 = vmatprep.subr.mxu0 0.0
        %3851 = vmatpush1.msra.mxu0 %v3615
        %3852 = vmatprep.subr.mxu0 0.0
        %3853 = vmatpush1.msra.mxu0 %v3616
        %3854 = vmatprep.subr.mxu0 0.0
        %3855 = vmatpush1.msra.mxu0 %v3617
        %3856 = vmatprep.subr.mxu0 0.0
        %3857 = vmatpush1.msra.mxu0 %v3618
        %3858 = vmatprep.subr.mxu0 0.0
        %3859 = vmatpush1.msra.mxu0 %v3619
        %3860 = vmatprep.subr.mxu0 0.0
        %3861 = vmatpush1.msra.mxu0 %v3620
        %3862 = vmatprep.subr.mxu0 0.0
        %3863 = vmatpush1.msra.mxu0 %v3621
        %3864 = vmatprep.subr.mxu0 0.0
        %3865 = vmatpush1.msra.mxu0 %v3622
        %3866 = vmatprep.subr.mxu0 0.0
        %3867 = vmatpush1.msra.mxu0 %v3623
        %3868 = vmatprep.subr.mxu0 0.0
        %3869 = vmatpush1.msra.mxu0 %v3624
        %3870 = vmatprep.mubr.f32.mxu0 %v3513
        %3871 = vmatmul.mubr.f32.gmra.mrb[0].mxu0 %v3512
        %v3872 = vpop.f32.mrb[0].mxu0
        %v3873 = vadd.f32 %v3794, %v3872
        %v3874 = vpop.f32.mrb[0].mxu0
        %3875 = vmatprep.mubr.f32.mxu0 %v3520
        %3876 = vmatmul.mubr.f32.gmra.mrb[0].mxu0 %v3519
        %v3877 = vpop.f32.mrb[0].mxu0
        %v3878 = vadd.f32 %v3799, %v3877
        %v3879 = vpop.f32.mrb[0].mxu0
        %3880 = vmatprep.mubr.f32.mxu0 %v3527
        %3881 = vmatmul.mubr.f32.gmra.mrb[0].mxu0 %v3526
        %v3882 = vpop.f32.mrb[0].mxu0
        %v3883 = vpop.f32.mrb[0].mxu0
        %3884 = vdwg.mxu0
        %3885 = vmatprep.subr.mxu0 0.0
        %3886 = vmatpush1.msra.mxu0 %v3625
        %3887 = vmatprep.subr.mxu0 0.0
        %3888 = vmatpush1.msra.mxu0 %v3626
        %3889 = vmatprep.subr.mxu0 0.0
        %3890 = vmatpush1.msra.mxu0 %v3627
        %3891 = vmatprep.subr.mxu0 0.0
        %3892 = vmatpush1.msra.mxu0 %v3628
        %3893 = vmatprep.subr.mxu0 0.0
        %3894 = vmatpush1.msra.mxu0 %v3629
        %3895 = vmatprep.subr.mxu0 0.0
        %3896 = vmatpush1.msra.mxu0 %v3630
        %3897 = vmatprep.subr.mxu0 0.0
        %3898 = vmatpush1.msra.mxu0 %v3631
        %3899 = vmatprep.subr.mxu0 0.0
        %3900 = vmatpush1.msra.mxu0 %v3632
        %3901 = vmatprep.subr.mxu0 0.0
        %3902 = vmatpush1.msra.mxu0 %v3633
        %3903 = vmatprep.subr.mxu0 0.0
        %3904 = vmatpush1.msra.mxu0 %v3634
        %3905 = vmatprep.subr.mxu0 0.0
        %3906 = vmatpush1.msra.mxu0 %v3635
        %3907 = vmatprep.subr.mxu0 0.0
        %3908 = vmatpush1.msra.mxu0 %v3636
        %3909 = vmatprep.subr.mxu0 0.0
        %3910 = vmatpush1.msra.mxu0 %v3637
        %3911 = vmatprep.subr.mxu0 0.0
        %3912 = vmatpush1.msra.mxu0 %v3638
        %3913 = vmatprep.subr.mxu0 0.0
        %3914 = vmatpush1.msra.mxu0 %v3639
        %3915 = vmatprep.subr.mxu0 0.0
        %3916 = vmatpush1.msra.mxu0 %v3640
        %3917 = vmatprep.subr.mxu0 0.0
        %3918 = vmatpush1.msra.mxu0 0.0
        %3919 = vmatprep.subr.mxu0 0.0
        %3920 = vmatpush1.msra.mxu0 0.0
        %3921 = vmatprep.subr.mxu0 0.0
        %3922 = vmatpush1.msra.mxu0 0.0
        %3923 = vmatprep.subr.mxu0 0.0
        %3924 = vmatpush1.msra.mxu0 0.0
        %3925 = vmatprep.subr.mxu0 0.0
        %3926 = vmatpush1.msra.mxu0 0.0
        %3927 = vmatprep.subr.mxu0 0.0
        %3928 = vmatpush1.msra.mxu0 0.0
        %3929 = vmatprep.subr.mxu0 0.0
        %3930 = vmatpush1.msra.mxu0 0.0
        %3931 = vmatprep.subr.mxu0 0.0
        %3932 = vmatpush1.msra.mxu0 0.0
        %3933 = vmatprep.subr.mxu0 0.0
        %3934 = vmatpush1.msra.mxu0 0.0
        %3935 = vmatprep.subr.mxu0 0.0
        %3936 = vmatpush1.msra.mxu0 0.0
        %3937 = vmatprep.subr.mxu0 0.0
        %3938 = vmatpush1.msra.mxu0 0.0
        %3939 = vmatprep.subr.mxu0 0.0
        %3940 = vmatpush1.msra.mxu0 0.0
        %3941 = vmatprep.subr.mxu0 0.0
        %3942 = vmatpush1.msra.mxu0 0.0
        %3943 = vmatprep.subr.mxu0 0.0
        %3944 = vmatpush1.msra.mxu0 0.0
        %3945 = vmatprep.subr.mxu0 0.0
        %3946 = vmatpush1.msra.mxu0 0.0
        %3947 = vmatprep.subr.mxu0 0.0
        %3948 = vmatpush1.msra.mxu0 0.0
        %3949 = vmatprep.mubr.f32.mxu0 0.0
        %3950 = vmatmul.mubr.f32.gmra.mrb[0].mxu0 %v3514
        %v3951 = vpop.f32.mrb[0].mxu0
        %v3952 = vadd.f32 %v3873, %v3951
        %v3953 = vpop.f32.mrb[0].mxu0
        %3954 = vmatprep.mubr.f32.mxu0 0.0
        %3955 = vmatmul.mubr.f32.gmra.mrb[0].mxu0 %v3521
        %v3956 = vpop.f32.mrb[0].mxu0
        %v3957 = vadd.f32 %v3878, %v3956
        %v3958 = vpop.f32.mrb[0].mxu0
        %3959 = vmatprep.mubr.f32.mxu0 0.0
        %3960 = vmatmul.mubr.f32.gmra.mrb[0].mxu0 %v3528
        %v3961 = vpop.f32.mrb[0].mxu0
        %v3962 = vpop.f32.mrb[0].mxu0
        %3963 = vdwg.mxu0
        %s3964 = sadd.s32 %s2121, 1
        %s3965 = sld [smem:[#allocation6 + %s3964]]
        %v3966 = vstv %s3965
        %v3967 = vmul.f32 %v3966, %v3952
        %v3968 = vmul.f32 %v3966, %v3957
        %v3969 = vadd.f32 %v2126, %v3967
        %v3970 = vadd.f32 %v2127, %v3968
        %3971 = vst [vmem:[%s312] sm:$0xff] %v3969
        %3972 = vst [vmem:[%s312 + $0x8] sm:$0xff] %v3970
        %s3973 = sand.u32 %s164, 1
        %s3974 = scalar_lea.sflag [#allocation8], %s3973
        %s3975 = sand.u32 %s164, 1
        %s3976 = smul.addr %s3975, 16
        %s3977 = scalar_lea.vmem [#allocation14], %s3976
        // Predicated region
        $region61: #{run.1} parent=43 // pred_check
          %p3978 = pneg %p174
        $region62: #{run.1} parent=43 // pred_check_branch
          %3980 = sbr.rel (%p3978) target = $region64
        $region63: #{run.1} parent=43 // pred_region
          %s3982 = ssub.s32 256, 256
          %3983 = vsyncadd %s3974, %s3982
          %s3984 = smul.addr %s25, 2
          %s3985 = smul.addr %s3984, 128
          %s3986 = scalar_lea.hbm %s6, %s3985
          %s3987 = sshll.u32 %s3977, 4
          %s3988 = int_to_ptr.vmem [resolvable:$true] %s3987
          %3993 = dma.vmem_to_hbm [thread:$0]  %s3988, 256, %s3986, %s3974, 128, 128, 8
        $region64: #{run.1} parent=43 // pred_fallthru
          _
      $region44: #{run.1} parent=5 // pred_fallthru
        _
      %p3994 = scmp.le.s32.totalorder 2, %s20
      // Predicated region
      $region65: #{run.1} parent=5 // pred_check
        %p3995 = pneg %p3994
      $region66: #{run.1} parent=5 // pred_check_branch
        %3997 = sbr.rel (%p3995) target = $region68
      $region67: #{run.1} parent=5 // pred_region
        %s3998 = ssub.s32 %s20, 2
        // Predicated region
        $region69: #{run.1} parent=67 // pred_check
          %p3999 = pneg %p180
        $region70: #{run.1} parent=67 // pred_check_branch
          %4001 = sbr.rel (%p3999) target = $region72
        $region71: #{run.1} parent=67 // pred_region
          %s4002 = sand.u32 %s165, 1
          %s4003 = scalar_lea.sflag [#allocation8], %s4002
          %s4004 = sand.u32 %s165, 1
          %s4005 = smul.addr %s4004, 16
          %s4006 = scalar_lea.vmem [#allocation14], %s4005
          %4007 = dma.done %s4003, 256
        $region72: #{run.1} parent=67 // pred_fallthru
          _
      $region68: #{run.1} parent=5 // pred_fallthru
        _
    $region6: #{run.1} parent=1 // loop_footer
      %s24 = sadd.s32 1, %s20
    $region7: #{run.1} parent=1 // loop_footer_branch
      %19 = sbr.rel target = $region3
    $region8: #{run.1} parent=1 // loop_exit
      _
    %4008 = vsyncpa [#allocation7], 1
    %s4009 = scalar_lea.sflag [#allocation7], 1
    %4010 = vsyncpa %s4009, 1
    %4011 = vsyncpa [#allocation12], 1
    %4012 = vsyncpa [#allocation8], 1
    %s4013 = scalar_lea.sflag [#allocation8], 1
    %4014 = vsyncpa %s4013, 1
    %4015 = vsyncpa [#allocation9], 1
    %s4016 = scalar_lea.sflag [#allocation9], 1
    %4017 = vsyncpa %s4016, 1

</llo_original>
